<compile_context>
chip_gen: v5e
topology: v5e:2x2
jax: 0.10.0
libtpu: 0.0.40
codegen_flags: <defaults>
</compile_context>

<pallas_src>
import numpy as np
import jax
import jax.numpy as jnp
from jax.experimental import pallas as pl
from jax.experimental.pallas import tpu as pltpu


# ----------------------------------------------------------------------------
# Host-side precomputation of constants (replaces sympy / scipy.brentq)
# ----------------------------------------------------------------------------
def _sph_jn(n, r):
    """Spherical Bessel function j_n(r) via upward recurrence (numpy, f64)."""
    r = np.asarray(r, dtype=np.float64)
    j0 = np.sin(r) / r
    if n == 0:
        return j0
    j1 = np.sin(r) / (r * r) - np.cos(r) / r
    jm2, jm1 = j0, j1
    for l in range(2, n + 1):
        jl = (2.0 * l - 1.0) / r * jm1 - jm2
        jm2, jm1 = jm1, jl
    return jm1


def _bisect(f, a, b, tol=1e-13, maxiter=200):
    fa = f(a)
    for _ in range(maxiter):
        m = 0.5 * (a + b)
        fm = f(m)
        if fa * fm <= 0.0:
            b = m
        else:
            a, fa = m, fm
        if (b - a) < tol:
            break
    return 0.5 * (a + b)


def _jn_zeros(n, k):
    """First k zeros of j_l for l = 0..n-1 (mirrors Jn_zeros in the module)."""
    zerosj = np.zeros((n, k), dtype=np.float64)
    zerosj[0] = np.arange(1, k + 1) * np.pi
    points = np.arange(1, k + n) * np.pi
    racines = np.zeros(k + n - 1, dtype=np.float64)
    for i in range(1, n):
        for j in range(k + n - 1 - i):
            racines[j] = _bisect(lambda r: _sph_jn(i, r), points[j], points[j + 1])
        points = racines.copy()
        zerosj[i][:k] = racines[:k]
    return zerosj


def _precompute_constants(num_spherical, num_radial):
    zeros = _jn_zeros(num_spherical, num_radial)              # (n, k)
    norms = np.zeros_like(zeros)
    for l in range(num_spherical):
        for i in range(num_radial):
            norms[l, i] = 1.0 / np.sqrt(0.5 * _sph_jn(l + 1, zeros[l, i]) ** 2)
    sph_pref = np.array(
        [np.sqrt((2.0 * l + 1.0) / (4.0 * np.pi)) for l in range(num_spherical)],
        dtype=np.float64,
    )
    return zeros.astype(np.float32), norms.astype(np.float32), sph_pref.astype(np.float32)


# ----------------------------------------------------------------------------
# Pallas kernel (lane-dense: rows = (l, i) basis index, lanes = batch)
# ----------------------------------------------------------------------------
def _make_kernel(num_spherical, num_radial, cutoff):
    inv_cutoff = float(1.0 / cutoff)
    k = num_radial

    def kernel(zeros_ref, comb_ref, dist_ref, angle_ref, out_ref):
        # (1, TN) lane-dense inputs
        x = dist_ref[...] * inv_cutoff                 # scaled distance
        ct = jnp.cos(angle_ref[...])                   # cos(theta)

        zeros_col = zeros_ref[...]                     # (nk, 1)
        comb_col = comb_ref[...]                       # (nk, 1) = norm * sph_pref

        # Batched Bessel argument for ALL (l, i) pairs: one sin/cos/recip pass.
        t = zeros_col * x                              # (nk, TN)
        sin_t = jnp.sin(t)
        cos_t = jnp.cos(t)
        inv_t = 1.0 / t                                # hoisted reciprocal
        # TODO(synk): no guard for dist == 0 (t == 0) — matches the original
        # torch/sympy sin(x)/x formulas which also produce NaN there.

        p_prev2 = None
        p_prev1 = None
        for l in range(num_spherical):
            # --- Legendre polynomial P_l(cos theta), m = 0
            if l == 0:
                p_l = jnp.ones_like(ct)
            elif l == 1:
                p_l = ct
            else:
                p_l = ((2.0 * l - 1.0) * ct * p_prev1
                       - (l - 1.0) * p_prev2) * (1.0 / float(l))
            p_prev2, p_prev1 = p_prev1, p_l

            # --- spherical Bessel j_l(z_{l,i} * x) via upward recurrence
            r0, r1 = l * k, (l + 1) * k
            s = sin_t[r0:r1, :]
            it = inv_t[r0:r1, :]
            j_prev2 = s * it                           # j_0
            if l == 0:
                j_l = j_prev2
            else:
                c = cos_t[r0:r1, :]
                j_prev1 = (j_prev2 - c) * it           # j_1 = sin/t^2 - cos/t
                j_l = j_prev1
                for ll in range(2, l + 1):
                    j_l = (2.0 * ll - 1.0) * it * j_prev1 - j_prev2
                    j_prev2, j_prev1 = j_prev1, j_l

            # --- epilogue: rbf * sbf with folded constants, direct slab write
            out_ref[r0:r1, :] = (j_l * (comb_col[r0:r1, :] * p_l)).astype(out_ref.dtype)

    return kernel


def d_angle_emb_forward(dist, angle, *, num_radial, num_spherical, cutoff=8.0,
                        tile_n=1024):
    """Pallas equivalent of d_angle_emb(num_radial, num_spherical, cutoff)(dist, angle)."""
    assert num_radial <= 64
    N = dist.shape[0]
    nk = num_spherical * num_radial

    zeros_nk, norm_nk, sph_pref = _precompute_constants(num_spherical, num_radial)
    comb_nk = (norm_nk * sph_pref[:, None]).astype(np.float32)   # fold norm * prefactor

    zeros_col = jnp.asarray(zeros_nk.reshape(nk, 1), dtype=jnp.float32)
    comb_col = jnp.asarray(comb_nk.reshape(nk, 1), dtype=jnp.float32)

    # Pad the batch to a multiple of tile_n (safe pad values; rows sliced off).
    n_tiles = pl.cdiv(N, tile_n)
    n_pad = int(n_tiles) * tile_n
    pad = n_pad - N
    dist_row = jnp.pad(jnp.asarray(dist, jnp.float32).reshape(1, N),
                       ((0, 0), (0, pad)), constant_values=float(cutoff))
    angle_row = jnp.pad(jnp.asarray(angle, jnp.float32).reshape(1, N),
                        ((0, 0), (0, pad)), constant_values=0.0)

    kernel = _make_kernel(num_spherical, num_radial, cutoff)

    out_t = pl.pallas_call(
        kernel,
        out_shape=jax.ShapeDtypeStruct((nk, n_pad), jnp.float32),
        grid_spec=pltpu.PrefetchScalarGridSpec(
            num_scalar_prefetch=0,
            grid=(n_pad // tile_n,),
            in_specs=[
                pl.BlockSpec((nk, 1), lambda i: (0, 0)),       # Bessel zeros
                pl.BlockSpec((nk, 1), lambda i: (0, 0)),       # norm * sph prefactor
                pl.BlockSpec((1, tile_n), lambda i: (0, i)),   # dist (lane-dense)
                pl.BlockSpec((1, tile_n), lambda i: (0, i)),   # angle (lane-dense)
            ],
            out_specs=pl.BlockSpec((nk, tile_n), lambda i: (0, i)),
        ),
        compiler_params=pltpu.CompilerParams(
            dimension_semantics=("parallel",)),
    )(zeros_col, comb_col, dist_row, angle_row)

    out = out_t.T[:N]                                          # (N, nk), torch layout
    return out, (zeros_nk, norm_nk, sph_pref)


# ----------------------------------------------------------------------------
# Pure-numpy reference (same math, float64) for a correctness check
# ----------------------------------------------------------------------------
def _ref_forward(dist, angle, zeros_nk, norm_nk, sph_pref, num_spherical,
                 num_radial, cutoff):
    d = np.asarray(dist, dtype=np.float64) / cutoff
    ct = np.cos(np.asarray(angle, dtype=np.float64))
    outs = []
    p_prev2 = p_prev1 = None
    for l in range(num_spherical):
        if l == 0:
            p_l = np.ones_like(ct)
        elif l == 1:
            p_l = ct
        else:
            p_l = ((2.0 * l - 1.0) * ct * p_prev1 - (l - 1.0) * p_prev2) / float(l)
        p_prev2, p_prev1 = p_prev1, p_l
        sbf = sph_pref[l].astype(np.float64) * p_l                     # (N,)
        t = d[:, None] * zeros_nk[l].astype(np.float64)[None, :]       # (N, k)
        jl = _sph_jn(l, t)
        rbf = norm_nk[l].astype(np.float64) * jl
        outs.append(rbf * sbf[:, None])
    return np.concatenate(outs, axis=1)


if __name__ == "__main__":
    NUM_RADIAL = 6
    NUM_SPHERICAL = 3
    CUTOFF = 8.0
    N = 2500            # deliberately not a multiple of the tile size

    key = jax.random.PRNGKey(0)
    k1, k2 = jax.random.split(key)
    # distances in (0.5, CUTOFF), angles in (0, pi) -- typical geometric inputs
    dist = jax.random.uniform(k1, (N,), minval=0.5, maxval=CUTOFF, dtype=jnp.float32)
    angle = jax.random.uniform(k2, (N,), minval=0.0, maxval=np.pi, dtype=jnp.float32)

    out, (zeros_nk, norm_nk, sph_pref) = d_angle_emb_forward(
        dist, angle, num_radial=NUM_RADIAL, num_spherical=NUM_SPHERICAL,
        cutoff=CUTOFF)
    out = jax.block_until_ready(out)

    ref = _ref_forward(np.asarray(dist), np.asarray(angle), zeros_nk, norm_nk,
                       sph_pref, NUM_SPHERICAL, NUM_RADIAL, CUTOFF)
    # Tolerance accounts for f32 cancellation in the upward Bessel recurrence
    # at small t (same behaviour as the original f32 torch module).
    np.testing.assert_allclose(np.asarray(out), ref, rtol=1e-3, atol=1e-4)

    assert out.shape == (N, NUM_SPHERICAL * NUM_RADIAL)
    print("KERNEL_OK")
</pallas_src>

<mosaic_0001>
module attributes {stable_mosaic.version = 11 : i64} {
  func.func @kernel(%arg0: i32, %arg1: memref<18x1xf32, #tpu.memory_space<vmem>>, %arg2: memref<18x1xf32, #tpu.memory_space<vmem>>, %arg3: memref<1x1024xf32, #tpu.memory_space<vmem>>, %arg4: memref<1x1024xf32, #tpu.memory_space<vmem>>, %arg5: memref<18x1024xf32, #tpu.memory_space<vmem>>) attributes {dimension_semantics = [#tpu.dimension_semantics<parallel>], iteration_bounds = array<i64: 3>, scalar_prefetch = 0 : i64, scratch_operands = 0 : i64, tpu.core_type = #tpu.core_type<tc>, window_params = [{pipeline_mode = #tpu.pipeline_mode<synchronous>, transform_indices = @transform_0, window_bounds = array<i64: 18, 1>}, {pipeline_mode = #tpu.pipeline_mode<synchronous>, transform_indices = @transform_1, window_bounds = array<i64: 18, 1>}, {transform_indices = @transform_2, window_bounds = array<i64: 1, 1024>}, {transform_indices = @transform_3, window_bounds = array<i64: 1, 1024>}, {transform_indices = @transform_4, window_bounds = array<i64: 18, 1024>}]} {
    %c0 = arith.constant 0 : index
    %c0_0 = arith.constant 0 : index
    %0 = vector.load %arg3[%c0, %c0_0] : memref<1x1024xf32, #tpu.memory_space<vmem>>, vector<1x1024xf32>
    %cst = arith.constant 1.250000e-01 : f32
    %1 = vector.broadcast %cst : f32 to vector<1x1024xf32>
    %2 = arith.mulf %0, %1 : vector<1x1024xf32>
    %c0_1 = arith.constant 0 : index
    %c0_2 = arith.constant 0 : index
    %3 = vector.load %arg4[%c0_1, %c0_2] : memref<1x1024xf32, #tpu.memory_space<vmem>>, vector<1x1024xf32>
    %4 = math.cos %3 : vector<1x1024xf32>
    %c0_3 = arith.constant 0 : index
    %c0_4 = arith.constant 0 : index
    %5 = vector.load %arg1[%c0_3, %c0_4] : memref<18x1xf32, #tpu.memory_space<vmem>>, vector<18x1xf32>
    %c0_5 = arith.constant 0 : index
    %c0_6 = arith.constant 0 : index
    %6 = vector.load %arg2[%c0_5, %c0_6] : memref<18x1xf32, #tpu.memory_space<vmem>>, vector<18x1xf32>
    %7 = vector.broadcast %5 : vector<18x1xf32> to vector<18x1024xf32>
    %8 = vector.broadcast %2 : vector<1x1024xf32> to vector<18x1024xf32>
    %9 = arith.mulf %7, %8 : vector<18x1024xf32>
    %10 = math.sin %9 : vector<18x1024xf32>
    %11 = math.cos %9 : vector<18x1024xf32>
    %cst_7 = arith.constant 1.000000e+00 : f32
    %12 = vector.broadcast %cst_7 : f32 to vector<18x1024xf32>
    %13 = arith.divf %12, %9 : vector<18x1024xf32>
    %cst_8 = arith.constant 1.000000e+00 : f32
    %14 = vector.broadcast %cst_8 : f32 to vector<1x1024xf32>
    %15 = vector.extract_strided_slice %10 {offsets = [0, 0], sizes = [6, 1024], strides = [1, 1]} : vector<18x1024xf32> to vector<6x1024xf32>
    %16 = vector.extract_strided_slice %13 {offsets = [0, 0], sizes = [6, 1024], strides = [1, 1]} : vector<18x1024xf32> to vector<6x1024xf32>
    %17 = arith.mulf %15, %16 : vector<6x1024xf32>
    %18 = vector.extract_strided_slice %6 {offsets = [0, 0], sizes = [6, 1], strides = [1, 1]} : vector<18x1xf32> to vector<6x1xf32>
    %19 = vector.broadcast %18 : vector<6x1xf32> to vector<6x1024xf32>
    %20 = vector.broadcast %14 : vector<1x1024xf32> to vector<6x1024xf32>
    %21 = arith.mulf %19, %20 : vector<6x1024xf32>
    %22 = arith.mulf %17, %21 : vector<6x1024xf32>
    %c0_9 = arith.constant 0 : index
    %c0_10 = arith.constant 0 : index
    %23 = vector.load %arg5[%c0_9, %c0_10] : memref<18x1024xf32, #tpu.memory_space<vmem>>, vector<6x1024xf32>
    tpu.vector_store %arg5[%c0_9, %c0_10], %22 {strides = array<i32>} : memref<18x1024xf32, #tpu.memory_space<vmem>>, vector<6x1024xf32>,
    %24 = vector.extract_strided_slice %10 {offsets = [6, 0], sizes = [6, 1024], strides = [1, 1]} : vector<18x1024xf32> to vector<6x1024xf32>
    %25 = vector.extract_strided_slice %13 {offsets = [6, 0], sizes = [6, 1024], strides = [1, 1]} : vector<18x1024xf32> to vector<6x1024xf32>
    %26 = arith.mulf %24, %25 : vector<6x1024xf32>
    %27 = vector.extract_strided_slice %11 {offsets = [6, 0], sizes = [6, 1024], strides = [1, 1]} : vector<18x1024xf32> to vector<6x1024xf32>
    %28 = arith.subf %26, %27 : vector<6x1024xf32>
    %29 = arith.mulf %28, %25 : vector<6x1024xf32>
    %30 = vector.extract_strided_slice %6 {offsets = [6, 0], sizes = [6, 1], strides = [1, 1]} : vector<18x1xf32> to vector<6x1xf32>
    %31 = vector.broadcast %30 : vector<6x1xf32> to vector<6x1024xf32>
    %32 = vector.broadcast %4 : vector<1x1024xf32> to vector<6x1024xf32>
    %33 = arith.mulf %31, %32 : vector<6x1024xf32>
    %34 = arith.mulf %29, %33 : vector<6x1024xf32>
    %c6 = arith.constant 6 : index
    %c0_11 = arith.constant 0 : index
    %35 = vector.load %arg5[%c6, %c0_11] : memref<18x1024xf32, #tpu.memory_space<vmem>>, vector<6x1024xf32>
    tpu.vector_store %arg5[%c6, %c0_11], %34 {strides = array<i32>} : memref<18x1024xf32, #tpu.memory_space<vmem>>, vector<6x1024xf32>,
    %cst_12 = arith.constant 3.000000e+00 : f32
    %36 = vector.broadcast %cst_12 : f32 to vector<1x1024xf32>
    %37 = arith.mulf %36, %4 : vector<1x1024xf32>
    %38 = arith.mulf %37, %4 : vector<1x1024xf32>
    %cst_13 = arith.constant 1.000000e+00 : f32
    %39 = vector.broadcast %cst_13 : f32 to vector<1x1024xf32>
    %40 = arith.mulf %39, %14 : vector<1x1024xf32>
    %41 = arith.subf %38, %40 : vector<1x1024xf32>
    %cst_14 = arith.constant 5.000000e-01 : f32
    %42 = vector.broadcast %cst_14 : f32 to vector<1x1024xf32>
    %43 = arith.mulf %41, %42 : vector<1x1024xf32>
    %44 = vector.extract_strided_slice %10 {offsets = [12, 0], sizes = [6, 1024], strides = [1, 1]} : vector<18x1024xf32> to vector<6x1024xf32>
    %45 = vector.extract_strided_slice %13 {offsets = [12, 0], sizes = [6, 1024], strides = [1, 1]} : vector<18x1024xf32> to vector<6x1024xf32>
    %46 = arith.mulf %44, %45 : vector<6x1024xf32>
    %47 = vector.extract_strided_slice %11 {offsets = [12, 0], sizes = [6, 1024], strides = [1, 1]} : vector<18x1024xf32> to vector<6x1024xf32>
    %48 = arith.subf %46, %47 : vector<6x1024xf32>
    %49 = arith.mulf %48, %45 : vector<6x1024xf32>
    %cst_15 = arith.constant 3.000000e+00 : f32
    %50 = vector.broadcast %cst_15 : f32 to vector<6x1024xf32>
    %51 = arith.mulf %50, %45 : vector<6x1024xf32>
    %52 = arith.mulf %51, %49 : vector<6x1024xf32>
    %53 = arith.subf %52, %46 : vector<6x1024xf32>
    %54 = vector.extract_strided_slice %6 {offsets = [12, 0], sizes = [6, 1], strides = [1, 1]} : vector<18x1xf32> to vector<6x1xf32>
    %55 = vector.broadcast %54 : vector<6x1xf32> to vector<6x1024xf32>
    %56 = vector.broadcast %43 : vector<1x1024xf32> to vector<6x1024xf32>
    %57 = arith.mulf %55, %56 : vector<6x1024xf32>
    %58 = arith.mulf %53, %57 : vector<6x1024xf32>
    %c12 = arith.constant 12 : index
    %c0_16 = arith.constant 0 : index
    %59 = vector.load %arg5[%c12, %c0_16] : memref<18x1024xf32, #tpu.memory_space<vmem>>, vector<6x1024xf32>
    tpu.vector_store %arg5[%c12, %c0_16], %58 {strides = array<i32>} : memref<18x1024xf32, #tpu.memory_space<vmem>>, vector<6x1024xf32>,
    return
  }
  func.func @transform_0(%arg0: i32) -> (i32, i32) {
    %c0_i32 = arith.constant 0 : i32
    %c0_i32_0 = arith.constant 0 : i32
    %c0_i32_1 = arith.constant 0 : i32
    return %c0_i32, %c0_i32_0 : i32, i32
  }
  func.func @transform_1(%arg0: i32) -> (i32, i32) {
    %c0_i32 = arith.constant 0 : i32
    %c0_i32_0 = arith.constant 0 : i32
    %c0_i32_1 = arith.constant 0 : i32
    return %c0_i32, %c0_i32_0 : i32, i32
  }
  func.func @transform_2(%arg0: i32) -> (i32, i32) {
    %c0_i32 = arith.constant 0 : i32
    %c0_i32_0 = arith.constant 0 : i32
    return %c0_i32, %arg0 : i32, i32
  }
  func.func @transform_3(%arg0: i32) -> (i32, i32) {
    %c0_i32 = arith.constant 0 : i32
    %c0_i32_0 = arith.constant 0 : i32
    return %c0_i32, %arg0 : i32, i32
  }
  func.func @transform_4(%arg0: i32) -> (i32, i32) {
    %c0_i32 = arith.constant 0 : i32
    %c0_i32_0 = arith.constant 0 : i32
    return %c0_i32, %arg0 : i32, i32
  }
}

</mosaic_0001>

<llo_original>
// kernel: tpu_custom_call.1
$region0: #{tpu_custom_call.1}
  #allocation0 [shape = 'u32[]', space=smem, size = 0x4, offset = 0x4, fixed_abs, tag = 'smem constant byte address 0x4 - core index']
  #allocation1 [shape = 'u32[72,128]{1,0:T(1,128)}', space=vmem, size = 0x9000, scoped, tag = 'internal scratch']
  %s0 = inlined_call_operand.vmem [shape: f32[18,1], index: 0, kind: input, shape index: {}]
  %s1 = inlined_call_operand.vmem [shape: f32[18,1], index: 1, kind: input, shape index: {}]
  %s2 = inlined_call_operand.vmem [shape: f32[1,3072], index: 2, kind: input, shape index: {}]
  %s3 = inlined_call_operand.vmem [shape: f32[1,3072], index: 3, kind: input, shape index: {}]
  %s4 = inlined_call_operand.hbm [shape: f32[18,3072], index: 4, kind: output, shape index: {}]
  %s5 = sld [smem:[#allocation0]]
  $region49: #{tpu_custom_call.1} parent=0
    _
  %s7 = ssub.s32 1, %s5
  %s8 = scalar_select 0, %s7, %s5
  $region1: #{tpu_custom_call.1} parent=0
    #allocation2 [shape = 'u8[196608]{0}', space=vmem, size = 0x30000, scoped, tag = 'output window, operand 0']
    #allocation3 [shape = 's32[2]{0}', space=sflag, size = 0x8, scoped, tag = 'scoped memory for tpu_custom_call.1']
    %9 = vsyncpa [#allocation3], 0
    %s10 = scalar_lea.sflag [#allocation3], 1
    %11 = vsyncpa %s10, 0
    loop: start=0, step=1, limit=5
    $region2: #{tpu_custom_call.1} parent=1 // loop_pre_header
      _
    $region3: #{tpu_custom_call.1} parent=1 // loop_header
      %s13 = sphi 0, %s17
      %p14 = scmp.ge.s32.totalorder %s13, 5
      %s21 = sphi 0, %s21
      %s23 = sphi 0, %s21
      %s24 = sphi 0, %s23
      %s38 = sphi 0, %s24
      %s42 = sphi 0, %s42
      %s44 = sphi 0, %s42
      %s45 = sphi 0, %s44
      %s59 = sphi 0, %s45
      %s65 = sphi 0, %s67
      %s68 = sphi 0, %s65
      %s69 = sphi 0, %s68
      %s85 = sphi 0, %s69
      %s91 = sphi 0, %s93
      %s94 = sphi 0, %s91
      %s95 = sphi 0, %s94
      %s111 = sphi 0, %s95
      %s117 = sphi 0, %s119
      %s120 = sphi 0, %s117
      %s121 = sphi 0, %s120
      %s137 = sphi 0, %s121
    $region4: #{tpu_custom_call.1} parent=1 // loop_header_branch
      %16 = sbr.rel (%p14) target = $region8
    $region5: #{tpu_custom_call.1} parent=1 // loop_body
      %s18 = ssub.s32 %s13, 1
      %s19 = ssub.s32 %s13, 2
      %s20 = sadd.s32 %s13, 1
      %s22 = sadd.s32 %s21, 1
      %p25 = scmp.eq.s32.totalorder %s13, 2
      %p26 = scmp.ne.s32.totalorder %s21, %s23
      %p27 = scmp.eq.s32.totalorder %s13, 0
      %p28 = por %p26, %p27
      %p29 = scmp.ne.s32.totalorder %s21, %s23
      %p30 = scmp.eq.s32.totalorder %s18, 2
      %p31 = por %p29, %p30
      %p32 = scmp.ne.s32.totalorder %s23, %s24
      %p33 = scmp.eq.s32.totalorder %s18, 0
      %p34 = por %p32, %p33
      %p35 = scmp.ne.s32.totalorder %s23, %s24
      %p36 = scmp.eq.s32.totalorder %s19, 2
      %p37 = por %p35, %p36
      %p39 = scmp.ne.s32.totalorder %s24, %s38
      %p40 = scmp.eq.s32.totalorder %s19, 0
      %p41 = por %p39, %p40
      %s43 = sadd.s32 %s42, 1
      %p46 = scmp.eq.s32.totalorder %s13, 2
      %p47 = scmp.ne.s32.totalorder %s42, %s44
      %p48 = scmp.eq.s32.totalorder %s13, 0
      %p49 = por %p47, %p48
      %p50 = scmp.ne.s32.totalorder %s42, %s44
      %p51 = scmp.eq.s32.totalorder %s18, 2
      %p52 = por %p50, %p51
      %p53 = scmp.ne.s32.totalorder %s44, %s45
      %p54 = scmp.eq.s32.totalorder %s18, 0
      %p55 = por %p53, %p54
      %p56 = scmp.ne.s32.totalorder %s44, %s45
      %p57 = scmp.eq.s32.totalorder %s19, 2
      %p58 = por %p56, %p57
      %p60 = scmp.ne.s32.totalorder %s45, %s59
      %p61 = scmp.eq.s32.totalorder %s19, 0
      %p62 = por %p60, %p61
      %s63 = ssub.s32 %s13, %s20
      %p64 = scmp.eq.s32.totalorder %s63, 0
      %s66 = sadd.s32 %s65, 1
      %s67 = scalar_select %p64, %s65, %s66
      %p70 = pneg %p64
      %p71 = scmp.eq.s32.totalorder %s13, 2
      %p72 = por %p70, %p71
      %p73 = scmp.ne.s32.totalorder %s65, %s68
      %p74 = scmp.eq.s32.totalorder %s13, 0
      %p75 = por %p73, %p74
      %p76 = scmp.ne.s32.totalorder %s65, %s68
      %p77 = scmp.eq.s32.totalorder %s18, 2
      %p78 = por %p76, %p77
      %p79 = scmp.ne.s32.totalorder %s68, %s69
      %p80 = scmp.eq.s32.totalorder %s18, 0
      %p81 = por %p79, %p80
      %p82 = scmp.ne.s32.totalorder %s68, %s69
      %p83 = scmp.eq.s32.totalorder %s19, 2
      %p84 = por %p82, %p83
      %p86 = scmp.ne.s32.totalorder %s69, %s85
      %p87 = scmp.eq.s32.totalorder %s19, 0
      %p88 = por %p86, %p87
      %s89 = ssub.s32 %s13, %s20
      %p90 = scmp.eq.s32.totalorder %s89, 0
      %s92 = sadd.s32 %s91, 1
      %s93 = scalar_select %p90, %s91, %s92
      %p96 = pneg %p90
      %p97 = scmp.eq.s32.totalorder %s13, 2
      %p98 = por %p96, %p97
      %p99 = scmp.ne.s32.totalorder %s91, %s94
      %p100 = scmp.eq.s32.totalorder %s13, 0
      %p101 = por %p99, %p100
      %p102 = scmp.ne.s32.totalorder %s91, %s94
      %p103 = scmp.eq.s32.totalorder %s18, 2
      %p104 = por %p102, %p103
      %p105 = scmp.ne.s32.totalorder %s94, %s95
      %p106 = scmp.eq.s32.totalorder %s18, 0
      %p107 = por %p105, %p106
      %p108 = scmp.ne.s32.totalorder %s94, %s95
      %p109 = scmp.eq.s32.totalorder %s19, 2
      %p110 = por %p108, %p109
      %p112 = scmp.ne.s32.totalorder %s95, %s111
      %p113 = scmp.eq.s32.totalorder %s19, 0
      %p114 = por %p112, %p113
      %s115 = ssub.s32 %s13, %s20
      %p116 = scmp.eq.s32.totalorder %s115, 0
      %s118 = sadd.s32 %s117, 1
      %s119 = scalar_select %p116, %s117, %s118
      %p122 = pneg %p116
      %p123 = scmp.eq.s32.totalorder %s13, 2
      %p124 = por %p122, %p123
      %p125 = scmp.ne.s32.totalorder %s117, %s120
      %p126 = scmp.eq.s32.totalorder %s13, 0
      %p127 = por %p125, %p126
      %p128 = scmp.ne.s32.totalorder %s117, %s120
      %p129 = scmp.eq.s32.totalorder %s18, 2
      %p130 = por %p128, %p129
      %p131 = scmp.ne.s32.totalorder %s120, %s121
      %p132 = scmp.eq.s32.totalorder %s18, 0
      %p133 = por %p131, %p132
      %p134 = scmp.ne.s32.totalorder %s120, %s121
      %p135 = scmp.eq.s32.totalorder %s19, 2
      %p136 = por %p134, %p135
      %p138 = scmp.ne.s32.totalorder %s121, %s137
      %p139 = scmp.eq.s32.totalorder %s19, 0
      %p140 = por %p138, %p139
      %p141 = scmp.le.s32.totalorder 1, %s13
      %p142 = scmp.lt.s32.totalorder %s13, 4
      %p143 = pnand %p141, %p142
      %p144 = pneg %p143
      // Predicated region
      $region9: #{tpu_custom_call.1} parent=5 // pred_check
        _
      $region10: #{tpu_custom_call.1} parent=5 // pred_check_branch
        %146 = sbr.rel (%p143) target = $region12
      $region11: #{tpu_custom_call.1} parent=5 // pred_region
        %s147 = ssub.s32 %s13, 1
        // Predicated region
        $region13: #{tpu_custom_call.1} parent=11 // pred_check
          %p148 = pneg %p34
        $region14: #{tpu_custom_call.1} parent=11 // pred_check_branch
          %150 = sbr.rel (%p148) target = $region16
        $region15: #{tpu_custom_call.1} parent=11 // pred_region
          _
        $region16: #{tpu_custom_call.1} parent=11 // pred_fallthru
          _
        // Predicated region
        $region17: #{tpu_custom_call.1} parent=11 // pred_check
          %p151 = pneg %p55
        $region18: #{tpu_custom_call.1} parent=11 // pred_check_branch
          %153 = sbr.rel (%p151) target = $region20
        $region19: #{tpu_custom_call.1} parent=11 // pred_region
          _
        $region20: #{tpu_custom_call.1} parent=11 // pred_fallthru
          _
      $region12: #{tpu_custom_call.1} parent=5 // pred_fallthru
        _
      %p154 = scmp.lt.s32.totalorder %s13, 3
      // Predicated region
      $region21: #{tpu_custom_call.1} parent=5 // pred_check
        %p155 = pneg %p154
      $region22: #{tpu_custom_call.1} parent=5 // pred_check_branch
        %157 = sbr.rel (%p155) target = $region24
      $region23: #{tpu_custom_call.1} parent=5 // pred_region
        // Predicated region
        $region25: #{tpu_custom_call.1} parent=23 // pred_check
          %p158 = pneg %p75
        $region26: #{tpu_custom_call.1} parent=23 // pred_check_branch
          %160 = sbr.rel (%p158) target = $region28
        $region27: #{tpu_custom_call.1} parent=23 // pred_region
          %s161 = smul.u32 8, %s13
          %p162 = scmp.lt.s32.totalorder %s161, 23
          %s163 = scalar_select %p162, %s161, 23
          %s164 = scalar_lea.vmem %s2, %s163
          %s165 = smul.u32 8, %s13
        $region28: #{tpu_custom_call.1} parent=23 // pred_fallthru
          _
        // Predicated region
        $region29: #{tpu_custom_call.1} parent=23 // pred_check
          %p166 = pneg %p101
        $region30: #{tpu_custom_call.1} parent=23 // pred_check_branch
          %168 = sbr.rel (%p166) target = $region32
        $region31: #{tpu_custom_call.1} parent=23 // pred_region
          %s169 = smul.u32 8, %s13
          %p170 = scmp.lt.s32.totalorder %s169, 23
          %s171 = scalar_select %p170, %s169, 23
          %s172 = scalar_lea.vmem %s3, %s171
          %s173 = smul.u32 8, %s13
        $region32: #{tpu_custom_call.1} parent=23 // pred_fallthru
          _
      $region24: #{tpu_custom_call.1} parent=5 // pred_fallthru
        _
      %p174 = scmp.le.s32.totalorder 1, %s13
      %p175 = scmp.lt.s32.totalorder %s13, 4
      %p176 = pnand %p174, %p175
      %p177 = pneg %p176
      // Predicated region
      $region33: #{tpu_custom_call.1} parent=5 // pred_check
        _
      $region34: #{tpu_custom_call.1} parent=5 // pred_check_branch
        %179 = sbr.rel (%p176) target = $region36
      $region35: #{tpu_custom_call.1} parent=5 // pred_region
        %s180 = ssub.s32 %s13, 1
        %p181 = pneg %p34
        %p182 = pneg %p31
        %p183 = pneg %p55
        %p184 = pneg %p52
        %s185 = smul.u32 8, %s18
        %p186 = scmp.lt.s32.totalorder %s185, 23
        %s187 = scalar_select %p186, %s185, 23
        %s188 = scalar_lea.vmem %s2, %s187
        %p189 = pneg %p81
        %p190 = pneg %p78
        %s191 = smul.u32 8, %s18
        %p192 = scmp.lt.s32.totalorder %s191, 23
        %s193 = scalar_select %p192, %s191, 23
        %s194 = scalar_lea.vmem %s3, %s193
        %p195 = pneg %p107
        %p196 = pneg %p104
        %p197 = pneg %p133
        %p198 = pneg %p130
        %s199 = sand.u32 %s120, 1
        %s200 = scalar_lea.sflag [#allocation3], %s199
        %s201 = sand.u32 %s120, 1
        %s202 = smul.addr %s201, 192
        %s203 = scalar_lea.vmem [#allocation2], %s202
        %s204 = smul.u32 8, %s18
        %p205 = scmp.lt.s32.totalorder %s204, 23
        %s206 = scalar_select %p205, %s204, 23
        %s207 = scalar_lea.vmem %s2, %s206
        %s208 = smul.u32 8, %s18
        %s209 = smul.u32 8, %s18
        %p210 = scmp.lt.s32.totalorder %s209, 23
        %s211 = scalar_select %p210, %s209, 23
        %s212 = scalar_lea.vmem %s3, %s211
        %s213 = smul.u32 8, %s18
        %s214 = smul.u32 8, %s18
        %v215 = vld [vmem:[%s207] sm:$0xff]
        %v216 = vmul.f32 %v215, 0.125
        %v217 = vld [vmem:[%s212] sm:$0xff]
        %v218 = vand.u32 2147483647, %v217
        %vm219 = vcmp.le.f32.partialorder %v218, 0.7853982
        %vm220 = vcmp.lt.s32.totalorder %v217, 0
        %v221 = vand.u32 %v217, 2139095040
        %v222 = vshrl.u32 %v221, 23
        %v223 = vsub.s32 %v222, 127
        %v224 = vand.u32 2147483647, %v217
        %v225 = vand.u32 %v224, 8388607
        %v226 = vor.u32 %v225, 8388608
        %v227 = vsub.s32 0, %v226
        %v228 = vadd.s32 %v223, 1
        %vm229 = vcmp.gt.s32.totalorder %v228, 0
        %v230 = vsel %vm229, %v228, 0
        %v231 = vshrl.u32 %v230, 5
        %v232 = vand.u32 %v230, 31
        %v233 = vsub.s32 32, %v232
        %v234 = vshrl.u32 683565275, %v233
        %v235 = vshll.u32 683565275, %v232
        %v236 = vshrl.u32 2475754826, %v233
        %v237 = vor.u32 %v235, %v236
        %v238 = vshll.u32 2475754826, %v232
        %v239 = vshrl.u32 2131351028, %v233
        %v240 = vor.u32 %v238, %v239
        %v241 = vshll.u32 2131351028, %v232
        %v242 = vshrl.u32 2102212464, %v233
        %v243 = vor.u32 %v241, %v242
        %v244 = vshll.u32 2102212464, %v232
        %v245 = vshrl.u32 920167782, %v233
        %v246 = vor.u32 %v244, %v245
        %v247 = vshll.u32 920167782, %v232
        %v248 = vshrl.u32 1326507024, %v233
        %v249 = vor.u32 %v247, %v248
        %vm250 = vcmp.lt.s32.totalorder %v231, 1
        %vm251 = vcmp.lt.s32.totalorder %v231, 2
        %vm252 = vcmp.lt.s32.totalorder %v231, 3
        %vm253 = vcmp.lt.s32.totalorder %v231, 4
        %v254 = vsel %vm250, %v234, %v237
        %v255 = vsel %vm253, %v243, 2102212464
        %v256 = vsel %vm252, %v240, %v255
        %v257 = vsel %vm251, %v254, %v256
        %v258 = vsel %vm250, %v237, %v240
        %v259 = vsel %vm253, %v246, 920167782
        %v260 = vsel %vm252, %v243, %v259
        %v261 = vsel %vm251, %v258, %v260
        %v262 = vsel %vm250, %v240, %v243
        %v263 = vsel %vm253, %v249, 1326507024
        %v264 = vsel %vm252, %v246, %v263
        %v265 = vsel %vm251, %v262, %v264
        %v266 = vshll.u32 %v226, 8
        %v267 = vand.u32 %v266, 65535
        %v268 = vshrl.u32 %v266, 16
        %v269 = vand.u32 %v265, 65535
        %v270 = vshrl.u32 %v265, 16
        %v271 = vmul.u32 %v267, %v269
        %v272 = vmul.u32 %v267, %v270
        %v273 = vmul.u32 %v268, %v269
        %v274 = vmul.u32 %v268, %v270
        %v275 = vshll.u32 %v272, 16
        %v276 = vshrl.u32 %v272, 16
        %v277 = vshll.u32 %v273, 16
        %v278 = vshrl.u32 %v273, 16
        %vm279 = vc.u32 %v271, %v275
        %v280 = vsel %vm279, 1, 0
        %v281 = vadd.s32 %v271, %v275
        %v282 = vadd.s32 %v274, %v280
        %vm283 = vc.u32 %v281, %v277
        %v284 = vsel %vm283, 1, 0
        %v285 = vadd.s32 %v281, %v277
        %v286 = vadd.s32 %v282, %v284
        %v287 = vadd.s32 %v286, %v276
        %v288 = vadd.s32 %v287, %v278
        %v289 = vand.u32 %v266, 65535
        %v290 = vshrl.u32 %v266, 16
        %v291 = vand.u32 %v261, 65535
        %v292 = vshrl.u32 %v261, 16
        %v293 = vmul.u32 %v289, %v291
        %v294 = vmul.u32 %v289, %v292
        %v295 = vmul.u32 %v290, %v291
        %v296 = vmul.u32 %v290, %v292
        %v297 = vshll.u32 %v294, 16
        %v298 = vshrl.u32 %v294, 16
        %v299 = vshll.u32 %v295, 16
        %v300 = vshrl.u32 %v295, 16
        %vm301 = vc.u32 %v293, %v297
        %v302 = vsel %vm301, 1, 0
        %v303 = vadd.s32 %v293, %v297
        %v304 = vadd.s32 %v296, %v302
        %vm305 = vc.u32 %v303, %v299
        %v306 = vsel %vm305, 1, 0
        %v307 = vadd.s32 %v303, %v299
        %v308 = vadd.s32 %v304, %v306
        %v309 = vadd.s32 %v308, %v298
        %v310 = vadd.s32 %v309, %v300
        %v311 = vmul.u32 %v266, %v257
        %v312 = vadd.s32 %v288, %v307
        %vm313 = vc.u32 %v288, %v307
        %v314 = vadd.s32 %v310, 1
        %v315 = vsel %vm313, %v314, %v310
        %v316 = vadd.s32 %v311, %v315
        %v317 = vadd.s32 %v316, 536870912
        %v318 = vshrl.u32 %v317, 30
        %v319 = vshll.u32 %v318, 30
        %v320 = vsub.s32 %v316, %v319
        %vm321 = vcmp.lt.s32.totalorder %v320, 0
        %v322 = vsub.s32 0, %v320
        %v323 = vsel %vm321, %v322, %v320
        %v324 = vclz %v323
        %v325 = vsub.s32 %v324, 2
        %vm326 = vcmp.gt.s32.totalorder 0, %v325
        %v327 = vsel %vm326, 0, %v325
        %v328 = vsub.s32 32, %v327
        %v329 = vshll.u32 %v320, %v327
        %v330 = vshrl.u32 %v312, %v328
        %v331 = vor.u32 %v329, %v330
        %v332 = vsub.s32 4294967266, %v327
        %v333 = vadd.s32 %v332, 127
        %v334 = vshll.u32 %v333, 23
        %v335 = vor.u32 4788187, %v334
        %v336 = vand.u32 2147483647, %v335
        %v338 = vcvt.s32.f32 %v331
        %v339 = vmul.f32 %v338, %v336
        %v340 = vxor.u32 %v339, 2147483648
        %v341 = vsel %vm220, %v340, %v339
        %v342 = vsub.s32 4, %v318
        %v343 = vsel %vm220, %v342, %v318
        %v344 = vsel %vm219, %v217, %v341
        %v345 = vsel %vm219, 0, %v343
        %v346 = vmul.f32 %v344, %v344
        %v347 = vmul.f32 %v346, -0.001358992
        %v348 = vadd.f32 %v347, 0.041655596
        %v349 = vmul.f32 %v346, %v348
        %v350 = vadd.f32 %v349, -0.4999988
        %v351 = vmul.f32 %v346, %v350
        %v352 = vadd.f32 1.0, %v351
        %v353 = vmul.f32 %v344, %v344
        %v354 = vmul.f32 %v353, -0.00019511016
        %v355 = vadd.f32 %v354, 0.008332121
        %v356 = vmul.f32 %v353, %v355
        %v357 = vadd.f32 %v356, -0.16666654
        %v358 = vmul.f32 %v353, %v357
        %v359 = vadd.f32 %v358, 1.0
        %v360 = vmul.f32 %v359, %v344
        %vm361 = vweird.f32 %v217
        %v362 = vand.u32 %v345, 3
        %vm363 = vcmp.lt.s32.totalorder %v362, 2
        %vm364 = vcmp.eq.s32.totalorder %v362, 0
        %v365 = vxor.u32 %v360, 2147483648
        %v366 = vsel %vm364, %v352, %v365
        %vm367 = vcmp.eq.s32.totalorder %v362, 2
        %v368 = vxor.u32 %v352, 2147483648
        %v369 = vsel %vm367, %v368, %v360
        %v370 = vsel %vm363, %v366, %v369
        %v371 = vsel %vm361, nan, %v370
        %v372 = vld [vmem:[%s0] sm:$0xff]
        %v373 = vld [vmem:[%s0 + $0x8] sm:$0xff]
        %v374 = vld [vmem:[%s0 + $0x10] sm:$0x3]
        %v375 = vld [vmem:[%s1] sm:$0xff]
        %v376 = vld [vmem:[%s1 + $0x8] sm:$0xff]
        %v377 = vld [vmem:[%s1 + $0x10] sm:$0x3]
        %379 = vset.pattern.permute.xlu0 0
        %380 = vperm.xlu0 %379, %v372
        %v381 = vpop.permute.xlu0 %380
        %384 = vset.pattern.permute.xlu0 0
        %385 = vperm.xlu0 %384, %v373
        %v386 = vpop.permute.xlu0 %385
        %389 = vset.pattern.permute.xlu0 0
        %390 = vperm.xlu0 %389, %v374
        %v391 = vpop.permute.xlu0 %390
        %v394 = vperm.slane %v216, 0
        %v395 = vperm.slane %v216, 1
        %v396 = vperm.slane %v216, 2
        %v397 = vperm.slane %v216, 3
        %v398 = vperm.slane %v216, 4
        %v399 = vperm.slane %v216, 5
        %v400 = vperm.slane %v216, 6
        %v401 = vperm.slane %v216, 7
        %v410 = vmul.f32 %v381, %v394
        %v411 = vmul.f32 %v381, %v395
        %v412 = vmul.f32 %v381, %v396
        %v413 = vmul.f32 %v381, %v397
        %v414 = vmul.f32 %v381, %v398
        %v415 = vmul.f32 %v381, %v399
        %v416 = vmul.f32 %v381, %v400
        %v417 = vmul.f32 %v381, %v401
        %v418 = vmul.f32 %v386, %v394
        %v419 = vmul.f32 %v386, %v395
        %v420 = vmul.f32 %v386, %v396
        %v421 = vmul.f32 %v386, %v397
        %v422 = vmul.f32 %v386, %v398
        %v423 = vmul.f32 %v386, %v399
        %v424 = vmul.f32 %v386, %v400
        %v425 = vmul.f32 %v386, %v401
        %v426 = vmul.f32 %v391, %v394
        %v427 = vmul.f32 %v391, %v395
        %v428 = vmul.f32 %v391, %v396
        %v429 = vmul.f32 %v391, %v397
        %v430 = vmul.f32 %v391, %v398
        %v431 = vmul.f32 %v391, %v399
        %v432 = vmul.f32 %v391, %v400
        %v433 = vmul.f32 %v391, %v401
        %v434 = vand.u32 2147483647, %v410
        %vm435 = vcmp.le.f32.partialorder %v434, 0.7853982
        %vm436 = vcmp.lt.s32.totalorder %v410, 0
        %v437 = vand.u32 %v410, 2139095040
        %v438 = vshrl.u32 %v437, 23
        %v439 = vsub.s32 %v438, 127
        %v440 = vand.u32 2147483647, %v410
        %v441 = vand.u32 %v440, 8388607
        %v442 = vor.u32 %v441, 8388608
        %v443 = vsub.s32 0, %v442
        %v444 = vadd.s32 %v439, 1
        %vm445 = vcmp.gt.s32.totalorder %v444, 0
        %v446 = vsel %vm445, %v444, 0
        %v447 = vshrl.u32 %v446, 5
        %v448 = vand.u32 %v446, 31
        %v449 = vsub.s32 32, %v448
        %v450 = vshrl.u32 683565275, %v449
        %v451 = vshll.u32 683565275, %v448
        %v452 = vshrl.u32 2475754826, %v449
        %v453 = vor.u32 %v451, %v452
        %v454 = vshll.u32 2475754826, %v448
        %v455 = vshrl.u32 2131351028, %v449
        %v456 = vor.u32 %v454, %v455
        %v457 = vshll.u32 2131351028, %v448
        %v458 = vshrl.u32 2102212464, %v449
        %v459 = vor.u32 %v457, %v458
        %v460 = vshll.u32 2102212464, %v448
        %v461 = vshrl.u32 920167782, %v449
        %v462 = vor.u32 %v460, %v461
        %v463 = vshll.u32 920167782, %v448
        %v464 = vshrl.u32 1326507024, %v449
        %v465 = vor.u32 %v463, %v464
        %vm466 = vcmp.lt.s32.totalorder %v447, 1
        %vm467 = vcmp.lt.s32.totalorder %v447, 2
        %vm468 = vcmp.lt.s32.totalorder %v447, 3
        %vm469 = vcmp.lt.s32.totalorder %v447, 4
        %v470 = vsel %vm466, %v450, %v453
        %v471 = vsel %vm469, %v459, 2102212464
        %v472 = vsel %vm468, %v456, %v471
        %v473 = vsel %vm467, %v470, %v472
        %v474 = vsel %vm466, %v453, %v456
        %v475 = vsel %vm469, %v462, 920167782
        %v476 = vsel %vm468, %v459, %v475
        %v477 = vsel %vm467, %v474, %v476
        %v478 = vsel %vm466, %v456, %v459
        %v479 = vsel %vm469, %v465, 1326507024
        %v480 = vsel %vm468, %v462, %v479
        %v481 = vsel %vm467, %v478, %v480
        %v482 = vshll.u32 %v442, 8
        %v483 = vand.u32 %v482, 65535
        %v484 = vshrl.u32 %v482, 16
        %v485 = vand.u32 %v481, 65535
        %v486 = vshrl.u32 %v481, 16
        %v487 = vmul.u32 %v483, %v485
        %v488 = vmul.u32 %v483, %v486
        %v489 = vmul.u32 %v484, %v485
        %v490 = vmul.u32 %v484, %v486
        %v491 = vshll.u32 %v488, 16
        %v492 = vshrl.u32 %v488, 16
        %v493 = vshll.u32 %v489, 16
        %v494 = vshrl.u32 %v489, 16
        %vm495 = vc.u32 %v487, %v491
        %v496 = vsel %vm495, 1, 0
        %v497 = vadd.s32 %v487, %v491
        %v498 = vadd.s32 %v490, %v496
        %vm499 = vc.u32 %v497, %v493
        %v500 = vsel %vm499, 1, 0
        %v501 = vadd.s32 %v497, %v493
        %v502 = vadd.s32 %v498, %v500
        %v503 = vadd.s32 %v502, %v492
        %v504 = vadd.s32 %v503, %v494
        %v505 = vand.u32 %v482, 65535
        %v506 = vshrl.u32 %v482, 16
        %v507 = vand.u32 %v477, 65535
        %v508 = vshrl.u32 %v477, 16
        %v509 = vmul.u32 %v505, %v507
        %v510 = vmul.u32 %v505, %v508
        %v511 = vmul.u32 %v506, %v507
        %v512 = vmul.u32 %v506, %v508
        %v513 = vshll.u32 %v510, 16
        %v514 = vshrl.u32 %v510, 16
        %v515 = vshll.u32 %v511, 16
        %v516 = vshrl.u32 %v511, 16
        %vm517 = vc.u32 %v509, %v513
        %v518 = vsel %vm517, 1, 0
        %v519 = vadd.s32 %v509, %v513
        %v520 = vadd.s32 %v512, %v518
        %vm521 = vc.u32 %v519, %v515
        %v522 = vsel %vm521, 1, 0
        %v523 = vadd.s32 %v519, %v515
        %v524 = vadd.s32 %v520, %v522
        %v525 = vadd.s32 %v524, %v514
        %v526 = vadd.s32 %v525, %v516
        %v527 = vmul.u32 %v482, %v473
        %v528 = vadd.s32 %v504, %v523
        %vm529 = vc.u32 %v504, %v523
        %v530 = vadd.s32 %v526, 1
        %v531 = vsel %vm529, %v530, %v526
        %v532 = vadd.s32 %v527, %v531
        %v533 = vadd.s32 %v532, 536870912
        %v534 = vshrl.u32 %v533, 30
        %v535 = vshll.u32 %v534, 30
        %v536 = vsub.s32 %v532, %v535
        %vm537 = vcmp.lt.s32.totalorder %v536, 0
        %v538 = vsub.s32 0, %v536
        %v539 = vsel %vm537, %v538, %v536
        %v540 = vclz %v539
        %v541 = vsub.s32 %v540, 2
        %vm542 = vcmp.gt.s32.totalorder 0, %v541
        %v543 = vsel %vm542, 0, %v541
        %v544 = vsub.s32 32, %v543
        %v545 = vshll.u32 %v536, %v543
        %v546 = vshrl.u32 %v528, %v544
        %v547 = vor.u32 %v545, %v546
        %v548 = vsub.s32 4294967266, %v543
        %v549 = vadd.s32 %v548, 127
        %v550 = vshll.u32 %v549, 23
        %v551 = vor.u32 4788187, %v550
        %v552 = vand.u32 2147483647, %v551
        %v554 = vcvt.s32.f32 %v547
        %v555 = vmul.f32 %v554, %v552
        %v556 = vxor.u32 %v555, 2147483648
        %v557 = vsel %vm436, %v556, %v555
        %v558 = vsub.s32 4, %v534
        %v559 = vsel %vm436, %v558, %v534
        %v560 = vsel %vm435, %v410, %v557
        %v561 = vsel %vm435, 0, %v559
        %v562 = vmul.f32 %v560, %v560
        %v563 = vmul.f32 %v562, -0.001358992
        %v564 = vadd.f32 %v563, 0.041655596
        %v565 = vmul.f32 %v562, %v564
        %v566 = vadd.f32 %v565, -0.4999988
        %v567 = vmul.f32 %v562, %v566
        %v568 = vadd.f32 1.0, %v567
        %v569 = vmul.f32 %v560, %v560
        %v570 = vmul.f32 %v569, -0.00019511016
        %v571 = vadd.f32 %v570, 0.008332121
        %v572 = vmul.f32 %v569, %v571
        %v573 = vadd.f32 %v572, -0.16666654
        %v574 = vmul.f32 %v569, %v573
        %v575 = vadd.f32 %v574, 1.0
        %v576 = vmul.f32 %v575, %v560
        %vm577 = vweird.f32 %v410
        %v578 = vadd.s32 %v561, 3
        %v579 = vand.u32 %v578, 3
        %vm580 = vcmp.lt.s32.totalorder %v579, 2
        %vm581 = vcmp.eq.s32.totalorder %v579, 0
        %v582 = vxor.u32 %v576, 2147483648
        %v583 = vsel %vm581, %v568, %v582
        %vm584 = vcmp.eq.s32.totalorder %v579, 2
        %v585 = vxor.u32 %v568, 2147483648
        %v586 = vsel %vm584, %v585, %v576
        %v587 = vsel %vm580, %v583, %v586
        %v588 = vsel %vm577, nan, %v587
        %v589 = vand.u32 2147483647, %v411
        %vm590 = vcmp.le.f32.partialorder %v589, 0.7853982
        %vm591 = vcmp.lt.s32.totalorder %v411, 0
        %v592 = vand.u32 %v411, 2139095040
        %v593 = vshrl.u32 %v592, 23
        %v594 = vsub.s32 %v593, 127
        %v595 = vand.u32 2147483647, %v411
        %v596 = vand.u32 %v595, 8388607
        %v597 = vor.u32 %v596, 8388608
        %v598 = vsub.s32 0, %v597
        %v599 = vadd.s32 %v594, 1
        %vm600 = vcmp.gt.s32.totalorder %v599, 0
        %v601 = vsel %vm600, %v599, 0
        %v602 = vshrl.u32 %v601, 5
        %v603 = vand.u32 %v601, 31
        %v604 = vsub.s32 32, %v603
        %v605 = vshrl.u32 683565275, %v604
        %v606 = vshll.u32 683565275, %v603
        %v607 = vshrl.u32 2475754826, %v604
        %v608 = vor.u32 %v606, %v607
        %v609 = vshll.u32 2475754826, %v603
        %v610 = vshrl.u32 2131351028, %v604
        %v611 = vor.u32 %v609, %v610
        %v612 = vshll.u32 2131351028, %v603
        %v613 = vshrl.u32 2102212464, %v604
        %v614 = vor.u32 %v612, %v613
        %v615 = vshll.u32 2102212464, %v603
        %v616 = vshrl.u32 920167782, %v604
        %v617 = vor.u32 %v615, %v616
        %v618 = vshll.u32 920167782, %v603
        %v619 = vshrl.u32 1326507024, %v604
        %v620 = vor.u32 %v618, %v619
        %vm621 = vcmp.lt.s32.totalorder %v602, 1
        %vm622 = vcmp.lt.s32.totalorder %v602, 2
        %vm623 = vcmp.lt.s32.totalorder %v602, 3
        %vm624 = vcmp.lt.s32.totalorder %v602, 4
        %v625 = vsel %vm621, %v605, %v608
        %v626 = vsel %vm624, %v614, 2102212464
        %v627 = vsel %vm623, %v611, %v626
        %v628 = vsel %vm622, %v625, %v627
        %v629 = vsel %vm621, %v608, %v611
        %v630 = vsel %vm624, %v617, 920167782
        %v631 = vsel %vm623, %v614, %v630
        %v632 = vsel %vm622, %v629, %v631
        %v633 = vsel %vm621, %v611, %v614
        %v634 = vsel %vm624, %v620, 1326507024
        %v635 = vsel %vm623, %v617, %v634
        %v636 = vsel %vm622, %v633, %v635
        %v637 = vshll.u32 %v597, 8
        %v638 = vand.u32 %v637, 65535
        %v639 = vshrl.u32 %v637, 16
        %v640 = vand.u32 %v636, 65535
        %v641 = vshrl.u32 %v636, 16
        %v642 = vmul.u32 %v638, %v640
        %v643 = vmul.u32 %v638, %v641
        %v644 = vmul.u32 %v639, %v640
        %v645 = vmul.u32 %v639, %v641
        %v646 = vshll.u32 %v643, 16
        %v647 = vshrl.u32 %v643, 16
        %v648 = vshll.u32 %v644, 16
        %v649 = vshrl.u32 %v644, 16
        %vm650 = vc.u32 %v642, %v646
        %v651 = vsel %vm650, 1, 0
        %v652 = vadd.s32 %v642, %v646
        %v653 = vadd.s32 %v645, %v651
        %vm654 = vc.u32 %v652, %v648
        %v655 = vsel %vm654, 1, 0
        %v656 = vadd.s32 %v652, %v648
        %v657 = vadd.s32 %v653, %v655
        %v658 = vadd.s32 %v657, %v647
        %v659 = vadd.s32 %v658, %v649
        %v660 = vand.u32 %v637, 65535
        %v661 = vshrl.u32 %v637, 16
        %v662 = vand.u32 %v632, 65535
        %v663 = vshrl.u32 %v632, 16
        %v664 = vmul.u32 %v660, %v662
        %v665 = vmul.u32 %v660, %v663
        %v666 = vmul.u32 %v661, %v662
        %v667 = vmul.u32 %v661, %v663
        %v668 = vshll.u32 %v665, 16
        %v669 = vshrl.u32 %v665, 16
        %v670 = vshll.u32 %v666, 16
        %v671 = vshrl.u32 %v666, 16
        %vm672 = vc.u32 %v664, %v668
        %v673 = vsel %vm672, 1, 0
        %v674 = vadd.s32 %v664, %v668
        %v675 = vadd.s32 %v667, %v673
        %vm676 = vc.u32 %v674, %v670
        %v677 = vsel %vm676, 1, 0
        %v678 = vadd.s32 %v674, %v670
        %v679 = vadd.s32 %v675, %v677
        %v680 = vadd.s32 %v679, %v669
        %v681 = vadd.s32 %v680, %v671
        %v682 = vmul.u32 %v637, %v628
        %v683 = vadd.s32 %v659, %v678
        %vm684 = vc.u32 %v659, %v678
        %v685 = vadd.s32 %v681, 1
        %v686 = vsel %vm684, %v685, %v681
        %v687 = vadd.s32 %v682, %v686
        %v688 = vadd.s32 %v687, 536870912
        %v689 = vshrl.u32 %v688, 30
        %v690 = vshll.u32 %v689, 30
        %v691 = vsub.s32 %v687, %v690
        %vm692 = vcmp.lt.s32.totalorder %v691, 0
        %v693 = vsub.s32 0, %v691
        %v694 = vsel %vm692, %v693, %v691
        %v695 = vclz %v694
        %v696 = vsub.s32 %v695, 2
        %vm697 = vcmp.gt.s32.totalorder 0, %v696
        %v698 = vsel %vm697, 0, %v696
        %v699 = vsub.s32 32, %v698
        %v700 = vshll.u32 %v691, %v698
        %v701 = vshrl.u32 %v683, %v699
        %v702 = vor.u32 %v700, %v701
        %v703 = vsub.s32 4294967266, %v698
        %v704 = vadd.s32 %v703, 127
        %v705 = vshll.u32 %v704, 23
        %v706 = vor.u32 4788187, %v705
        %v707 = vand.u32 2147483647, %v706
        %v709 = vcvt.s32.f32 %v702
        %v710 = vmul.f32 %v709, %v707
        %v711 = vxor.u32 %v710, 2147483648
        %v712 = vsel %vm591, %v711, %v710
        %v713 = vsub.s32 4, %v689
        %v714 = vsel %vm591, %v713, %v689
        %v715 = vsel %vm590, %v411, %v712
        %v716 = vsel %vm590, 0, %v714
        %v717 = vmul.f32 %v715, %v715
        %v718 = vmul.f32 %v717, -0.001358992
        %v719 = vadd.f32 %v718, 0.041655596
        %v720 = vmul.f32 %v717, %v719
        %v721 = vadd.f32 %v720, -0.4999988
        %v722 = vmul.f32 %v717, %v721
        %v723 = vadd.f32 1.0, %v722
        %v724 = vmul.f32 %v715, %v715
        %v725 = vmul.f32 %v724, -0.00019511016
        %v726 = vadd.f32 %v725, 0.008332121
        %v727 = vmul.f32 %v724, %v726
        %v728 = vadd.f32 %v727, -0.16666654
        %v729 = vmul.f32 %v724, %v728
        %v730 = vadd.f32 %v729, 1.0
        %v731 = vmul.f32 %v730, %v715
        %vm732 = vweird.f32 %v411
        %v733 = vadd.s32 %v716, 3
        %v734 = vand.u32 %v733, 3
        %vm735 = vcmp.lt.s32.totalorder %v734, 2
        %vm736 = vcmp.eq.s32.totalorder %v734, 0
        %v737 = vxor.u32 %v731, 2147483648
        %v738 = vsel %vm736, %v723, %v737
        %vm739 = vcmp.eq.s32.totalorder %v734, 2
        %v740 = vxor.u32 %v723, 2147483648
        %v741 = vsel %vm739, %v740, %v731
        %v742 = vsel %vm735, %v738, %v741
        %v743 = vsel %vm732, nan, %v742
        %v744 = vand.u32 2147483647, %v412
        %vm745 = vcmp.le.f32.partialorder %v744, 0.7853982
        %vm746 = vcmp.lt.s32.totalorder %v412, 0
        %v747 = vand.u32 %v412, 2139095040
        %v748 = vshrl.u32 %v747, 23
        %v749 = vsub.s32 %v748, 127
        %v750 = vand.u32 2147483647, %v412
        %v751 = vand.u32 %v750, 8388607
        %v752 = vor.u32 %v751, 8388608
        %v753 = vsub.s32 0, %v752
        %v754 = vadd.s32 %v749, 1
        %vm755 = vcmp.gt.s32.totalorder %v754, 0
        %v756 = vsel %vm755, %v754, 0
        %v757 = vshrl.u32 %v756, 5
        %v758 = vand.u32 %v756, 31
        %v759 = vsub.s32 32, %v758
        %v760 = vshrl.u32 683565275, %v759
        %v761 = vshll.u32 683565275, %v758
        %v762 = vshrl.u32 2475754826, %v759
        %v763 = vor.u32 %v761, %v762
        %v764 = vshll.u32 2475754826, %v758
        %v765 = vshrl.u32 2131351028, %v759
        %v766 = vor.u32 %v764, %v765
        %v767 = vshll.u32 2131351028, %v758
        %v768 = vshrl.u32 2102212464, %v759
        %v769 = vor.u32 %v767, %v768
        %v770 = vshll.u32 2102212464, %v758
        %v771 = vshrl.u32 920167782, %v759
        %v772 = vor.u32 %v770, %v771
        %v773 = vshll.u32 920167782, %v758
        %v774 = vshrl.u32 1326507024, %v759
        %v775 = vor.u32 %v773, %v774
        %vm776 = vcmp.lt.s32.totalorder %v757, 1
        %vm777 = vcmp.lt.s32.totalorder %v757, 2
        %vm778 = vcmp.lt.s32.totalorder %v757, 3
        %vm779 = vcmp.lt.s32.totalorder %v757, 4
        %v780 = vsel %vm776, %v760, %v763
        %v781 = vsel %vm779, %v769, 2102212464
        %v782 = vsel %vm778, %v766, %v781
        %v783 = vsel %vm777, %v780, %v782
        %v784 = vsel %vm776, %v763, %v766
        %v785 = vsel %vm779, %v772, 920167782
        %v786 = vsel %vm778, %v769, %v785
        %v787 = vsel %vm777, %v784, %v786
        %v788 = vsel %vm776, %v766, %v769
        %v789 = vsel %vm779, %v775, 1326507024
        %v790 = vsel %vm778, %v772, %v789
        %v791 = vsel %vm777, %v788, %v790
        %v792 = vshll.u32 %v752, 8
        %v793 = vand.u32 %v792, 65535
        %v794 = vshrl.u32 %v792, 16
        %v795 = vand.u32 %v791, 65535
        %v796 = vshrl.u32 %v791, 16
        %v797 = vmul.u32 %v793, %v795
        %v798 = vmul.u32 %v793, %v796
        %v799 = vmul.u32 %v794, %v795
        %v800 = vmul.u32 %v794, %v796
        %v801 = vshll.u32 %v798, 16
        %v802 = vshrl.u32 %v798, 16
        %v803 = vshll.u32 %v799, 16
        %v804 = vshrl.u32 %v799, 16
        %vm805 = vc.u32 %v797, %v801
        %v806 = vsel %vm805, 1, 0
        %v807 = vadd.s32 %v797, %v801
        %v808 = vadd.s32 %v800, %v806
        %vm809 = vc.u32 %v807, %v803
        %v810 = vsel %vm809, 1, 0
        %v811 = vadd.s32 %v807, %v803
        %v812 = vadd.s32 %v808, %v810
        %v813 = vadd.s32 %v812, %v802
        %v814 = vadd.s32 %v813, %v804
        %v815 = vand.u32 %v792, 65535
        %v816 = vshrl.u32 %v792, 16
        %v817 = vand.u32 %v787, 65535
        %v818 = vshrl.u32 %v787, 16
        %v819 = vmul.u32 %v815, %v817
        %v820 = vmul.u32 %v815, %v818
        %v821 = vmul.u32 %v816, %v817
        %v822 = vmul.u32 %v816, %v818
        %v823 = vshll.u32 %v820, 16
        %v824 = vshrl.u32 %v820, 16
        %v825 = vshll.u32 %v821, 16
        %v826 = vshrl.u32 %v821, 16
        %vm827 = vc.u32 %v819, %v823
        %v828 = vsel %vm827, 1, 0
        %v829 = vadd.s32 %v819, %v823
        %v830 = vadd.s32 %v822, %v828
        %vm831 = vc.u32 %v829, %v825
        %v832 = vsel %vm831, 1, 0
        %v833 = vadd.s32 %v829, %v825
        %v834 = vadd.s32 %v830, %v832
        %v835 = vadd.s32 %v834, %v824
        %v836 = vadd.s32 %v835, %v826
        %v837 = vmul.u32 %v792, %v783
        %v838 = vadd.s32 %v814, %v833
        %vm839 = vc.u32 %v814, %v833
        %v840 = vadd.s32 %v836, 1
        %v841 = vsel %vm839, %v840, %v836
        %v842 = vadd.s32 %v837, %v841
        %v843 = vadd.s32 %v842, 536870912
        %v844 = vshrl.u32 %v843, 30
        %v845 = vshll.u32 %v844, 30
        %v846 = vsub.s32 %v842, %v845
        %vm847 = vcmp.lt.s32.totalorder %v846, 0
        %v848 = vsub.s32 0, %v846
        %v849 = vsel %vm847, %v848, %v846
        %v850 = vclz %v849
        %v851 = vsub.s32 %v850, 2
        %vm852 = vcmp.gt.s32.totalorder 0, %v851
        %v853 = vsel %vm852, 0, %v851
        %v854 = vsub.s32 32, %v853
        %v855 = vshll.u32 %v846, %v853
        %v856 = vshrl.u32 %v838, %v854
        %v857 = vor.u32 %v855, %v856
        %v858 = vsub.s32 4294967266, %v853
        %v859 = vadd.s32 %v858, 127
        %v860 = vshll.u32 %v859, 23
        %v861 = vor.u32 4788187, %v860
        %v862 = vand.u32 2147483647, %v861
        %v864 = vcvt.s32.f32 %v857
        %v865 = vmul.f32 %v864, %v862
        %v866 = vxor.u32 %v865, 2147483648
        %v867 = vsel %vm746, %v866, %v865
        %v868 = vsub.s32 4, %v844
        %v869 = vsel %vm746, %v868, %v844
        %v870 = vsel %vm745, %v412, %v867
        %v871 = vsel %vm745, 0, %v869
        %v872 = vmul.f32 %v870, %v870
        %v873 = vmul.f32 %v872, -0.001358992
        %v874 = vadd.f32 %v873, 0.041655596
        %v875 = vmul.f32 %v872, %v874
        %v876 = vadd.f32 %v875, -0.4999988
        %v877 = vmul.f32 %v872, %v876
        %v878 = vadd.f32 1.0, %v877
        %v879 = vmul.f32 %v870, %v870
        %v880 = vmul.f32 %v879, -0.00019511016
        %v881 = vadd.f32 %v880, 0.008332121
        %v882 = vmul.f32 %v879, %v881
        %v883 = vadd.f32 %v882, -0.16666654
        %v884 = vmul.f32 %v879, %v883
        %v885 = vadd.f32 %v884, 1.0
        %v886 = vmul.f32 %v885, %v870
        %vm887 = vweird.f32 %v412
        %v888 = vadd.s32 %v871, 3
        %v889 = vand.u32 %v888, 3
        %vm890 = vcmp.lt.s32.totalorder %v889, 2
        %vm891 = vcmp.eq.s32.totalorder %v889, 0
        %v892 = vxor.u32 %v886, 2147483648
        %v893 = vsel %vm891, %v878, %v892
        %vm894 = vcmp.eq.s32.totalorder %v889, 2
        %v895 = vxor.u32 %v878, 2147483648
        %v896 = vsel %vm894, %v895, %v886
        %v897 = vsel %vm890, %v893, %v896
        %v898 = vsel %vm887, nan, %v897
        %v899 = vand.u32 2147483647, %v413
        %vm900 = vcmp.le.f32.partialorder %v899, 0.7853982
        %vm901 = vcmp.lt.s32.totalorder %v413, 0
        %v902 = vand.u32 %v413, 2139095040
        %v903 = vshrl.u32 %v902, 23
        %v904 = vsub.s32 %v903, 127
        %v905 = vand.u32 2147483647, %v413
        %v906 = vand.u32 %v905, 8388607
        %v907 = vor.u32 %v906, 8388608
        %v908 = vsub.s32 0, %v907
        %v909 = vadd.s32 %v904, 1
        %vm910 = vcmp.gt.s32.totalorder %v909, 0
        %v911 = vsel %vm910, %v909, 0
        %v912 = vshrl.u32 %v911, 5
        %v913 = vand.u32 %v911, 31
        %v914 = vsub.s32 32, %v913
        %v915 = vshrl.u32 683565275, %v914
        %v916 = vshll.u32 683565275, %v913
        %v917 = vshrl.u32 2475754826, %v914
        %v918 = vor.u32 %v916, %v917
        %v919 = vshll.u32 2475754826, %v913
        %v920 = vshrl.u32 2131351028, %v914
        %v921 = vor.u32 %v919, %v920
        %v922 = vshll.u32 2131351028, %v913
        %v923 = vshrl.u32 2102212464, %v914
        %v924 = vor.u32 %v922, %v923
        %v925 = vshll.u32 2102212464, %v913
        %v926 = vshrl.u32 920167782, %v914
        %v927 = vor.u32 %v925, %v926
        %v928 = vshll.u32 920167782, %v913
        %v929 = vshrl.u32 1326507024, %v914
        %v930 = vor.u32 %v928, %v929
        %vm931 = vcmp.lt.s32.totalorder %v912, 1
        %vm932 = vcmp.lt.s32.totalorder %v912, 2
        %vm933 = vcmp.lt.s32.totalorder %v912, 3
        %vm934 = vcmp.lt.s32.totalorder %v912, 4
        %v935 = vsel %vm931, %v915, %v918
        %v936 = vsel %vm934, %v924, 2102212464
        %v937 = vsel %vm933, %v921, %v936
        %v938 = vsel %vm932, %v935, %v937
        %v939 = vsel %vm931, %v918, %v921
        %v940 = vsel %vm934, %v927, 920167782
        %v941 = vsel %vm933, %v924, %v940
        %v942 = vsel %vm932, %v939, %v941
        %v943 = vsel %vm931, %v921, %v924
        %v944 = vsel %vm934, %v930, 1326507024
        %v945 = vsel %vm933, %v927, %v944
        %v946 = vsel %vm932, %v943, %v945
        %v947 = vshll.u32 %v907, 8
        %v948 = vand.u32 %v947, 65535
        %v949 = vshrl.u32 %v947, 16
        %v950 = vand.u32 %v946, 65535
        %v951 = vshrl.u32 %v946, 16
        %v952 = vmul.u32 %v948, %v950
        %v953 = vmul.u32 %v948, %v951
        %v954 = vmul.u32 %v949, %v950
        %v955 = vmul.u32 %v949, %v951
        %v956 = vshll.u32 %v953, 16
        %v957 = vshrl.u32 %v953, 16
        %v958 = vshll.u32 %v954, 16
        %v959 = vshrl.u32 %v954, 16
        %vm960 = vc.u32 %v952, %v956
        %v961 = vsel %vm960, 1, 0
        %v962 = vadd.s32 %v952, %v956
        %v963 = vadd.s32 %v955, %v961
        %vm964 = vc.u32 %v962, %v958
        %v965 = vsel %vm964, 1, 0
        %v966 = vadd.s32 %v962, %v958
        %v967 = vadd.s32 %v963, %v965
        %v968 = vadd.s32 %v967, %v957
        %v969 = vadd.s32 %v968, %v959
        %v970 = vand.u32 %v947, 65535
        %v971 = vshrl.u32 %v947, 16
        %v972 = vand.u32 %v942, 65535
        %v973 = vshrl.u32 %v942, 16
        %v974 = vmul.u32 %v970, %v972
        %v975 = vmul.u32 %v970, %v973
        %v976 = vmul.u32 %v971, %v972
        %v977 = vmul.u32 %v971, %v973
        %v978 = vshll.u32 %v975, 16
        %v979 = vshrl.u32 %v975, 16
        %v980 = vshll.u32 %v976, 16
        %v981 = vshrl.u32 %v976, 16
        %vm982 = vc.u32 %v974, %v978
        %v983 = vsel %vm982, 1, 0
        %v984 = vadd.s32 %v974, %v978
        %v985 = vadd.s32 %v977, %v983
        %vm986 = vc.u32 %v984, %v980
        %v987 = vsel %vm986, 1, 0
        %v988 = vadd.s32 %v984, %v980
        %v989 = vadd.s32 %v985, %v987
        %v990 = vadd.s32 %v989, %v979
        %v991 = vadd.s32 %v990, %v981
        %v992 = vmul.u32 %v947, %v938
        %v993 = vadd.s32 %v969, %v988
        %vm994 = vc.u32 %v969, %v988
        %v995 = vadd.s32 %v991, 1
        %v996 = vsel %vm994, %v995, %v991
        %v997 = vadd.s32 %v992, %v996
        %v998 = vadd.s32 %v997, 536870912
        %v999 = vshrl.u32 %v998, 30
        %v1000 = vshll.u32 %v999, 30
        %v1001 = vsub.s32 %v997, %v1000
        %vm1002 = vcmp.lt.s32.totalorder %v1001, 0
        %v1003 = vsub.s32 0, %v1001
        %v1004 = vsel %vm1002, %v1003, %v1001
        %v1005 = vclz %v1004
        %v1006 = vsub.s32 %v1005, 2
        %vm1007 = vcmp.gt.s32.totalorder 0, %v1006
        %v1008 = vsel %vm1007, 0, %v1006
        %v1009 = vsub.s32 32, %v1008
        %v1010 = vshll.u32 %v1001, %v1008
        %v1011 = vshrl.u32 %v993, %v1009
        %v1012 = vor.u32 %v1010, %v1011
        %v1013 = vsub.s32 4294967266, %v1008
        %v1014 = vadd.s32 %v1013, 127
        %v1015 = vshll.u32 %v1014, 23
        %v1016 = vor.u32 4788187, %v1015
        %v1017 = vand.u32 2147483647, %v1016
        %v1019 = vcvt.s32.f32 %v1012
        %v1020 = vmul.f32 %v1019, %v1017
        %v1021 = vxor.u32 %v1020, 2147483648
        %v1022 = vsel %vm901, %v1021, %v1020
        %v1023 = vsub.s32 4, %v999
        %v1024 = vsel %vm901, %v1023, %v999
        %v1025 = vsel %vm900, %v413, %v1022
        %v1026 = vsel %vm900, 0, %v1024
        %v1027 = vmul.f32 %v1025, %v1025
        %v1028 = vmul.f32 %v1027, -0.001358992
        %v1029 = vadd.f32 %v1028, 0.041655596
        %v1030 = vmul.f32 %v1027, %v1029
        %v1031 = vadd.f32 %v1030, -0.4999988
        %v1032 = vmul.f32 %v1027, %v1031
        %v1033 = vadd.f32 1.0, %v1032
        %v1034 = vmul.f32 %v1025, %v1025
        %v1035 = vmul.f32 %v1034, -0.00019511016
        %v1036 = vadd.f32 %v1035, 0.008332121
        %v1037 = vmul.f32 %v1034, %v1036
        %v1038 = vadd.f32 %v1037, -0.16666654
        %v1039 = vmul.f32 %v1034, %v1038
        %v1040 = vadd.f32 %v1039, 1.0
        %v1041 = vmul.f32 %v1040, %v1025
        %vm1042 = vweird.f32 %v413
        %v1043 = vadd.s32 %v1026, 3
        %v1044 = vand.u32 %v1043, 3
        %vm1045 = vcmp.lt.s32.totalorder %v1044, 2
        %vm1046 = vcmp.eq.s32.totalorder %v1044, 0
        %v1047 = vxor.u32 %v1041, 2147483648
        %v1048 = vsel %vm1046, %v1033, %v1047
        %vm1049 = vcmp.eq.s32.totalorder %v1044, 2
        %v1050 = vxor.u32 %v1033, 2147483648
        %v1051 = vsel %vm1049, %v1050, %v1041
        %v1052 = vsel %vm1045, %v1048, %v1051
        %v1053 = vsel %vm1042, nan, %v1052
        %v1054 = vand.u32 2147483647, %v414
        %vm1055 = vcmp.le.f32.partialorder %v1054, 0.7853982
        %vm1056 = vcmp.lt.s32.totalorder %v414, 0
        %v1057 = vand.u32 %v414, 2139095040
        %v1058 = vshrl.u32 %v1057, 23
        %v1059 = vsub.s32 %v1058, 127
        %v1060 = vand.u32 2147483647, %v414
        %v1061 = vand.u32 %v1060, 8388607
        %v1062 = vor.u32 %v1061, 8388608
        %v1063 = vsub.s32 0, %v1062
        %v1064 = vadd.s32 %v1059, 1
        %vm1065 = vcmp.gt.s32.totalorder %v1064, 0
        %v1066 = vsel %vm1065, %v1064, 0
        %v1067 = vshrl.u32 %v1066, 5
        %v1068 = vand.u32 %v1066, 31
        %v1069 = vsub.s32 32, %v1068
        %v1070 = vshrl.u32 683565275, %v1069
        %v1071 = vshll.u32 683565275, %v1068
        %v1072 = vshrl.u32 2475754826, %v1069
        %v1073 = vor.u32 %v1071, %v1072
        %v1074 = vshll.u32 2475754826, %v1068
        %v1075 = vshrl.u32 2131351028, %v1069
        %v1076 = vor.u32 %v1074, %v1075
        %v1077 = vshll.u32 2131351028, %v1068
        %v1078 = vshrl.u32 2102212464, %v1069
        %v1079 = vor.u32 %v1077, %v1078
        %v1080 = vshll.u32 2102212464, %v1068
        %v1081 = vshrl.u32 920167782, %v1069
        %v1082 = vor.u32 %v1080, %v1081
        %v1083 = vshll.u32 920167782, %v1068
        %v1084 = vshrl.u32 1326507024, %v1069
        %v1085 = vor.u32 %v1083, %v1084
        %vm1086 = vcmp.lt.s32.totalorder %v1067, 1
        %vm1087 = vcmp.lt.s32.totalorder %v1067, 2
        %vm1088 = vcmp.lt.s32.totalorder %v1067, 3
        %vm1089 = vcmp.lt.s32.totalorder %v1067, 4
        %v1090 = vsel %vm1086, %v1070, %v1073
        %v1091 = vsel %vm1089, %v1079, 2102212464
        %v1092 = vsel %vm1088, %v1076, %v1091
        %v1093 = vsel %vm1087, %v1090, %v1092
        %v1094 = vsel %vm1086, %v1073, %v1076
        %v1095 = vsel %vm1089, %v1082, 920167782
        %v1096 = vsel %vm1088, %v1079, %v1095
        %v1097 = vsel %vm1087, %v1094, %v1096
        %v1098 = vsel %vm1086, %v1076, %v1079
        %v1099 = vsel %vm1089, %v1085, 1326507024
        %v1100 = vsel %vm1088, %v1082, %v1099
        %v1101 = vsel %vm1087, %v1098, %v1100
        %v1102 = vshll.u32 %v1062, 8
        %v1103 = vand.u32 %v1102, 65535
        %v1104 = vshrl.u32 %v1102, 16
        %v1105 = vand.u32 %v1101, 65535
        %v1106 = vshrl.u32 %v1101, 16
        %v1107 = vmul.u32 %v1103, %v1105
        %v1108 = vmul.u32 %v1103, %v1106
        %v1109 = vmul.u32 %v1104, %v1105
        %v1110 = vmul.u32 %v1104, %v1106
        %v1111 = vshll.u32 %v1108, 16
        %v1112 = vshrl.u32 %v1108, 16
        %v1113 = vshll.u32 %v1109, 16
        %v1114 = vshrl.u32 %v1109, 16
        %vm1115 = vc.u32 %v1107, %v1111
        %v1116 = vsel %vm1115, 1, 0
        %v1117 = vadd.s32 %v1107, %v1111
        %v1118 = vadd.s32 %v1110, %v1116
        %vm1119 = vc.u32 %v1117, %v1113
        %v1120 = vsel %vm1119, 1, 0
        %v1121 = vadd.s32 %v1117, %v1113
        %v1122 = vadd.s32 %v1118, %v1120
        %v1123 = vadd.s32 %v1122, %v1112
        %v1124 = vadd.s32 %v1123, %v1114
        %v1125 = vand.u32 %v1102, 65535
        %v1126 = vshrl.u32 %v1102, 16
        %v1127 = vand.u32 %v1097, 65535
        %v1128 = vshrl.u32 %v1097, 16
        %v1129 = vmul.u32 %v1125, %v1127
        %v1130 = vmul.u32 %v1125, %v1128
        %v1131 = vmul.u32 %v1126, %v1127
        %v1132 = vmul.u32 %v1126, %v1128
        %v1133 = vshll.u32 %v1130, 16
        %v1134 = vshrl.u32 %v1130, 16
        %v1135 = vshll.u32 %v1131, 16
        %v1136 = vshrl.u32 %v1131, 16
        %vm1137 = vc.u32 %v1129, %v1133
        %v1138 = vsel %vm1137, 1, 0
        %v1139 = vadd.s32 %v1129, %v1133
        %v1140 = vadd.s32 %v1132, %v1138
        %vm1141 = vc.u32 %v1139, %v1135
        %v1142 = vsel %vm1141, 1, 0
        %v1143 = vadd.s32 %v1139, %v1135
        %v1144 = vadd.s32 %v1140, %v1142
        %v1145 = vadd.s32 %v1144, %v1134
        %v1146 = vadd.s32 %v1145, %v1136
        %v1147 = vmul.u32 %v1102, %v1093
        %v1148 = vadd.s32 %v1124, %v1143
        %vm1149 = vc.u32 %v1124, %v1143
        %v1150 = vadd.s32 %v1146, 1
        %v1151 = vsel %vm1149, %v1150, %v1146
        %v1152 = vadd.s32 %v1147, %v1151
        %v1153 = vadd.s32 %v1152, 536870912
        %v1154 = vshrl.u32 %v1153, 30
        %v1155 = vshll.u32 %v1154, 30
        %v1156 = vsub.s32 %v1152, %v1155
        %vm1157 = vcmp.lt.s32.totalorder %v1156, 0
        %v1158 = vsub.s32 0, %v1156
        %v1159 = vsel %vm1157, %v1158, %v1156
        %v1160 = vclz %v1159
        %v1161 = vsub.s32 %v1160, 2
        %vm1162 = vcmp.gt.s32.totalorder 0, %v1161
        %v1163 = vsel %vm1162, 0, %v1161
        %v1164 = vsub.s32 32, %v1163
        %v1165 = vshll.u32 %v1156, %v1163
        %v1166 = vshrl.u32 %v1148, %v1164
        %v1167 = vor.u32 %v1165, %v1166
        %v1168 = vsub.s32 4294967266, %v1163
        %v1169 = vadd.s32 %v1168, 127
        %v1170 = vshll.u32 %v1169, 23
        %v1171 = vor.u32 4788187, %v1170
        %v1172 = vand.u32 2147483647, %v1171
        %v1174 = vcvt.s32.f32 %v1167
        %v1175 = vmul.f32 %v1174, %v1172
        %v1176 = vxor.u32 %v1175, 2147483648
        %v1177 = vsel %vm1056, %v1176, %v1175
        %v1178 = vsub.s32 4, %v1154
        %v1179 = vsel %vm1056, %v1178, %v1154
        %v1180 = vsel %vm1055, %v414, %v1177
        %v1181 = vsel %vm1055, 0, %v1179
        %v1182 = vmul.f32 %v1180, %v1180
        %v1183 = vmul.f32 %v1182, -0.001358992
        %v1184 = vadd.f32 %v1183, 0.041655596
        %v1185 = vmul.f32 %v1182, %v1184
        %v1186 = vadd.f32 %v1185, -0.4999988
        %v1187 = vmul.f32 %v1182, %v1186
        %v1188 = vadd.f32 1.0, %v1187
        %v1189 = vmul.f32 %v1180, %v1180
        %v1190 = vmul.f32 %v1189, -0.00019511016
        %v1191 = vadd.f32 %v1190, 0.008332121
        %v1192 = vmul.f32 %v1189, %v1191
        %v1193 = vadd.f32 %v1192, -0.16666654
        %v1194 = vmul.f32 %v1189, %v1193
        %v1195 = vadd.f32 %v1194, 1.0
        %v1196 = vmul.f32 %v1195, %v1180
        %vm1197 = vweird.f32 %v414
        %v1198 = vadd.s32 %v1181, 3
        %v1199 = vand.u32 %v1198, 3
        %vm1200 = vcmp.lt.s32.totalorder %v1199, 2
        %vm1201 = vcmp.eq.s32.totalorder %v1199, 0
        %v1202 = vxor.u32 %v1196, 2147483648
        %v1203 = vsel %vm1201, %v1188, %v1202
        %vm1204 = vcmp.eq.s32.totalorder %v1199, 2
        %v1205 = vxor.u32 %v1188, 2147483648
        %v1206 = vsel %vm1204, %v1205, %v1196
        %v1207 = vsel %vm1200, %v1203, %v1206
        %v1208 = vsel %vm1197, nan, %v1207
        %v1209 = vand.u32 2147483647, %v415
        %vm1210 = vcmp.le.f32.partialorder %v1209, 0.7853982
        %vm1211 = vcmp.lt.s32.totalorder %v415, 0
        %v1212 = vand.u32 %v415, 2139095040
        %v1213 = vshrl.u32 %v1212, 23
        %v1214 = vsub.s32 %v1213, 127
        %v1215 = vand.u32 2147483647, %v415
        %v1216 = vand.u32 %v1215, 8388607
        %v1217 = vor.u32 %v1216, 8388608
        %v1218 = vsub.s32 0, %v1217
        %v1219 = vadd.s32 %v1214, 1
        %vm1220 = vcmp.gt.s32.totalorder %v1219, 0
        %v1221 = vsel %vm1220, %v1219, 0
        %v1222 = vshrl.u32 %v1221, 5
        %v1223 = vand.u32 %v1221, 31
        %v1224 = vsub.s32 32, %v1223
        %v1225 = vshrl.u32 683565275, %v1224
        %v1226 = vshll.u32 683565275, %v1223
        %v1227 = vshrl.u32 2475754826, %v1224
        %v1228 = vor.u32 %v1226, %v1227
        %v1229 = vshll.u32 2475754826, %v1223
        %v1230 = vshrl.u32 2131351028, %v1224
        %v1231 = vor.u32 %v1229, %v1230
        %v1232 = vshll.u32 2131351028, %v1223
        %v1233 = vshrl.u32 2102212464, %v1224
        %v1234 = vor.u32 %v1232, %v1233
        %v1235 = vshll.u32 2102212464, %v1223
        %v1236 = vshrl.u32 920167782, %v1224
        %v1237 = vor.u32 %v1235, %v1236
        %v1238 = vshll.u32 920167782, %v1223
        %v1239 = vshrl.u32 1326507024, %v1224
        %v1240 = vor.u32 %v1238, %v1239
        %vm1241 = vcmp.lt.s32.totalorder %v1222, 1
        %vm1242 = vcmp.lt.s32.totalorder %v1222, 2
        %vm1243 = vcmp.lt.s32.totalorder %v1222, 3
        %vm1244 = vcmp.lt.s32.totalorder %v1222, 4
        %v1245 = vsel %vm1241, %v1225, %v1228
        %v1246 = vsel %vm1244, %v1234, 2102212464
        %v1247 = vsel %vm1243, %v1231, %v1246
        %v1248 = vsel %vm1242, %v1245, %v1247
        %v1249 = vsel %vm1241, %v1228, %v1231
        %v1250 = vsel %vm1244, %v1237, 920167782
        %v1251 = vsel %vm1243, %v1234, %v1250
        %v1252 = vsel %vm1242, %v1249, %v1251
        %v1253 = vsel %vm1241, %v1231, %v1234
        %v1254 = vsel %vm1244, %v1240, 1326507024
        %v1255 = vsel %vm1243, %v1237, %v1254
        %v1256 = vsel %vm1242, %v1253, %v1255
        %v1257 = vshll.u32 %v1217, 8
        %v1258 = vand.u32 %v1257, 65535
        %v1259 = vshrl.u32 %v1257, 16
        %v1260 = vand.u32 %v1256, 65535
        %v1261 = vshrl.u32 %v1256, 16
        %v1262 = vmul.u32 %v1258, %v1260
        %v1263 = vmul.u32 %v1258, %v1261
        %v1264 = vmul.u32 %v1259, %v1260
        %v1265 = vmul.u32 %v1259, %v1261
        %v1266 = vshll.u32 %v1263, 16
        %v1267 = vshrl.u32 %v1263, 16
        %v1268 = vshll.u32 %v1264, 16
        %v1269 = vshrl.u32 %v1264, 16
        %vm1270 = vc.u32 %v1262, %v1266
        %v1271 = vsel %vm1270, 1, 0
        %v1272 = vadd.s32 %v1262, %v1266
        %v1273 = vadd.s32 %v1265, %v1271
        %vm1274 = vc.u32 %v1272, %v1268
        %v1275 = vsel %vm1274, 1, 0
        %v1276 = vadd.s32 %v1272, %v1268
        %v1277 = vadd.s32 %v1273, %v1275
        %v1278 = vadd.s32 %v1277, %v1267
        %v1279 = vadd.s32 %v1278, %v1269
        %v1280 = vand.u32 %v1257, 65535
        %v1281 = vshrl.u32 %v1257, 16
        %v1282 = vand.u32 %v1252, 65535
        %v1283 = vshrl.u32 %v1252, 16
        %v1284 = vmul.u32 %v1280, %v1282
        %v1285 = vmul.u32 %v1280, %v1283
        %v1286 = vmul.u32 %v1281, %v1282
        %v1287 = vmul.u32 %v1281, %v1283
        %v1288 = vshll.u32 %v1285, 16
        %v1289 = vshrl.u32 %v1285, 16
        %v1290 = vshll.u32 %v1286, 16
        %v1291 = vshrl.u32 %v1286, 16
        %vm1292 = vc.u32 %v1284, %v1288
        %v1293 = vsel %vm1292, 1, 0
        %v1294 = vadd.s32 %v1284, %v1288
        %v1295 = vadd.s32 %v1287, %v1293
        %vm1296 = vc.u32 %v1294, %v1290
        %v1297 = vsel %vm1296, 1, 0
        %v1298 = vadd.s32 %v1294, %v1290
        %v1299 = vadd.s32 %v1295, %v1297
        %v1300 = vadd.s32 %v1299, %v1289
        %v1301 = vadd.s32 %v1300, %v1291
        %v1302 = vmul.u32 %v1257, %v1248
        %v1303 = vadd.s32 %v1279, %v1298
        %vm1304 = vc.u32 %v1279, %v1298
        %v1305 = vadd.s32 %v1301, 1
        %v1306 = vsel %vm1304, %v1305, %v1301
        %v1307 = vadd.s32 %v1302, %v1306
        %v1308 = vadd.s32 %v1307, 536870912
        %v1309 = vshrl.u32 %v1308, 30
        %v1310 = vshll.u32 %v1309, 30
        %v1311 = vsub.s32 %v1307, %v1310
        %vm1312 = vcmp.lt.s32.totalorder %v1311, 0
        %v1313 = vsub.s32 0, %v1311
        %v1314 = vsel %vm1312, %v1313, %v1311
        %v1315 = vclz %v1314
        %v1316 = vsub.s32 %v1315, 2
        %vm1317 = vcmp.gt.s32.totalorder 0, %v1316
        %v1318 = vsel %vm1317, 0, %v1316
        %v1319 = vsub.s32 32, %v1318
        %v1320 = vshll.u32 %v1311, %v1318
        %v1321 = vshrl.u32 %v1303, %v1319
        %v1322 = vor.u32 %v1320, %v1321
        %v1323 = vsub.s32 4294967266, %v1318
        %v1324 = vadd.s32 %v1323, 127
        %v1325 = vshll.u32 %v1324, 23
        %v1326 = vor.u32 4788187, %v1325
        %v1327 = vand.u32 2147483647, %v1326
        %v1329 = vcvt.s32.f32 %v1322
        %v1330 = vmul.f32 %v1329, %v1327
        %v1331 = vxor.u32 %v1330, 2147483648
        %v1332 = vsel %vm1211, %v1331, %v1330
        %v1333 = vsub.s32 4, %v1309
        %v1334 = vsel %vm1211, %v1333, %v1309
        %v1335 = vsel %vm1210, %v415, %v1332
        %v1336 = vsel %vm1210, 0, %v1334
        %v1337 = vmul.f32 %v1335, %v1335
        %v1338 = vmul.f32 %v1337, -0.001358992
        %v1339 = vadd.f32 %v1338, 0.041655596
        %v1340 = vmul.f32 %v1337, %v1339
        %v1341 = vadd.f32 %v1340, -0.4999988
        %v1342 = vmul.f32 %v1337, %v1341
        %v1343 = vadd.f32 1.0, %v1342
        %v1344 = vmul.f32 %v1335, %v1335
        %v1345 = vmul.f32 %v1344, -0.00019511016
        %v1346 = vadd.f32 %v1345, 0.008332121
        %v1347 = vmul.f32 %v1344, %v1346
        %v1348 = vadd.f32 %v1347, -0.16666654
        %v1349 = vmul.f32 %v1344, %v1348
        %v1350 = vadd.f32 %v1349, 1.0
        %v1351 = vmul.f32 %v1350, %v1335
        %vm1352 = vweird.f32 %v415
        %v1353 = vadd.s32 %v1336, 3
        %v1354 = vand.u32 %v1353, 3
        %vm1355 = vcmp.lt.s32.totalorder %v1354, 2
        %vm1356 = vcmp.eq.s32.totalorder %v1354, 0
        %v1357 = vxor.u32 %v1351, 2147483648
        %v1358 = vsel %vm1356, %v1343, %v1357
        %vm1359 = vcmp.eq.s32.totalorder %v1354, 2
        %v1360 = vxor.u32 %v1343, 2147483648
        %v1361 = vsel %vm1359, %v1360, %v1351
        %v1362 = vsel %vm1355, %v1358, %v1361
        %v1363 = vsel %vm1352, nan, %v1362
        %v1364 = vand.u32 2147483647, %v416
        %vm1365 = vcmp.le.f32.partialorder %v1364, 0.7853982
        %vm1366 = vcmp.lt.s32.totalorder %v416, 0
        %v1367 = vand.u32 %v416, 2139095040
        %v1368 = vshrl.u32 %v1367, 23
        %v1369 = vsub.s32 %v1368, 127
        %v1370 = vand.u32 2147483647, %v416
        %v1371 = vand.u32 %v1370, 8388607
        %v1372 = vor.u32 %v1371, 8388608
        %v1373 = vsub.s32 0, %v1372
        %v1374 = vadd.s32 %v1369, 1
        %vm1375 = vcmp.gt.s32.totalorder %v1374, 0
        %v1376 = vsel %vm1375, %v1374, 0
        %v1377 = vshrl.u32 %v1376, 5
        %v1378 = vand.u32 %v1376, 31
        %v1379 = vsub.s32 32, %v1378
        %v1380 = vshrl.u32 683565275, %v1379
        %v1381 = vshll.u32 683565275, %v1378
        %v1382 = vshrl.u32 2475754826, %v1379
        %v1383 = vor.u32 %v1381, %v1382
        %v1384 = vshll.u32 2475754826, %v1378
        %v1385 = vshrl.u32 2131351028, %v1379
        %v1386 = vor.u32 %v1384, %v1385
        %v1387 = vshll.u32 2131351028, %v1378
        %v1388 = vshrl.u32 2102212464, %v1379
        %v1389 = vor.u32 %v1387, %v1388
        %v1390 = vshll.u32 2102212464, %v1378
        %v1391 = vshrl.u32 920167782, %v1379
        %v1392 = vor.u32 %v1390, %v1391
        %v1393 = vshll.u32 920167782, %v1378
        %v1394 = vshrl.u32 1326507024, %v1379
        %v1395 = vor.u32 %v1393, %v1394
        %vm1396 = vcmp.lt.s32.totalorder %v1377, 1
        %vm1397 = vcmp.lt.s32.totalorder %v1377, 2
        %vm1398 = vcmp.lt.s32.totalorder %v1377, 3
        %vm1399 = vcmp.lt.s32.totalorder %v1377, 4
        %v1400 = vsel %vm1396, %v1380, %v1383
        %v1401 = vsel %vm1399, %v1389, 2102212464
        %v1402 = vsel %vm1398, %v1386, %v1401
        %v1403 = vsel %vm1397, %v1400, %v1402
        %v1404 = vsel %vm1396, %v1383, %v1386
        %v1405 = vsel %vm1399, %v1392, 920167782
        %v1406 = vsel %vm1398, %v1389, %v1405
        %v1407 = vsel %vm1397, %v1404, %v1406
        %v1408 = vsel %vm1396, %v1386, %v1389
        %v1409 = vsel %vm1399, %v1395, 1326507024
        %v1410 = vsel %vm1398, %v1392, %v1409
        %v1411 = vsel %vm1397, %v1408, %v1410
        %v1412 = vshll.u32 %v1372, 8
        %v1413 = vand.u32 %v1412, 65535
        %v1414 = vshrl.u32 %v1412, 16
        %v1415 = vand.u32 %v1411, 65535
        %v1416 = vshrl.u32 %v1411, 16
        %v1417 = vmul.u32 %v1413, %v1415
        %v1418 = vmul.u32 %v1413, %v1416
        %v1419 = vmul.u32 %v1414, %v1415
        %v1420 = vmul.u32 %v1414, %v1416
        %v1421 = vshll.u32 %v1418, 16
        %v1422 = vshrl.u32 %v1418, 16
        %v1423 = vshll.u32 %v1419, 16
        %v1424 = vshrl.u32 %v1419, 16
        %vm1425 = vc.u32 %v1417, %v1421
        %v1426 = vsel %vm1425, 1, 0
        %v1427 = vadd.s32 %v1417, %v1421
        %v1428 = vadd.s32 %v1420, %v1426
        %vm1429 = vc.u32 %v1427, %v1423
        %v1430 = vsel %vm1429, 1, 0
        %v1431 = vadd.s32 %v1427, %v1423
        %v1432 = vadd.s32 %v1428, %v1430
        %v1433 = vadd.s32 %v1432, %v1422
        %v1434 = vadd.s32 %v1433, %v1424
        %v1435 = vand.u32 %v1412, 65535
        %v1436 = vshrl.u32 %v1412, 16
        %v1437 = vand.u32 %v1407, 65535
        %v1438 = vshrl.u32 %v1407, 16
        %v1439 = vmul.u32 %v1435, %v1437
        %v1440 = vmul.u32 %v1435, %v1438
        %v1441 = vmul.u32 %v1436, %v1437
        %v1442 = vmul.u32 %v1436, %v1438
        %v1443 = vshll.u32 %v1440, 16
        %v1444 = vshrl.u32 %v1440, 16
        %v1445 = vshll.u32 %v1441, 16
        %v1446 = vshrl.u32 %v1441, 16
        %vm1447 = vc.u32 %v1439, %v1443
        %v1448 = vsel %vm1447, 1, 0
        %v1449 = vadd.s32 %v1439, %v1443
        %v1450 = vadd.s32 %v1442, %v1448
        %vm1451 = vc.u32 %v1449, %v1445
        %v1452 = vsel %vm1451, 1, 0
        %v1453 = vadd.s32 %v1449, %v1445
        %v1454 = vadd.s32 %v1450, %v1452
        %v1455 = vadd.s32 %v1454, %v1444
        %v1456 = vadd.s32 %v1455, %v1446
        %v1457 = vmul.u32 %v1412, %v1403
        %v1458 = vadd.s32 %v1434, %v1453
        %vm1459 = vc.u32 %v1434, %v1453
        %v1460 = vadd.s32 %v1456, 1
        %v1461 = vsel %vm1459, %v1460, %v1456
        %v1462 = vadd.s32 %v1457, %v1461
        %v1463 = vadd.s32 %v1462, 536870912
        %v1464 = vshrl.u32 %v1463, 30
        %v1465 = vshll.u32 %v1464, 30
        %v1466 = vsub.s32 %v1462, %v1465
        %vm1467 = vcmp.lt.s32.totalorder %v1466, 0
        %v1468 = vsub.s32 0, %v1466
        %v1469 = vsel %vm1467, %v1468, %v1466
        %v1470 = vclz %v1469
        %v1471 = vsub.s32 %v1470, 2
        %vm1472 = vcmp.gt.s32.totalorder 0, %v1471
        %v1473 = vsel %vm1472, 0, %v1471
        %v1474 = vsub.s32 32, %v1473
        %v1475 = vshll.u32 %v1466, %v1473
        %v1476 = vshrl.u32 %v1458, %v1474
        %v1477 = vor.u32 %v1475, %v1476
        %v1478 = vsub.s32 4294967266, %v1473
        %v1479 = vadd.s32 %v1478, 127
        %v1480 = vshll.u32 %v1479, 23
        %v1481 = vor.u32 4788187, %v1480
        %v1482 = vand.u32 2147483647, %v1481
        %v1484 = vcvt.s32.f32 %v1477
        %v1485 = vmul.f32 %v1484, %v1482
        %v1486 = vxor.u32 %v1485, 2147483648
        %v1487 = vsel %vm1366, %v1486, %v1485
        %v1488 = vsub.s32 4, %v1464
        %v1489 = vsel %vm1366, %v1488, %v1464
        %v1490 = vsel %vm1365, %v416, %v1487
        %v1491 = vsel %vm1365, 0, %v1489
        %v1492 = vmul.f32 %v1490, %v1490
        %v1493 = vmul.f32 %v1492, -0.001358992
        %v1494 = vadd.f32 %v1493, 0.041655596
        %v1495 = vmul.f32 %v1492, %v1494
        %v1496 = vadd.f32 %v1495, -0.4999988
        %v1497 = vmul.f32 %v1492, %v1496
        %v1498 = vadd.f32 1.0, %v1497
        %v1499 = vmul.f32 %v1490, %v1490
        %v1500 = vmul.f32 %v1499, -0.00019511016
        %v1501 = vadd.f32 %v1500, 0.008332121
        %v1502 = vmul.f32 %v1499, %v1501
        %v1503 = vadd.f32 %v1502, -0.16666654
        %v1504 = vmul.f32 %v1499, %v1503
        %v1505 = vadd.f32 %v1504, 1.0
        %v1506 = vmul.f32 %v1505, %v1490
        %vm1507 = vweird.f32 %v416
        %v1508 = vadd.s32 %v1491, 3
        %v1509 = vand.u32 %v1508, 3
        %vm1510 = vcmp.lt.s32.totalorder %v1509, 2
        %vm1511 = vcmp.eq.s32.totalorder %v1509, 0
        %v1512 = vxor.u32 %v1506, 2147483648
        %v1513 = vsel %vm1511, %v1498, %v1512
        %vm1514 = vcmp.eq.s32.totalorder %v1509, 2
        %v1515 = vxor.u32 %v1498, 2147483648
        %v1516 = vsel %vm1514, %v1515, %v1506
        %v1517 = vsel %vm1510, %v1513, %v1516
        %v1518 = vsel %vm1507, nan, %v1517
        %v1519 = vand.u32 2147483647, %v417
        %vm1520 = vcmp.le.f32.partialorder %v1519, 0.7853982
        %vm1521 = vcmp.lt.s32.totalorder %v417, 0
        %v1522 = vand.u32 %v417, 2139095040
        %v1523 = vshrl.u32 %v1522, 23
        %v1524 = vsub.s32 %v1523, 127
        %v1525 = vand.u32 2147483647, %v417
        %v1526 = vand.u32 %v1525, 8388607
        %v1527 = vor.u32 %v1526, 8388608
        %v1528 = vsub.s32 0, %v1527
        %v1529 = vadd.s32 %v1524, 1
        %vm1530 = vcmp.gt.s32.totalorder %v1529, 0
        %v1531 = vsel %vm1530, %v1529, 0
        %v1532 = vshrl.u32 %v1531, 5
        %v1533 = vand.u32 %v1531, 31
        %v1534 = vsub.s32 32, %v1533
        %v1535 = vshrl.u32 683565275, %v1534
        %v1536 = vshll.u32 683565275, %v1533
        %v1537 = vshrl.u32 2475754826, %v1534
        %v1538 = vor.u32 %v1536, %v1537
        %v1539 = vshll.u32 2475754826, %v1533
        %v1540 = vshrl.u32 2131351028, %v1534
        %v1541 = vor.u32 %v1539, %v1540
        %v1542 = vshll.u32 2131351028, %v1533
        %v1543 = vshrl.u32 2102212464, %v1534
        %v1544 = vor.u32 %v1542, %v1543
        %v1545 = vshll.u32 2102212464, %v1533
        %v1546 = vshrl.u32 920167782, %v1534
        %v1547 = vor.u32 %v1545, %v1546
        %v1548 = vshll.u32 920167782, %v1533
        %v1549 = vshrl.u32 1326507024, %v1534
        %v1550 = vor.u32 %v1548, %v1549
        %vm1551 = vcmp.lt.s32.totalorder %v1532, 1
        %vm1552 = vcmp.lt.s32.totalorder %v1532, 2
        %vm1553 = vcmp.lt.s32.totalorder %v1532, 3
        %vm1554 = vcmp.lt.s32.totalorder %v1532, 4
        %v1555 = vsel %vm1551, %v1535, %v1538
        %v1556 = vsel %vm1554, %v1544, 2102212464
        %v1557 = vsel %vm1553, %v1541, %v1556
        %v1558 = vsel %vm1552, %v1555, %v1557
        %v1559 = vsel %vm1551, %v1538, %v1541
        %v1560 = vsel %vm1554, %v1547, 920167782
        %v1561 = vsel %vm1553, %v1544, %v1560
        %v1562 = vsel %vm1552, %v1559, %v1561
        %v1563 = vsel %vm1551, %v1541, %v1544
        %v1564 = vsel %vm1554, %v1550, 1326507024
        %v1565 = vsel %vm1553, %v1547, %v1564
        %v1566 = vsel %vm1552, %v1563, %v1565
        %v1567 = vshll.u32 %v1527, 8
        %v1568 = vand.u32 %v1567, 65535
        %v1569 = vshrl.u32 %v1567, 16
        %v1570 = vand.u32 %v1566, 65535
        %v1571 = vshrl.u32 %v1566, 16
        %v1572 = vmul.u32 %v1568, %v1570
        %v1573 = vmul.u32 %v1568, %v1571
        %v1574 = vmul.u32 %v1569, %v1570
        %v1575 = vmul.u32 %v1569, %v1571
        %v1576 = vshll.u32 %v1573, 16
        %v1577 = vshrl.u32 %v1573, 16
        %v1578 = vshll.u32 %v1574, 16
        %v1579 = vshrl.u32 %v1574, 16
        %vm1580 = vc.u32 %v1572, %v1576
        %v1581 = vsel %vm1580, 1, 0
        %v1582 = vadd.s32 %v1572, %v1576
        %v1583 = vadd.s32 %v1575, %v1581
        %vm1584 = vc.u32 %v1582, %v1578
        %v1585 = vsel %vm1584, 1, 0
        %v1586 = vadd.s32 %v1582, %v1578
        %v1587 = vadd.s32 %v1583, %v1585
        %v1588 = vadd.s32 %v1587, %v1577
        %v1589 = vadd.s32 %v1588, %v1579
        %v1590 = vand.u32 %v1567, 65535
        %v1591 = vshrl.u32 %v1567, 16
        %v1592 = vand.u32 %v1562, 65535
        %v1593 = vshrl.u32 %v1562, 16
        %v1594 = vmul.u32 %v1590, %v1592
        %v1595 = vmul.u32 %v1590, %v1593
        %v1596 = vmul.u32 %v1591, %v1592
        %v1597 = vmul.u32 %v1591, %v1593
        %v1598 = vshll.u32 %v1595, 16
        %v1599 = vshrl.u32 %v1595, 16
        %v1600 = vshll.u32 %v1596, 16
        %v1601 = vshrl.u32 %v1596, 16
        %vm1602 = vc.u32 %v1594, %v1598
        %v1603 = vsel %vm1602, 1, 0
        %v1604 = vadd.s32 %v1594, %v1598
        %v1605 = vadd.s32 %v1597, %v1603
        %vm1606 = vc.u32 %v1604, %v1600
        %v1607 = vsel %vm1606, 1, 0
        %v1608 = vadd.s32 %v1604, %v1600
        %v1609 = vadd.s32 %v1605, %v1607
        %v1610 = vadd.s32 %v1609, %v1599
        %v1611 = vadd.s32 %v1610, %v1601
        %v1612 = vmul.u32 %v1567, %v1558
        %v1613 = vadd.s32 %v1589, %v1608
        %vm1614 = vc.u32 %v1589, %v1608
        %v1615 = vadd.s32 %v1611, 1
        %v1616 = vsel %vm1614, %v1615, %v1611
        %v1617 = vadd.s32 %v1612, %v1616
        %v1618 = vadd.s32 %v1617, 536870912
        %v1619 = vshrl.u32 %v1618, 30
        %v1620 = vshll.u32 %v1619, 30
        %v1621 = vsub.s32 %v1617, %v1620
        %vm1622 = vcmp.lt.s32.totalorder %v1621, 0
        %v1623 = vsub.s32 0, %v1621
        %v1624 = vsel %vm1622, %v1623, %v1621
        %v1625 = vclz %v1624
        %v1626 = vsub.s32 %v1625, 2
        %vm1627 = vcmp.gt.s32.totalorder 0, %v1626
        %v1628 = vsel %vm1627, 0, %v1626
        %v1629 = vsub.s32 32, %v1628
        %v1630 = vshll.u32 %v1621, %v1628
        %v1631 = vshrl.u32 %v1613, %v1629
        %v1632 = vor.u32 %v1630, %v1631
        %v1633 = vsub.s32 4294967266, %v1628
        %v1634 = vadd.s32 %v1633, 127
        %v1635 = vshll.u32 %v1634, 23
        %v1636 = vor.u32 4788187, %v1635
        %v1637 = vand.u32 2147483647, %v1636
        %v1639 = vcvt.s32.f32 %v1632
        %v1640 = vmul.f32 %v1639, %v1637
        %v1641 = vxor.u32 %v1640, 2147483648
        %v1642 = vsel %vm1521, %v1641, %v1640
        %v1643 = vsub.s32 4, %v1619
        %v1644 = vsel %vm1521, %v1643, %v1619
        %v1645 = vsel %vm1520, %v417, %v1642
        %v1646 = vsel %vm1520, 0, %v1644
        %v1647 = vmul.f32 %v1645, %v1645
        %v1648 = vmul.f32 %v1647, -0.001358992
        %v1649 = vadd.f32 %v1648, 0.041655596
        %v1650 = vmul.f32 %v1647, %v1649
        %v1651 = vadd.f32 %v1650, -0.4999988
        %v1652 = vmul.f32 %v1647, %v1651
        %v1653 = vadd.f32 1.0, %v1652
        %v1654 = vmul.f32 %v1645, %v1645
        %v1655 = vmul.f32 %v1654, -0.00019511016
        %v1656 = vadd.f32 %v1655, 0.008332121
        %v1657 = vmul.f32 %v1654, %v1656
        %v1658 = vadd.f32 %v1657, -0.16666654
        %v1659 = vmul.f32 %v1654, %v1658
        %v1660 = vadd.f32 %v1659, 1.0
        %v1661 = vmul.f32 %v1660, %v1645
        %vm1662 = vweird.f32 %v417
        %v1663 = vadd.s32 %v1646, 3
        %v1664 = vand.u32 %v1663, 3
        %vm1665 = vcmp.lt.s32.totalorder %v1664, 2
        %vm1666 = vcmp.eq.s32.totalorder %v1664, 0
        %v1667 = vxor.u32 %v1661, 2147483648
        %v1668 = vsel %vm1666, %v1653, %v1667
        %vm1669 = vcmp.eq.s32.totalorder %v1664, 2
        %v1670 = vxor.u32 %v1653, 2147483648
        %v1671 = vsel %vm1669, %v1670, %v1661
        %v1672 = vsel %vm1665, %v1668, %v1671
        %v1673 = vsel %vm1662, nan, %v1672
        %v1674 = vand.u32 2147483647, %v418
        %vm1675 = vcmp.le.f32.partialorder %v1674, 0.7853982
        %vm1676 = vcmp.lt.s32.totalorder %v418, 0
        %v1677 = vand.u32 %v418, 2139095040
        %v1678 = vshrl.u32 %v1677, 23
        %v1679 = vsub.s32 %v1678, 127
        %v1680 = vand.u32 2147483647, %v418
        %v1681 = vand.u32 %v1680, 8388607
        %v1682 = vor.u32 %v1681, 8388608
        %v1683 = vsub.s32 0, %v1682
        %v1684 = vadd.s32 %v1679, 1
        %vm1685 = vcmp.gt.s32.totalorder %v1684, 0
        %v1686 = vsel %vm1685, %v1684, 0
        %v1687 = vshrl.u32 %v1686, 5
        %v1688 = vand.u32 %v1686, 31
        %v1689 = vsub.s32 32, %v1688
        %v1690 = vshrl.u32 683565275, %v1689
        %v1691 = vshll.u32 683565275, %v1688
        %v1692 = vshrl.u32 2475754826, %v1689
        %v1693 = vor.u32 %v1691, %v1692
        %v1694 = vshll.u32 2475754826, %v1688
        %v1695 = vshrl.u32 2131351028, %v1689
        %v1696 = vor.u32 %v1694, %v1695
        %v1697 = vshll.u32 2131351028, %v1688
        %v1698 = vshrl.u32 2102212464, %v1689
        %v1699 = vor.u32 %v1697, %v1698
        %v1700 = vshll.u32 2102212464, %v1688
        %v1701 = vshrl.u32 920167782, %v1689
        %v1702 = vor.u32 %v1700, %v1701
        %v1703 = vshll.u32 920167782, %v1688
        %v1704 = vshrl.u32 1326507024, %v1689
        %v1705 = vor.u32 %v1703, %v1704
        %vm1706 = vcmp.lt.s32.totalorder %v1687, 1
        %vm1707 = vcmp.lt.s32.totalorder %v1687, 2
        %vm1708 = vcmp.lt.s32.totalorder %v1687, 3
        %vm1709 = vcmp.lt.s32.totalorder %v1687, 4
        %v1710 = vsel %vm1706, %v1690, %v1693
        %v1711 = vsel %vm1709, %v1699, 2102212464
        %v1712 = vsel %vm1708, %v1696, %v1711
        %v1713 = vsel %vm1707, %v1710, %v1712
        %v1714 = vsel %vm1706, %v1693, %v1696
        %v1715 = vsel %vm1709, %v1702, 920167782
        %v1716 = vsel %vm1708, %v1699, %v1715
        %v1717 = vsel %vm1707, %v1714, %v1716
        %v1718 = vsel %vm1706, %v1696, %v1699
        %v1719 = vsel %vm1709, %v1705, 1326507024
        %v1720 = vsel %vm1708, %v1702, %v1719
        %v1721 = vsel %vm1707, %v1718, %v1720
        %v1722 = vshll.u32 %v1682, 8
        %v1723 = vand.u32 %v1722, 65535
        %v1724 = vshrl.u32 %v1722, 16
        %v1725 = vand.u32 %v1721, 65535
        %v1726 = vshrl.u32 %v1721, 16
        %v1727 = vmul.u32 %v1723, %v1725
        %v1728 = vmul.u32 %v1723, %v1726
        %v1729 = vmul.u32 %v1724, %v1725
        %v1730 = vmul.u32 %v1724, %v1726
        %v1731 = vshll.u32 %v1728, 16
        %v1732 = vshrl.u32 %v1728, 16
        %v1733 = vshll.u32 %v1729, 16
        %v1734 = vshrl.u32 %v1729, 16
        %vm1735 = vc.u32 %v1727, %v1731
        %v1736 = vsel %vm1735, 1, 0
        %v1737 = vadd.s32 %v1727, %v1731
        %v1738 = vadd.s32 %v1730, %v1736
        %vm1739 = vc.u32 %v1737, %v1733
        %v1740 = vsel %vm1739, 1, 0
        %v1741 = vadd.s32 %v1737, %v1733
        %v1742 = vadd.s32 %v1738, %v1740
        %v1743 = vadd.s32 %v1742, %v1732
        %v1744 = vadd.s32 %v1743, %v1734
        %v1745 = vand.u32 %v1722, 65535
        %v1746 = vshrl.u32 %v1722, 16
        %v1747 = vand.u32 %v1717, 65535
        %v1748 = vshrl.u32 %v1717, 16
        %v1749 = vmul.u32 %v1745, %v1747
        %v1750 = vmul.u32 %v1745, %v1748
        %v1751 = vmul.u32 %v1746, %v1747
        %v1752 = vmul.u32 %v1746, %v1748
        %v1753 = vshll.u32 %v1750, 16
        %v1754 = vshrl.u32 %v1750, 16
        %v1755 = vshll.u32 %v1751, 16
        %v1756 = vshrl.u32 %v1751, 16
        %vm1757 = vc.u32 %v1749, %v1753
        %v1758 = vsel %vm1757, 1, 0
        %v1759 = vadd.s32 %v1749, %v1753
        %v1760 = vadd.s32 %v1752, %v1758
        %vm1761 = vc.u32 %v1759, %v1755
        %v1762 = vsel %vm1761, 1, 0
        %v1763 = vadd.s32 %v1759, %v1755
        %v1764 = vadd.s32 %v1760, %v1762
        %v1765 = vadd.s32 %v1764, %v1754
        %v1766 = vadd.s32 %v1765, %v1756
        %v1767 = vmul.u32 %v1722, %v1713
        %v1768 = vadd.s32 %v1744, %v1763
        %vm1769 = vc.u32 %v1744, %v1763
        %v1770 = vadd.s32 %v1766, 1
        %v1771 = vsel %vm1769, %v1770, %v1766
        %v1772 = vadd.s32 %v1767, %v1771
        %v1773 = vadd.s32 %v1772, 536870912
        %v1774 = vshrl.u32 %v1773, 30
        %v1775 = vshll.u32 %v1774, 30
        %v1776 = vsub.s32 %v1772, %v1775
        %vm1777 = vcmp.lt.s32.totalorder %v1776, 0
        %v1778 = vsub.s32 0, %v1776
        %v1779 = vsel %vm1777, %v1778, %v1776
        %v1780 = vclz %v1779
        %v1781 = vsub.s32 %v1780, 2
        %vm1782 = vcmp.gt.s32.totalorder 0, %v1781
        %v1783 = vsel %vm1782, 0, %v1781
        %v1784 = vsub.s32 32, %v1783
        %v1785 = vshll.u32 %v1776, %v1783
        %v1786 = vshrl.u32 %v1768, %v1784
        %v1787 = vor.u32 %v1785, %v1786
        %v1788 = vsub.s32 4294967266, %v1783
        %v1789 = vadd.s32 %v1788, 127
        %v1790 = vshll.u32 %v1789, 23
        %v1791 = vor.u32 4788187, %v1790
        %v1792 = vand.u32 2147483647, %v1791
        %v1794 = vcvt.s32.f32 %v1787
        %v1795 = vmul.f32 %v1794, %v1792
        %v1796 = vxor.u32 %v1795, 2147483648
        %v1797 = vsel %vm1676, %v1796, %v1795
        %v1798 = vsub.s32 4, %v1774
        %v1799 = vsel %vm1676, %v1798, %v1774
        %v1800 = vsel %vm1675, %v418, %v1797
        %v1801 = vsel %vm1675, 0, %v1799
        %v1802 = vmul.f32 %v1800, %v1800
        %v1803 = vmul.f32 %v1802, -0.001358992
        %v1804 = vadd.f32 %v1803, 0.041655596
        %v1805 = vmul.f32 %v1802, %v1804
        %v1806 = vadd.f32 %v1805, -0.4999988
        %v1807 = vmul.f32 %v1802, %v1806
        %v1808 = vadd.f32 1.0, %v1807
        %v1809 = vmul.f32 %v1800, %v1800
        %v1810 = vmul.f32 %v1809, -0.00019511016
        %v1811 = vadd.f32 %v1810, 0.008332121
        %v1812 = vmul.f32 %v1809, %v1811
        %v1813 = vadd.f32 %v1812, -0.16666654
        %v1814 = vmul.f32 %v1809, %v1813
        %v1815 = vadd.f32 %v1814, 1.0
        %v1816 = vmul.f32 %v1815, %v1800
        %vm1817 = vweird.f32 %v418
        %v1818 = vadd.s32 %v1801, 3
        %v1819 = vand.u32 %v1818, 3
        %vm1820 = vcmp.lt.s32.totalorder %v1819, 2
        %vm1821 = vcmp.eq.s32.totalorder %v1819, 0
        %v1822 = vxor.u32 %v1816, 2147483648
        %v1823 = vsel %vm1821, %v1808, %v1822
        %vm1824 = vcmp.eq.s32.totalorder %v1819, 2
        %v1825 = vxor.u32 %v1808, 2147483648
        %v1826 = vsel %vm1824, %v1825, %v1816
        %v1827 = vsel %vm1820, %v1823, %v1826
        %v1828 = vsel %vm1817, nan, %v1827
        %v1829 = vand.u32 2147483647, %v419
        %vm1830 = vcmp.le.f32.partialorder %v1829, 0.7853982
        %vm1831 = vcmp.lt.s32.totalorder %v419, 0
        %v1832 = vand.u32 %v419, 2139095040
        %v1833 = vshrl.u32 %v1832, 23
        %v1834 = vsub.s32 %v1833, 127
        %v1835 = vand.u32 2147483647, %v419
        %v1836 = vand.u32 %v1835, 8388607
        %v1837 = vor.u32 %v1836, 8388608
        %v1838 = vsub.s32 0, %v1837
        %v1839 = vadd.s32 %v1834, 1
        %vm1840 = vcmp.gt.s32.totalorder %v1839, 0
        %v1841 = vsel %vm1840, %v1839, 0
        %v1842 = vshrl.u32 %v1841, 5
        %v1843 = vand.u32 %v1841, 31
        %v1844 = vsub.s32 32, %v1843
        %v1845 = vshrl.u32 683565275, %v1844
        %v1846 = vshll.u32 683565275, %v1843
        %v1847 = vshrl.u32 2475754826, %v1844
        %v1848 = vor.u32 %v1846, %v1847
        %v1849 = vshll.u32 2475754826, %v1843
        %v1850 = vshrl.u32 2131351028, %v1844
        %v1851 = vor.u32 %v1849, %v1850
        %v1852 = vshll.u32 2131351028, %v1843
        %v1853 = vshrl.u32 2102212464, %v1844
        %v1854 = vor.u32 %v1852, %v1853
        %v1855 = vshll.u32 2102212464, %v1843
        %v1856 = vshrl.u32 920167782, %v1844
        %v1857 = vor.u32 %v1855, %v1856
        %v1858 = vshll.u32 920167782, %v1843
        %v1859 = vshrl.u32 1326507024, %v1844
        %v1860 = vor.u32 %v1858, %v1859
        %vm1861 = vcmp.lt.s32.totalorder %v1842, 1
        %vm1862 = vcmp.lt.s32.totalorder %v1842, 2
        %vm1863 = vcmp.lt.s32.totalorder %v1842, 3
        %vm1864 = vcmp.lt.s32.totalorder %v1842, 4
        %v1865 = vsel %vm1861, %v1845, %v1848
        %v1866 = vsel %vm1864, %v1854, 2102212464
        %v1867 = vsel %vm1863, %v1851, %v1866
        %v1868 = vsel %vm1862, %v1865, %v1867
        %v1869 = vsel %vm1861, %v1848, %v1851
        %v1870 = vsel %vm1864, %v1857, 920167782
        %v1871 = vsel %vm1863, %v1854, %v1870
        %v1872 = vsel %vm1862, %v1869, %v1871
        %v1873 = vsel %vm1861, %v1851, %v1854
        %v1874 = vsel %vm1864, %v1860, 1326507024
        %v1875 = vsel %vm1863, %v1857, %v1874
        %v1876 = vsel %vm1862, %v1873, %v1875
        %v1877 = vshll.u32 %v1837, 8
        %v1878 = vand.u32 %v1877, 65535
        %v1879 = vshrl.u32 %v1877, 16
        %v1880 = vand.u32 %v1876, 65535
        %v1881 = vshrl.u32 %v1876, 16
        %v1882 = vmul.u32 %v1878, %v1880
        %v1883 = vmul.u32 %v1878, %v1881
        %v1884 = vmul.u32 %v1879, %v1880
        %v1885 = vmul.u32 %v1879, %v1881
        %v1886 = vshll.u32 %v1883, 16
        %v1887 = vshrl.u32 %v1883, 16
        %v1888 = vshll.u32 %v1884, 16
        %v1889 = vshrl.u32 %v1884, 16
        %vm1890 = vc.u32 %v1882, %v1886
        %v1891 = vsel %vm1890, 1, 0
        %v1892 = vadd.s32 %v1882, %v1886
        %v1893 = vadd.s32 %v1885, %v1891
        %vm1894 = vc.u32 %v1892, %v1888
        %v1895 = vsel %vm1894, 1, 0
        %v1896 = vadd.s32 %v1892, %v1888
        %v1897 = vadd.s32 %v1893, %v1895
        %v1898 = vadd.s32 %v1897, %v1887
        %v1899 = vadd.s32 %v1898, %v1889
        %v1900 = vand.u32 %v1877, 65535
        %v1901 = vshrl.u32 %v1877, 16
        %v1902 = vand.u32 %v1872, 65535
        %v1903 = vshrl.u32 %v1872, 16
        %v1904 = vmul.u32 %v1900, %v1902
        %v1905 = vmul.u32 %v1900, %v1903
        %v1906 = vmul.u32 %v1901, %v1902
        %v1907 = vmul.u32 %v1901, %v1903
        %v1908 = vshll.u32 %v1905, 16
        %v1909 = vshrl.u32 %v1905, 16
        %v1910 = vshll.u32 %v1906, 16
        %v1911 = vshrl.u32 %v1906, 16
        %vm1912 = vc.u32 %v1904, %v1908
        %v1913 = vsel %vm1912, 1, 0
        %v1914 = vadd.s32 %v1904, %v1908
        %v1915 = vadd.s32 %v1907, %v1913
        %vm1916 = vc.u32 %v1914, %v1910
        %v1917 = vsel %vm1916, 1, 0
        %v1918 = vadd.s32 %v1914, %v1910
        %v1919 = vadd.s32 %v1915, %v1917
        %v1920 = vadd.s32 %v1919, %v1909
        %v1921 = vadd.s32 %v1920, %v1911
        %v1922 = vmul.u32 %v1877, %v1868
        %v1923 = vadd.s32 %v1899, %v1918
        %vm1924 = vc.u32 %v1899, %v1918
        %v1925 = vadd.s32 %v1921, 1
        %v1926 = vsel %vm1924, %v1925, %v1921
        %v1927 = vadd.s32 %v1922, %v1926
        %v1928 = vadd.s32 %v1927, 536870912
        %v1929 = vshrl.u32 %v1928, 30
        %v1930 = vshll.u32 %v1929, 30
        %v1931 = vsub.s32 %v1927, %v1930
        %vm1932 = vcmp.lt.s32.totalorder %v1931, 0
        %v1933 = vsub.s32 0, %v1931
        %v1934 = vsel %vm1932, %v1933, %v1931
        %v1935 = vclz %v1934
        %v1936 = vsub.s32 %v1935, 2
        %vm1937 = vcmp.gt.s32.totalorder 0, %v1936
        %v1938 = vsel %vm1937, 0, %v1936
        %v1939 = vsub.s32 32, %v1938
        %v1940 = vshll.u32 %v1931, %v1938
        %v1941 = vshrl.u32 %v1923, %v1939
        %v1942 = vor.u32 %v1940, %v1941
        %v1943 = vsub.s32 4294967266, %v1938
        %v1944 = vadd.s32 %v1943, 127
        %v1945 = vshll.u32 %v1944, 23
        %v1946 = vor.u32 4788187, %v1945
        %v1947 = vand.u32 2147483647, %v1946
        %v1949 = vcvt.s32.f32 %v1942
        %v1950 = vmul.f32 %v1949, %v1947
        %v1951 = vxor.u32 %v1950, 2147483648
        %v1952 = vsel %vm1831, %v1951, %v1950
        %v1953 = vsub.s32 4, %v1929
        %v1954 = vsel %vm1831, %v1953, %v1929
        %v1955 = vsel %vm1830, %v419, %v1952
        %v1956 = vsel %vm1830, 0, %v1954
        %v1957 = vmul.f32 %v1955, %v1955
        %v1958 = vmul.f32 %v1957, -0.001358992
        %v1959 = vadd.f32 %v1958, 0.041655596
        %v1960 = vmul.f32 %v1957, %v1959
        %v1961 = vadd.f32 %v1960, -0.4999988
        %v1962 = vmul.f32 %v1957, %v1961
        %v1963 = vadd.f32 1.0, %v1962
        %v1964 = vmul.f32 %v1955, %v1955
        %v1965 = vmul.f32 %v1964, -0.00019511016
        %v1966 = vadd.f32 %v1965, 0.008332121
        %v1967 = vmul.f32 %v1964, %v1966
        %v1968 = vadd.f32 %v1967, -0.16666654
        %v1969 = vmul.f32 %v1964, %v1968
        %v1970 = vadd.f32 %v1969, 1.0
        %v1971 = vmul.f32 %v1970, %v1955
        %vm1972 = vweird.f32 %v419
        %v1973 = vadd.s32 %v1956, 3
        %v1974 = vand.u32 %v1973, 3
        %vm1975 = vcmp.lt.s32.totalorder %v1974, 2
        %vm1976 = vcmp.eq.s32.totalorder %v1974, 0
        %v1977 = vxor.u32 %v1971, 2147483648
        %v1978 = vsel %vm1976, %v1963, %v1977
        %vm1979 = vcmp.eq.s32.totalorder %v1974, 2
        %v1980 = vxor.u32 %v1963, 2147483648
        %v1981 = vsel %vm1979, %v1980, %v1971
        %v1982 = vsel %vm1975, %v1978, %v1981
        %v1983 = vsel %vm1972, nan, %v1982
        %v1984 = vand.u32 2147483647, %v420
        %vm1985 = vcmp.le.f32.partialorder %v1984, 0.7853982
        %vm1986 = vcmp.lt.s32.totalorder %v420, 0
        %v1987 = vand.u32 %v420, 2139095040
        %v1988 = vshrl.u32 %v1987, 23
        %v1989 = vsub.s32 %v1988, 127
        %v1990 = vand.u32 2147483647, %v420
        %v1991 = vand.u32 %v1990, 8388607
        %v1992 = vor.u32 %v1991, 8388608
        %v1993 = vsub.s32 0, %v1992
        %v1994 = vadd.s32 %v1989, 1
        %vm1995 = vcmp.gt.s32.totalorder %v1994, 0
        %v1996 = vsel %vm1995, %v1994, 0
        %v1997 = vshrl.u32 %v1996, 5
        %v1998 = vand.u32 %v1996, 31
        %v1999 = vsub.s32 32, %v1998
        %v2000 = vshrl.u32 683565275, %v1999
        %v2001 = vshll.u32 683565275, %v1998
        %v2002 = vshrl.u32 2475754826, %v1999
        %v2003 = vor.u32 %v2001, %v2002
        %v2004 = vshll.u32 2475754826, %v1998
        %v2005 = vshrl.u32 2131351028, %v1999
        %v2006 = vor.u32 %v2004, %v2005
        %v2007 = vshll.u32 2131351028, %v1998
        %v2008 = vshrl.u32 2102212464, %v1999
        %v2009 = vor.u32 %v2007, %v2008
        %v2010 = vshll.u32 2102212464, %v1998
        %v2011 = vshrl.u32 920167782, %v1999
        %v2012 = vor.u32 %v2010, %v2011
        %v2013 = vshll.u32 920167782, %v1998
        %v2014 = vshrl.u32 1326507024, %v1999
        %v2015 = vor.u32 %v2013, %v2014
        %vm2016 = vcmp.lt.s32.totalorder %v1997, 1
        %vm2017 = vcmp.lt.s32.totalorder %v1997, 2
        %vm2018 = vcmp.lt.s32.totalorder %v1997, 3
        %vm2019 = vcmp.lt.s32.totalorder %v1997, 4
        %v2020 = vsel %vm2016, %v2000, %v2003
        %v2021 = vsel %vm2019, %v2009, 2102212464
        %v2022 = vsel %vm2018, %v2006, %v2021
        %v2023 = vsel %vm2017, %v2020, %v2022
        %v2024 = vsel %vm2016, %v2003, %v2006
        %v2025 = vsel %vm2019, %v2012, 920167782
        %v2026 = vsel %vm2018, %v2009, %v2025
        %v2027 = vsel %vm2017, %v2024, %v2026
        %v2028 = vsel %vm2016, %v2006, %v2009
        %v2029 = vsel %vm2019, %v2015, 1326507024
        %v2030 = vsel %vm2018, %v2012, %v2029
        %v2031 = vsel %vm2017, %v2028, %v2030
        %v2032 = vshll.u32 %v1992, 8
        %v2033 = vand.u32 %v2032, 65535
        %v2034 = vshrl.u32 %v2032, 16
        %v2035 = vand.u32 %v2031, 65535
        %v2036 = vshrl.u32 %v2031, 16
        %v2037 = vmul.u32 %v2033, %v2035
        %v2038 = vmul.u32 %v2033, %v2036
        %v2039 = vmul.u32 %v2034, %v2035
        %v2040 = vmul.u32 %v2034, %v2036
        %v2041 = vshll.u32 %v2038, 16
        %v2042 = vshrl.u32 %v2038, 16
        %v2043 = vshll.u32 %v2039, 16
        %v2044 = vshrl.u32 %v2039, 16
        %vm2045 = vc.u32 %v2037, %v2041
        %v2046 = vsel %vm2045, 1, 0
        %v2047 = vadd.s32 %v2037, %v2041
        %v2048 = vadd.s32 %v2040, %v2046
        %vm2049 = vc.u32 %v2047, %v2043
        %v2050 = vsel %vm2049, 1, 0
        %v2051 = vadd.s32 %v2047, %v2043
        %v2052 = vadd.s32 %v2048, %v2050
        %v2053 = vadd.s32 %v2052, %v2042
        %v2054 = vadd.s32 %v2053, %v2044
        %v2055 = vand.u32 %v2032, 65535
        %v2056 = vshrl.u32 %v2032, 16
        %v2057 = vand.u32 %v2027, 65535
        %v2058 = vshrl.u32 %v2027, 16
        %v2059 = vmul.u32 %v2055, %v2057
        %v2060 = vmul.u32 %v2055, %v2058
        %v2061 = vmul.u32 %v2056, %v2057
        %v2062 = vmul.u32 %v2056, %v2058
        %v2063 = vshll.u32 %v2060, 16
        %v2064 = vshrl.u32 %v2060, 16
        %v2065 = vshll.u32 %v2061, 16
        %v2066 = vshrl.u32 %v2061, 16
        %vm2067 = vc.u32 %v2059, %v2063
        %v2068 = vsel %vm2067, 1, 0
        %v2069 = vadd.s32 %v2059, %v2063
        %v2070 = vadd.s32 %v2062, %v2068
        %vm2071 = vc.u32 %v2069, %v2065
        %v2072 = vsel %vm2071, 1, 0
        %v2073 = vadd.s32 %v2069, %v2065
        %v2074 = vadd.s32 %v2070, %v2072
        %v2075 = vadd.s32 %v2074, %v2064
        %v2076 = vadd.s32 %v2075, %v2066
        %v2077 = vmul.u32 %v2032, %v2023
        %v2078 = vadd.s32 %v2054, %v2073
        %vm2079 = vc.u32 %v2054, %v2073
        %v2080 = vadd.s32 %v2076, 1
        %v2081 = vsel %vm2079, %v2080, %v2076
        %v2082 = vadd.s32 %v2077, %v2081
        %v2083 = vadd.s32 %v2082, 536870912
        %v2084 = vshrl.u32 %v2083, 30
        %v2085 = vshll.u32 %v2084, 30
        %v2086 = vsub.s32 %v2082, %v2085
        %vm2087 = vcmp.lt.s32.totalorder %v2086, 0
        %v2088 = vsub.s32 0, %v2086
        %v2089 = vsel %vm2087, %v2088, %v2086
        %v2090 = vclz %v2089
        %v2091 = vsub.s32 %v2090, 2
        %vm2092 = vcmp.gt.s32.totalorder 0, %v2091
        %v2093 = vsel %vm2092, 0, %v2091
        %v2094 = vsub.s32 32, %v2093
        %v2095 = vshll.u32 %v2086, %v2093
        %v2096 = vshrl.u32 %v2078, %v2094
        %v2097 = vor.u32 %v2095, %v2096
        %v2098 = vsub.s32 4294967266, %v2093
        %v2099 = vadd.s32 %v2098, 127
        %v2100 = vshll.u32 %v2099, 23
        %v2101 = vor.u32 4788187, %v2100
        %v2102 = vand.u32 2147483647, %v2101
        %v2104 = vcvt.s32.f32 %v2097
        %v2105 = vmul.f32 %v2104, %v2102
        %v2106 = vxor.u32 %v2105, 2147483648
        %v2107 = vsel %vm1986, %v2106, %v2105
        %v2108 = vsub.s32 4, %v2084
        %v2109 = vsel %vm1986, %v2108, %v2084
        %v2110 = vsel %vm1985, %v420, %v2107
        %v2111 = vsel %vm1985, 0, %v2109
        %v2112 = vmul.f32 %v2110, %v2110
        %v2113 = vmul.f32 %v2112, -0.001358992
        %v2114 = vadd.f32 %v2113, 0.041655596
        %v2115 = vmul.f32 %v2112, %v2114
        %v2116 = vadd.f32 %v2115, -0.4999988
        %v2117 = vmul.f32 %v2112, %v2116
        %v2118 = vadd.f32 1.0, %v2117
        %v2119 = vmul.f32 %v2110, %v2110
        %v2120 = vmul.f32 %v2119, -0.00019511016
        %v2121 = vadd.f32 %v2120, 0.008332121
        %v2122 = vmul.f32 %v2119, %v2121
        %v2123 = vadd.f32 %v2122, -0.16666654
        %v2124 = vmul.f32 %v2119, %v2123
        %v2125 = vadd.f32 %v2124, 1.0
        %v2126 = vmul.f32 %v2125, %v2110
        %vm2127 = vweird.f32 %v420
        %v2128 = vadd.s32 %v2111, 3
        %v2129 = vand.u32 %v2128, 3
        %vm2130 = vcmp.lt.s32.totalorder %v2129, 2
        %vm2131 = vcmp.eq.s32.totalorder %v2129, 0
        %v2132 = vxor.u32 %v2126, 2147483648
        %v2133 = vsel %vm2131, %v2118, %v2132
        %vm2134 = vcmp.eq.s32.totalorder %v2129, 2
        %v2135 = vxor.u32 %v2118, 2147483648
        %v2136 = vsel %vm2134, %v2135, %v2126
        %v2137 = vsel %vm2130, %v2133, %v2136
        %v2138 = vsel %vm2127, nan, %v2137
        %v2139 = vand.u32 2147483647, %v421
        %vm2140 = vcmp.le.f32.partialorder %v2139, 0.7853982
        %vm2141 = vcmp.lt.s32.totalorder %v421, 0
        %v2142 = vand.u32 %v421, 2139095040
        %v2143 = vshrl.u32 %v2142, 23
        %v2144 = vsub.s32 %v2143, 127
        %v2145 = vand.u32 2147483647, %v421
        %v2146 = vand.u32 %v2145, 8388607
        %v2147 = vor.u32 %v2146, 8388608
        %v2148 = vsub.s32 0, %v2147
        %v2149 = vadd.s32 %v2144, 1
        %vm2150 = vcmp.gt.s32.totalorder %v2149, 0
        %v2151 = vsel %vm2150, %v2149, 0
        %v2152 = vshrl.u32 %v2151, 5
        %v2153 = vand.u32 %v2151, 31
        %v2154 = vsub.s32 32, %v2153
        %v2155 = vshrl.u32 683565275, %v2154
        %v2156 = vshll.u32 683565275, %v2153
        %v2157 = vshrl.u32 2475754826, %v2154
        %v2158 = vor.u32 %v2156, %v2157
        %v2159 = vshll.u32 2475754826, %v2153
        %v2160 = vshrl.u32 2131351028, %v2154
        %v2161 = vor.u32 %v2159, %v2160
        %v2162 = vshll.u32 2131351028, %v2153
        %v2163 = vshrl.u32 2102212464, %v2154
        %v2164 = vor.u32 %v2162, %v2163
        %v2165 = vshll.u32 2102212464, %v2153
        %v2166 = vshrl.u32 920167782, %v2154
        %v2167 = vor.u32 %v2165, %v2166
        %v2168 = vshll.u32 920167782, %v2153
        %v2169 = vshrl.u32 1326507024, %v2154
        %v2170 = vor.u32 %v2168, %v2169
        %vm2171 = vcmp.lt.s32.totalorder %v2152, 1
        %vm2172 = vcmp.lt.s32.totalorder %v2152, 2
        %vm2173 = vcmp.lt.s32.totalorder %v2152, 3
        %vm2174 = vcmp.lt.s32.totalorder %v2152, 4
        %v2175 = vsel %vm2171, %v2155, %v2158
        %v2176 = vsel %vm2174, %v2164, 2102212464
        %v2177 = vsel %vm2173, %v2161, %v2176
        %v2178 = vsel %vm2172, %v2175, %v2177
        %v2179 = vsel %vm2171, %v2158, %v2161
        %v2180 = vsel %vm2174, %v2167, 920167782
        %v2181 = vsel %vm2173, %v2164, %v2180
        %v2182 = vsel %vm2172, %v2179, %v2181
        %v2183 = vsel %vm2171, %v2161, %v2164
        %v2184 = vsel %vm2174, %v2170, 1326507024
        %v2185 = vsel %vm2173, %v2167, %v2184
        %v2186 = vsel %vm2172, %v2183, %v2185
        %v2187 = vshll.u32 %v2147, 8
        %v2188 = vand.u32 %v2187, 65535
        %v2189 = vshrl.u32 %v2187, 16
        %v2190 = vand.u32 %v2186, 65535
        %v2191 = vshrl.u32 %v2186, 16
        %v2192 = vmul.u32 %v2188, %v2190
        %v2193 = vmul.u32 %v2188, %v2191
        %v2194 = vmul.u32 %v2189, %v2190
        %v2195 = vmul.u32 %v2189, %v2191
        %v2196 = vshll.u32 %v2193, 16
        %v2197 = vshrl.u32 %v2193, 16
        %v2198 = vshll.u32 %v2194, 16
        %v2199 = vshrl.u32 %v2194, 16
        %vm2200 = vc.u32 %v2192, %v2196
        %v2201 = vsel %vm2200, 1, 0
        %v2202 = vadd.s32 %v2192, %v2196
        %v2203 = vadd.s32 %v2195, %v2201
        %vm2204 = vc.u32 %v2202, %v2198
        %v2205 = vsel %vm2204, 1, 0
        %v2206 = vadd.s32 %v2202, %v2198
        %v2207 = vadd.s32 %v2203, %v2205
        %v2208 = vadd.s32 %v2207, %v2197
        %v2209 = vadd.s32 %v2208, %v2199
        %v2210 = vand.u32 %v2187, 65535
        %v2211 = vshrl.u32 %v2187, 16
        %v2212 = vand.u32 %v2182, 65535
        %v2213 = vshrl.u32 %v2182, 16
        %v2214 = vmul.u32 %v2210, %v2212
        %v2215 = vmul.u32 %v2210, %v2213
        %v2216 = vmul.u32 %v2211, %v2212
        %v2217 = vmul.u32 %v2211, %v2213
        %v2218 = vshll.u32 %v2215, 16
        %v2219 = vshrl.u32 %v2215, 16
        %v2220 = vshll.u32 %v2216, 16
        %v2221 = vshrl.u32 %v2216, 16
        %vm2222 = vc.u32 %v2214, %v2218
        %v2223 = vsel %vm2222, 1, 0
        %v2224 = vadd.s32 %v2214, %v2218
        %v2225 = vadd.s32 %v2217, %v2223
        %vm2226 = vc.u32 %v2224, %v2220
        %v2227 = vsel %vm2226, 1, 0
        %v2228 = vadd.s32 %v2224, %v2220
        %v2229 = vadd.s32 %v2225, %v2227
        %v2230 = vadd.s32 %v2229, %v2219
        %v2231 = vadd.s32 %v2230, %v2221
        %v2232 = vmul.u32 %v2187, %v2178
        %v2233 = vadd.s32 %v2209, %v2228
        %vm2234 = vc.u32 %v2209, %v2228
        %v2235 = vadd.s32 %v2231, 1
        %v2236 = vsel %vm2234, %v2235, %v2231
        %v2237 = vadd.s32 %v2232, %v2236
        %v2238 = vadd.s32 %v2237, 536870912
        %v2239 = vshrl.u32 %v2238, 30
        %v2240 = vshll.u32 %v2239, 30
        %v2241 = vsub.s32 %v2237, %v2240
        %vm2242 = vcmp.lt.s32.totalorder %v2241, 0
        %v2243 = vsub.s32 0, %v2241
        %v2244 = vsel %vm2242, %v2243, %v2241
        %v2245 = vclz %v2244
        %v2246 = vsub.s32 %v2245, 2
        %vm2247 = vcmp.gt.s32.totalorder 0, %v2246
        %v2248 = vsel %vm2247, 0, %v2246
        %v2249 = vsub.s32 32, %v2248
        %v2250 = vshll.u32 %v2241, %v2248
        %v2251 = vshrl.u32 %v2233, %v2249
        %v2252 = vor.u32 %v2250, %v2251
        %v2253 = vsub.s32 4294967266, %v2248
        %v2254 = vadd.s32 %v2253, 127
        %v2255 = vshll.u32 %v2254, 23
        %v2256 = vor.u32 4788187, %v2255
        %v2257 = vand.u32 2147483647, %v2256
        %v2259 = vcvt.s32.f32 %v2252
        %v2260 = vmul.f32 %v2259, %v2257
        %v2261 = vxor.u32 %v2260, 2147483648
        %v2262 = vsel %vm2141, %v2261, %v2260
        %v2263 = vsub.s32 4, %v2239
        %v2264 = vsel %vm2141, %v2263, %v2239
        %v2265 = vsel %vm2140, %v421, %v2262
        %v2266 = vsel %vm2140, 0, %v2264
        %v2267 = vmul.f32 %v2265, %v2265
        %v2268 = vmul.f32 %v2267, -0.001358992
        %v2269 = vadd.f32 %v2268, 0.041655596
        %v2270 = vmul.f32 %v2267, %v2269
        %v2271 = vadd.f32 %v2270, -0.4999988
        %v2272 = vmul.f32 %v2267, %v2271
        %v2273 = vadd.f32 1.0, %v2272
        %v2274 = vmul.f32 %v2265, %v2265
        %v2275 = vmul.f32 %v2274, -0.00019511016
        %v2276 = vadd.f32 %v2275, 0.008332121
        %v2277 = vmul.f32 %v2274, %v2276
        %v2278 = vadd.f32 %v2277, -0.16666654
        %v2279 = vmul.f32 %v2274, %v2278
        %v2280 = vadd.f32 %v2279, 1.0
        %v2281 = vmul.f32 %v2280, %v2265
        %vm2282 = vweird.f32 %v421
        %v2283 = vadd.s32 %v2266, 3
        %v2284 = vand.u32 %v2283, 3
        %vm2285 = vcmp.lt.s32.totalorder %v2284, 2
        %vm2286 = vcmp.eq.s32.totalorder %v2284, 0
        %v2287 = vxor.u32 %v2281, 2147483648
        %v2288 = vsel %vm2286, %v2273, %v2287
        %vm2289 = vcmp.eq.s32.totalorder %v2284, 2
        %v2290 = vxor.u32 %v2273, 2147483648
        %v2291 = vsel %vm2289, %v2290, %v2281
        %v2292 = vsel %vm2285, %v2288, %v2291
        %v2293 = vsel %vm2282, nan, %v2292
        %v2294 = vand.u32 2147483647, %v422
        %vm2295 = vcmp.le.f32.partialorder %v2294, 0.7853982
        %vm2296 = vcmp.lt.s32.totalorder %v422, 0
        %v2297 = vand.u32 %v422, 2139095040
        %v2298 = vshrl.u32 %v2297, 23
        %v2299 = vsub.s32 %v2298, 127
        %v2300 = vand.u32 2147483647, %v422
        %v2301 = vand.u32 %v2300, 8388607
        %v2302 = vor.u32 %v2301, 8388608
        %v2303 = vsub.s32 0, %v2302
        %v2304 = vadd.s32 %v2299, 1
        %vm2305 = vcmp.gt.s32.totalorder %v2304, 0
        %v2306 = vsel %vm2305, %v2304, 0
        %v2307 = vshrl.u32 %v2306, 5
        %v2308 = vand.u32 %v2306, 31
        %v2309 = vsub.s32 32, %v2308
        %v2310 = vshrl.u32 683565275, %v2309
        %v2311 = vshll.u32 683565275, %v2308
        %v2312 = vshrl.u32 2475754826, %v2309
        %v2313 = vor.u32 %v2311, %v2312
        %v2314 = vshll.u32 2475754826, %v2308
        %v2315 = vshrl.u32 2131351028, %v2309
        %v2316 = vor.u32 %v2314, %v2315
        %v2317 = vshll.u32 2131351028, %v2308
        %v2318 = vshrl.u32 2102212464, %v2309
        %v2319 = vor.u32 %v2317, %v2318
        %v2320 = vshll.u32 2102212464, %v2308
        %v2321 = vshrl.u32 920167782, %v2309
        %v2322 = vor.u32 %v2320, %v2321
        %v2323 = vshll.u32 920167782, %v2308
        %v2324 = vshrl.u32 1326507024, %v2309
        %v2325 = vor.u32 %v2323, %v2324
        %vm2326 = vcmp.lt.s32.totalorder %v2307, 1
        %vm2327 = vcmp.lt.s32.totalorder %v2307, 2
        %vm2328 = vcmp.lt.s32.totalorder %v2307, 3
        %vm2329 = vcmp.lt.s32.totalorder %v2307, 4
        %v2330 = vsel %vm2326, %v2310, %v2313
        %v2331 = vsel %vm2329, %v2319, 2102212464
        %v2332 = vsel %vm2328, %v2316, %v2331
        %v2333 = vsel %vm2327, %v2330, %v2332
        %v2334 = vsel %vm2326, %v2313, %v2316
        %v2335 = vsel %vm2329, %v2322, 920167782
        %v2336 = vsel %vm2328, %v2319, %v2335
        %v2337 = vsel %vm2327, %v2334, %v2336
        %v2338 = vsel %vm2326, %v2316, %v2319
        %v2339 = vsel %vm2329, %v2325, 1326507024
        %v2340 = vsel %vm2328, %v2322, %v2339
        %v2341 = vsel %vm2327, %v2338, %v2340
        %v2342 = vshll.u32 %v2302, 8
        %v2343 = vand.u32 %v2342, 65535
        %v2344 = vshrl.u32 %v2342, 16
        %v2345 = vand.u32 %v2341, 65535
        %v2346 = vshrl.u32 %v2341, 16
        %v2347 = vmul.u32 %v2343, %v2345
        %v2348 = vmul.u32 %v2343, %v2346
        %v2349 = vmul.u32 %v2344, %v2345
        %v2350 = vmul.u32 %v2344, %v2346
        %v2351 = vshll.u32 %v2348, 16
        %v2352 = vshrl.u32 %v2348, 16
        %v2353 = vshll.u32 %v2349, 16
        %v2354 = vshrl.u32 %v2349, 16
        %vm2355 = vc.u32 %v2347, %v2351
        %v2356 = vsel %vm2355, 1, 0
        %v2357 = vadd.s32 %v2347, %v2351
        %v2358 = vadd.s32 %v2350, %v2356
        %vm2359 = vc.u32 %v2357, %v2353
        %v2360 = vsel %vm2359, 1, 0
        %v2361 = vadd.s32 %v2357, %v2353
        %v2362 = vadd.s32 %v2358, %v2360
        %v2363 = vadd.s32 %v2362, %v2352
        %v2364 = vadd.s32 %v2363, %v2354
        %v2365 = vand.u32 %v2342, 65535
        %v2366 = vshrl.u32 %v2342, 16
        %v2367 = vand.u32 %v2337, 65535
        %v2368 = vshrl.u32 %v2337, 16
        %v2369 = vmul.u32 %v2365, %v2367
        %v2370 = vmul.u32 %v2365, %v2368
        %v2371 = vmul.u32 %v2366, %v2367
        %v2372 = vmul.u32 %v2366, %v2368
        %v2373 = vshll.u32 %v2370, 16
        %v2374 = vshrl.u32 %v2370, 16
        %v2375 = vshll.u32 %v2371, 16
        %v2376 = vshrl.u32 %v2371, 16
        %vm2377 = vc.u32 %v2369, %v2373
        %v2378 = vsel %vm2377, 1, 0
        %v2379 = vadd.s32 %v2369, %v2373
        %v2380 = vadd.s32 %v2372, %v2378
        %vm2381 = vc.u32 %v2379, %v2375
        %v2382 = vsel %vm2381, 1, 0
        %v2383 = vadd.s32 %v2379, %v2375
        %v2384 = vadd.s32 %v2380, %v2382
        %v2385 = vadd.s32 %v2384, %v2374
        %v2386 = vadd.s32 %v2385, %v2376
        %v2387 = vmul.u32 %v2342, %v2333
        %v2388 = vadd.s32 %v2364, %v2383
        %vm2389 = vc.u32 %v2364, %v2383
        %v2390 = vadd.s32 %v2386, 1
        %v2391 = vsel %vm2389, %v2390, %v2386
        %v2392 = vadd.s32 %v2387, %v2391
        %v2393 = vadd.s32 %v2392, 536870912
        %v2394 = vshrl.u32 %v2393, 30
        %v2395 = vshll.u32 %v2394, 30
        %v2396 = vsub.s32 %v2392, %v2395
        %vm2397 = vcmp.lt.s32.totalorder %v2396, 0
        %v2398 = vsub.s32 0, %v2396
        %v2399 = vsel %vm2397, %v2398, %v2396
        %v2400 = vclz %v2399
        %v2401 = vsub.s32 %v2400, 2
        %vm2402 = vcmp.gt.s32.totalorder 0, %v2401
        %v2403 = vsel %vm2402, 0, %v2401
        %v2404 = vsub.s32 32, %v2403
        %v2405 = vshll.u32 %v2396, %v2403
        %v2406 = vshrl.u32 %v2388, %v2404
        %v2407 = vor.u32 %v2405, %v2406
        %v2408 = vsub.s32 4294967266, %v2403
        %v2409 = vadd.s32 %v2408, 127
        %v2410 = vshll.u32 %v2409, 23
        %v2411 = vor.u32 4788187, %v2410
        %v2412 = vand.u32 2147483647, %v2411
        %v2414 = vcvt.s32.f32 %v2407
        %v2415 = vmul.f32 %v2414, %v2412
        %v2416 = vxor.u32 %v2415, 2147483648
        %v2417 = vsel %vm2296, %v2416, %v2415
        %v2418 = vsub.s32 4, %v2394
        %v2419 = vsel %vm2296, %v2418, %v2394
        %v2420 = vsel %vm2295, %v422, %v2417
        %v2421 = vsel %vm2295, 0, %v2419
        %v2422 = vmul.f32 %v2420, %v2420
        %v2423 = vmul.f32 %v2422, -0.001358992
        %v2424 = vadd.f32 %v2423, 0.041655596
        %v2425 = vmul.f32 %v2422, %v2424
        %v2426 = vadd.f32 %v2425, -0.4999988
        %v2427 = vmul.f32 %v2422, %v2426
        %v2428 = vadd.f32 1.0, %v2427
        %v2429 = vmul.f32 %v2420, %v2420
        %v2430 = vmul.f32 %v2429, -0.00019511016
        %v2431 = vadd.f32 %v2430, 0.008332121
        %v2432 = vmul.f32 %v2429, %v2431
        %v2433 = vadd.f32 %v2432, -0.16666654
        %v2434 = vmul.f32 %v2429, %v2433
        %v2435 = vadd.f32 %v2434, 1.0
        %v2436 = vmul.f32 %v2435, %v2420
        %vm2437 = vweird.f32 %v422
        %v2438 = vadd.s32 %v2421, 3
        %v2439 = vand.u32 %v2438, 3
        %vm2440 = vcmp.lt.s32.totalorder %v2439, 2
        %vm2441 = vcmp.eq.s32.totalorder %v2439, 0
        %v2442 = vxor.u32 %v2436, 2147483648
        %v2443 = vsel %vm2441, %v2428, %v2442
        %vm2444 = vcmp.eq.s32.totalorder %v2439, 2
        %v2445 = vxor.u32 %v2428, 2147483648
        %v2446 = vsel %vm2444, %v2445, %v2436
        %v2447 = vsel %vm2440, %v2443, %v2446
        %v2448 = vsel %vm2437, nan, %v2447
        %v2449 = vand.u32 2147483647, %v423
        %vm2450 = vcmp.le.f32.partialorder %v2449, 0.7853982
        %vm2451 = vcmp.lt.s32.totalorder %v423, 0
        %v2452 = vand.u32 %v423, 2139095040
        %v2453 = vshrl.u32 %v2452, 23
        %v2454 = vsub.s32 %v2453, 127
        %v2455 = vand.u32 2147483647, %v423
        %v2456 = vand.u32 %v2455, 8388607
        %v2457 = vor.u32 %v2456, 8388608
        %v2458 = vsub.s32 0, %v2457
        %v2459 = vadd.s32 %v2454, 1
        %vm2460 = vcmp.gt.s32.totalorder %v2459, 0
        %v2461 = vsel %vm2460, %v2459, 0
        %v2462 = vshrl.u32 %v2461, 5
        %v2463 = vand.u32 %v2461, 31
        %v2464 = vsub.s32 32, %v2463
        %v2465 = vshrl.u32 683565275, %v2464
        %v2466 = vshll.u32 683565275, %v2463
        %v2467 = vshrl.u32 2475754826, %v2464
        %v2468 = vor.u32 %v2466, %v2467
        %v2469 = vshll.u32 2475754826, %v2463
        %v2470 = vshrl.u32 2131351028, %v2464
        %v2471 = vor.u32 %v2469, %v2470
        %v2472 = vshll.u32 2131351028, %v2463
        %v2473 = vshrl.u32 2102212464, %v2464
        %v2474 = vor.u32 %v2472, %v2473
        %v2475 = vshll.u32 2102212464, %v2463
        %v2476 = vshrl.u32 920167782, %v2464
        %v2477 = vor.u32 %v2475, %v2476
        %v2478 = vshll.u32 920167782, %v2463
        %v2479 = vshrl.u32 1326507024, %v2464
        %v2480 = vor.u32 %v2478, %v2479
        %vm2481 = vcmp.lt.s32.totalorder %v2462, 1
        %vm2482 = vcmp.lt.s32.totalorder %v2462, 2
        %vm2483 = vcmp.lt.s32.totalorder %v2462, 3
        %vm2484 = vcmp.lt.s32.totalorder %v2462, 4
        %v2485 = vsel %vm2481, %v2465, %v2468
        %v2486 = vsel %vm2484, %v2474, 2102212464
        %v2487 = vsel %vm2483, %v2471, %v2486
        %v2488 = vsel %vm2482, %v2485, %v2487
        %v2489 = vsel %vm2481, %v2468, %v2471
        %v2490 = vsel %vm2484, %v2477, 920167782
        %v2491 = vsel %vm2483, %v2474, %v2490
        %v2492 = vsel %vm2482, %v2489, %v2491
        %v2493 = vsel %vm2481, %v2471, %v2474
        %v2494 = vsel %vm2484, %v2480, 1326507024
        %v2495 = vsel %vm2483, %v2477, %v2494
        %v2496 = vsel %vm2482, %v2493, %v2495
        %v2497 = vshll.u32 %v2457, 8
        %v2498 = vand.u32 %v2497, 65535
        %v2499 = vshrl.u32 %v2497, 16
        %v2500 = vand.u32 %v2496, 65535
        %v2501 = vshrl.u32 %v2496, 16
        %v2502 = vmul.u32 %v2498, %v2500
        %v2503 = vmul.u32 %v2498, %v2501
        %v2504 = vmul.u32 %v2499, %v2500
        %v2505 = vmul.u32 %v2499, %v2501
        %v2506 = vshll.u32 %v2503, 16
        %v2507 = vshrl.u32 %v2503, 16
        %v2508 = vshll.u32 %v2504, 16
        %v2509 = vshrl.u32 %v2504, 16
        %vm2510 = vc.u32 %v2502, %v2506
        %v2511 = vsel %vm2510, 1, 0
        %v2512 = vadd.s32 %v2502, %v2506
        %v2513 = vadd.s32 %v2505, %v2511
        %vm2514 = vc.u32 %v2512, %v2508
        %v2515 = vsel %vm2514, 1, 0
        %v2516 = vadd.s32 %v2512, %v2508
        %v2517 = vadd.s32 %v2513, %v2515
        %v2518 = vadd.s32 %v2517, %v2507
        %v2519 = vadd.s32 %v2518, %v2509
        %v2520 = vand.u32 %v2497, 65535
        %v2521 = vshrl.u32 %v2497, 16
        %v2522 = vand.u32 %v2492, 65535
        %v2523 = vshrl.u32 %v2492, 16
        %v2524 = vmul.u32 %v2520, %v2522
        %v2525 = vmul.u32 %v2520, %v2523
        %v2526 = vmul.u32 %v2521, %v2522
        %v2527 = vmul.u32 %v2521, %v2523
        %v2528 = vshll.u32 %v2525, 16
        %v2529 = vshrl.u32 %v2525, 16
        %v2530 = vshll.u32 %v2526, 16
        %v2531 = vshrl.u32 %v2526, 16
        %vm2532 = vc.u32 %v2524, %v2528
        %v2533 = vsel %vm2532, 1, 0
        %v2534 = vadd.s32 %v2524, %v2528
        %v2535 = vadd.s32 %v2527, %v2533
        %vm2536 = vc.u32 %v2534, %v2530
        %v2537 = vsel %vm2536, 1, 0
        %v2538 = vadd.s32 %v2534, %v2530
        %v2539 = vadd.s32 %v2535, %v2537
        %v2540 = vadd.s32 %v2539, %v2529
        %v2541 = vadd.s32 %v2540, %v2531
        %v2542 = vmul.u32 %v2497, %v2488
        %v2543 = vadd.s32 %v2519, %v2538
        %vm2544 = vc.u32 %v2519, %v2538
        %v2545 = vadd.s32 %v2541, 1
        %v2546 = vsel %vm2544, %v2545, %v2541
        %v2547 = vadd.s32 %v2542, %v2546
        %v2548 = vadd.s32 %v2547, 536870912
        %v2549 = vshrl.u32 %v2548, 30
        %v2550 = vshll.u32 %v2549, 30
        %v2551 = vsub.s32 %v2547, %v2550
        %vm2552 = vcmp.lt.s32.totalorder %v2551, 0
        %v2553 = vsub.s32 0, %v2551
        %v2554 = vsel %vm2552, %v2553, %v2551
        %v2555 = vclz %v2554
        %v2556 = vsub.s32 %v2555, 2
        %vm2557 = vcmp.gt.s32.totalorder 0, %v2556
        %v2558 = vsel %vm2557, 0, %v2556
        %v2559 = vsub.s32 32, %v2558
        %v2560 = vshll.u32 %v2551, %v2558
        %v2561 = vshrl.u32 %v2543, %v2559
        %v2562 = vor.u32 %v2560, %v2561
        %v2563 = vsub.s32 4294967266, %v2558
        %v2564 = vadd.s32 %v2563, 127
        %v2565 = vshll.u32 %v2564, 23
        %v2566 = vor.u32 4788187, %v2565
        %v2567 = vand.u32 2147483647, %v2566
        %v2569 = vcvt.s32.f32 %v2562
        %v2570 = vmul.f32 %v2569, %v2567
        %v2571 = vxor.u32 %v2570, 2147483648
        %v2572 = vsel %vm2451, %v2571, %v2570
        %v2573 = vsub.s32 4, %v2549
        %v2574 = vsel %vm2451, %v2573, %v2549
        %v2575 = vsel %vm2450, %v423, %v2572
        %v2576 = vsel %vm2450, 0, %v2574
        %v2577 = vmul.f32 %v2575, %v2575
        %v2578 = vmul.f32 %v2577, -0.001358992
        %v2579 = vadd.f32 %v2578, 0.041655596
        %v2580 = vmul.f32 %v2577, %v2579
        %v2581 = vadd.f32 %v2580, -0.4999988
        %v2582 = vmul.f32 %v2577, %v2581
        %v2583 = vadd.f32 1.0, %v2582
        %v2584 = vmul.f32 %v2575, %v2575
        %v2585 = vmul.f32 %v2584, -0.00019511016
        %v2586 = vadd.f32 %v2585, 0.008332121
        %v2587 = vmul.f32 %v2584, %v2586
        %v2588 = vadd.f32 %v2587, -0.16666654
        %v2589 = vmul.f32 %v2584, %v2588
        %v2590 = vadd.f32 %v2589, 1.0
        %v2591 = vmul.f32 %v2590, %v2575
        %vm2592 = vweird.f32 %v423
        %v2593 = vadd.s32 %v2576, 3
        %v2594 = vand.u32 %v2593, 3
        %vm2595 = vcmp.lt.s32.totalorder %v2594, 2
        %vm2596 = vcmp.eq.s32.totalorder %v2594, 0
        %v2597 = vxor.u32 %v2591, 2147483648
        %v2598 = vsel %vm2596, %v2583, %v2597
        %vm2599 = vcmp.eq.s32.totalorder %v2594, 2
        %v2600 = vxor.u32 %v2583, 2147483648
        %v2601 = vsel %vm2599, %v2600, %v2591
        %v2602 = vsel %vm2595, %v2598, %v2601
        %v2603 = vsel %vm2592, nan, %v2602
        %v2604 = vand.u32 2147483647, %v424
        %vm2605 = vcmp.le.f32.partialorder %v2604, 0.7853982
        %vm2606 = vcmp.lt.s32.totalorder %v424, 0
        %v2607 = vand.u32 %v424, 2139095040
        %v2608 = vshrl.u32 %v2607, 23
        %v2609 = vsub.s32 %v2608, 127
        %v2610 = vand.u32 2147483647, %v424
        %v2611 = vand.u32 %v2610, 8388607
        %v2612 = vor.u32 %v2611, 8388608
        %v2613 = vsub.s32 0, %v2612
        %v2614 = vadd.s32 %v2609, 1
        %vm2615 = vcmp.gt.s32.totalorder %v2614, 0
        %v2616 = vsel %vm2615, %v2614, 0
        %v2617 = vshrl.u32 %v2616, 5
        %v2618 = vand.u32 %v2616, 31
        %v2619 = vsub.s32 32, %v2618
        %v2620 = vshrl.u32 683565275, %v2619
        %v2621 = vshll.u32 683565275, %v2618
        %v2622 = vshrl.u32 2475754826, %v2619
        %v2623 = vor.u32 %v2621, %v2622
        %v2624 = vshll.u32 2475754826, %v2618
        %v2625 = vshrl.u32 2131351028, %v2619
        %v2626 = vor.u32 %v2624, %v2625
        %v2627 = vshll.u32 2131351028, %v2618
        %v2628 = vshrl.u32 2102212464, %v2619
        %v2629 = vor.u32 %v2627, %v2628
        %v2630 = vshll.u32 2102212464, %v2618
        %v2631 = vshrl.u32 920167782, %v2619
        %v2632 = vor.u32 %v2630, %v2631
        %v2633 = vshll.u32 920167782, %v2618
        %v2634 = vshrl.u32 1326507024, %v2619
        %v2635 = vor.u32 %v2633, %v2634
        %vm2636 = vcmp.lt.s32.totalorder %v2617, 1
        %vm2637 = vcmp.lt.s32.totalorder %v2617, 2
        %vm2638 = vcmp.lt.s32.totalorder %v2617, 3
        %vm2639 = vcmp.lt.s32.totalorder %v2617, 4
        %v2640 = vsel %vm2636, %v2620, %v2623
        %v2641 = vsel %vm2639, %v2629, 2102212464
        %v2642 = vsel %vm2638, %v2626, %v2641
        %v2643 = vsel %vm2637, %v2640, %v2642
        %v2644 = vsel %vm2636, %v2623, %v2626
        %v2645 = vsel %vm2639, %v2632, 920167782
        %v2646 = vsel %vm2638, %v2629, %v2645
        %v2647 = vsel %vm2637, %v2644, %v2646
        %v2648 = vsel %vm2636, %v2626, %v2629
        %v2649 = vsel %vm2639, %v2635, 1326507024
        %v2650 = vsel %vm2638, %v2632, %v2649
        %v2651 = vsel %vm2637, %v2648, %v2650
        %v2652 = vshll.u32 %v2612, 8
        %v2653 = vand.u32 %v2652, 65535
        %v2654 = vshrl.u32 %v2652, 16
        %v2655 = vand.u32 %v2651, 65535
        %v2656 = vshrl.u32 %v2651, 16
        %v2657 = vmul.u32 %v2653, %v2655
        %v2658 = vmul.u32 %v2653, %v2656
        %v2659 = vmul.u32 %v2654, %v2655
        %v2660 = vmul.u32 %v2654, %v2656
        %v2661 = vshll.u32 %v2658, 16
        %v2662 = vshrl.u32 %v2658, 16
        %v2663 = vshll.u32 %v2659, 16
        %v2664 = vshrl.u32 %v2659, 16
        %vm2665 = vc.u32 %v2657, %v2661
        %v2666 = vsel %vm2665, 1, 0
        %v2667 = vadd.s32 %v2657, %v2661
        %v2668 = vadd.s32 %v2660, %v2666
        %vm2669 = vc.u32 %v2667, %v2663
        %v2670 = vsel %vm2669, 1, 0
        %v2671 = vadd.s32 %v2667, %v2663
        %v2672 = vadd.s32 %v2668, %v2670
        %v2673 = vadd.s32 %v2672, %v2662
        %v2674 = vadd.s32 %v2673, %v2664
        %v2675 = vand.u32 %v2652, 65535
        %v2676 = vshrl.u32 %v2652, 16
        %v2677 = vand.u32 %v2647, 65535
        %v2678 = vshrl.u32 %v2647, 16
        %v2679 = vmul.u32 %v2675, %v2677
        %v2680 = vmul.u32 %v2675, %v2678
        %v2681 = vmul.u32 %v2676, %v2677
        %v2682 = vmul.u32 %v2676, %v2678
        %v2683 = vshll.u32 %v2680, 16
        %v2684 = vshrl.u32 %v2680, 16
        %v2685 = vshll.u32 %v2681, 16
        %v2686 = vshrl.u32 %v2681, 16
        %vm2687 = vc.u32 %v2679, %v2683
        %v2688 = vsel %vm2687, 1, 0
        %v2689 = vadd.s32 %v2679, %v2683
        %v2690 = vadd.s32 %v2682, %v2688
        %vm2691 = vc.u32 %v2689, %v2685
        %v2692 = vsel %vm2691, 1, 0
        %v2693 = vadd.s32 %v2689, %v2685
        %v2694 = vadd.s32 %v2690, %v2692
        %v2695 = vadd.s32 %v2694, %v2684
        %v2696 = vadd.s32 %v2695, %v2686
        %v2697 = vmul.u32 %v2652, %v2643
        %v2698 = vadd.s32 %v2674, %v2693
        %vm2699 = vc.u32 %v2674, %v2693
        %v2700 = vadd.s32 %v2696, 1
        %v2701 = vsel %vm2699, %v2700, %v2696
        %v2702 = vadd.s32 %v2697, %v2701
        %v2703 = vadd.s32 %v2702, 536870912
        %v2704 = vshrl.u32 %v2703, 30
        %v2705 = vshll.u32 %v2704, 30
        %v2706 = vsub.s32 %v2702, %v2705
        %vm2707 = vcmp.lt.s32.totalorder %v2706, 0
        %v2708 = vsub.s32 0, %v2706
        %v2709 = vsel %vm2707, %v2708, %v2706
        %v2710 = vclz %v2709
        %v2711 = vsub.s32 %v2710, 2
        %vm2712 = vcmp.gt.s32.totalorder 0, %v2711
        %v2713 = vsel %vm2712, 0, %v2711
        %v2714 = vsub.s32 32, %v2713
        %v2715 = vshll.u32 %v2706, %v2713
        %v2716 = vshrl.u32 %v2698, %v2714
        %v2717 = vor.u32 %v2715, %v2716
        %v2718 = vsub.s32 4294967266, %v2713
        %v2719 = vadd.s32 %v2718, 127
        %v2720 = vshll.u32 %v2719, 23
        %v2721 = vor.u32 4788187, %v2720
        %v2722 = vand.u32 2147483647, %v2721
        %v2724 = vcvt.s32.f32 %v2717
        %v2725 = vmul.f32 %v2724, %v2722
        %v2726 = vxor.u32 %v2725, 2147483648
        %v2727 = vsel %vm2606, %v2726, %v2725
        %v2728 = vsub.s32 4, %v2704
        %v2729 = vsel %vm2606, %v2728, %v2704
        %v2730 = vsel %vm2605, %v424, %v2727
        %v2731 = vsel %vm2605, 0, %v2729
        %v2732 = vmul.f32 %v2730, %v2730
        %v2733 = vmul.f32 %v2732, -0.001358992
        %v2734 = vadd.f32 %v2733, 0.041655596
        %v2735 = vmul.f32 %v2732, %v2734
        %v2736 = vadd.f32 %v2735, -0.4999988
        %v2737 = vmul.f32 %v2732, %v2736
        %v2738 = vadd.f32 1.0, %v2737
        %v2739 = vmul.f32 %v2730, %v2730
        %v2740 = vmul.f32 %v2739, -0.00019511016
        %v2741 = vadd.f32 %v2740, 0.008332121
        %v2742 = vmul.f32 %v2739, %v2741
        %v2743 = vadd.f32 %v2742, -0.16666654
        %v2744 = vmul.f32 %v2739, %v2743
        %v2745 = vadd.f32 %v2744, 1.0
        %v2746 = vmul.f32 %v2745, %v2730
        %vm2747 = vweird.f32 %v424
        %v2748 = vadd.s32 %v2731, 3
        %v2749 = vand.u32 %v2748, 3
        %vm2750 = vcmp.lt.s32.totalorder %v2749, 2
        %vm2751 = vcmp.eq.s32.totalorder %v2749, 0
        %v2752 = vxor.u32 %v2746, 2147483648
        %v2753 = vsel %vm2751, %v2738, %v2752
        %vm2754 = vcmp.eq.s32.totalorder %v2749, 2
        %v2755 = vxor.u32 %v2738, 2147483648
        %v2756 = vsel %vm2754, %v2755, %v2746
        %v2757 = vsel %vm2750, %v2753, %v2756
        %v2758 = vsel %vm2747, nan, %v2757
        %v2759 = vand.u32 2147483647, %v425
        %vm2760 = vcmp.le.f32.partialorder %v2759, 0.7853982
        %vm2761 = vcmp.lt.s32.totalorder %v425, 0
        %v2762 = vand.u32 %v425, 2139095040
        %v2763 = vshrl.u32 %v2762, 23
        %v2764 = vsub.s32 %v2763, 127
        %v2765 = vand.u32 2147483647, %v425
        %v2766 = vand.u32 %v2765, 8388607
        %v2767 = vor.u32 %v2766, 8388608
        %v2768 = vsub.s32 0, %v2767
        %v2769 = vadd.s32 %v2764, 1
        %vm2770 = vcmp.gt.s32.totalorder %v2769, 0
        %v2771 = vsel %vm2770, %v2769, 0
        %v2772 = vshrl.u32 %v2771, 5
        %v2773 = vand.u32 %v2771, 31
        %v2774 = vsub.s32 32, %v2773
        %v2775 = vshrl.u32 683565275, %v2774
        %v2776 = vshll.u32 683565275, %v2773
        %v2777 = vshrl.u32 2475754826, %v2774
        %v2778 = vor.u32 %v2776, %v2777
        %v2779 = vshll.u32 2475754826, %v2773
        %v2780 = vshrl.u32 2131351028, %v2774
        %v2781 = vor.u32 %v2779, %v2780
        %v2782 = vshll.u32 2131351028, %v2773
        %v2783 = vshrl.u32 2102212464, %v2774
        %v2784 = vor.u32 %v2782, %v2783
        %v2785 = vshll.u32 2102212464, %v2773
        %v2786 = vshrl.u32 920167782, %v2774
        %v2787 = vor.u32 %v2785, %v2786
        %v2788 = vshll.u32 920167782, %v2773
        %v2789 = vshrl.u32 1326507024, %v2774
        %v2790 = vor.u32 %v2788, %v2789
        %vm2791 = vcmp.lt.s32.totalorder %v2772, 1
        %vm2792 = vcmp.lt.s32.totalorder %v2772, 2
        %vm2793 = vcmp.lt.s32.totalorder %v2772, 3
        %vm2794 = vcmp.lt.s32.totalorder %v2772, 4
        %v2795 = vsel %vm2791, %v2775, %v2778
        %v2796 = vsel %vm2794, %v2784, 2102212464
        %v2797 = vsel %vm2793, %v2781, %v2796
        %v2798 = vsel %vm2792, %v2795, %v2797
        %v2799 = vsel %vm2791, %v2778, %v2781
        %v2800 = vsel %vm2794, %v2787, 920167782
        %v2801 = vsel %vm2793, %v2784, %v2800
        %v2802 = vsel %vm2792, %v2799, %v2801
        %v2803 = vsel %vm2791, %v2781, %v2784
        %v2804 = vsel %vm2794, %v2790, 1326507024
        %v2805 = vsel %vm2793, %v2787, %v2804
        %v2806 = vsel %vm2792, %v2803, %v2805
        %v2807 = vshll.u32 %v2767, 8
        %v2808 = vand.u32 %v2807, 65535
        %v2809 = vshrl.u32 %v2807, 16
        %v2810 = vand.u32 %v2806, 65535
        %v2811 = vshrl.u32 %v2806, 16
        %v2812 = vmul.u32 %v2808, %v2810
        %v2813 = vmul.u32 %v2808, %v2811
        %v2814 = vmul.u32 %v2809, %v2810
        %v2815 = vmul.u32 %v2809, %v2811
        %v2816 = vshll.u32 %v2813, 16
        %v2817 = vshrl.u32 %v2813, 16
        %v2818 = vshll.u32 %v2814, 16
        %v2819 = vshrl.u32 %v2814, 16
        %vm2820 = vc.u32 %v2812, %v2816
        %v2821 = vsel %vm2820, 1, 0
        %v2822 = vadd.s32 %v2812, %v2816
        %v2823 = vadd.s32 %v2815, %v2821
        %vm2824 = vc.u32 %v2822, %v2818
        %v2825 = vsel %vm2824, 1, 0
        %v2826 = vadd.s32 %v2822, %v2818
        %v2827 = vadd.s32 %v2823, %v2825
        %v2828 = vadd.s32 %v2827, %v2817
        %v2829 = vadd.s32 %v2828, %v2819
        %v2830 = vand.u32 %v2807, 65535
        %v2831 = vshrl.u32 %v2807, 16
        %v2832 = vand.u32 %v2802, 65535
        %v2833 = vshrl.u32 %v2802, 16
        %v2834 = vmul.u32 %v2830, %v2832
        %v2835 = vmul.u32 %v2830, %v2833
        %v2836 = vmul.u32 %v2831, %v2832
        %v2837 = vmul.u32 %v2831, %v2833
        %v2838 = vshll.u32 %v2835, 16
        %v2839 = vshrl.u32 %v2835, 16
        %v2840 = vshll.u32 %v2836, 16
        %v2841 = vshrl.u32 %v2836, 16
        %vm2842 = vc.u32 %v2834, %v2838
        %v2843 = vsel %vm2842, 1, 0
        %v2844 = vadd.s32 %v2834, %v2838
        %v2845 = vadd.s32 %v2837, %v2843
        %vm2846 = vc.u32 %v2844, %v2840
        %v2847 = vsel %vm2846, 1, 0
        %v2848 = vadd.s32 %v2844, %v2840
        %v2849 = vadd.s32 %v2845, %v2847
        %v2850 = vadd.s32 %v2849, %v2839
        %v2851 = vadd.s32 %v2850, %v2841
        %v2852 = vmul.u32 %v2807, %v2798
        %v2853 = vadd.s32 %v2829, %v2848
        %vm2854 = vc.u32 %v2829, %v2848
        %v2855 = vadd.s32 %v2851, 1
        %v2856 = vsel %vm2854, %v2855, %v2851
        %v2857 = vadd.s32 %v2852, %v2856
        %v2858 = vadd.s32 %v2857, 536870912
        %v2859 = vshrl.u32 %v2858, 30
        %v2860 = vshll.u32 %v2859, 30
        %v2861 = vsub.s32 %v2857, %v2860
        %vm2862 = vcmp.lt.s32.totalorder %v2861, 0
        %v2863 = vsub.s32 0, %v2861
        %v2864 = vsel %vm2862, %v2863, %v2861
        %v2865 = vclz %v2864
        %v2866 = vsub.s32 %v2865, 2
        %vm2867 = vcmp.gt.s32.totalorder 0, %v2866
        %v2868 = vsel %vm2867, 0, %v2866
        %v2869 = vsub.s32 32, %v2868
        %v2870 = vshll.u32 %v2861, %v2868
        %v2871 = vshrl.u32 %v2853, %v2869
        %v2872 = vor.u32 %v2870, %v2871
        %v2873 = vsub.s32 4294967266, %v2868
        %v2874 = vadd.s32 %v2873, 127
        %v2875 = vshll.u32 %v2874, 23
        %v2876 = vor.u32 4788187, %v2875
        %v2877 = vand.u32 2147483647, %v2876
        %v2879 = vcvt.s32.f32 %v2872
        %v2880 = vmul.f32 %v2879, %v2877
        %v2881 = vxor.u32 %v2880, 2147483648
        %v2882 = vsel %vm2761, %v2881, %v2880
        %v2883 = vsub.s32 4, %v2859
        %v2884 = vsel %vm2761, %v2883, %v2859
        %v2885 = vsel %vm2760, %v425, %v2882
        %v2886 = vsel %vm2760, 0, %v2884
        %v2887 = vmul.f32 %v2885, %v2885
        %v2888 = vmul.f32 %v2887, -0.001358992
        %v2889 = vadd.f32 %v2888, 0.041655596
        %v2890 = vmul.f32 %v2887, %v2889
        %v2891 = vadd.f32 %v2890, -0.4999988
        %v2892 = vmul.f32 %v2887, %v2891
        %v2893 = vadd.f32 1.0, %v2892
        %v2894 = vmul.f32 %v2885, %v2885
        %v2895 = vmul.f32 %v2894, -0.00019511016
        %v2896 = vadd.f32 %v2895, 0.008332121
        %v2897 = vmul.f32 %v2894, %v2896
        %v2898 = vadd.f32 %v2897, -0.16666654
        %v2899 = vmul.f32 %v2894, %v2898
        %v2900 = vadd.f32 %v2899, 1.0
        %v2901 = vmul.f32 %v2900, %v2885
        %vm2902 = vweird.f32 %v425
        %v2903 = vadd.s32 %v2886, 3
        %v2904 = vand.u32 %v2903, 3
        %vm2905 = vcmp.lt.s32.totalorder %v2904, 2
        %vm2906 = vcmp.eq.s32.totalorder %v2904, 0
        %v2907 = vxor.u32 %v2901, 2147483648
        %v2908 = vsel %vm2906, %v2893, %v2907
        %vm2909 = vcmp.eq.s32.totalorder %v2904, 2
        %v2910 = vxor.u32 %v2893, 2147483648
        %v2911 = vsel %vm2909, %v2910, %v2901
        %v2912 = vsel %vm2905, %v2908, %v2911
        %v2913 = vsel %vm2902, nan, %v2912
        %v2914 = vand.u32 2147483647, %v426
        %vm2915 = vcmp.le.f32.partialorder %v2914, 0.7853982
        %vm2916 = vcmp.lt.s32.totalorder %v426, 0
        %v2917 = vand.u32 %v426, 2139095040
        %v2918 = vshrl.u32 %v2917, 23
        %v2919 = vsub.s32 %v2918, 127
        %v2920 = vand.u32 2147483647, %v426
        %v2921 = vand.u32 %v2920, 8388607
        %v2922 = vor.u32 %v2921, 8388608
        %v2923 = vsub.s32 0, %v2922
        %v2924 = vadd.s32 %v2919, 1
        %vm2925 = vcmp.gt.s32.totalorder %v2924, 0
        %v2926 = vsel %vm2925, %v2924, 0
        %v2927 = vshrl.u32 %v2926, 5
        %v2928 = vand.u32 %v2926, 31
        %v2929 = vsub.s32 32, %v2928
        %v2930 = vshrl.u32 683565275, %v2929
        %v2931 = vshll.u32 683565275, %v2928
        %v2932 = vshrl.u32 2475754826, %v2929
        %v2933 = vor.u32 %v2931, %v2932
        %v2934 = vshll.u32 2475754826, %v2928
        %v2935 = vshrl.u32 2131351028, %v2929
        %v2936 = vor.u32 %v2934, %v2935
        %v2937 = vshll.u32 2131351028, %v2928
        %v2938 = vshrl.u32 2102212464, %v2929
        %v2939 = vor.u32 %v2937, %v2938
        %v2940 = vshll.u32 2102212464, %v2928
        %v2941 = vshrl.u32 920167782, %v2929
        %v2942 = vor.u32 %v2940, %v2941
        %v2943 = vshll.u32 920167782, %v2928
        %v2944 = vshrl.u32 1326507024, %v2929
        %v2945 = vor.u32 %v2943, %v2944
        %vm2946 = vcmp.lt.s32.totalorder %v2927, 1
        %vm2947 = vcmp.lt.s32.totalorder %v2927, 2
        %vm2948 = vcmp.lt.s32.totalorder %v2927, 3
        %vm2949 = vcmp.lt.s32.totalorder %v2927, 4
        %v2950 = vsel %vm2946, %v2930, %v2933
        %v2951 = vsel %vm2949, %v2939, 2102212464
        %v2952 = vsel %vm2948, %v2936, %v2951
        %v2953 = vsel %vm2947, %v2950, %v2952
        %v2954 = vsel %vm2946, %v2933, %v2936
        %v2955 = vsel %vm2949, %v2942, 920167782
        %v2956 = vsel %vm2948, %v2939, %v2955
        %v2957 = vsel %vm2947, %v2954, %v2956
        %v2958 = vsel %vm2946, %v2936, %v2939
        %v2959 = vsel %vm2949, %v2945, 1326507024
        %v2960 = vsel %vm2948, %v2942, %v2959
        %v2961 = vsel %vm2947, %v2958, %v2960
        %v2962 = vshll.u32 %v2922, 8
        %v2963 = vand.u32 %v2962, 65535
        %v2964 = vshrl.u32 %v2962, 16
        %v2965 = vand.u32 %v2961, 65535
        %v2966 = vshrl.u32 %v2961, 16
        %v2967 = vmul.u32 %v2963, %v2965
        %v2968 = vmul.u32 %v2963, %v2966
        %v2969 = vmul.u32 %v2964, %v2965
        %v2970 = vmul.u32 %v2964, %v2966
        %v2971 = vshll.u32 %v2968, 16
        %v2972 = vshrl.u32 %v2968, 16
        %v2973 = vshll.u32 %v2969, 16
        %v2974 = vshrl.u32 %v2969, 16
        %vm2975 = vc.u32 %v2967, %v2971
        %v2976 = vsel %vm2975, 1, 0
        %v2977 = vadd.s32 %v2967, %v2971
        %v2978 = vadd.s32 %v2970, %v2976
        %vm2979 = vc.u32 %v2977, %v2973
        %v2980 = vsel %vm2979, 1, 0
        %v2981 = vadd.s32 %v2977, %v2973
        %v2982 = vadd.s32 %v2978, %v2980
        %v2983 = vadd.s32 %v2982, %v2972
        %v2984 = vadd.s32 %v2983, %v2974
        %v2985 = vand.u32 %v2962, 65535
        %v2986 = vshrl.u32 %v2962, 16
        %v2987 = vand.u32 %v2957, 65535
        %v2988 = vshrl.u32 %v2957, 16
        %v2989 = vmul.u32 %v2985, %v2987
        %v2990 = vmul.u32 %v2985, %v2988
        %v2991 = vmul.u32 %v2986, %v2987
        %v2992 = vmul.u32 %v2986, %v2988
        %v2993 = vshll.u32 %v2990, 16
        %v2994 = vshrl.u32 %v2990, 16
        %v2995 = vshll.u32 %v2991, 16
        %v2996 = vshrl.u32 %v2991, 16
        %vm2997 = vc.u32 %v2989, %v2993
        %v2998 = vsel %vm2997, 1, 0
        %v2999 = vadd.s32 %v2989, %v2993
        %v3000 = vadd.s32 %v2992, %v2998
        %vm3001 = vc.u32 %v2999, %v2995
        %v3002 = vsel %vm3001, 1, 0
        %v3003 = vadd.s32 %v2999, %v2995
        %v3004 = vadd.s32 %v3000, %v3002
        %v3005 = vadd.s32 %v3004, %v2994
        %v3006 = vadd.s32 %v3005, %v2996
        %v3007 = vmul.u32 %v2962, %v2953
        %v3008 = vadd.s32 %v2984, %v3003
        %vm3009 = vc.u32 %v2984, %v3003
        %v3010 = vadd.s32 %v3006, 1
        %v3011 = vsel %vm3009, %v3010, %v3006
        %v3012 = vadd.s32 %v3007, %v3011
        %v3013 = vadd.s32 %v3012, 536870912
        %v3014 = vshrl.u32 %v3013, 30
        %v3015 = vshll.u32 %v3014, 30
        %v3016 = vsub.s32 %v3012, %v3015
        %vm3017 = vcmp.lt.s32.totalorder %v3016, 0
        %v3018 = vsub.s32 0, %v3016
        %v3019 = vsel %vm3017, %v3018, %v3016
        %v3020 = vclz %v3019
        %v3021 = vsub.s32 %v3020, 2
        %vm3022 = vcmp.gt.s32.totalorder 0, %v3021
        %v3023 = vsel %vm3022, 0, %v3021
        %v3024 = vsub.s32 32, %v3023
        %v3025 = vshll.u32 %v3016, %v3023
        %v3026 = vshrl.u32 %v3008, %v3024
        %v3027 = vor.u32 %v3025, %v3026
        %v3028 = vsub.s32 4294967266, %v3023
        %v3029 = vadd.s32 %v3028, 127
        %v3030 = vshll.u32 %v3029, 23
        %v3031 = vor.u32 4788187, %v3030
        %v3032 = vand.u32 2147483647, %v3031
        %v3034 = vcvt.s32.f32 %v3027
        %v3035 = vmul.f32 %v3034, %v3032
        %v3036 = vxor.u32 %v3035, 2147483648
        %v3037 = vsel %vm2916, %v3036, %v3035
        %v3038 = vsub.s32 4, %v3014
        %v3039 = vsel %vm2916, %v3038, %v3014
        %v3040 = vsel %vm2915, %v426, %v3037
        %v3041 = vsel %vm2915, 0, %v3039
        %v3042 = vmul.f32 %v3040, %v3040
        %v3043 = vmul.f32 %v3042, -0.001358992
        %v3044 = vadd.f32 %v3043, 0.041655596
        %v3045 = vmul.f32 %v3042, %v3044
        %v3046 = vadd.f32 %v3045, -0.4999988
        %v3047 = vmul.f32 %v3042, %v3046
        %v3048 = vadd.f32 1.0, %v3047
        %v3049 = vmul.f32 %v3040, %v3040
        %v3050 = vmul.f32 %v3049, -0.00019511016
        %v3051 = vadd.f32 %v3050, 0.008332121
        %v3052 = vmul.f32 %v3049, %v3051
        %v3053 = vadd.f32 %v3052, -0.16666654
        %v3054 = vmul.f32 %v3049, %v3053
        %v3055 = vadd.f32 %v3054, 1.0
        %v3056 = vmul.f32 %v3055, %v3040
        %vm3057 = vweird.f32 %v426
        %v3058 = vadd.s32 %v3041, 3
        %v3059 = vand.u32 %v3058, 3
        %vm3060 = vcmp.lt.s32.totalorder %v3059, 2
        %vm3061 = vcmp.eq.s32.totalorder %v3059, 0
        %v3062 = vxor.u32 %v3056, 2147483648
        %v3063 = vsel %vm3061, %v3048, %v3062
        %vm3064 = vcmp.eq.s32.totalorder %v3059, 2
        %v3065 = vxor.u32 %v3048, 2147483648
        %v3066 = vsel %vm3064, %v3065, %v3056
        %v3067 = vsel %vm3060, %v3063, %v3066
        %v3068 = vsel %vm3057, nan, %v3067
        %v3069 = vand.u32 2147483647, %v427
        %vm3070 = vcmp.le.f32.partialorder %v3069, 0.7853982
        %vm3071 = vcmp.lt.s32.totalorder %v427, 0
        %v3072 = vand.u32 %v427, 2139095040
        %v3073 = vshrl.u32 %v3072, 23
        %v3074 = vsub.s32 %v3073, 127
        %v3075 = vand.u32 2147483647, %v427
        %v3076 = vand.u32 %v3075, 8388607
        %v3077 = vor.u32 %v3076, 8388608
        %v3078 = vsub.s32 0, %v3077
        %v3079 = vadd.s32 %v3074, 1
        %vm3080 = vcmp.gt.s32.totalorder %v3079, 0
        %v3081 = vsel %vm3080, %v3079, 0
        %v3082 = vshrl.u32 %v3081, 5
        %v3083 = vand.u32 %v3081, 31
        %v3084 = vsub.s32 32, %v3083
        %v3085 = vshrl.u32 683565275, %v3084
        %v3086 = vshll.u32 683565275, %v3083
        %v3087 = vshrl.u32 2475754826, %v3084
        %v3088 = vor.u32 %v3086, %v3087
        %v3089 = vshll.u32 2475754826, %v3083
        %v3090 = vshrl.u32 2131351028, %v3084
        %v3091 = vor.u32 %v3089, %v3090
        %v3092 = vshll.u32 2131351028, %v3083
        %v3093 = vshrl.u32 2102212464, %v3084
        %v3094 = vor.u32 %v3092, %v3093
        %v3095 = vshll.u32 2102212464, %v3083
        %v3096 = vshrl.u32 920167782, %v3084
        %v3097 = vor.u32 %v3095, %v3096
        %v3098 = vshll.u32 920167782, %v3083
        %v3099 = vshrl.u32 1326507024, %v3084
        %v3100 = vor.u32 %v3098, %v3099
        %vm3101 = vcmp.lt.s32.totalorder %v3082, 1
        %vm3102 = vcmp.lt.s32.totalorder %v3082, 2
        %vm3103 = vcmp.lt.s32.totalorder %v3082, 3
        %vm3104 = vcmp.lt.s32.totalorder %v3082, 4
        %v3105 = vsel %vm3101, %v3085, %v3088
        %v3106 = vsel %vm3104, %v3094, 2102212464
        %v3107 = vsel %vm3103, %v3091, %v3106
        %v3108 = vsel %vm3102, %v3105, %v3107
        %v3109 = vsel %vm3101, %v3088, %v3091
        %v3110 = vsel %vm3104, %v3097, 920167782
        %v3111 = vsel %vm3103, %v3094, %v3110
        %v3112 = vsel %vm3102, %v3109, %v3111
        %v3113 = vsel %vm3101, %v3091, %v3094
        %v3114 = vsel %vm3104, %v3100, 1326507024
        %v3115 = vsel %vm3103, %v3097, %v3114
        %v3116 = vsel %vm3102, %v3113, %v3115
        %v3117 = vshll.u32 %v3077, 8
        %v3118 = vand.u32 %v3117, 65535
        %v3119 = vshrl.u32 %v3117, 16
        %v3120 = vand.u32 %v3116, 65535
        %v3121 = vshrl.u32 %v3116, 16
        %v3122 = vmul.u32 %v3118, %v3120
        %v3123 = vmul.u32 %v3118, %v3121
        %v3124 = vmul.u32 %v3119, %v3120
        %v3125 = vmul.u32 %v3119, %v3121
        %v3126 = vshll.u32 %v3123, 16
        %v3127 = vshrl.u32 %v3123, 16
        %v3128 = vshll.u32 %v3124, 16
        %v3129 = vshrl.u32 %v3124, 16
        %vm3130 = vc.u32 %v3122, %v3126
        %v3131 = vsel %vm3130, 1, 0
        %v3132 = vadd.s32 %v3122, %v3126
        %v3133 = vadd.s32 %v3125, %v3131
        %vm3134 = vc.u32 %v3132, %v3128
        %v3135 = vsel %vm3134, 1, 0
        %v3136 = vadd.s32 %v3132, %v3128
        %v3137 = vadd.s32 %v3133, %v3135
        %v3138 = vadd.s32 %v3137, %v3127
        %v3139 = vadd.s32 %v3138, %v3129
        %v3140 = vand.u32 %v3117, 65535
        %v3141 = vshrl.u32 %v3117, 16
        %v3142 = vand.u32 %v3112, 65535
        %v3143 = vshrl.u32 %v3112, 16
        %v3144 = vmul.u32 %v3140, %v3142
        %v3145 = vmul.u32 %v3140, %v3143
        %v3146 = vmul.u32 %v3141, %v3142
        %v3147 = vmul.u32 %v3141, %v3143
        %v3148 = vshll.u32 %v3145, 16
        %v3149 = vshrl.u32 %v3145, 16
        %v3150 = vshll.u32 %v3146, 16
        %v3151 = vshrl.u32 %v3146, 16
        %vm3152 = vc.u32 %v3144, %v3148
        %v3153 = vsel %vm3152, 1, 0
        %v3154 = vadd.s32 %v3144, %v3148
        %v3155 = vadd.s32 %v3147, %v3153
        %vm3156 = vc.u32 %v3154, %v3150
        %v3157 = vsel %vm3156, 1, 0
        %v3158 = vadd.s32 %v3154, %v3150
        %v3159 = vadd.s32 %v3155, %v3157
        %v3160 = vadd.s32 %v3159, %v3149
        %v3161 = vadd.s32 %v3160, %v3151
        %v3162 = vmul.u32 %v3117, %v3108
        %v3163 = vadd.s32 %v3139, %v3158
        %vm3164 = vc.u32 %v3139, %v3158
        %v3165 = vadd.s32 %v3161, 1
        %v3166 = vsel %vm3164, %v3165, %v3161
        %v3167 = vadd.s32 %v3162, %v3166
        %v3168 = vadd.s32 %v3167, 536870912
        %v3169 = vshrl.u32 %v3168, 30
        %v3170 = vshll.u32 %v3169, 30
        %v3171 = vsub.s32 %v3167, %v3170
        %vm3172 = vcmp.lt.s32.totalorder %v3171, 0
        %v3173 = vsub.s32 0, %v3171
        %v3174 = vsel %vm3172, %v3173, %v3171
        %v3175 = vclz %v3174
        %v3176 = vsub.s32 %v3175, 2
        %vm3177 = vcmp.gt.s32.totalorder 0, %v3176
        %v3178 = vsel %vm3177, 0, %v3176
        %v3179 = vsub.s32 32, %v3178
        %v3180 = vshll.u32 %v3171, %v3178
        %v3181 = vshrl.u32 %v3163, %v3179
        %v3182 = vor.u32 %v3180, %v3181
        %v3183 = vsub.s32 4294967266, %v3178
        %v3184 = vadd.s32 %v3183, 127
        %v3185 = vshll.u32 %v3184, 23
        %v3186 = vor.u32 4788187, %v3185
        %v3187 = vand.u32 2147483647, %v3186
        %v3189 = vcvt.s32.f32 %v3182
        %v3190 = vmul.f32 %v3189, %v3187
        %v3191 = vxor.u32 %v3190, 2147483648
        %v3192 = vsel %vm3071, %v3191, %v3190
        %v3193 = vsub.s32 4, %v3169
        %v3194 = vsel %vm3071, %v3193, %v3169
        %v3195 = vsel %vm3070, %v427, %v3192
        %v3196 = vsel %vm3070, 0, %v3194
        %v3197 = vmul.f32 %v3195, %v3195
        %v3198 = vmul.f32 %v3197, -0.001358992
        %v3199 = vadd.f32 %v3198, 0.041655596
        %v3200 = vmul.f32 %v3197, %v3199
        %v3201 = vadd.f32 %v3200, -0.4999988
        %v3202 = vmul.f32 %v3197, %v3201
        %v3203 = vadd.f32 1.0, %v3202
        %v3204 = vmul.f32 %v3195, %v3195
        %v3205 = vmul.f32 %v3204, -0.00019511016
        %v3206 = vadd.f32 %v3205, 0.008332121
        %v3207 = vmul.f32 %v3204, %v3206
        %v3208 = vadd.f32 %v3207, -0.16666654
        %v3209 = vmul.f32 %v3204, %v3208
        %v3210 = vadd.f32 %v3209, 1.0
        %v3211 = vmul.f32 %v3210, %v3195
        %vm3212 = vweird.f32 %v427
        %v3213 = vadd.s32 %v3196, 3
        %v3214 = vand.u32 %v3213, 3
        %vm3215 = vcmp.lt.s32.totalorder %v3214, 2
        %vm3216 = vcmp.eq.s32.totalorder %v3214, 0
        %v3217 = vxor.u32 %v3211, 2147483648
        %v3218 = vsel %vm3216, %v3203, %v3217
        %vm3219 = vcmp.eq.s32.totalorder %v3214, 2
        %v3220 = vxor.u32 %v3203, 2147483648
        %v3221 = vsel %vm3219, %v3220, %v3211
        %v3222 = vsel %vm3215, %v3218, %v3221
        %v3223 = vsel %vm3212, nan, %v3222
        %v3224 = vand.u32 2147483647, %v428
        %vm3225 = vcmp.le.f32.partialorder %v3224, 0.7853982
        %vm3226 = vcmp.lt.s32.totalorder %v428, 0
        %v3227 = vand.u32 %v428, 2139095040
        %v3228 = vshrl.u32 %v3227, 23
        %v3229 = vsub.s32 %v3228, 127
        %v3230 = vand.u32 2147483647, %v428
        %v3231 = vand.u32 %v3230, 8388607
        %v3232 = vor.u32 %v3231, 8388608
        %v3233 = vsub.s32 0, %v3232
        %v3234 = vadd.s32 %v3229, 1
        %vm3235 = vcmp.gt.s32.totalorder %v3234, 0
        %v3236 = vsel %vm3235, %v3234, 0
        %v3237 = vshrl.u32 %v3236, 5
        %v3238 = vand.u32 %v3236, 31
        %v3239 = vsub.s32 32, %v3238
        %v3240 = vshrl.u32 683565275, %v3239
        %v3241 = vshll.u32 683565275, %v3238
        %v3242 = vshrl.u32 2475754826, %v3239
        %v3243 = vor.u32 %v3241, %v3242
        %v3244 = vshll.u32 2475754826, %v3238
        %v3245 = vshrl.u32 2131351028, %v3239
        %v3246 = vor.u32 %v3244, %v3245
        %v3247 = vshll.u32 2131351028, %v3238
        %v3248 = vshrl.u32 2102212464, %v3239
        %v3249 = vor.u32 %v3247, %v3248
        %v3250 = vshll.u32 2102212464, %v3238
        %v3251 = vshrl.u32 920167782, %v3239
        %v3252 = vor.u32 %v3250, %v3251
        %v3253 = vshll.u32 920167782, %v3238
        %v3254 = vshrl.u32 1326507024, %v3239
        %v3255 = vor.u32 %v3253, %v3254
        %vm3256 = vcmp.lt.s32.totalorder %v3237, 1
        %vm3257 = vcmp.lt.s32.totalorder %v3237, 2
        %vm3258 = vcmp.lt.s32.totalorder %v3237, 3
        %vm3259 = vcmp.lt.s32.totalorder %v3237, 4
        %v3260 = vsel %vm3256, %v3240, %v3243
        %v3261 = vsel %vm3259, %v3249, 2102212464
        %v3262 = vsel %vm3258, %v3246, %v3261
        %v3263 = vsel %vm3257, %v3260, %v3262
        %v3264 = vsel %vm3256, %v3243, %v3246
        %v3265 = vsel %vm3259, %v3252, 920167782
        %v3266 = vsel %vm3258, %v3249, %v3265
        %v3267 = vsel %vm3257, %v3264, %v3266
        %v3268 = vsel %vm3256, %v3246, %v3249
        %v3269 = vsel %vm3259, %v3255, 1326507024
        %v3270 = vsel %vm3258, %v3252, %v3269
        %v3271 = vsel %vm3257, %v3268, %v3270
        %v3272 = vshll.u32 %v3232, 8
        %v3273 = vand.u32 %v3272, 65535
        %v3274 = vshrl.u32 %v3272, 16
        %v3275 = vand.u32 %v3271, 65535
        %v3276 = vshrl.u32 %v3271, 16
        %v3277 = vmul.u32 %v3273, %v3275
        %v3278 = vmul.u32 %v3273, %v3276
        %v3279 = vmul.u32 %v3274, %v3275
        %v3280 = vmul.u32 %v3274, %v3276
        %v3281 = vshll.u32 %v3278, 16
        %v3282 = vshrl.u32 %v3278, 16
        %v3283 = vshll.u32 %v3279, 16
        %v3284 = vshrl.u32 %v3279, 16
        %vm3285 = vc.u32 %v3277, %v3281
        %v3286 = vsel %vm3285, 1, 0
        %v3287 = vadd.s32 %v3277, %v3281
        %v3288 = vadd.s32 %v3280, %v3286
        %vm3289 = vc.u32 %v3287, %v3283
        %v3290 = vsel %vm3289, 1, 0
        %v3291 = vadd.s32 %v3287, %v3283
        %v3292 = vadd.s32 %v3288, %v3290
        %v3293 = vadd.s32 %v3292, %v3282
        %v3294 = vadd.s32 %v3293, %v3284
        %v3295 = vand.u32 %v3272, 65535
        %v3296 = vshrl.u32 %v3272, 16
        %v3297 = vand.u32 %v3267, 65535
        %v3298 = vshrl.u32 %v3267, 16
        %v3299 = vmul.u32 %v3295, %v3297
        %v3300 = vmul.u32 %v3295, %v3298
        %v3301 = vmul.u32 %v3296, %v3297
        %v3302 = vmul.u32 %v3296, %v3298
        %v3303 = vshll.u32 %v3300, 16
        %v3304 = vshrl.u32 %v3300, 16
        %v3305 = vshll.u32 %v3301, 16
        %v3306 = vshrl.u32 %v3301, 16
        %vm3307 = vc.u32 %v3299, %v3303
        %v3308 = vsel %vm3307, 1, 0
        %v3309 = vadd.s32 %v3299, %v3303
        %v3310 = vadd.s32 %v3302, %v3308
        %vm3311 = vc.u32 %v3309, %v3305
        %v3312 = vsel %vm3311, 1, 0
        %v3313 = vadd.s32 %v3309, %v3305
        %v3314 = vadd.s32 %v3310, %v3312
        %v3315 = vadd.s32 %v3314, %v3304
        %v3316 = vadd.s32 %v3315, %v3306
        %v3317 = vmul.u32 %v3272, %v3263
        %v3318 = vadd.s32 %v3294, %v3313
        %vm3319 = vc.u32 %v3294, %v3313
        %v3320 = vadd.s32 %v3316, 1
        %v3321 = vsel %vm3319, %v3320, %v3316
        %v3322 = vadd.s32 %v3317, %v3321
        %v3323 = vadd.s32 %v3322, 536870912
        %v3324 = vshrl.u32 %v3323, 30
        %v3325 = vshll.u32 %v3324, 30
        %v3326 = vsub.s32 %v3322, %v3325
        %vm3327 = vcmp.lt.s32.totalorder %v3326, 0
        %v3328 = vsub.s32 0, %v3326
        %v3329 = vsel %vm3327, %v3328, %v3326
        %v3330 = vclz %v3329
        %v3331 = vsub.s32 %v3330, 2
        %vm3332 = vcmp.gt.s32.totalorder 0, %v3331
        %v3333 = vsel %vm3332, 0, %v3331
        %v3334 = vsub.s32 32, %v3333
        %v3335 = vshll.u32 %v3326, %v3333
        %v3336 = vshrl.u32 %v3318, %v3334
        %v3337 = vor.u32 %v3335, %v3336
        %v3338 = vsub.s32 4294967266, %v3333
        %v3339 = vadd.s32 %v3338, 127
        %v3340 = vshll.u32 %v3339, 23
        %v3341 = vor.u32 4788187, %v3340
        %v3342 = vand.u32 2147483647, %v3341
        %v3344 = vcvt.s32.f32 %v3337
        %v3345 = vmul.f32 %v3344, %v3342
        %v3346 = vxor.u32 %v3345, 2147483648
        %v3347 = vsel %vm3226, %v3346, %v3345
        %v3348 = vsub.s32 4, %v3324
        %v3349 = vsel %vm3226, %v3348, %v3324
        %v3350 = vsel %vm3225, %v428, %v3347
        %v3351 = vsel %vm3225, 0, %v3349
        %v3352 = vmul.f32 %v3350, %v3350
        %v3353 = vmul.f32 %v3352, -0.001358992
        %v3354 = vadd.f32 %v3353, 0.041655596
        %v3355 = vmul.f32 %v3352, %v3354
        %v3356 = vadd.f32 %v3355, -0.4999988
        %v3357 = vmul.f32 %v3352, %v3356
        %v3358 = vadd.f32 1.0, %v3357
        %v3359 = vmul.f32 %v3350, %v3350
        %v3360 = vmul.f32 %v3359, -0.00019511016
        %v3361 = vadd.f32 %v3360, 0.008332121
        %v3362 = vmul.f32 %v3359, %v3361
        %v3363 = vadd.f32 %v3362, -0.16666654
        %v3364 = vmul.f32 %v3359, %v3363
        %v3365 = vadd.f32 %v3364, 1.0
        %v3366 = vmul.f32 %v3365, %v3350
        %vm3367 = vweird.f32 %v428
        %v3368 = vadd.s32 %v3351, 3
        %v3369 = vand.u32 %v3368, 3
        %vm3370 = vcmp.lt.s32.totalorder %v3369, 2
        %vm3371 = vcmp.eq.s32.totalorder %v3369, 0
        %v3372 = vxor.u32 %v3366, 2147483648
        %v3373 = vsel %vm3371, %v3358, %v3372
        %vm3374 = vcmp.eq.s32.totalorder %v3369, 2
        %v3375 = vxor.u32 %v3358, 2147483648
        %v3376 = vsel %vm3374, %v3375, %v3366
        %v3377 = vsel %vm3370, %v3373, %v3376
        %v3378 = vsel %vm3367, nan, %v3377
        %v3379 = vand.u32 2147483647, %v429
        %vm3380 = vcmp.le.f32.partialorder %v3379, 0.7853982
        %vm3381 = vcmp.lt.s32.totalorder %v429, 0
        %v3382 = vand.u32 %v429, 2139095040
        %v3383 = vshrl.u32 %v3382, 23
        %v3384 = vsub.s32 %v3383, 127
        %v3385 = vand.u32 2147483647, %v429
        %v3386 = vand.u32 %v3385, 8388607
        %v3387 = vor.u32 %v3386, 8388608
        %v3388 = vsub.s32 0, %v3387
        %v3389 = vadd.s32 %v3384, 1
        %vm3390 = vcmp.gt.s32.totalorder %v3389, 0
        %v3391 = vsel %vm3390, %v3389, 0
        %v3392 = vshrl.u32 %v3391, 5
        %v3393 = vand.u32 %v3391, 31
        %v3394 = vsub.s32 32, %v3393
        %v3395 = vshrl.u32 683565275, %v3394
        %v3396 = vshll.u32 683565275, %v3393
        %v3397 = vshrl.u32 2475754826, %v3394
        %v3398 = vor.u32 %v3396, %v3397
        %v3399 = vshll.u32 2475754826, %v3393
        %v3400 = vshrl.u32 2131351028, %v3394
        %v3401 = vor.u32 %v3399, %v3400
        %v3402 = vshll.u32 2131351028, %v3393
        %v3403 = vshrl.u32 2102212464, %v3394
        %v3404 = vor.u32 %v3402, %v3403
        %v3405 = vshll.u32 2102212464, %v3393
        %v3406 = vshrl.u32 920167782, %v3394
        %v3407 = vor.u32 %v3405, %v3406
        %v3408 = vshll.u32 920167782, %v3393
        %v3409 = vshrl.u32 1326507024, %v3394
        %v3410 = vor.u32 %v3408, %v3409
        %vm3411 = vcmp.lt.s32.totalorder %v3392, 1
        %vm3412 = vcmp.lt.s32.totalorder %v3392, 2
        %vm3413 = vcmp.lt.s32.totalorder %v3392, 3
        %vm3414 = vcmp.lt.s32.totalorder %v3392, 4
        %v3415 = vsel %vm3411, %v3395, %v3398
        %v3416 = vsel %vm3414, %v3404, 2102212464
        %v3417 = vsel %vm3413, %v3401, %v3416
        %v3418 = vsel %vm3412, %v3415, %v3417
        %v3419 = vsel %vm3411, %v3398, %v3401
        %v3420 = vsel %vm3414, %v3407, 920167782
        %v3421 = vsel %vm3413, %v3404, %v3420
        %v3422 = vsel %vm3412, %v3419, %v3421
        %v3423 = vsel %vm3411, %v3401, %v3404
        %v3424 = vsel %vm3414, %v3410, 1326507024
        %v3425 = vsel %vm3413, %v3407, %v3424
        %v3426 = vsel %vm3412, %v3423, %v3425
        %v3427 = vshll.u32 %v3387, 8
        %v3428 = vand.u32 %v3427, 65535
        %v3429 = vshrl.u32 %v3427, 16
        %v3430 = vand.u32 %v3426, 65535
        %v3431 = vshrl.u32 %v3426, 16
        %v3432 = vmul.u32 %v3428, %v3430
        %v3433 = vmul.u32 %v3428, %v3431
        %v3434 = vmul.u32 %v3429, %v3430
        %v3435 = vmul.u32 %v3429, %v3431
        %v3436 = vshll.u32 %v3433, 16
        %v3437 = vshrl.u32 %v3433, 16
        %v3438 = vshll.u32 %v3434, 16
        %v3439 = vshrl.u32 %v3434, 16
        %vm3440 = vc.u32 %v3432, %v3436
        %v3441 = vsel %vm3440, 1, 0
        %v3442 = vadd.s32 %v3432, %v3436
        %v3443 = vadd.s32 %v3435, %v3441
        %vm3444 = vc.u32 %v3442, %v3438
        %v3445 = vsel %vm3444, 1, 0
        %v3446 = vadd.s32 %v3442, %v3438
        %v3447 = vadd.s32 %v3443, %v3445
        %v3448 = vadd.s32 %v3447, %v3437
        %v3449 = vadd.s32 %v3448, %v3439
        %v3450 = vand.u32 %v3427, 65535
        %v3451 = vshrl.u32 %v3427, 16
        %v3452 = vand.u32 %v3422, 65535
        %v3453 = vshrl.u32 %v3422, 16
        %v3454 = vmul.u32 %v3450, %v3452
        %v3455 = vmul.u32 %v3450, %v3453
        %v3456 = vmul.u32 %v3451, %v3452
        %v3457 = vmul.u32 %v3451, %v3453
        %v3458 = vshll.u32 %v3455, 16
        %v3459 = vshrl.u32 %v3455, 16
        %v3460 = vshll.u32 %v3456, 16
        %v3461 = vshrl.u32 %v3456, 16
        %vm3462 = vc.u32 %v3454, %v3458
        %v3463 = vsel %vm3462, 1, 0
        %v3464 = vadd.s32 %v3454, %v3458
        %v3465 = vadd.s32 %v3457, %v3463
        %vm3466 = vc.u32 %v3464, %v3460
        %v3467 = vsel %vm3466, 1, 0
        %v3468 = vadd.s32 %v3464, %v3460
        %v3469 = vadd.s32 %v3465, %v3467
        %v3470 = vadd.s32 %v3469, %v3459
        %v3471 = vadd.s32 %v3470, %v3461
        %v3472 = vmul.u32 %v3427, %v3418
        %v3473 = vadd.s32 %v3449, %v3468
        %vm3474 = vc.u32 %v3449, %v3468
        %v3475 = vadd.s32 %v3471, 1
        %v3476 = vsel %vm3474, %v3475, %v3471
        %v3477 = vadd.s32 %v3472, %v3476
        %v3478 = vadd.s32 %v3477, 536870912
        %v3479 = vshrl.u32 %v3478, 30
        %v3480 = vshll.u32 %v3479, 30
        %v3481 = vsub.s32 %v3477, %v3480
        %vm3482 = vcmp.lt.s32.totalorder %v3481, 0
        %v3483 = vsub.s32 0, %v3481
        %v3484 = vsel %vm3482, %v3483, %v3481
        %v3485 = vclz %v3484
        %v3486 = vsub.s32 %v3485, 2
        %vm3487 = vcmp.gt.s32.totalorder 0, %v3486
        %v3488 = vsel %vm3487, 0, %v3486
        %v3489 = vsub.s32 32, %v3488
        %v3490 = vshll.u32 %v3481, %v3488
        %v3491 = vshrl.u32 %v3473, %v3489
        %v3492 = vor.u32 %v3490, %v3491
        %v3493 = vsub.s32 4294967266, %v3488
        %v3494 = vadd.s32 %v3493, 127
        %v3495 = vshll.u32 %v3494, 23
        %v3496 = vor.u32 4788187, %v3495
        %v3497 = vand.u32 2147483647, %v3496
        %v3499 = vcvt.s32.f32 %v3492
        %v3500 = vmul.f32 %v3499, %v3497
        %v3501 = vxor.u32 %v3500, 2147483648
        %v3502 = vsel %vm3381, %v3501, %v3500
        %v3503 = vsub.s32 4, %v3479
        %v3504 = vsel %vm3381, %v3503, %v3479
        %v3505 = vsel %vm3380, %v429, %v3502
        %v3506 = vsel %vm3380, 0, %v3504
        %v3507 = vmul.f32 %v3505, %v3505
        %v3508 = vmul.f32 %v3507, -0.001358992
        %v3509 = vadd.f32 %v3508, 0.041655596
        %v3510 = vmul.f32 %v3507, %v3509
        %v3511 = vadd.f32 %v3510, -0.4999988
        %v3512 = vmul.f32 %v3507, %v3511
        %v3513 = vadd.f32 1.0, %v3512
        %v3514 = vmul.f32 %v3505, %v3505
        %v3515 = vmul.f32 %v3514, -0.00019511016
        %v3516 = vadd.f32 %v3515, 0.008332121
        %v3517 = vmul.f32 %v3514, %v3516
        %v3518 = vadd.f32 %v3517, -0.16666654
        %v3519 = vmul.f32 %v3514, %v3518
        %v3520 = vadd.f32 %v3519, 1.0
        %v3521 = vmul.f32 %v3520, %v3505
        %vm3522 = vweird.f32 %v429
        %v3523 = vadd.s32 %v3506, 3
        %v3524 = vand.u32 %v3523, 3
        %vm3525 = vcmp.lt.s32.totalorder %v3524, 2
        %vm3526 = vcmp.eq.s32.totalorder %v3524, 0
        %v3527 = vxor.u32 %v3521, 2147483648
        %v3528 = vsel %vm3526, %v3513, %v3527
        %vm3529 = vcmp.eq.s32.totalorder %v3524, 2
        %v3530 = vxor.u32 %v3513, 2147483648
        %v3531 = vsel %vm3529, %v3530, %v3521
        %v3532 = vsel %vm3525, %v3528, %v3531
        %v3533 = vsel %vm3522, nan, %v3532
        %v3534 = vand.u32 2147483647, %v430
        %vm3535 = vcmp.le.f32.partialorder %v3534, 0.7853982
        %vm3536 = vcmp.lt.s32.totalorder %v430, 0
        %v3537 = vand.u32 %v430, 2139095040
        %v3538 = vshrl.u32 %v3537, 23
        %v3539 = vsub.s32 %v3538, 127
        %v3540 = vand.u32 2147483647, %v430
        %v3541 = vand.u32 %v3540, 8388607
        %v3542 = vor.u32 %v3541, 8388608
        %v3543 = vsub.s32 0, %v3542
        %v3544 = vadd.s32 %v3539, 1
        %vm3545 = vcmp.gt.s32.totalorder %v3544, 0
        %v3546 = vsel %vm3545, %v3544, 0
        %v3547 = vshrl.u32 %v3546, 5
        %v3548 = vand.u32 %v3546, 31
        %v3549 = vsub.s32 32, %v3548
        %v3550 = vshrl.u32 683565275, %v3549
        %v3551 = vshll.u32 683565275, %v3548
        %v3552 = vshrl.u32 2475754826, %v3549
        %v3553 = vor.u32 %v3551, %v3552
        %v3554 = vshll.u32 2475754826, %v3548
        %v3555 = vshrl.u32 2131351028, %v3549
        %v3556 = vor.u32 %v3554, %v3555
        %v3557 = vshll.u32 2131351028, %v3548
        %v3558 = vshrl.u32 2102212464, %v3549
        %v3559 = vor.u32 %v3557, %v3558
        %v3560 = vshll.u32 2102212464, %v3548
        %v3561 = vshrl.u32 920167782, %v3549
        %v3562 = vor.u32 %v3560, %v3561
        %v3563 = vshll.u32 920167782, %v3548
        %v3564 = vshrl.u32 1326507024, %v3549
        %v3565 = vor.u32 %v3563, %v3564
        %vm3566 = vcmp.lt.s32.totalorder %v3547, 1
        %vm3567 = vcmp.lt.s32.totalorder %v3547, 2
        %vm3568 = vcmp.lt.s32.totalorder %v3547, 3
        %vm3569 = vcmp.lt.s32.totalorder %v3547, 4
        %v3570 = vsel %vm3566, %v3550, %v3553
        %v3571 = vsel %vm3569, %v3559, 2102212464
        %v3572 = vsel %vm3568, %v3556, %v3571
        %v3573 = vsel %vm3567, %v3570, %v3572
        %v3574 = vsel %vm3566, %v3553, %v3556
        %v3575 = vsel %vm3569, %v3562, 920167782
        %v3576 = vsel %vm3568, %v3559, %v3575
        %v3577 = vsel %vm3567, %v3574, %v3576
        %v3578 = vsel %vm3566, %v3556, %v3559
        %v3579 = vsel %vm3569, %v3565, 1326507024
        %v3580 = vsel %vm3568, %v3562, %v3579
        %v3581 = vsel %vm3567, %v3578, %v3580
        %v3582 = vshll.u32 %v3542, 8
        %v3583 = vand.u32 %v3582, 65535
        %v3584 = vshrl.u32 %v3582, 16
        %v3585 = vand.u32 %v3581, 65535
        %v3586 = vshrl.u32 %v3581, 16
        %v3587 = vmul.u32 %v3583, %v3585
        %v3588 = vmul.u32 %v3583, %v3586
        %v3589 = vmul.u32 %v3584, %v3585
        %v3590 = vmul.u32 %v3584, %v3586
        %v3591 = vshll.u32 %v3588, 16
        %v3592 = vshrl.u32 %v3588, 16
        %v3593 = vshll.u32 %v3589, 16
        %v3594 = vshrl.u32 %v3589, 16
        %vm3595 = vc.u32 %v3587, %v3591
        %v3596 = vsel %vm3595, 1, 0
        %v3597 = vadd.s32 %v3587, %v3591
        %v3598 = vadd.s32 %v3590, %v3596
        %vm3599 = vc.u32 %v3597, %v3593
        %v3600 = vsel %vm3599, 1, 0
        %v3601 = vadd.s32 %v3597, %v3593
        %v3602 = vadd.s32 %v3598, %v3600
        %v3603 = vadd.s32 %v3602, %v3592
        %v3604 = vadd.s32 %v3603, %v3594
        %v3605 = vand.u32 %v3582, 65535
        %v3606 = vshrl.u32 %v3582, 16
        %v3607 = vand.u32 %v3577, 65535
        %v3608 = vshrl.u32 %v3577, 16
        %v3609 = vmul.u32 %v3605, %v3607
        %v3610 = vmul.u32 %v3605, %v3608
        %v3611 = vmul.u32 %v3606, %v3607
        %v3612 = vmul.u32 %v3606, %v3608
        %v3613 = vshll.u32 %v3610, 16
        %v3614 = vshrl.u32 %v3610, 16
        %v3615 = vshll.u32 %v3611, 16
        %v3616 = vshrl.u32 %v3611, 16
        %vm3617 = vc.u32 %v3609, %v3613
        %v3618 = vsel %vm3617, 1, 0
        %v3619 = vadd.s32 %v3609, %v3613
        %v3620 = vadd.s32 %v3612, %v3618
        %vm3621 = vc.u32 %v3619, %v3615
        %v3622 = vsel %vm3621, 1, 0
        %v3623 = vadd.s32 %v3619, %v3615
        %v3624 = vadd.s32 %v3620, %v3622
        %v3625 = vadd.s32 %v3624, %v3614
        %v3626 = vadd.s32 %v3625, %v3616
        %v3627 = vmul.u32 %v3582, %v3573
        %v3628 = vadd.s32 %v3604, %v3623
        %vm3629 = vc.u32 %v3604, %v3623
        %v3630 = vadd.s32 %v3626, 1
        %v3631 = vsel %vm3629, %v3630, %v3626
        %v3632 = vadd.s32 %v3627, %v3631
        %v3633 = vadd.s32 %v3632, 536870912
        %v3634 = vshrl.u32 %v3633, 30
        %v3635 = vshll.u32 %v3634, 30
        %v3636 = vsub.s32 %v3632, %v3635
        %vm3637 = vcmp.lt.s32.totalorder %v3636, 0
        %v3638 = vsub.s32 0, %v3636
        %v3639 = vsel %vm3637, %v3638, %v3636
        %v3640 = vclz %v3639
        %v3641 = vsub.s32 %v3640, 2
        %vm3642 = vcmp.gt.s32.totalorder 0, %v3641
        %v3643 = vsel %vm3642, 0, %v3641
        %v3644 = vsub.s32 32, %v3643
        %v3645 = vshll.u32 %v3636, %v3643
        %v3646 = vshrl.u32 %v3628, %v3644
        %v3647 = vor.u32 %v3645, %v3646
        %v3648 = vsub.s32 4294967266, %v3643
        %v3649 = vadd.s32 %v3648, 127
        %v3650 = vshll.u32 %v3649, 23
        %v3651 = vor.u32 4788187, %v3650
        %v3652 = vand.u32 2147483647, %v3651
        %v3654 = vcvt.s32.f32 %v3647
        %v3655 = vmul.f32 %v3654, %v3652
        %v3656 = vxor.u32 %v3655, 2147483648
        %v3657 = vsel %vm3536, %v3656, %v3655
        %v3658 = vsub.s32 4, %v3634
        %v3659 = vsel %vm3536, %v3658, %v3634
        %v3660 = vsel %vm3535, %v430, %v3657
        %v3661 = vsel %vm3535, 0, %v3659
        %v3662 = vmul.f32 %v3660, %v3660
        %v3663 = vmul.f32 %v3662, -0.001358992
        %v3664 = vadd.f32 %v3663, 0.041655596
        %v3665 = vmul.f32 %v3662, %v3664
        %v3666 = vadd.f32 %v3665, -0.4999988
        %v3667 = vmul.f32 %v3662, %v3666
        %v3668 = vadd.f32 1.0, %v3667
        %v3669 = vmul.f32 %v3660, %v3660
        %v3670 = vmul.f32 %v3669, -0.00019511016
        %v3671 = vadd.f32 %v3670, 0.008332121
        %v3672 = vmul.f32 %v3669, %v3671
        %v3673 = vadd.f32 %v3672, -0.16666654
        %v3674 = vmul.f32 %v3669, %v3673
        %v3675 = vadd.f32 %v3674, 1.0
        %v3676 = vmul.f32 %v3675, %v3660
        %vm3677 = vweird.f32 %v430
        %v3678 = vadd.s32 %v3661, 3
        %v3679 = vand.u32 %v3678, 3
        %vm3680 = vcmp.lt.s32.totalorder %v3679, 2
        %vm3681 = vcmp.eq.s32.totalorder %v3679, 0
        %v3682 = vxor.u32 %v3676, 2147483648
        %v3683 = vsel %vm3681, %v3668, %v3682
        %vm3684 = vcmp.eq.s32.totalorder %v3679, 2
        %v3685 = vxor.u32 %v3668, 2147483648
        %v3686 = vsel %vm3684, %v3685, %v3676
        %v3687 = vsel %vm3680, %v3683, %v3686
        %v3688 = vsel %vm3677, nan, %v3687
        %v3689 = vand.u32 2147483647, %v431
        %vm3690 = vcmp.le.f32.partialorder %v3689, 0.7853982
        %vm3691 = vcmp.lt.s32.totalorder %v431, 0
        %v3692 = vand.u32 %v431, 2139095040
        %v3693 = vshrl.u32 %v3692, 23
        %v3694 = vsub.s32 %v3693, 127
        %v3695 = vand.u32 2147483647, %v431
        %v3696 = vand.u32 %v3695, 8388607
        %v3697 = vor.u32 %v3696, 8388608
        %v3698 = vsub.s32 0, %v3697
        %v3699 = vadd.s32 %v3694, 1
        %vm3700 = vcmp.gt.s32.totalorder %v3699, 0
        %v3701 = vsel %vm3700, %v3699, 0
        %v3702 = vshrl.u32 %v3701, 5
        %v3703 = vand.u32 %v3701, 31
        %v3704 = vsub.s32 32, %v3703
        %v3705 = vshrl.u32 683565275, %v3704
        %v3706 = vshll.u32 683565275, %v3703
        %v3707 = vshrl.u32 2475754826, %v3704
        %v3708 = vor.u32 %v3706, %v3707
        %v3709 = vshll.u32 2475754826, %v3703
        %v3710 = vshrl.u32 2131351028, %v3704
        %v3711 = vor.u32 %v3709, %v3710
        %v3712 = vshll.u32 2131351028, %v3703
        %v3713 = vshrl.u32 2102212464, %v3704
        %v3714 = vor.u32 %v3712, %v3713
        %v3715 = vshll.u32 2102212464, %v3703
        %v3716 = vshrl.u32 920167782, %v3704
        %v3717 = vor.u32 %v3715, %v3716
        %v3718 = vshll.u32 920167782, %v3703
        %v3719 = vshrl.u32 1326507024, %v3704
        %v3720 = vor.u32 %v3718, %v3719
        %vm3721 = vcmp.lt.s32.totalorder %v3702, 1
        %vm3722 = vcmp.lt.s32.totalorder %v3702, 2
        %vm3723 = vcmp.lt.s32.totalorder %v3702, 3
        %vm3724 = vcmp.lt.s32.totalorder %v3702, 4
        %v3725 = vsel %vm3721, %v3705, %v3708
        %v3726 = vsel %vm3724, %v3714, 2102212464
        %v3727 = vsel %vm3723, %v3711, %v3726
        %v3728 = vsel %vm3722, %v3725, %v3727
        %v3729 = vsel %vm3721, %v3708, %v3711
        %v3730 = vsel %vm3724, %v3717, 920167782
        %v3731 = vsel %vm3723, %v3714, %v3730
        %v3732 = vsel %vm3722, %v3729, %v3731
        %v3733 = vsel %vm3721, %v3711, %v3714
        %v3734 = vsel %vm3724, %v3720, 1326507024
        %v3735 = vsel %vm3723, %v3717, %v3734
        %v3736 = vsel %vm3722, %v3733, %v3735
        %v3737 = vshll.u32 %v3697, 8
        %v3738 = vand.u32 %v3737, 65535
        %v3739 = vshrl.u32 %v3737, 16
        %v3740 = vand.u32 %v3736, 65535
        %v3741 = vshrl.u32 %v3736, 16
        %v3742 = vmul.u32 %v3738, %v3740
        %v3743 = vmul.u32 %v3738, %v3741
        %v3744 = vmul.u32 %v3739, %v3740
        %v3745 = vmul.u32 %v3739, %v3741
        %v3746 = vshll.u32 %v3743, 16
        %v3747 = vshrl.u32 %v3743, 16
        %v3748 = vshll.u32 %v3744, 16
        %v3749 = vshrl.u32 %v3744, 16
        %vm3750 = vc.u32 %v3742, %v3746
        %v3751 = vsel %vm3750, 1, 0
        %v3752 = vadd.s32 %v3742, %v3746
        %v3753 = vadd.s32 %v3745, %v3751
        %vm3754 = vc.u32 %v3752, %v3748
        %v3755 = vsel %vm3754, 1, 0
        %v3756 = vadd.s32 %v3752, %v3748
        %v3757 = vadd.s32 %v3753, %v3755
        %v3758 = vadd.s32 %v3757, %v3747
        %v3759 = vadd.s32 %v3758, %v3749
        %v3760 = vand.u32 %v3737, 65535
        %v3761 = vshrl.u32 %v3737, 16
        %v3762 = vand.u32 %v3732, 65535
        %v3763 = vshrl.u32 %v3732, 16
        %v3764 = vmul.u32 %v3760, %v3762
        %v3765 = vmul.u32 %v3760, %v3763
        %v3766 = vmul.u32 %v3761, %v3762
        %v3767 = vmul.u32 %v3761, %v3763
        %v3768 = vshll.u32 %v3765, 16
        %v3769 = vshrl.u32 %v3765, 16
        %v3770 = vshll.u32 %v3766, 16
        %v3771 = vshrl.u32 %v3766, 16
        %vm3772 = vc.u32 %v3764, %v3768
        %v3773 = vsel %vm3772, 1, 0
        %v3774 = vadd.s32 %v3764, %v3768
        %v3775 = vadd.s32 %v3767, %v3773
        %vm3776 = vc.u32 %v3774, %v3770
        %v3777 = vsel %vm3776, 1, 0
        %v3778 = vadd.s32 %v3774, %v3770
        %v3779 = vadd.s32 %v3775, %v3777
        %v3780 = vadd.s32 %v3779, %v3769
        %v3781 = vadd.s32 %v3780, %v3771
        %v3782 = vmul.u32 %v3737, %v3728
        %v3783 = vadd.s32 %v3759, %v3778
        %vm3784 = vc.u32 %v3759, %v3778
        %v3785 = vadd.s32 %v3781, 1
        %v3786 = vsel %vm3784, %v3785, %v3781
        %v3787 = vadd.s32 %v3782, %v3786
        %v3788 = vadd.s32 %v3787, 536870912
        %v3789 = vshrl.u32 %v3788, 30
        %v3790 = vshll.u32 %v3789, 30
        %v3791 = vsub.s32 %v3787, %v3790
        %vm3792 = vcmp.lt.s32.totalorder %v3791, 0
        %v3793 = vsub.s32 0, %v3791
        %v3794 = vsel %vm3792, %v3793, %v3791
        %v3795 = vclz %v3794
        %v3796 = vsub.s32 %v3795, 2
        %vm3797 = vcmp.gt.s32.totalorder 0, %v3796
        %v3798 = vsel %vm3797, 0, %v3796
        %v3799 = vsub.s32 32, %v3798
        %v3800 = vshll.u32 %v3791, %v3798
        %v3801 = vshrl.u32 %v3783, %v3799
        %v3802 = vor.u32 %v3800, %v3801
        %v3803 = vsub.s32 4294967266, %v3798
        %v3804 = vadd.s32 %v3803, 127
        %v3805 = vshll.u32 %v3804, 23
        %v3806 = vor.u32 4788187, %v3805
        %v3807 = vand.u32 2147483647, %v3806
        %v3809 = vcvt.s32.f32 %v3802
        %v3810 = vmul.f32 %v3809, %v3807
        %v3811 = vxor.u32 %v3810, 2147483648
        %v3812 = vsel %vm3691, %v3811, %v3810
        %v3813 = vsub.s32 4, %v3789
        %v3814 = vsel %vm3691, %v3813, %v3789
        %v3815 = vsel %vm3690, %v431, %v3812
        %v3816 = vsel %vm3690, 0, %v3814
        %v3817 = vmul.f32 %v3815, %v3815
        %v3818 = vmul.f32 %v3817, -0.001358992
        %v3819 = vadd.f32 %v3818, 0.041655596
        %v3820 = vmul.f32 %v3817, %v3819
        %v3821 = vadd.f32 %v3820, -0.4999988
        %v3822 = vmul.f32 %v3817, %v3821
        %v3823 = vadd.f32 1.0, %v3822
        %v3824 = vmul.f32 %v3815, %v3815
        %v3825 = vmul.f32 %v3824, -0.00019511016
        %v3826 = vadd.f32 %v3825, 0.008332121
        %v3827 = vmul.f32 %v3824, %v3826
        %v3828 = vadd.f32 %v3827, -0.16666654
        %v3829 = vmul.f32 %v3824, %v3828
        %v3830 = vadd.f32 %v3829, 1.0
        %v3831 = vmul.f32 %v3830, %v3815
        %vm3832 = vweird.f32 %v431
        %v3833 = vadd.s32 %v3816, 3
        %v3834 = vand.u32 %v3833, 3
        %vm3835 = vcmp.lt.s32.totalorder %v3834, 2
        %vm3836 = vcmp.eq.s32.totalorder %v3834, 0
        %v3837 = vxor.u32 %v3831, 2147483648
        %v3838 = vsel %vm3836, %v3823, %v3837
        %vm3839 = vcmp.eq.s32.totalorder %v3834, 2
        %v3840 = vxor.u32 %v3823, 2147483648
        %v3841 = vsel %vm3839, %v3840, %v3831
        %v3842 = vsel %vm3835, %v3838, %v3841
        %v3843 = vsel %vm3832, nan, %v3842
        %v3844 = vand.u32 2147483647, %v432
        %vm3845 = vcmp.le.f32.partialorder %v3844, 0.7853982
        %vm3846 = vcmp.lt.s32.totalorder %v432, 0
        %v3847 = vand.u32 %v432, 2139095040
        %v3848 = vshrl.u32 %v3847, 23
        %v3849 = vsub.s32 %v3848, 127
        %v3850 = vand.u32 2147483647, %v432
        %v3851 = vand.u32 %v3850, 8388607
        %v3852 = vor.u32 %v3851, 8388608
        %v3853 = vsub.s32 0, %v3852
        %v3854 = vadd.s32 %v3849, 1
        %vm3855 = vcmp.gt.s32.totalorder %v3854, 0
        %v3856 = vsel %vm3855, %v3854, 0
        %v3857 = vshrl.u32 %v3856, 5
        %v3858 = vand.u32 %v3856, 31
        %v3859 = vsub.s32 32, %v3858
        %v3860 = vshrl.u32 683565275, %v3859
        %v3861 = vshll.u32 683565275, %v3858
        %v3862 = vshrl.u32 2475754826, %v3859
        %v3863 = vor.u32 %v3861, %v3862
        %v3864 = vshll.u32 2475754826, %v3858
        %v3865 = vshrl.u32 2131351028, %v3859
        %v3866 = vor.u32 %v3864, %v3865
        %v3867 = vshll.u32 2131351028, %v3858
        %v3868 = vshrl.u32 2102212464, %v3859
        %v3869 = vor.u32 %v3867, %v3868
        %v3870 = vshll.u32 2102212464, %v3858
        %v3871 = vshrl.u32 920167782, %v3859
        %v3872 = vor.u32 %v3870, %v3871
        %v3873 = vshll.u32 920167782, %v3858
        %v3874 = vshrl.u32 1326507024, %v3859
        %v3875 = vor.u32 %v3873, %v3874
        %vm3876 = vcmp.lt.s32.totalorder %v3857, 1
        %vm3877 = vcmp.lt.s32.totalorder %v3857, 2
        %vm3878 = vcmp.lt.s32.totalorder %v3857, 3
        %vm3879 = vcmp.lt.s32.totalorder %v3857, 4
        %v3880 = vsel %vm3876, %v3860, %v3863
        %v3881 = vsel %vm3879, %v3869, 2102212464
        %v3882 = vsel %vm3878, %v3866, %v3881
        %v3883 = vsel %vm3877, %v3880, %v3882
        %v3884 = vsel %vm3876, %v3863, %v3866
        %v3885 = vsel %vm3879, %v3872, 920167782
        %v3886 = vsel %vm3878, %v3869, %v3885
        %v3887 = vsel %vm3877, %v3884, %v3886
        %v3888 = vsel %vm3876, %v3866, %v3869
        %v3889 = vsel %vm3879, %v3875, 1326507024
        %v3890 = vsel %vm3878, %v3872, %v3889
        %v3891 = vsel %vm3877, %v3888, %v3890
        %v3892 = vshll.u32 %v3852, 8
        %v3893 = vand.u32 %v3892, 65535
        %v3894 = vshrl.u32 %v3892, 16
        %v3895 = vand.u32 %v3891, 65535
        %v3896 = vshrl.u32 %v3891, 16
        %v3897 = vmul.u32 %v3893, %v3895
        %v3898 = vmul.u32 %v3893, %v3896
        %v3899 = vmul.u32 %v3894, %v3895
        %v3900 = vmul.u32 %v3894, %v3896
        %v3901 = vshll.u32 %v3898, 16
        %v3902 = vshrl.u32 %v3898, 16
        %v3903 = vshll.u32 %v3899, 16
        %v3904 = vshrl.u32 %v3899, 16
        %vm3905 = vc.u32 %v3897, %v3901
        %v3906 = vsel %vm3905, 1, 0
        %v3907 = vadd.s32 %v3897, %v3901
        %v3908 = vadd.s32 %v3900, %v3906
        %vm3909 = vc.u32 %v3907, %v3903
        %v3910 = vsel %vm3909, 1, 0
        %v3911 = vadd.s32 %v3907, %v3903
        %v3912 = vadd.s32 %v3908, %v3910
        %v3913 = vadd.s32 %v3912, %v3902
        %v3914 = vadd.s32 %v3913, %v3904
        %v3915 = vand.u32 %v3892, 65535
        %v3916 = vshrl.u32 %v3892, 16
        %v3917 = vand.u32 %v3887, 65535
        %v3918 = vshrl.u32 %v3887, 16
        %v3919 = vmul.u32 %v3915, %v3917
        %v3920 = vmul.u32 %v3915, %v3918
        %v3921 = vmul.u32 %v3916, %v3917
        %v3922 = vmul.u32 %v3916, %v3918
        %v3923 = vshll.u32 %v3920, 16
        %v3924 = vshrl.u32 %v3920, 16
        %v3925 = vshll.u32 %v3921, 16
        %v3926 = vshrl.u32 %v3921, 16
        %vm3927 = vc.u32 %v3919, %v3923
        %v3928 = vsel %vm3927, 1, 0
        %v3929 = vadd.s32 %v3919, %v3923
        %v3930 = vadd.s32 %v3922, %v3928
        %vm3931 = vc.u32 %v3929, %v3925
        %v3932 = vsel %vm3931, 1, 0
        %v3933 = vadd.s32 %v3929, %v3925
        %v3934 = vadd.s32 %v3930, %v3932
        %v3935 = vadd.s32 %v3934, %v3924
        %v3936 = vadd.s32 %v3935, %v3926
        %v3937 = vmul.u32 %v3892, %v3883
        %v3938 = vadd.s32 %v3914, %v3933
        %vm3939 = vc.u32 %v3914, %v3933
        %v3940 = vadd.s32 %v3936, 1
        %v3941 = vsel %vm3939, %v3940, %v3936
        %v3942 = vadd.s32 %v3937, %v3941
        %v3943 = vadd.s32 %v3942, 536870912
        %v3944 = vshrl.u32 %v3943, 30
        %v3945 = vshll.u32 %v3944, 30
        %v3946 = vsub.s32 %v3942, %v3945
        %vm3947 = vcmp.lt.s32.totalorder %v3946, 0
        %v3948 = vsub.s32 0, %v3946
        %v3949 = vsel %vm3947, %v3948, %v3946
        %v3950 = vclz %v3949
        %v3951 = vsub.s32 %v3950, 2
        %vm3952 = vcmp.gt.s32.totalorder 0, %v3951
        %v3953 = vsel %vm3952, 0, %v3951
        %v3954 = vsub.s32 32, %v3953
        %v3955 = vshll.u32 %v3946, %v3953
        %v3956 = vshrl.u32 %v3938, %v3954
        %v3957 = vor.u32 %v3955, %v3956
        %v3958 = vsub.s32 4294967266, %v3953
        %v3959 = vadd.s32 %v3958, 127
        %v3960 = vshll.u32 %v3959, 23
        %v3961 = vor.u32 4788187, %v3960
        %v3962 = vand.u32 2147483647, %v3961
        %v3964 = vcvt.s32.f32 %v3957
        %v3965 = vmul.f32 %v3964, %v3962
        %v3966 = vxor.u32 %v3965, 2147483648
        %v3967 = vsel %vm3846, %v3966, %v3965
        %v3968 = vsub.s32 4, %v3944
        %v3969 = vsel %vm3846, %v3968, %v3944
        %v3970 = vsel %vm3845, %v432, %v3967
        %v3971 = vsel %vm3845, 0, %v3969
        %v3972 = vmul.f32 %v3970, %v3970
        %v3973 = vmul.f32 %v3972, -0.001358992
        %v3974 = vadd.f32 %v3973, 0.041655596
        %v3975 = vmul.f32 %v3972, %v3974
        %v3976 = vadd.f32 %v3975, -0.4999988
        %v3977 = vmul.f32 %v3972, %v3976
        %v3978 = vadd.f32 1.0, %v3977
        %v3979 = vmul.f32 %v3970, %v3970
        %v3980 = vmul.f32 %v3979, -0.00019511016
        %v3981 = vadd.f32 %v3980, 0.008332121
        %v3982 = vmul.f32 %v3979, %v3981
        %v3983 = vadd.f32 %v3982, -0.16666654
        %v3984 = vmul.f32 %v3979, %v3983
        %v3985 = vadd.f32 %v3984, 1.0
        %v3986 = vmul.f32 %v3985, %v3970
        %vm3987 = vweird.f32 %v432
        %v3988 = vadd.s32 %v3971, 3
        %v3989 = vand.u32 %v3988, 3
        %vm3990 = vcmp.lt.s32.totalorder %v3989, 2
        %vm3991 = vcmp.eq.s32.totalorder %v3989, 0
        %v3992 = vxor.u32 %v3986, 2147483648
        %v3993 = vsel %vm3991, %v3978, %v3992
        %vm3994 = vcmp.eq.s32.totalorder %v3989, 2
        %v3995 = vxor.u32 %v3978, 2147483648
        %v3996 = vsel %vm3994, %v3995, %v3986
        %v3997 = vsel %vm3990, %v3993, %v3996
        %v3998 = vsel %vm3987, nan, %v3997
        %v3999 = vand.u32 2147483647, %v433
        %vm4000 = vcmp.le.f32.partialorder %v3999, 0.7853982
        %vm4001 = vcmp.lt.s32.totalorder %v433, 0
        %v4002 = vand.u32 %v433, 2139095040
        %v4003 = vshrl.u32 %v4002, 23
        %v4004 = vsub.s32 %v4003, 127
        %v4005 = vand.u32 2147483647, %v433
        %v4006 = vand.u32 %v4005, 8388607
        %v4007 = vor.u32 %v4006, 8388608
        %v4008 = vsub.s32 0, %v4007
        %v4009 = vadd.s32 %v4004, 1
        %vm4010 = vcmp.gt.s32.totalorder %v4009, 0
        %v4011 = vsel %vm4010, %v4009, 0
        %v4012 = vshrl.u32 %v4011, 5
        %v4013 = vand.u32 %v4011, 31
        %v4014 = vsub.s32 32, %v4013
        %v4015 = vshrl.u32 683565275, %v4014
        %v4016 = vshll.u32 683565275, %v4013
        %v4017 = vshrl.u32 2475754826, %v4014
        %v4018 = vor.u32 %v4016, %v4017
        %v4019 = vshll.u32 2475754826, %v4013
        %v4020 = vshrl.u32 2131351028, %v4014
        %v4021 = vor.u32 %v4019, %v4020
        %v4022 = vshll.u32 2131351028, %v4013
        %v4023 = vshrl.u32 2102212464, %v4014
        %v4024 = vor.u32 %v4022, %v4023
        %v4025 = vshll.u32 2102212464, %v4013
        %v4026 = vshrl.u32 920167782, %v4014
        %v4027 = vor.u32 %v4025, %v4026
        %v4028 = vshll.u32 920167782, %v4013
        %v4029 = vshrl.u32 1326507024, %v4014
        %v4030 = vor.u32 %v4028, %v4029
        %vm4031 = vcmp.lt.s32.totalorder %v4012, 1
        %vm4032 = vcmp.lt.s32.totalorder %v4012, 2
        %vm4033 = vcmp.lt.s32.totalorder %v4012, 3
        %vm4034 = vcmp.lt.s32.totalorder %v4012, 4
        %v4035 = vsel %vm4031, %v4015, %v4018
        %v4036 = vsel %vm4034, %v4024, 2102212464
        %v4037 = vsel %vm4033, %v4021, %v4036
        %v4038 = vsel %vm4032, %v4035, %v4037
        %v4039 = vsel %vm4031, %v4018, %v4021
        %v4040 = vsel %vm4034, %v4027, 920167782
        %v4041 = vsel %vm4033, %v4024, %v4040
        %v4042 = vsel %vm4032, %v4039, %v4041
        %v4043 = vsel %vm4031, %v4021, %v4024
        %v4044 = vsel %vm4034, %v4030, 1326507024
        %v4045 = vsel %vm4033, %v4027, %v4044
        %v4046 = vsel %vm4032, %v4043, %v4045
        %v4047 = vshll.u32 %v4007, 8
        %v4048 = vand.u32 %v4047, 65535
        %v4049 = vshrl.u32 %v4047, 16
        %v4050 = vand.u32 %v4046, 65535
        %v4051 = vshrl.u32 %v4046, 16
        %v4052 = vmul.u32 %v4048, %v4050
        %v4053 = vmul.u32 %v4048, %v4051
        %v4054 = vmul.u32 %v4049, %v4050
        %v4055 = vmul.u32 %v4049, %v4051
        %v4056 = vshll.u32 %v4053, 16
        %v4057 = vshrl.u32 %v4053, 16
        %v4058 = vshll.u32 %v4054, 16
        %v4059 = vshrl.u32 %v4054, 16
        %vm4060 = vc.u32 %v4052, %v4056
        %v4061 = vsel %vm4060, 1, 0
        %v4062 = vadd.s32 %v4052, %v4056
        %v4063 = vadd.s32 %v4055, %v4061
        %vm4064 = vc.u32 %v4062, %v4058
        %v4065 = vsel %vm4064, 1, 0
        %v4066 = vadd.s32 %v4062, %v4058
        %v4067 = vadd.s32 %v4063, %v4065
        %v4068 = vadd.s32 %v4067, %v4057
        %v4069 = vadd.s32 %v4068, %v4059
        %v4070 = vand.u32 %v4047, 65535
        %v4071 = vshrl.u32 %v4047, 16
        %v4072 = vand.u32 %v4042, 65535
        %v4073 = vshrl.u32 %v4042, 16
        %v4074 = vmul.u32 %v4070, %v4072
        %v4075 = vmul.u32 %v4070, %v4073
        %v4076 = vmul.u32 %v4071, %v4072
        %v4077 = vmul.u32 %v4071, %v4073
        %v4078 = vshll.u32 %v4075, 16
        %v4079 = vshrl.u32 %v4075, 16
        %v4080 = vshll.u32 %v4076, 16
        %v4081 = vshrl.u32 %v4076, 16
        %vm4082 = vc.u32 %v4074, %v4078
        %v4083 = vsel %vm4082, 1, 0
        %v4084 = vadd.s32 %v4074, %v4078
        %v4085 = vadd.s32 %v4077, %v4083
        %vm4086 = vc.u32 %v4084, %v4080
        %v4087 = vsel %vm4086, 1, 0
        %v4088 = vadd.s32 %v4084, %v4080
        %v4089 = vadd.s32 %v4085, %v4087
        %v4090 = vadd.s32 %v4089, %v4079
        %v4091 = vadd.s32 %v4090, %v4081
        %v4092 = vmul.u32 %v4047, %v4038
        %v4093 = vadd.s32 %v4069, %v4088
        %vm4094 = vc.u32 %v4069, %v4088
        %v4095 = vadd.s32 %v4091, 1
        %v4096 = vsel %vm4094, %v4095, %v4091
        %v4097 = vadd.s32 %v4092, %v4096
        %v4098 = vadd.s32 %v4097, 536870912
        %v4099 = vshrl.u32 %v4098, 30
        %v4100 = vshll.u32 %v4099, 30
        %v4101 = vsub.s32 %v4097, %v4100
        %vm4102 = vcmp.lt.s32.totalorder %v4101, 0
        %v4103 = vsub.s32 0, %v4101
        %v4104 = vsel %vm4102, %v4103, %v4101
        %v4105 = vclz %v4104
        %v4106 = vsub.s32 %v4105, 2
        %vm4107 = vcmp.gt.s32.totalorder 0, %v4106
        %v4108 = vsel %vm4107, 0, %v4106
        %v4109 = vsub.s32 32, %v4108
        %v4110 = vshll.u32 %v4101, %v4108
        %v4111 = vshrl.u32 %v4093, %v4109
        %v4112 = vor.u32 %v4110, %v4111
        %v4113 = vsub.s32 4294967266, %v4108
        %v4114 = vadd.s32 %v4113, 127
        %v4115 = vshll.u32 %v4114, 23
        %v4116 = vor.u32 4788187, %v4115
        %v4117 = vand.u32 2147483647, %v4116
        %v4119 = vcvt.s32.f32 %v4112
        %v4120 = vmul.f32 %v4119, %v4117
        %v4121 = vxor.u32 %v4120, 2147483648
        %v4122 = vsel %vm4001, %v4121, %v4120
        %v4123 = vsub.s32 4, %v4099
        %v4124 = vsel %vm4001, %v4123, %v4099
        %v4125 = vsel %vm4000, %v433, %v4122
        %v4126 = vsel %vm4000, 0, %v4124
        %v4127 = vmul.f32 %v4125, %v4125
        %v4128 = vmul.f32 %v4127, -0.001358992
        %v4129 = vadd.f32 %v4128, 0.041655596
        %v4130 = vmul.f32 %v4127, %v4129
        %v4131 = vadd.f32 %v4130, -0.4999988
        %v4132 = vmul.f32 %v4127, %v4131
        %v4133 = vadd.f32 1.0, %v4132
        %v4134 = vmul.f32 %v4125, %v4125
        %v4135 = vmul.f32 %v4134, -0.00019511016
        %v4136 = vadd.f32 %v4135, 0.008332121
        %v4137 = vmul.f32 %v4134, %v4136
        %v4138 = vadd.f32 %v4137, -0.16666654
        %v4139 = vmul.f32 %v4134, %v4138
        %v4140 = vadd.f32 %v4139, 1.0
        %v4141 = vmul.f32 %v4140, %v4125
        %vm4142 = vweird.f32 %v433
        %v4143 = vadd.s32 %v4126, 3
        %v4144 = vand.u32 %v4143, 3
        %vm4145 = vcmp.lt.s32.totalorder %v4144, 2
        %vm4146 = vcmp.eq.s32.totalorder %v4144, 0
        %v4147 = vxor.u32 %v4141, 2147483648
        %v4148 = vsel %vm4146, %v4133, %v4147
        %vm4149 = vcmp.eq.s32.totalorder %v4144, 2
        %v4150 = vxor.u32 %v4133, 2147483648
        %v4151 = vsel %vm4149, %v4150, %v4141
        %v4152 = vsel %vm4145, %v4148, %v4151
        %v4153 = vsel %vm4142, nan, %v4152
        %v4154 = vand.u32 2147483647, %v410
        %vm4155 = vcmp.le.f32.partialorder %v4154, 0.7853982
        %vm4156 = vcmp.lt.s32.totalorder %v410, 0
        %v4157 = vand.u32 %v410, 2139095040
        %v4158 = vshrl.u32 %v4157, 23
        %v4159 = vsub.s32 %v4158, 127
        %v4160 = vand.u32 2147483647, %v410
        %v4161 = vand.u32 %v4160, 8388607
        %v4162 = vor.u32 %v4161, 8388608
        %v4163 = vsub.s32 0, %v4162
        %v4164 = vadd.s32 %v4159, 1
        %vm4165 = vcmp.gt.s32.totalorder %v4164, 0
        %v4166 = vsel %vm4165, %v4164, 0
        %v4167 = vshrl.u32 %v4166, 5
        %v4168 = vand.u32 %v4166, 31
        %v4169 = vsub.s32 32, %v4168
        %v4170 = vshrl.u32 683565275, %v4169
        %v4171 = vshll.u32 683565275, %v4168
        %v4172 = vshrl.u32 2475754826, %v4169
        %v4173 = vor.u32 %v4171, %v4172
        %v4174 = vshll.u32 2475754826, %v4168
        %v4175 = vshrl.u32 2131351028, %v4169
        %v4176 = vor.u32 %v4174, %v4175
        %v4177 = vshll.u32 2131351028, %v4168
        %v4178 = vshrl.u32 2102212464, %v4169
        %v4179 = vor.u32 %v4177, %v4178
        %v4180 = vshll.u32 2102212464, %v4168
        %v4181 = vshrl.u32 920167782, %v4169
        %v4182 = vor.u32 %v4180, %v4181
        %v4183 = vshll.u32 920167782, %v4168
        %v4184 = vshrl.u32 1326507024, %v4169
        %v4185 = vor.u32 %v4183, %v4184
        %vm4186 = vcmp.lt.s32.totalorder %v4167, 1
        %vm4187 = vcmp.lt.s32.totalorder %v4167, 2
        %vm4188 = vcmp.lt.s32.totalorder %v4167, 3
        %vm4189 = vcmp.lt.s32.totalorder %v4167, 4
        %v4190 = vsel %vm4186, %v4170, %v4173
        %v4191 = vsel %vm4189, %v4179, 2102212464
        %v4192 = vsel %vm4188, %v4176, %v4191
        %v4193 = vsel %vm4187, %v4190, %v4192
        %v4194 = vsel %vm4186, %v4173, %v4176
        %v4195 = vsel %vm4189, %v4182, 920167782
        %v4196 = vsel %vm4188, %v4179, %v4195
        %v4197 = vsel %vm4187, %v4194, %v4196
        %v4198 = vsel %vm4186, %v4176, %v4179
        %v4199 = vsel %vm4189, %v4185, 1326507024
        %v4200 = vsel %vm4188, %v4182, %v4199
        %v4201 = vsel %vm4187, %v4198, %v4200
        %v4202 = vshll.u32 %v4162, 8
        %v4203 = vand.u32 %v4202, 65535
        %v4204 = vshrl.u32 %v4202, 16
        %v4205 = vand.u32 %v4201, 65535
        %v4206 = vshrl.u32 %v4201, 16
        %v4207 = vmul.u32 %v4203, %v4205
        %v4208 = vmul.u32 %v4203, %v4206
        %v4209 = vmul.u32 %v4204, %v4205
        %v4210 = vmul.u32 %v4204, %v4206
        %v4211 = vshll.u32 %v4208, 16
        %v4212 = vshrl.u32 %v4208, 16
        %v4213 = vshll.u32 %v4209, 16
        %v4214 = vshrl.u32 %v4209, 16
        %vm4215 = vc.u32 %v4207, %v4211
        %v4216 = vsel %vm4215, 1, 0
        %v4217 = vadd.s32 %v4207, %v4211
        %v4218 = vadd.s32 %v4210, %v4216
        %vm4219 = vc.u32 %v4217, %v4213
        %v4220 = vsel %vm4219, 1, 0
        %v4221 = vadd.s32 %v4217, %v4213
        %v4222 = vadd.s32 %v4218, %v4220
        %v4223 = vadd.s32 %v4222, %v4212
        %v4224 = vadd.s32 %v4223, %v4214
        %v4225 = vand.u32 %v4202, 65535
        %v4226 = vshrl.u32 %v4202, 16
        %v4227 = vand.u32 %v4197, 65535
        %v4228 = vshrl.u32 %v4197, 16
        %v4229 = vmul.u32 %v4225, %v4227
        %v4230 = vmul.u32 %v4225, %v4228
        %v4231 = vmul.u32 %v4226, %v4227
        %v4232 = vmul.u32 %v4226, %v4228
        %v4233 = vshll.u32 %v4230, 16
        %v4234 = vshrl.u32 %v4230, 16
        %v4235 = vshll.u32 %v4231, 16
        %v4236 = vshrl.u32 %v4231, 16
        %vm4237 = vc.u32 %v4229, %v4233
        %v4238 = vsel %vm4237, 1, 0
        %v4239 = vadd.s32 %v4229, %v4233
        %v4240 = vadd.s32 %v4232, %v4238
        %vm4241 = vc.u32 %v4239, %v4235
        %v4242 = vsel %vm4241, 1, 0
        %v4243 = vadd.s32 %v4239, %v4235
        %v4244 = vadd.s32 %v4240, %v4242
        %v4245 = vadd.s32 %v4244, %v4234
        %v4246 = vadd.s32 %v4245, %v4236
        %v4247 = vmul.u32 %v4202, %v4193
        %v4248 = vadd.s32 %v4224, %v4243
        %vm4249 = vc.u32 %v4224, %v4243
        %v4250 = vadd.s32 %v4246, 1
        %v4251 = vsel %vm4249, %v4250, %v4246
        %v4252 = vadd.s32 %v4247, %v4251
        %v4253 = vadd.s32 %v4252, 536870912
        %v4254 = vshrl.u32 %v4253, 30
        %v4255 = vshll.u32 %v4254, 30
        %v4256 = vsub.s32 %v4252, %v4255
        %vm4257 = vcmp.lt.s32.totalorder %v4256, 0
        %v4258 = vsub.s32 0, %v4256
        %v4259 = vsel %vm4257, %v4258, %v4256
        %v4260 = vclz %v4259
        %v4261 = vsub.s32 %v4260, 2
        %vm4262 = vcmp.gt.s32.totalorder 0, %v4261
        %v4263 = vsel %vm4262, 0, %v4261
        %v4264 = vsub.s32 32, %v4263
        %v4265 = vshll.u32 %v4256, %v4263
        %v4266 = vshrl.u32 %v4248, %v4264
        %v4267 = vor.u32 %v4265, %v4266
        %v4268 = vsub.s32 4294967266, %v4263
        %v4269 = vadd.s32 %v4268, 127
        %v4270 = vshll.u32 %v4269, 23
        %v4271 = vor.u32 4788187, %v4270
        %v4272 = vand.u32 2147483647, %v4271
        %v4274 = vcvt.s32.f32 %v4267
        %v4275 = vmul.f32 %v4274, %v4272
        %v4276 = vxor.u32 %v4275, 2147483648
        %v4277 = vsel %vm4156, %v4276, %v4275
        %v4278 = vsub.s32 4, %v4254
        %v4279 = vsel %vm4156, %v4278, %v4254
        %v4280 = vsel %vm4155, %v410, %v4277
        %v4281 = vsel %vm4155, 0, %v4279
        %v4282 = vmul.f32 %v4280, %v4280
        %v4283 = vmul.f32 %v4282, -0.001358992
        %v4284 = vadd.f32 %v4283, 0.041655596
        %v4285 = vmul.f32 %v4282, %v4284
        %v4286 = vadd.f32 %v4285, -0.4999988
        %v4287 = vmul.f32 %v4282, %v4286
        %v4288 = vadd.f32 1.0, %v4287
        %v4289 = vmul.f32 %v4280, %v4280
        %v4290 = vmul.f32 %v4289, -0.00019511016
        %v4291 = vadd.f32 %v4290, 0.008332121
        %v4292 = vmul.f32 %v4289, %v4291
        %v4293 = vadd.f32 %v4292, -0.16666654
        %v4294 = vmul.f32 %v4289, %v4293
        %v4295 = vadd.f32 %v4294, 1.0
        %v4296 = vmul.f32 %v4295, %v4280
        %vm4297 = vweird.f32 %v410
        %v4298 = vand.u32 %v4281, 3
        %vm4299 = vcmp.lt.s32.totalorder %v4298, 2
        %vm4300 = vcmp.eq.s32.totalorder %v4298, 0
        %v4301 = vxor.u32 %v4296, 2147483648
        %v4302 = vsel %vm4300, %v4288, %v4301
        %vm4303 = vcmp.eq.s32.totalorder %v4298, 2
        %v4304 = vxor.u32 %v4288, 2147483648
        %v4305 = vsel %vm4303, %v4304, %v4296
        %v4306 = vsel %vm4299, %v4302, %v4305
        %v4307 = vsel %vm4297, nan, %v4306
        %v4308 = vand.u32 2147483647, %v411
        %vm4309 = vcmp.le.f32.partialorder %v4308, 0.7853982
        %vm4310 = vcmp.lt.s32.totalorder %v411, 0
        %v4311 = vand.u32 %v411, 2139095040
        %v4312 = vshrl.u32 %v4311, 23
        %v4313 = vsub.s32 %v4312, 127
        %v4314 = vand.u32 2147483647, %v411
        %v4315 = vand.u32 %v4314, 8388607
        %v4316 = vor.u32 %v4315, 8388608
        %v4317 = vsub.s32 0, %v4316
        %v4318 = vadd.s32 %v4313, 1
        %vm4319 = vcmp.gt.s32.totalorder %v4318, 0
        %v4320 = vsel %vm4319, %v4318, 0
        %v4321 = vshrl.u32 %v4320, 5
        %v4322 = vand.u32 %v4320, 31
        %v4323 = vsub.s32 32, %v4322
        %v4324 = vshrl.u32 683565275, %v4323
        %v4325 = vshll.u32 683565275, %v4322
        %v4326 = vshrl.u32 2475754826, %v4323
        %v4327 = vor.u32 %v4325, %v4326
        %v4328 = vshll.u32 2475754826, %v4322
        %v4329 = vshrl.u32 2131351028, %v4323
        %v4330 = vor.u32 %v4328, %v4329
        %v4331 = vshll.u32 2131351028, %v4322
        %v4332 = vshrl.u32 2102212464, %v4323
        %v4333 = vor.u32 %v4331, %v4332
        %v4334 = vshll.u32 2102212464, %v4322
        %v4335 = vshrl.u32 920167782, %v4323
        %v4336 = vor.u32 %v4334, %v4335
        %v4337 = vshll.u32 920167782, %v4322
        %v4338 = vshrl.u32 1326507024, %v4323
        %v4339 = vor.u32 %v4337, %v4338
        %vm4340 = vcmp.lt.s32.totalorder %v4321, 1
        %vm4341 = vcmp.lt.s32.totalorder %v4321, 2
        %vm4342 = vcmp.lt.s32.totalorder %v4321, 3
        %vm4343 = vcmp.lt.s32.totalorder %v4321, 4
        %v4344 = vsel %vm4340, %v4324, %v4327
        %v4345 = vsel %vm4343, %v4333, 2102212464
        %v4346 = vsel %vm4342, %v4330, %v4345
        %v4347 = vsel %vm4341, %v4344, %v4346
        %v4348 = vsel %vm4340, %v4327, %v4330
        %v4349 = vsel %vm4343, %v4336, 920167782
        %v4350 = vsel %vm4342, %v4333, %v4349
        %v4351 = vsel %vm4341, %v4348, %v4350
        %v4352 = vsel %vm4340, %v4330, %v4333
        %v4353 = vsel %vm4343, %v4339, 1326507024
        %v4354 = vsel %vm4342, %v4336, %v4353
        %v4355 = vsel %vm4341, %v4352, %v4354
        %v4356 = vshll.u32 %v4316, 8
        %v4357 = vand.u32 %v4356, 65535
        %v4358 = vshrl.u32 %v4356, 16
        %v4359 = vand.u32 %v4355, 65535
        %v4360 = vshrl.u32 %v4355, 16
        %v4361 = vmul.u32 %v4357, %v4359
        %v4362 = vmul.u32 %v4357, %v4360
        %v4363 = vmul.u32 %v4358, %v4359
        %v4364 = vmul.u32 %v4358, %v4360
        %v4365 = vshll.u32 %v4362, 16
        %v4366 = vshrl.u32 %v4362, 16
        %v4367 = vshll.u32 %v4363, 16
        %v4368 = vshrl.u32 %v4363, 16
        %vm4369 = vc.u32 %v4361, %v4365
        %v4370 = vsel %vm4369, 1, 0
        %v4371 = vadd.s32 %v4361, %v4365
        %v4372 = vadd.s32 %v4364, %v4370
        %vm4373 = vc.u32 %v4371, %v4367
        %v4374 = vsel %vm4373, 1, 0
        %v4375 = vadd.s32 %v4371, %v4367
        %v4376 = vadd.s32 %v4372, %v4374
        %v4377 = vadd.s32 %v4376, %v4366
        %v4378 = vadd.s32 %v4377, %v4368
        %v4379 = vand.u32 %v4356, 65535
        %v4380 = vshrl.u32 %v4356, 16
        %v4381 = vand.u32 %v4351, 65535
        %v4382 = vshrl.u32 %v4351, 16
        %v4383 = vmul.u32 %v4379, %v4381
        %v4384 = vmul.u32 %v4379, %v4382
        %v4385 = vmul.u32 %v4380, %v4381
        %v4386 = vmul.u32 %v4380, %v4382
        %v4387 = vshll.u32 %v4384, 16
        %v4388 = vshrl.u32 %v4384, 16
        %v4389 = vshll.u32 %v4385, 16
        %v4390 = vshrl.u32 %v4385, 16
        %vm4391 = vc.u32 %v4383, %v4387
        %v4392 = vsel %vm4391, 1, 0
        %v4393 = vadd.s32 %v4383, %v4387
        %v4394 = vadd.s32 %v4386, %v4392
        %vm4395 = vc.u32 %v4393, %v4389
        %v4396 = vsel %vm4395, 1, 0
        %v4397 = vadd.s32 %v4393, %v4389
        %v4398 = vadd.s32 %v4394, %v4396
        %v4399 = vadd.s32 %v4398, %v4388
        %v4400 = vadd.s32 %v4399, %v4390
        %v4401 = vmul.u32 %v4356, %v4347
        %v4402 = vadd.s32 %v4378, %v4397
        %vm4403 = vc.u32 %v4378, %v4397
        %v4404 = vadd.s32 %v4400, 1
        %v4405 = vsel %vm4403, %v4404, %v4400
        %v4406 = vadd.s32 %v4401, %v4405
        %v4407 = vadd.s32 %v4406, 536870912
        %v4408 = vshrl.u32 %v4407, 30
        %v4409 = vshll.u32 %v4408, 30
        %v4410 = vsub.s32 %v4406, %v4409
        %vm4411 = vcmp.lt.s32.totalorder %v4410, 0
        %v4412 = vsub.s32 0, %v4410
        %v4413 = vsel %vm4411, %v4412, %v4410
        %v4414 = vclz %v4413
        %v4415 = vsub.s32 %v4414, 2
        %vm4416 = vcmp.gt.s32.totalorder 0, %v4415
        %v4417 = vsel %vm4416, 0, %v4415
        %v4418 = vsub.s32 32, %v4417
        %v4419 = vshll.u32 %v4410, %v4417
        %v4420 = vshrl.u32 %v4402, %v4418
        %v4421 = vor.u32 %v4419, %v4420
        %v4422 = vsub.s32 4294967266, %v4417
        %v4423 = vadd.s32 %v4422, 127
        %v4424 = vshll.u32 %v4423, 23
        %v4425 = vor.u32 4788187, %v4424
        %v4426 = vand.u32 2147483647, %v4425
        %v4428 = vcvt.s32.f32 %v4421
        %v4429 = vmul.f32 %v4428, %v4426
        %v4430 = vxor.u32 %v4429, 2147483648
        %v4431 = vsel %vm4310, %v4430, %v4429
        %v4432 = vsub.s32 4, %v4408
        %v4433 = vsel %vm4310, %v4432, %v4408
        %v4434 = vsel %vm4309, %v411, %v4431
        %v4435 = vsel %vm4309, 0, %v4433
        %v4436 = vmul.f32 %v4434, %v4434
        %v4437 = vmul.f32 %v4436, -0.001358992
        %v4438 = vadd.f32 %v4437, 0.041655596
        %v4439 = vmul.f32 %v4436, %v4438
        %v4440 = vadd.f32 %v4439, -0.4999988
        %v4441 = vmul.f32 %v4436, %v4440
        %v4442 = vadd.f32 1.0, %v4441
        %v4443 = vmul.f32 %v4434, %v4434
        %v4444 = vmul.f32 %v4443, -0.00019511016
        %v4445 = vadd.f32 %v4444, 0.008332121
        %v4446 = vmul.f32 %v4443, %v4445
        %v4447 = vadd.f32 %v4446, -0.16666654
        %v4448 = vmul.f32 %v4443, %v4447
        %v4449 = vadd.f32 %v4448, 1.0
        %v4450 = vmul.f32 %v4449, %v4434
        %vm4451 = vweird.f32 %v411
        %v4452 = vand.u32 %v4435, 3
        %vm4453 = vcmp.lt.s32.totalorder %v4452, 2
        %vm4454 = vcmp.eq.s32.totalorder %v4452, 0
        %v4455 = vxor.u32 %v4450, 2147483648
        %v4456 = vsel %vm4454, %v4442, %v4455
        %vm4457 = vcmp.eq.s32.totalorder %v4452, 2
        %v4458 = vxor.u32 %v4442, 2147483648
        %v4459 = vsel %vm4457, %v4458, %v4450
        %v4460 = vsel %vm4453, %v4456, %v4459
        %v4461 = vsel %vm4451, nan, %v4460
        %v4462 = vand.u32 2147483647, %v412
        %vm4463 = vcmp.le.f32.partialorder %v4462, 0.7853982
        %vm4464 = vcmp.lt.s32.totalorder %v412, 0
        %v4465 = vand.u32 %v412, 2139095040
        %v4466 = vshrl.u32 %v4465, 23
        %v4467 = vsub.s32 %v4466, 127
        %v4468 = vand.u32 2147483647, %v412
        %v4469 = vand.u32 %v4468, 8388607
        %v4470 = vor.u32 %v4469, 8388608
        %v4471 = vsub.s32 0, %v4470
        %v4472 = vadd.s32 %v4467, 1
        %vm4473 = vcmp.gt.s32.totalorder %v4472, 0
        %v4474 = vsel %vm4473, %v4472, 0
        %v4475 = vshrl.u32 %v4474, 5
        %v4476 = vand.u32 %v4474, 31
        %v4477 = vsub.s32 32, %v4476
        %v4478 = vshrl.u32 683565275, %v4477
        %v4479 = vshll.u32 683565275, %v4476
        %v4480 = vshrl.u32 2475754826, %v4477
        %v4481 = vor.u32 %v4479, %v4480
        %v4482 = vshll.u32 2475754826, %v4476
        %v4483 = vshrl.u32 2131351028, %v4477
        %v4484 = vor.u32 %v4482, %v4483
        %v4485 = vshll.u32 2131351028, %v4476
        %v4486 = vshrl.u32 2102212464, %v4477
        %v4487 = vor.u32 %v4485, %v4486
        %v4488 = vshll.u32 2102212464, %v4476
        %v4489 = vshrl.u32 920167782, %v4477
        %v4490 = vor.u32 %v4488, %v4489
        %v4491 = vshll.u32 920167782, %v4476
        %v4492 = vshrl.u32 1326507024, %v4477
        %v4493 = vor.u32 %v4491, %v4492
        %vm4494 = vcmp.lt.s32.totalorder %v4475, 1
        %vm4495 = vcmp.lt.s32.totalorder %v4475, 2
        %vm4496 = vcmp.lt.s32.totalorder %v4475, 3
        %vm4497 = vcmp.lt.s32.totalorder %v4475, 4
        %v4498 = vsel %vm4494, %v4478, %v4481
        %v4499 = vsel %vm4497, %v4487, 2102212464
        %v4500 = vsel %vm4496, %v4484, %v4499
        %v4501 = vsel %vm4495, %v4498, %v4500
        %v4502 = vsel %vm4494, %v4481, %v4484
        %v4503 = vsel %vm4497, %v4490, 920167782
        %v4504 = vsel %vm4496, %v4487, %v4503
        %v4505 = vsel %vm4495, %v4502, %v4504
        %v4506 = vsel %vm4494, %v4484, %v4487
        %v4507 = vsel %vm4497, %v4493, 1326507024
        %v4508 = vsel %vm4496, %v4490, %v4507
        %v4509 = vsel %vm4495, %v4506, %v4508
        %v4510 = vshll.u32 %v4470, 8
        %v4511 = vand.u32 %v4510, 65535
        %v4512 = vshrl.u32 %v4510, 16
        %v4513 = vand.u32 %v4509, 65535
        %v4514 = vshrl.u32 %v4509, 16
        %v4515 = vmul.u32 %v4511, %v4513
        %v4516 = vmul.u32 %v4511, %v4514
        %v4517 = vmul.u32 %v4512, %v4513
        %v4518 = vmul.u32 %v4512, %v4514
        %v4519 = vshll.u32 %v4516, 16
        %v4520 = vshrl.u32 %v4516, 16
        %v4521 = vshll.u32 %v4517, 16
        %v4522 = vshrl.u32 %v4517, 16
        %vm4523 = vc.u32 %v4515, %v4519
        %v4524 = vsel %vm4523, 1, 0
        %v4525 = vadd.s32 %v4515, %v4519
        %v4526 = vadd.s32 %v4518, %v4524
        %vm4527 = vc.u32 %v4525, %v4521
        %v4528 = vsel %vm4527, 1, 0
        %v4529 = vadd.s32 %v4525, %v4521
        %v4530 = vadd.s32 %v4526, %v4528
        %v4531 = vadd.s32 %v4530, %v4520
        %v4532 = vadd.s32 %v4531, %v4522
        %v4533 = vand.u32 %v4510, 65535
        %v4534 = vshrl.u32 %v4510, 16
        %v4535 = vand.u32 %v4505, 65535
        %v4536 = vshrl.u32 %v4505, 16
        %v4537 = vmul.u32 %v4533, %v4535
        %v4538 = vmul.u32 %v4533, %v4536
        %v4539 = vmul.u32 %v4534, %v4535
        %v4540 = vmul.u32 %v4534, %v4536
        %v4541 = vshll.u32 %v4538, 16
        %v4542 = vshrl.u32 %v4538, 16
        %v4543 = vshll.u32 %v4539, 16
        %v4544 = vshrl.u32 %v4539, 16
        %vm4545 = vc.u32 %v4537, %v4541
        %v4546 = vsel %vm4545, 1, 0
        %v4547 = vadd.s32 %v4537, %v4541
        %v4548 = vadd.s32 %v4540, %v4546
        %vm4549 = vc.u32 %v4547, %v4543
        %v4550 = vsel %vm4549, 1, 0
        %v4551 = vadd.s32 %v4547, %v4543
        %v4552 = vadd.s32 %v4548, %v4550
        %v4553 = vadd.s32 %v4552, %v4542
        %v4554 = vadd.s32 %v4553, %v4544
        %v4555 = vmul.u32 %v4510, %v4501
        %v4556 = vadd.s32 %v4532, %v4551
        %vm4557 = vc.u32 %v4532, %v4551
        %v4558 = vadd.s32 %v4554, 1
        %v4559 = vsel %vm4557, %v4558, %v4554
        %v4560 = vadd.s32 %v4555, %v4559
        %v4561 = vadd.s32 %v4560, 536870912
        %v4562 = vshrl.u32 %v4561, 30
        %v4563 = vshll.u32 %v4562, 30
        %v4564 = vsub.s32 %v4560, %v4563
        %vm4565 = vcmp.lt.s32.totalorder %v4564, 0
        %v4566 = vsub.s32 0, %v4564
        %v4567 = vsel %vm4565, %v4566, %v4564
        %v4568 = vclz %v4567
        %v4569 = vsub.s32 %v4568, 2
        %vm4570 = vcmp.gt.s32.totalorder 0, %v4569
        %v4571 = vsel %vm4570, 0, %v4569
        %v4572 = vsub.s32 32, %v4571
        %v4573 = vshll.u32 %v4564, %v4571
        %v4574 = vshrl.u32 %v4556, %v4572
        %v4575 = vor.u32 %v4573, %v4574
        %v4576 = vsub.s32 4294967266, %v4571
        %v4577 = vadd.s32 %v4576, 127
        %v4578 = vshll.u32 %v4577, 23
        %v4579 = vor.u32 4788187, %v4578
        %v4580 = vand.u32 2147483647, %v4579
        %v4582 = vcvt.s32.f32 %v4575
        %v4583 = vmul.f32 %v4582, %v4580
        %v4584 = vxor.u32 %v4583, 2147483648
        %v4585 = vsel %vm4464, %v4584, %v4583
        %v4586 = vsub.s32 4, %v4562
        %v4587 = vsel %vm4464, %v4586, %v4562
        %v4588 = vsel %vm4463, %v412, %v4585
        %v4589 = vsel %vm4463, 0, %v4587
        %v4590 = vmul.f32 %v4588, %v4588
        %v4591 = vmul.f32 %v4590, -0.001358992
        %v4592 = vadd.f32 %v4591, 0.041655596
        %v4593 = vmul.f32 %v4590, %v4592
        %v4594 = vadd.f32 %v4593, -0.4999988
        %v4595 = vmul.f32 %v4590, %v4594
        %v4596 = vadd.f32 1.0, %v4595
        %v4597 = vmul.f32 %v4588, %v4588
        %v4598 = vmul.f32 %v4597, -0.00019511016
        %v4599 = vadd.f32 %v4598, 0.008332121
        %v4600 = vmul.f32 %v4597, %v4599
        %v4601 = vadd.f32 %v4600, -0.16666654
        %v4602 = vmul.f32 %v4597, %v4601
        %v4603 = vadd.f32 %v4602, 1.0
        %v4604 = vmul.f32 %v4603, %v4588
        %vm4605 = vweird.f32 %v412
        %v4606 = vand.u32 %v4589, 3
        %vm4607 = vcmp.lt.s32.totalorder %v4606, 2
        %vm4608 = vcmp.eq.s32.totalorder %v4606, 0
        %v4609 = vxor.u32 %v4604, 2147483648
        %v4610 = vsel %vm4608, %v4596, %v4609
        %vm4611 = vcmp.eq.s32.totalorder %v4606, 2
        %v4612 = vxor.u32 %v4596, 2147483648
        %v4613 = vsel %vm4611, %v4612, %v4604
        %v4614 = vsel %vm4607, %v4610, %v4613
        %v4615 = vsel %vm4605, nan, %v4614
        %v4616 = vand.u32 2147483647, %v413
        %vm4617 = vcmp.le.f32.partialorder %v4616, 0.7853982
        %vm4618 = vcmp.lt.s32.totalorder %v413, 0
        %v4619 = vand.u32 %v413, 2139095040
        %v4620 = vshrl.u32 %v4619, 23
        %v4621 = vsub.s32 %v4620, 127
        %v4622 = vand.u32 2147483647, %v413
        %v4623 = vand.u32 %v4622, 8388607
        %v4624 = vor.u32 %v4623, 8388608
        %v4625 = vsub.s32 0, %v4624
        %v4626 = vadd.s32 %v4621, 1
        %vm4627 = vcmp.gt.s32.totalorder %v4626, 0
        %v4628 = vsel %vm4627, %v4626, 0
        %v4629 = vshrl.u32 %v4628, 5
        %v4630 = vand.u32 %v4628, 31
        %v4631 = vsub.s32 32, %v4630
        %v4632 = vshrl.u32 683565275, %v4631
        %v4633 = vshll.u32 683565275, %v4630
        %v4634 = vshrl.u32 2475754826, %v4631
        %v4635 = vor.u32 %v4633, %v4634
        %v4636 = vshll.u32 2475754826, %v4630
        %v4637 = vshrl.u32 2131351028, %v4631
        %v4638 = vor.u32 %v4636, %v4637
        %v4639 = vshll.u32 2131351028, %v4630
        %v4640 = vshrl.u32 2102212464, %v4631
        %v4641 = vor.u32 %v4639, %v4640
        %v4642 = vshll.u32 2102212464, %v4630
        %v4643 = vshrl.u32 920167782, %v4631
        %v4644 = vor.u32 %v4642, %v4643
        %v4645 = vshll.u32 920167782, %v4630
        %v4646 = vshrl.u32 1326507024, %v4631
        %v4647 = vor.u32 %v4645, %v4646
        %vm4648 = vcmp.lt.s32.totalorder %v4629, 1
        %vm4649 = vcmp.lt.s32.totalorder %v4629, 2
        %vm4650 = vcmp.lt.s32.totalorder %v4629, 3
        %vm4651 = vcmp.lt.s32.totalorder %v4629, 4
        %v4652 = vsel %vm4648, %v4632, %v4635
        %v4653 = vsel %vm4651, %v4641, 2102212464
        %v4654 = vsel %vm4650, %v4638, %v4653
        %v4655 = vsel %vm4649, %v4652, %v4654
        %v4656 = vsel %vm4648, %v4635, %v4638
        %v4657 = vsel %vm4651, %v4644, 920167782
        %v4658 = vsel %vm4650, %v4641, %v4657
        %v4659 = vsel %vm4649, %v4656, %v4658
        %v4660 = vsel %vm4648, %v4638, %v4641
        %v4661 = vsel %vm4651, %v4647, 1326507024
        %v4662 = vsel %vm4650, %v4644, %v4661
        %v4663 = vsel %vm4649, %v4660, %v4662
        %v4664 = vshll.u32 %v4624, 8
        %v4665 = vand.u32 %v4664, 65535
        %v4666 = vshrl.u32 %v4664, 16
        %v4667 = vand.u32 %v4663, 65535
        %v4668 = vshrl.u32 %v4663, 16
        %v4669 = vmul.u32 %v4665, %v4667
        %v4670 = vmul.u32 %v4665, %v4668
        %v4671 = vmul.u32 %v4666, %v4667
        %v4672 = vmul.u32 %v4666, %v4668
        %v4673 = vshll.u32 %v4670, 16
        %v4674 = vshrl.u32 %v4670, 16
        %v4675 = vshll.u32 %v4671, 16
        %v4676 = vshrl.u32 %v4671, 16
        %vm4677 = vc.u32 %v4669, %v4673
        %v4678 = vsel %vm4677, 1, 0
        %v4679 = vadd.s32 %v4669, %v4673
        %v4680 = vadd.s32 %v4672, %v4678
        %vm4681 = vc.u32 %v4679, %v4675
        %v4682 = vsel %vm4681, 1, 0
        %v4683 = vadd.s32 %v4679, %v4675
        %v4684 = vadd.s32 %v4680, %v4682
        %v4685 = vadd.s32 %v4684, %v4674
        %v4686 = vadd.s32 %v4685, %v4676
        %v4687 = vand.u32 %v4664, 65535
        %v4688 = vshrl.u32 %v4664, 16
        %v4689 = vand.u32 %v4659, 65535
        %v4690 = vshrl.u32 %v4659, 16
        %v4691 = vmul.u32 %v4687, %v4689
        %v4692 = vmul.u32 %v4687, %v4690
        %v4693 = vmul.u32 %v4688, %v4689
        %v4694 = vmul.u32 %v4688, %v4690
        %v4695 = vshll.u32 %v4692, 16
        %v4696 = vshrl.u32 %v4692, 16
        %v4697 = vshll.u32 %v4693, 16
        %v4698 = vshrl.u32 %v4693, 16
        %vm4699 = vc.u32 %v4691, %v4695
        %v4700 = vsel %vm4699, 1, 0
        %v4701 = vadd.s32 %v4691, %v4695
        %v4702 = vadd.s32 %v4694, %v4700
        %vm4703 = vc.u32 %v4701, %v4697
        %v4704 = vsel %vm4703, 1, 0
        %v4705 = vadd.s32 %v4701, %v4697
        %v4706 = vadd.s32 %v4702, %v4704
        %v4707 = vadd.s32 %v4706, %v4696
        %v4708 = vadd.s32 %v4707, %v4698
        %v4709 = vmul.u32 %v4664, %v4655
        %v4710 = vadd.s32 %v4686, %v4705
        %vm4711 = vc.u32 %v4686, %v4705
        %v4712 = vadd.s32 %v4708, 1
        %v4713 = vsel %vm4711, %v4712, %v4708
        %v4714 = vadd.s32 %v4709, %v4713
        %v4715 = vadd.s32 %v4714, 536870912
        %v4716 = vshrl.u32 %v4715, 30
        %v4717 = vshll.u32 %v4716, 30
        %v4718 = vsub.s32 %v4714, %v4717
        %vm4719 = vcmp.lt.s32.totalorder %v4718, 0
        %v4720 = vsub.s32 0, %v4718
        %v4721 = vsel %vm4719, %v4720, %v4718
        %v4722 = vclz %v4721
        %v4723 = vsub.s32 %v4722, 2
        %vm4724 = vcmp.gt.s32.totalorder 0, %v4723
        %v4725 = vsel %vm4724, 0, %v4723
        %v4726 = vsub.s32 32, %v4725
        %v4727 = vshll.u32 %v4718, %v4725
        %v4728 = vshrl.u32 %v4710, %v4726
        %v4729 = vor.u32 %v4727, %v4728
        %v4730 = vsub.s32 4294967266, %v4725
        %v4731 = vadd.s32 %v4730, 127
        %v4732 = vshll.u32 %v4731, 23
        %v4733 = vor.u32 4788187, %v4732
        %v4734 = vand.u32 2147483647, %v4733
        %v4736 = vcvt.s32.f32 %v4729
        %v4737 = vmul.f32 %v4736, %v4734
        %v4738 = vxor.u32 %v4737, 2147483648
        %v4739 = vsel %vm4618, %v4738, %v4737
        %v4740 = vsub.s32 4, %v4716
        %v4741 = vsel %vm4618, %v4740, %v4716
        %v4742 = vsel %vm4617, %v413, %v4739
        %v4743 = vsel %vm4617, 0, %v4741
        %v4744 = vmul.f32 %v4742, %v4742
        %v4745 = vmul.f32 %v4744, -0.001358992
        %v4746 = vadd.f32 %v4745, 0.041655596
        %v4747 = vmul.f32 %v4744, %v4746
        %v4748 = vadd.f32 %v4747, -0.4999988
        %v4749 = vmul.f32 %v4744, %v4748
        %v4750 = vadd.f32 1.0, %v4749
        %v4751 = vmul.f32 %v4742, %v4742
        %v4752 = vmul.f32 %v4751, -0.00019511016
        %v4753 = vadd.f32 %v4752, 0.008332121
        %v4754 = vmul.f32 %v4751, %v4753
        %v4755 = vadd.f32 %v4754, -0.16666654
        %v4756 = vmul.f32 %v4751, %v4755
        %v4757 = vadd.f32 %v4756, 1.0
        %v4758 = vmul.f32 %v4757, %v4742
        %vm4759 = vweird.f32 %v413
        %v4760 = vand.u32 %v4743, 3
        %vm4761 = vcmp.lt.s32.totalorder %v4760, 2
        %vm4762 = vcmp.eq.s32.totalorder %v4760, 0
        %v4763 = vxor.u32 %v4758, 2147483648
        %v4764 = vsel %vm4762, %v4750, %v4763
        %vm4765 = vcmp.eq.s32.totalorder %v4760, 2
        %v4766 = vxor.u32 %v4750, 2147483648
        %v4767 = vsel %vm4765, %v4766, %v4758
        %v4768 = vsel %vm4761, %v4764, %v4767
        %v4769 = vsel %vm4759, nan, %v4768
        %v4770 = vand.u32 2147483647, %v414
        %vm4771 = vcmp.le.f32.partialorder %v4770, 0.7853982
        %vm4772 = vcmp.lt.s32.totalorder %v414, 0
        %v4773 = vand.u32 %v414, 2139095040
        %v4774 = vshrl.u32 %v4773, 23
        %v4775 = vsub.s32 %v4774, 127
        %v4776 = vand.u32 2147483647, %v414
        %v4777 = vand.u32 %v4776, 8388607
        %v4778 = vor.u32 %v4777, 8388608
        %v4779 = vsub.s32 0, %v4778
        %v4780 = vadd.s32 %v4775, 1
        %vm4781 = vcmp.gt.s32.totalorder %v4780, 0
        %v4782 = vsel %vm4781, %v4780, 0
        %v4783 = vshrl.u32 %v4782, 5
        %v4784 = vand.u32 %v4782, 31
        %v4785 = vsub.s32 32, %v4784
        %v4786 = vshrl.u32 683565275, %v4785
        %v4787 = vshll.u32 683565275, %v4784
        %v4788 = vshrl.u32 2475754826, %v4785
        %v4789 = vor.u32 %v4787, %v4788
        %v4790 = vshll.u32 2475754826, %v4784
        %v4791 = vshrl.u32 2131351028, %v4785
        %v4792 = vor.u32 %v4790, %v4791
        %v4793 = vshll.u32 2131351028, %v4784
        %v4794 = vshrl.u32 2102212464, %v4785
        %v4795 = vor.u32 %v4793, %v4794
        %v4796 = vshll.u32 2102212464, %v4784
        %v4797 = vshrl.u32 920167782, %v4785
        %v4798 = vor.u32 %v4796, %v4797
        %v4799 = vshll.u32 920167782, %v4784
        %v4800 = vshrl.u32 1326507024, %v4785
        %v4801 = vor.u32 %v4799, %v4800
        %vm4802 = vcmp.lt.s32.totalorder %v4783, 1
        %vm4803 = vcmp.lt.s32.totalorder %v4783, 2
        %vm4804 = vcmp.lt.s32.totalorder %v4783, 3
        %vm4805 = vcmp.lt.s32.totalorder %v4783, 4
        %v4806 = vsel %vm4802, %v4786, %v4789
        %v4807 = vsel %vm4805, %v4795, 2102212464
        %v4808 = vsel %vm4804, %v4792, %v4807
        %v4809 = vsel %vm4803, %v4806, %v4808
        %v4810 = vsel %vm4802, %v4789, %v4792
        %v4811 = vsel %vm4805, %v4798, 920167782
        %v4812 = vsel %vm4804, %v4795, %v4811
        %v4813 = vsel %vm4803, %v4810, %v4812
        %v4814 = vsel %vm4802, %v4792, %v4795
        %v4815 = vsel %vm4805, %v4801, 1326507024
        %v4816 = vsel %vm4804, %v4798, %v4815
        %v4817 = vsel %vm4803, %v4814, %v4816
        %v4818 = vshll.u32 %v4778, 8
        %v4819 = vand.u32 %v4818, 65535
        %v4820 = vshrl.u32 %v4818, 16
        %v4821 = vand.u32 %v4817, 65535
        %v4822 = vshrl.u32 %v4817, 16
        %v4823 = vmul.u32 %v4819, %v4821
        %v4824 = vmul.u32 %v4819, %v4822
        %v4825 = vmul.u32 %v4820, %v4821
        %v4826 = vmul.u32 %v4820, %v4822
        %v4827 = vshll.u32 %v4824, 16
        %v4828 = vshrl.u32 %v4824, 16
        %v4829 = vshll.u32 %v4825, 16
        %v4830 = vshrl.u32 %v4825, 16
        %vm4831 = vc.u32 %v4823, %v4827
        %v4832 = vsel %vm4831, 1, 0
        %v4833 = vadd.s32 %v4823, %v4827
        %v4834 = vadd.s32 %v4826, %v4832
        %vm4835 = vc.u32 %v4833, %v4829
        %v4836 = vsel %vm4835, 1, 0
        %v4837 = vadd.s32 %v4833, %v4829
        %v4838 = vadd.s32 %v4834, %v4836
        %v4839 = vadd.s32 %v4838, %v4828
        %v4840 = vadd.s32 %v4839, %v4830
        %v4841 = vand.u32 %v4818, 65535
        %v4842 = vshrl.u32 %v4818, 16
        %v4843 = vand.u32 %v4813, 65535
        %v4844 = vshrl.u32 %v4813, 16
        %v4845 = vmul.u32 %v4841, %v4843
        %v4846 = vmul.u32 %v4841, %v4844
        %v4847 = vmul.u32 %v4842, %v4843
        %v4848 = vmul.u32 %v4842, %v4844
        %v4849 = vshll.u32 %v4846, 16
        %v4850 = vshrl.u32 %v4846, 16
        %v4851 = vshll.u32 %v4847, 16
        %v4852 = vshrl.u32 %v4847, 16
        %vm4853 = vc.u32 %v4845, %v4849
        %v4854 = vsel %vm4853, 1, 0
        %v4855 = vadd.s32 %v4845, %v4849
        %v4856 = vadd.s32 %v4848, %v4854
        %vm4857 = vc.u32 %v4855, %v4851
        %v4858 = vsel %vm4857, 1, 0
        %v4859 = vadd.s32 %v4855, %v4851
        %v4860 = vadd.s32 %v4856, %v4858
        %v4861 = vadd.s32 %v4860, %v4850
        %v4862 = vadd.s32 %v4861, %v4852
        %v4863 = vmul.u32 %v4818, %v4809
        %v4864 = vadd.s32 %v4840, %v4859
        %vm4865 = vc.u32 %v4840, %v4859
        %v4866 = vadd.s32 %v4862, 1
        %v4867 = vsel %vm4865, %v4866, %v4862
        %v4868 = vadd.s32 %v4863, %v4867
        %v4869 = vadd.s32 %v4868, 536870912
        %v4870 = vshrl.u32 %v4869, 30
        %v4871 = vshll.u32 %v4870, 30
        %v4872 = vsub.s32 %v4868, %v4871
        %vm4873 = vcmp.lt.s32.totalorder %v4872, 0
        %v4874 = vsub.s32 0, %v4872
        %v4875 = vsel %vm4873, %v4874, %v4872
        %v4876 = vclz %v4875
        %v4877 = vsub.s32 %v4876, 2
        %vm4878 = vcmp.gt.s32.totalorder 0, %v4877
        %v4879 = vsel %vm4878, 0, %v4877
        %v4880 = vsub.s32 32, %v4879
        %v4881 = vshll.u32 %v4872, %v4879
        %v4882 = vshrl.u32 %v4864, %v4880
        %v4883 = vor.u32 %v4881, %v4882
        %v4884 = vsub.s32 4294967266, %v4879
        %v4885 = vadd.s32 %v4884, 127
        %v4886 = vshll.u32 %v4885, 23
        %v4887 = vor.u32 4788187, %v4886
        %v4888 = vand.u32 2147483647, %v4887
        %v4890 = vcvt.s32.f32 %v4883
        %v4891 = vmul.f32 %v4890, %v4888
        %v4892 = vxor.u32 %v4891, 2147483648
        %v4893 = vsel %vm4772, %v4892, %v4891
        %v4894 = vsub.s32 4, %v4870
        %v4895 = vsel %vm4772, %v4894, %v4870
        %v4896 = vsel %vm4771, %v414, %v4893
        %v4897 = vsel %vm4771, 0, %v4895
        %v4898 = vmul.f32 %v4896, %v4896
        %v4899 = vmul.f32 %v4898, -0.001358992
        %v4900 = vadd.f32 %v4899, 0.041655596
        %v4901 = vmul.f32 %v4898, %v4900
        %v4902 = vadd.f32 %v4901, -0.4999988
        %v4903 = vmul.f32 %v4898, %v4902
        %v4904 = vadd.f32 1.0, %v4903
        %v4905 = vmul.f32 %v4896, %v4896
        %v4906 = vmul.f32 %v4905, -0.00019511016
        %v4907 = vadd.f32 %v4906, 0.008332121
        %v4908 = vmul.f32 %v4905, %v4907
        %v4909 = vadd.f32 %v4908, -0.16666654
        %v4910 = vmul.f32 %v4905, %v4909
        %v4911 = vadd.f32 %v4910, 1.0
        %v4912 = vmul.f32 %v4911, %v4896
        %vm4913 = vweird.f32 %v414
        %v4914 = vand.u32 %v4897, 3
        %vm4915 = vcmp.lt.s32.totalorder %v4914, 2
        %vm4916 = vcmp.eq.s32.totalorder %v4914, 0
        %v4917 = vxor.u32 %v4912, 2147483648
        %v4918 = vsel %vm4916, %v4904, %v4917
        %vm4919 = vcmp.eq.s32.totalorder %v4914, 2
        %v4920 = vxor.u32 %v4904, 2147483648
        %v4921 = vsel %vm4919, %v4920, %v4912
        %v4922 = vsel %vm4915, %v4918, %v4921
        %v4923 = vsel %vm4913, nan, %v4922
        %v4924 = vand.u32 2147483647, %v415
        %vm4925 = vcmp.le.f32.partialorder %v4924, 0.7853982
        %vm4926 = vcmp.lt.s32.totalorder %v415, 0
        %v4927 = vand.u32 %v415, 2139095040
        %v4928 = vshrl.u32 %v4927, 23
        %v4929 = vsub.s32 %v4928, 127
        %v4930 = vand.u32 2147483647, %v415
        %v4931 = vand.u32 %v4930, 8388607
        %v4932 = vor.u32 %v4931, 8388608
        %v4933 = vsub.s32 0, %v4932
        %v4934 = vadd.s32 %v4929, 1
        %vm4935 = vcmp.gt.s32.totalorder %v4934, 0
        %v4936 = vsel %vm4935, %v4934, 0
        %v4937 = vshrl.u32 %v4936, 5
        %v4938 = vand.u32 %v4936, 31
        %v4939 = vsub.s32 32, %v4938
        %v4940 = vshrl.u32 683565275, %v4939
        %v4941 = vshll.u32 683565275, %v4938
        %v4942 = vshrl.u32 2475754826, %v4939
        %v4943 = vor.u32 %v4941, %v4942
        %v4944 = vshll.u32 2475754826, %v4938
        %v4945 = vshrl.u32 2131351028, %v4939
        %v4946 = vor.u32 %v4944, %v4945
        %v4947 = vshll.u32 2131351028, %v4938
        %v4948 = vshrl.u32 2102212464, %v4939
        %v4949 = vor.u32 %v4947, %v4948
        %v4950 = vshll.u32 2102212464, %v4938
        %v4951 = vshrl.u32 920167782, %v4939
        %v4952 = vor.u32 %v4950, %v4951
        %v4953 = vshll.u32 920167782, %v4938
        %v4954 = vshrl.u32 1326507024, %v4939
        %v4955 = vor.u32 %v4953, %v4954
        %vm4956 = vcmp.lt.s32.totalorder %v4937, 1
        %vm4957 = vcmp.lt.s32.totalorder %v4937, 2
        %vm4958 = vcmp.lt.s32.totalorder %v4937, 3
        %vm4959 = vcmp.lt.s32.totalorder %v4937, 4
        %v4960 = vsel %vm4956, %v4940, %v4943
        %v4961 = vsel %vm4959, %v4949, 2102212464
        %v4962 = vsel %vm4958, %v4946, %v4961
        %v4963 = vsel %vm4957, %v4960, %v4962
        %v4964 = vsel %vm4956, %v4943, %v4946
        %v4965 = vsel %vm4959, %v4952, 920167782
        %v4966 = vsel %vm4958, %v4949, %v4965
        %v4967 = vsel %vm4957, %v4964, %v4966
        %v4968 = vsel %vm4956, %v4946, %v4949
        %v4969 = vsel %vm4959, %v4955, 1326507024
        %v4970 = vsel %vm4958, %v4952, %v4969
        %v4971 = vsel %vm4957, %v4968, %v4970
        %v4972 = vshll.u32 %v4932, 8
        %v4973 = vand.u32 %v4972, 65535
        %v4974 = vshrl.u32 %v4972, 16
        %v4975 = vand.u32 %v4971, 65535
        %v4976 = vshrl.u32 %v4971, 16
        %v4977 = vmul.u32 %v4973, %v4975
        %v4978 = vmul.u32 %v4973, %v4976
        %v4979 = vmul.u32 %v4974, %v4975
        %v4980 = vmul.u32 %v4974, %v4976
        %v4981 = vshll.u32 %v4978, 16
        %v4982 = vshrl.u32 %v4978, 16
        %v4983 = vshll.u32 %v4979, 16
        %v4984 = vshrl.u32 %v4979, 16
        %vm4985 = vc.u32 %v4977, %v4981
        %v4986 = vsel %vm4985, 1, 0
        %v4987 = vadd.s32 %v4977, %v4981
        %v4988 = vadd.s32 %v4980, %v4986
        %vm4989 = vc.u32 %v4987, %v4983
        %v4990 = vsel %vm4989, 1, 0
        %v4991 = vadd.s32 %v4987, %v4983
        %v4992 = vadd.s32 %v4988, %v4990
        %v4993 = vadd.s32 %v4992, %v4982
        %v4994 = vadd.s32 %v4993, %v4984
        %v4995 = vand.u32 %v4972, 65535
        %v4996 = vshrl.u32 %v4972, 16
        %v4997 = vand.u32 %v4967, 65535
        %v4998 = vshrl.u32 %v4967, 16
        %v4999 = vmul.u32 %v4995, %v4997
        %v5000 = vmul.u32 %v4995, %v4998
        %v5001 = vmul.u32 %v4996, %v4997
        %v5002 = vmul.u32 %v4996, %v4998
        %v5003 = vshll.u32 %v5000, 16
        %v5004 = vshrl.u32 %v5000, 16
        %v5005 = vshll.u32 %v5001, 16
        %v5006 = vshrl.u32 %v5001, 16
        %vm5007 = vc.u32 %v4999, %v5003
        %v5008 = vsel %vm5007, 1, 0
        %v5009 = vadd.s32 %v4999, %v5003
        %v5010 = vadd.s32 %v5002, %v5008
        %vm5011 = vc.u32 %v5009, %v5005
        %v5012 = vsel %vm5011, 1, 0
        %v5013 = vadd.s32 %v5009, %v5005
        %v5014 = vadd.s32 %v5010, %v5012
        %v5015 = vadd.s32 %v5014, %v5004
        %v5016 = vadd.s32 %v5015, %v5006
        %v5017 = vmul.u32 %v4972, %v4963
        %v5018 = vadd.s32 %v4994, %v5013
        %vm5019 = vc.u32 %v4994, %v5013
        %v5020 = vadd.s32 %v5016, 1
        %v5021 = vsel %vm5019, %v5020, %v5016
        %v5022 = vadd.s32 %v5017, %v5021
        %v5023 = vadd.s32 %v5022, 536870912
        %v5024 = vshrl.u32 %v5023, 30
        %v5025 = vshll.u32 %v5024, 30
        %v5026 = vsub.s32 %v5022, %v5025
        %vm5027 = vcmp.lt.s32.totalorder %v5026, 0
        %v5028 = vsub.s32 0, %v5026
        %v5029 = vsel %vm5027, %v5028, %v5026
        %v5030 = vclz %v5029
        %v5031 = vsub.s32 %v5030, 2
        %vm5032 = vcmp.gt.s32.totalorder 0, %v5031
        %v5033 = vsel %vm5032, 0, %v5031
        %v5034 = vsub.s32 32, %v5033
        %v5035 = vshll.u32 %v5026, %v5033
        %v5036 = vshrl.u32 %v5018, %v5034
        %v5037 = vor.u32 %v5035, %v5036
        %v5038 = vsub.s32 4294967266, %v5033
        %v5039 = vadd.s32 %v5038, 127
        %v5040 = vshll.u32 %v5039, 23
        %v5041 = vor.u32 4788187, %v5040
        %v5042 = vand.u32 2147483647, %v5041
        %v5044 = vcvt.s32.f32 %v5037
        %v5045 = vmul.f32 %v5044, %v5042
        %v5046 = vxor.u32 %v5045, 2147483648
        %v5047 = vsel %vm4926, %v5046, %v5045
        %v5048 = vsub.s32 4, %v5024
        %v5049 = vsel %vm4926, %v5048, %v5024
        %v5050 = vsel %vm4925, %v415, %v5047
        %v5051 = vsel %vm4925, 0, %v5049
        %v5052 = vmul.f32 %v5050, %v5050
        %v5053 = vmul.f32 %v5052, -0.001358992
        %v5054 = vadd.f32 %v5053, 0.041655596
        %v5055 = vmul.f32 %v5052, %v5054
        %v5056 = vadd.f32 %v5055, -0.4999988
        %v5057 = vmul.f32 %v5052, %v5056
        %v5058 = vadd.f32 1.0, %v5057
        %v5059 = vmul.f32 %v5050, %v5050
        %v5060 = vmul.f32 %v5059, -0.00019511016
        %v5061 = vadd.f32 %v5060, 0.008332121
        %v5062 = vmul.f32 %v5059, %v5061
        %v5063 = vadd.f32 %v5062, -0.16666654
        %v5064 = vmul.f32 %v5059, %v5063
        %v5065 = vadd.f32 %v5064, 1.0
        %v5066 = vmul.f32 %v5065, %v5050
        %vm5067 = vweird.f32 %v415
        %v5068 = vand.u32 %v5051, 3
        %vm5069 = vcmp.lt.s32.totalorder %v5068, 2
        %vm5070 = vcmp.eq.s32.totalorder %v5068, 0
        %v5071 = vxor.u32 %v5066, 2147483648
        %v5072 = vsel %vm5070, %v5058, %v5071
        %vm5073 = vcmp.eq.s32.totalorder %v5068, 2
        %v5074 = vxor.u32 %v5058, 2147483648
        %v5075 = vsel %vm5073, %v5074, %v5066
        %v5076 = vsel %vm5069, %v5072, %v5075
        %v5077 = vsel %vm5067, nan, %v5076
        %v5078 = vand.u32 2147483647, %v416
        %vm5079 = vcmp.le.f32.partialorder %v5078, 0.7853982
        %vm5080 = vcmp.lt.s32.totalorder %v416, 0
        %v5081 = vand.u32 %v416, 2139095040
        %v5082 = vshrl.u32 %v5081, 23
        %v5083 = vsub.s32 %v5082, 127
        %v5084 = vand.u32 2147483647, %v416
        %v5085 = vand.u32 %v5084, 8388607
        %v5086 = vor.u32 %v5085, 8388608
        %v5087 = vsub.s32 0, %v5086
        %v5088 = vadd.s32 %v5083, 1
        %vm5089 = vcmp.gt.s32.totalorder %v5088, 0
        %v5090 = vsel %vm5089, %v5088, 0
        %v5091 = vshrl.u32 %v5090, 5
        %v5092 = vand.u32 %v5090, 31
        %v5093 = vsub.s32 32, %v5092
        %v5094 = vshrl.u32 683565275, %v5093
        %v5095 = vshll.u32 683565275, %v5092
        %v5096 = vshrl.u32 2475754826, %v5093
        %v5097 = vor.u32 %v5095, %v5096
        %v5098 = vshll.u32 2475754826, %v5092
        %v5099 = vshrl.u32 2131351028, %v5093
        %v5100 = vor.u32 %v5098, %v5099
        %v5101 = vshll.u32 2131351028, %v5092
        %v5102 = vshrl.u32 2102212464, %v5093
        %v5103 = vor.u32 %v5101, %v5102
        %v5104 = vshll.u32 2102212464, %v5092
        %v5105 = vshrl.u32 920167782, %v5093
        %v5106 = vor.u32 %v5104, %v5105
        %v5107 = vshll.u32 920167782, %v5092
        %v5108 = vshrl.u32 1326507024, %v5093
        %v5109 = vor.u32 %v5107, %v5108
        %vm5110 = vcmp.lt.s32.totalorder %v5091, 1
        %vm5111 = vcmp.lt.s32.totalorder %v5091, 2
        %vm5112 = vcmp.lt.s32.totalorder %v5091, 3
        %vm5113 = vcmp.lt.s32.totalorder %v5091, 4
        %v5114 = vsel %vm5110, %v5094, %v5097
        %v5115 = vsel %vm5113, %v5103, 2102212464
        %v5116 = vsel %vm5112, %v5100, %v5115
        %v5117 = vsel %vm5111, %v5114, %v5116
        %v5118 = vsel %vm5110, %v5097, %v5100
        %v5119 = vsel %vm5113, %v5106, 920167782
        %v5120 = vsel %vm5112, %v5103, %v5119
        %v5121 = vsel %vm5111, %v5118, %v5120
        %v5122 = vsel %vm5110, %v5100, %v5103
        %v5123 = vsel %vm5113, %v5109, 1326507024
        %v5124 = vsel %vm5112, %v5106, %v5123
        %v5125 = vsel %vm5111, %v5122, %v5124
        %v5126 = vshll.u32 %v5086, 8
        %v5127 = vand.u32 %v5126, 65535
        %v5128 = vshrl.u32 %v5126, 16
        %v5129 = vand.u32 %v5125, 65535
        %v5130 = vshrl.u32 %v5125, 16
        %v5131 = vmul.u32 %v5127, %v5129
        %v5132 = vmul.u32 %v5127, %v5130
        %v5133 = vmul.u32 %v5128, %v5129
        %v5134 = vmul.u32 %v5128, %v5130
        %v5135 = vshll.u32 %v5132, 16
        %v5136 = vshrl.u32 %v5132, 16
        %v5137 = vshll.u32 %v5133, 16
        %v5138 = vshrl.u32 %v5133, 16
        %vm5139 = vc.u32 %v5131, %v5135
        %v5140 = vsel %vm5139, 1, 0
        %v5141 = vadd.s32 %v5131, %v5135
        %v5142 = vadd.s32 %v5134, %v5140
        %vm5143 = vc.u32 %v5141, %v5137
        %v5144 = vsel %vm5143, 1, 0
        %v5145 = vadd.s32 %v5141, %v5137
        %v5146 = vadd.s32 %v5142, %v5144
        %v5147 = vadd.s32 %v5146, %v5136
        %v5148 = vadd.s32 %v5147, %v5138
        %v5149 = vand.u32 %v5126, 65535
        %v5150 = vshrl.u32 %v5126, 16
        %v5151 = vand.u32 %v5121, 65535
        %v5152 = vshrl.u32 %v5121, 16
        %v5153 = vmul.u32 %v5149, %v5151
        %v5154 = vmul.u32 %v5149, %v5152
        %v5155 = vmul.u32 %v5150, %v5151
        %v5156 = vmul.u32 %v5150, %v5152
        %v5157 = vshll.u32 %v5154, 16
        %v5158 = vshrl.u32 %v5154, 16
        %v5159 = vshll.u32 %v5155, 16
        %v5160 = vshrl.u32 %v5155, 16
        %vm5161 = vc.u32 %v5153, %v5157
        %v5162 = vsel %vm5161, 1, 0
        %v5163 = vadd.s32 %v5153, %v5157
        %v5164 = vadd.s32 %v5156, %v5162
        %vm5165 = vc.u32 %v5163, %v5159
        %v5166 = vsel %vm5165, 1, 0
        %v5167 = vadd.s32 %v5163, %v5159
        %v5168 = vadd.s32 %v5164, %v5166
        %v5169 = vadd.s32 %v5168, %v5158
        %v5170 = vadd.s32 %v5169, %v5160
        %v5171 = vmul.u32 %v5126, %v5117
        %v5172 = vadd.s32 %v5148, %v5167
        %vm5173 = vc.u32 %v5148, %v5167
        %v5174 = vadd.s32 %v5170, 1
        %v5175 = vsel %vm5173, %v5174, %v5170
        %v5176 = vadd.s32 %v5171, %v5175
        %v5177 = vadd.s32 %v5176, 536870912
        %v5178 = vshrl.u32 %v5177, 30
        %v5179 = vshll.u32 %v5178, 30
        %v5180 = vsub.s32 %v5176, %v5179
        %vm5181 = vcmp.lt.s32.totalorder %v5180, 0
        %v5182 = vsub.s32 0, %v5180
        %v5183 = vsel %vm5181, %v5182, %v5180
        %v5184 = vclz %v5183
        %v5185 = vsub.s32 %v5184, 2
        %vm5186 = vcmp.gt.s32.totalorder 0, %v5185
        %v5187 = vsel %vm5186, 0, %v5185
        %v5188 = vsub.s32 32, %v5187
        %v5189 = vshll.u32 %v5180, %v5187
        %v5190 = vshrl.u32 %v5172, %v5188
        %v5191 = vor.u32 %v5189, %v5190
        %v5192 = vsub.s32 4294967266, %v5187
        %v5193 = vadd.s32 %v5192, 127
        %v5194 = vshll.u32 %v5193, 23
        %v5195 = vor.u32 4788187, %v5194
        %v5196 = vand.u32 2147483647, %v5195
        %v5198 = vcvt.s32.f32 %v5191
        %v5199 = vmul.f32 %v5198, %v5196
        %v5200 = vxor.u32 %v5199, 2147483648
        %v5201 = vsel %vm5080, %v5200, %v5199
        %v5202 = vsub.s32 4, %v5178
        %v5203 = vsel %vm5080, %v5202, %v5178
        %v5204 = vsel %vm5079, %v416, %v5201
        %v5205 = vsel %vm5079, 0, %v5203
        %v5206 = vmul.f32 %v5204, %v5204
        %v5207 = vmul.f32 %v5206, -0.001358992
        %v5208 = vadd.f32 %v5207, 0.041655596
        %v5209 = vmul.f32 %v5206, %v5208
        %v5210 = vadd.f32 %v5209, -0.4999988
        %v5211 = vmul.f32 %v5206, %v5210
        %v5212 = vadd.f32 1.0, %v5211
        %v5213 = vmul.f32 %v5204, %v5204
        %v5214 = vmul.f32 %v5213, -0.00019511016
        %v5215 = vadd.f32 %v5214, 0.008332121
        %v5216 = vmul.f32 %v5213, %v5215
        %v5217 = vadd.f32 %v5216, -0.16666654
        %v5218 = vmul.f32 %v5213, %v5217
        %v5219 = vadd.f32 %v5218, 1.0
        %v5220 = vmul.f32 %v5219, %v5204
        %vm5221 = vweird.f32 %v416
        %v5222 = vand.u32 %v5205, 3
        %vm5223 = vcmp.lt.s32.totalorder %v5222, 2
        %vm5224 = vcmp.eq.s32.totalorder %v5222, 0
        %v5225 = vxor.u32 %v5220, 2147483648
        %v5226 = vsel %vm5224, %v5212, %v5225
        %vm5227 = vcmp.eq.s32.totalorder %v5222, 2
        %v5228 = vxor.u32 %v5212, 2147483648
        %v5229 = vsel %vm5227, %v5228, %v5220
        %v5230 = vsel %vm5223, %v5226, %v5229
        %v5231 = vsel %vm5221, nan, %v5230
        %v5232 = vand.u32 2147483647, %v417
        %vm5233 = vcmp.le.f32.partialorder %v5232, 0.7853982
        %vm5234 = vcmp.lt.s32.totalorder %v417, 0
        %v5235 = vand.u32 %v417, 2139095040
        %v5236 = vshrl.u32 %v5235, 23
        %v5237 = vsub.s32 %v5236, 127
        %v5238 = vand.u32 2147483647, %v417
        %v5239 = vand.u32 %v5238, 8388607
        %v5240 = vor.u32 %v5239, 8388608
        %v5241 = vsub.s32 0, %v5240
        %v5242 = vadd.s32 %v5237, 1
        %vm5243 = vcmp.gt.s32.totalorder %v5242, 0
        %v5244 = vsel %vm5243, %v5242, 0
        %v5245 = vshrl.u32 %v5244, 5
        %v5246 = vand.u32 %v5244, 31
        %v5247 = vsub.s32 32, %v5246
        %v5248 = vshrl.u32 683565275, %v5247
        %v5249 = vshll.u32 683565275, %v5246
        %v5250 = vshrl.u32 2475754826, %v5247
        %v5251 = vor.u32 %v5249, %v5250
        %v5252 = vshll.u32 2475754826, %v5246
        %v5253 = vshrl.u32 2131351028, %v5247
        %v5254 = vor.u32 %v5252, %v5253
        %v5255 = vshll.u32 2131351028, %v5246
        %v5256 = vshrl.u32 2102212464, %v5247
        %v5257 = vor.u32 %v5255, %v5256
        %v5258 = vshll.u32 2102212464, %v5246
        %v5259 = vshrl.u32 920167782, %v5247
        %v5260 = vor.u32 %v5258, %v5259
        %v5261 = vshll.u32 920167782, %v5246
        %v5262 = vshrl.u32 1326507024, %v5247
        %v5263 = vor.u32 %v5261, %v5262
        %vm5264 = vcmp.lt.s32.totalorder %v5245, 1
        %vm5265 = vcmp.lt.s32.totalorder %v5245, 2
        %vm5266 = vcmp.lt.s32.totalorder %v5245, 3
        %vm5267 = vcmp.lt.s32.totalorder %v5245, 4
        %v5268 = vsel %vm5264, %v5248, %v5251
        %v5269 = vsel %vm5267, %v5257, 2102212464
        %v5270 = vsel %vm5266, %v5254, %v5269
        %v5271 = vsel %vm5265, %v5268, %v5270
        %v5272 = vsel %vm5264, %v5251, %v5254
        %v5273 = vsel %vm5267, %v5260, 920167782
        %v5274 = vsel %vm5266, %v5257, %v5273
        %v5275 = vsel %vm5265, %v5272, %v5274
        %v5276 = vsel %vm5264, %v5254, %v5257
        %v5277 = vsel %vm5267, %v5263, 1326507024
        %v5278 = vsel %vm5266, %v5260, %v5277
        %v5279 = vsel %vm5265, %v5276, %v5278
        %v5280 = vshll.u32 %v5240, 8
        %v5281 = vand.u32 %v5280, 65535
        %v5282 = vshrl.u32 %v5280, 16
        %v5283 = vand.u32 %v5279, 65535
        %v5284 = vshrl.u32 %v5279, 16
        %v5285 = vmul.u32 %v5281, %v5283
        %v5286 = vmul.u32 %v5281, %v5284
        %v5287 = vmul.u32 %v5282, %v5283
        %v5288 = vmul.u32 %v5282, %v5284
        %v5289 = vshll.u32 %v5286, 16
        %v5290 = vshrl.u32 %v5286, 16
        %v5291 = vshll.u32 %v5287, 16
        %v5292 = vshrl.u32 %v5287, 16
        %vm5293 = vc.u32 %v5285, %v5289
        %v5294 = vsel %vm5293, 1, 0
        %v5295 = vadd.s32 %v5285, %v5289
        %v5296 = vadd.s32 %v5288, %v5294
        %vm5297 = vc.u32 %v5295, %v5291
        %v5298 = vsel %vm5297, 1, 0
        %v5299 = vadd.s32 %v5295, %v5291
        %v5300 = vadd.s32 %v5296, %v5298
        %v5301 = vadd.s32 %v5300, %v5290
        %v5302 = vadd.s32 %v5301, %v5292
        %v5303 = vand.u32 %v5280, 65535
        %v5304 = vshrl.u32 %v5280, 16
        %v5305 = vand.u32 %v5275, 65535
        %v5306 = vshrl.u32 %v5275, 16
        %v5307 = vmul.u32 %v5303, %v5305
        %v5308 = vmul.u32 %v5303, %v5306
        %v5309 = vmul.u32 %v5304, %v5305
        %v5310 = vmul.u32 %v5304, %v5306
        %v5311 = vshll.u32 %v5308, 16
        %v5312 = vshrl.u32 %v5308, 16
        %v5313 = vshll.u32 %v5309, 16
        %v5314 = vshrl.u32 %v5309, 16
        %vm5315 = vc.u32 %v5307, %v5311
        %v5316 = vsel %vm5315, 1, 0
        %v5317 = vadd.s32 %v5307, %v5311
        %v5318 = vadd.s32 %v5310, %v5316
        %vm5319 = vc.u32 %v5317, %v5313
        %v5320 = vsel %vm5319, 1, 0
        %v5321 = vadd.s32 %v5317, %v5313
        %v5322 = vadd.s32 %v5318, %v5320
        %v5323 = vadd.s32 %v5322, %v5312
        %v5324 = vadd.s32 %v5323, %v5314
        %v5325 = vmul.u32 %v5280, %v5271
        %v5326 = vadd.s32 %v5302, %v5321
        %vm5327 = vc.u32 %v5302, %v5321
        %v5328 = vadd.s32 %v5324, 1
        %v5329 = vsel %vm5327, %v5328, %v5324
        %v5330 = vadd.s32 %v5325, %v5329
        %v5331 = vadd.s32 %v5330, 536870912
        %v5332 = vshrl.u32 %v5331, 30
        %v5333 = vshll.u32 %v5332, 30
        %v5334 = vsub.s32 %v5330, %v5333
        %vm5335 = vcmp.lt.s32.totalorder %v5334, 0
        %v5336 = vsub.s32 0, %v5334
        %v5337 = vsel %vm5335, %v5336, %v5334
        %v5338 = vclz %v5337
        %v5339 = vsub.s32 %v5338, 2
        %vm5340 = vcmp.gt.s32.totalorder 0, %v5339
        %v5341 = vsel %vm5340, 0, %v5339
        %v5342 = vsub.s32 32, %v5341
        %v5343 = vshll.u32 %v5334, %v5341
        %v5344 = vshrl.u32 %v5326, %v5342
        %v5345 = vor.u32 %v5343, %v5344
        %v5346 = vsub.s32 4294967266, %v5341
        %v5347 = vadd.s32 %v5346, 127
        %v5348 = vshll.u32 %v5347, 23
        %v5349 = vor.u32 4788187, %v5348
        %v5350 = vand.u32 2147483647, %v5349
        %v5352 = vcvt.s32.f32 %v5345
        %v5353 = vmul.f32 %v5352, %v5350
        %v5354 = vxor.u32 %v5353, 2147483648
        %v5355 = vsel %vm5234, %v5354, %v5353
        %v5356 = vsub.s32 4, %v5332
        %v5357 = vsel %vm5234, %v5356, %v5332
        %v5358 = vsel %vm5233, %v417, %v5355
        %v5359 = vsel %vm5233, 0, %v5357
        %v5360 = vmul.f32 %v5358, %v5358
        %v5361 = vmul.f32 %v5360, -0.001358992
        %v5362 = vadd.f32 %v5361, 0.041655596
        %v5363 = vmul.f32 %v5360, %v5362
        %v5364 = vadd.f32 %v5363, -0.4999988
        %v5365 = vmul.f32 %v5360, %v5364
        %v5366 = vadd.f32 1.0, %v5365
        %v5367 = vmul.f32 %v5358, %v5358
        %v5368 = vmul.f32 %v5367, -0.00019511016
        %v5369 = vadd.f32 %v5368, 0.008332121
        %v5370 = vmul.f32 %v5367, %v5369
        %v5371 = vadd.f32 %v5370, -0.16666654
        %v5372 = vmul.f32 %v5367, %v5371
        %v5373 = vadd.f32 %v5372, 1.0
        %v5374 = vmul.f32 %v5373, %v5358
        %vm5375 = vweird.f32 %v417
        %v5376 = vand.u32 %v5359, 3
        %vm5377 = vcmp.lt.s32.totalorder %v5376, 2
        %vm5378 = vcmp.eq.s32.totalorder %v5376, 0
        %v5379 = vxor.u32 %v5374, 2147483648
        %v5380 = vsel %vm5378, %v5366, %v5379
        %vm5381 = vcmp.eq.s32.totalorder %v5376, 2
        %v5382 = vxor.u32 %v5366, 2147483648
        %v5383 = vsel %vm5381, %v5382, %v5374
        %v5384 = vsel %vm5377, %v5380, %v5383
        %v5385 = vsel %vm5375, nan, %v5384
        %v5386 = vand.u32 2147483647, %v418
        %vm5387 = vcmp.le.f32.partialorder %v5386, 0.7853982
        %vm5388 = vcmp.lt.s32.totalorder %v418, 0
        %v5389 = vand.u32 %v418, 2139095040
        %v5390 = vshrl.u32 %v5389, 23
        %v5391 = vsub.s32 %v5390, 127
        %v5392 = vand.u32 2147483647, %v418
        %v5393 = vand.u32 %v5392, 8388607
        %v5394 = vor.u32 %v5393, 8388608
        %v5395 = vsub.s32 0, %v5394
        %v5396 = vadd.s32 %v5391, 1
        %vm5397 = vcmp.gt.s32.totalorder %v5396, 0
        %v5398 = vsel %vm5397, %v5396, 0
        %v5399 = vshrl.u32 %v5398, 5
        %v5400 = vand.u32 %v5398, 31
        %v5401 = vsub.s32 32, %v5400
        %v5402 = vshrl.u32 683565275, %v5401
        %v5403 = vshll.u32 683565275, %v5400
        %v5404 = vshrl.u32 2475754826, %v5401
        %v5405 = vor.u32 %v5403, %v5404
        %v5406 = vshll.u32 2475754826, %v5400
        %v5407 = vshrl.u32 2131351028, %v5401
        %v5408 = vor.u32 %v5406, %v5407
        %v5409 = vshll.u32 2131351028, %v5400
        %v5410 = vshrl.u32 2102212464, %v5401
        %v5411 = vor.u32 %v5409, %v5410
        %v5412 = vshll.u32 2102212464, %v5400
        %v5413 = vshrl.u32 920167782, %v5401
        %v5414 = vor.u32 %v5412, %v5413
        %v5415 = vshll.u32 920167782, %v5400
        %v5416 = vshrl.u32 1326507024, %v5401
        %v5417 = vor.u32 %v5415, %v5416
        %vm5418 = vcmp.lt.s32.totalorder %v5399, 1
        %vm5419 = vcmp.lt.s32.totalorder %v5399, 2
        %vm5420 = vcmp.lt.s32.totalorder %v5399, 3
        %vm5421 = vcmp.lt.s32.totalorder %v5399, 4
        %v5422 = vsel %vm5418, %v5402, %v5405
        %v5423 = vsel %vm5421, %v5411, 2102212464
        %v5424 = vsel %vm5420, %v5408, %v5423
        %v5425 = vsel %vm5419, %v5422, %v5424
        %v5426 = vsel %vm5418, %v5405, %v5408
        %v5427 = vsel %vm5421, %v5414, 920167782
        %v5428 = vsel %vm5420, %v5411, %v5427
        %v5429 = vsel %vm5419, %v5426, %v5428
        %v5430 = vsel %vm5418, %v5408, %v5411
        %v5431 = vsel %vm5421, %v5417, 1326507024
        %v5432 = vsel %vm5420, %v5414, %v5431
        %v5433 = vsel %vm5419, %v5430, %v5432
        %v5434 = vshll.u32 %v5394, 8
        %v5435 = vand.u32 %v5434, 65535
        %v5436 = vshrl.u32 %v5434, 16
        %v5437 = vand.u32 %v5433, 65535
        %v5438 = vshrl.u32 %v5433, 16
        %v5439 = vmul.u32 %v5435, %v5437
        %v5440 = vmul.u32 %v5435, %v5438
        %v5441 = vmul.u32 %v5436, %v5437
        %v5442 = vmul.u32 %v5436, %v5438
        %v5443 = vshll.u32 %v5440, 16
        %v5444 = vshrl.u32 %v5440, 16
        %v5445 = vshll.u32 %v5441, 16
        %v5446 = vshrl.u32 %v5441, 16
        %vm5447 = vc.u32 %v5439, %v5443
        %v5448 = vsel %vm5447, 1, 0
        %v5449 = vadd.s32 %v5439, %v5443
        %v5450 = vadd.s32 %v5442, %v5448
        %vm5451 = vc.u32 %v5449, %v5445
        %v5452 = vsel %vm5451, 1, 0
        %v5453 = vadd.s32 %v5449, %v5445
        %v5454 = vadd.s32 %v5450, %v5452
        %v5455 = vadd.s32 %v5454, %v5444
        %v5456 = vadd.s32 %v5455, %v5446
        %v5457 = vand.u32 %v5434, 65535
        %v5458 = vshrl.u32 %v5434, 16
        %v5459 = vand.u32 %v5429, 65535
        %v5460 = vshrl.u32 %v5429, 16
        %v5461 = vmul.u32 %v5457, %v5459
        %v5462 = vmul.u32 %v5457, %v5460
        %v5463 = vmul.u32 %v5458, %v5459
        %v5464 = vmul.u32 %v5458, %v5460
        %v5465 = vshll.u32 %v5462, 16
        %v5466 = vshrl.u32 %v5462, 16
        %v5467 = vshll.u32 %v5463, 16
        %v5468 = vshrl.u32 %v5463, 16
        %vm5469 = vc.u32 %v5461, %v5465
        %v5470 = vsel %vm5469, 1, 0
        %v5471 = vadd.s32 %v5461, %v5465
        %v5472 = vadd.s32 %v5464, %v5470
        %vm5473 = vc.u32 %v5471, %v5467
        %v5474 = vsel %vm5473, 1, 0
        %v5475 = vadd.s32 %v5471, %v5467
        %v5476 = vadd.s32 %v5472, %v5474
        %v5477 = vadd.s32 %v5476, %v5466
        %v5478 = vadd.s32 %v5477, %v5468
        %v5479 = vmul.u32 %v5434, %v5425
        %v5480 = vadd.s32 %v5456, %v5475
        %vm5481 = vc.u32 %v5456, %v5475
        %v5482 = vadd.s32 %v5478, 1
        %v5483 = vsel %vm5481, %v5482, %v5478
        %v5484 = vadd.s32 %v5479, %v5483
        %v5485 = vadd.s32 %v5484, 536870912
        %v5486 = vshrl.u32 %v5485, 30
        %v5487 = vshll.u32 %v5486, 30
        %v5488 = vsub.s32 %v5484, %v5487
        %vm5489 = vcmp.lt.s32.totalorder %v5488, 0
        %v5490 = vsub.s32 0, %v5488
        %v5491 = vsel %vm5489, %v5490, %v5488
        %v5492 = vclz %v5491
        %v5493 = vsub.s32 %v5492, 2
        %vm5494 = vcmp.gt.s32.totalorder 0, %v5493
        %v5495 = vsel %vm5494, 0, %v5493
        %v5496 = vsub.s32 32, %v5495
        %v5497 = vshll.u32 %v5488, %v5495
        %v5498 = vshrl.u32 %v5480, %v5496
        %v5499 = vor.u32 %v5497, %v5498
        %v5500 = vsub.s32 4294967266, %v5495
        %v5501 = vadd.s32 %v5500, 127
        %v5502 = vshll.u32 %v5501, 23
        %v5503 = vor.u32 4788187, %v5502
        %v5504 = vand.u32 2147483647, %v5503
        %v5506 = vcvt.s32.f32 %v5499
        %v5507 = vmul.f32 %v5506, %v5504
        %v5508 = vxor.u32 %v5507, 2147483648
        %v5509 = vsel %vm5388, %v5508, %v5507
        %v5510 = vsub.s32 4, %v5486
        %v5511 = vsel %vm5388, %v5510, %v5486
        %v5512 = vsel %vm5387, %v418, %v5509
        %v5513 = vsel %vm5387, 0, %v5511
        %v5514 = vmul.f32 %v5512, %v5512
        %v5515 = vmul.f32 %v5514, -0.001358992
        %v5516 = vadd.f32 %v5515, 0.041655596
        %v5517 = vmul.f32 %v5514, %v5516
        %v5518 = vadd.f32 %v5517, -0.4999988
        %v5519 = vmul.f32 %v5514, %v5518
        %v5520 = vadd.f32 1.0, %v5519
        %v5521 = vmul.f32 %v5512, %v5512
        %v5522 = vmul.f32 %v5521, -0.00019511016
        %v5523 = vadd.f32 %v5522, 0.008332121
        %v5524 = vmul.f32 %v5521, %v5523
        %v5525 = vadd.f32 %v5524, -0.16666654
        %v5526 = vmul.f32 %v5521, %v5525
        %v5527 = vadd.f32 %v5526, 1.0
        %v5528 = vmul.f32 %v5527, %v5512
        %vm5529 = vweird.f32 %v418
        %v5530 = vand.u32 %v5513, 3
        %vm5531 = vcmp.lt.s32.totalorder %v5530, 2
        %vm5532 = vcmp.eq.s32.totalorder %v5530, 0
        %v5533 = vxor.u32 %v5528, 2147483648
        %v5534 = vsel %vm5532, %v5520, %v5533
        %vm5535 = vcmp.eq.s32.totalorder %v5530, 2
        %v5536 = vxor.u32 %v5520, 2147483648
        %v5537 = vsel %vm5535, %v5536, %v5528
        %v5538 = vsel %vm5531, %v5534, %v5537
        %v5539 = vsel %vm5529, nan, %v5538
        %v5540 = vand.u32 2147483647, %v419
        %vm5541 = vcmp.le.f32.partialorder %v5540, 0.7853982
        %vm5542 = vcmp.lt.s32.totalorder %v419, 0
        %v5543 = vand.u32 %v419, 2139095040
        %v5544 = vshrl.u32 %v5543, 23
        %v5545 = vsub.s32 %v5544, 127
        %v5546 = vand.u32 2147483647, %v419
        %v5547 = vand.u32 %v5546, 8388607
        %v5548 = vor.u32 %v5547, 8388608
        %v5549 = vsub.s32 0, %v5548
        %v5550 = vadd.s32 %v5545, 1
        %vm5551 = vcmp.gt.s32.totalorder %v5550, 0
        %v5552 = vsel %vm5551, %v5550, 0
        %v5553 = vshrl.u32 %v5552, 5
        %v5554 = vand.u32 %v5552, 31
        %v5555 = vsub.s32 32, %v5554
        %v5556 = vshrl.u32 683565275, %v5555
        %v5557 = vshll.u32 683565275, %v5554
        %v5558 = vshrl.u32 2475754826, %v5555
        %v5559 = vor.u32 %v5557, %v5558
        %v5560 = vshll.u32 2475754826, %v5554
        %v5561 = vshrl.u32 2131351028, %v5555
        %v5562 = vor.u32 %v5560, %v5561
        %v5563 = vshll.u32 2131351028, %v5554
        %v5564 = vshrl.u32 2102212464, %v5555
        %v5565 = vor.u32 %v5563, %v5564
        %v5566 = vshll.u32 2102212464, %v5554
        %v5567 = vshrl.u32 920167782, %v5555
        %v5568 = vor.u32 %v5566, %v5567
        %v5569 = vshll.u32 920167782, %v5554
        %v5570 = vshrl.u32 1326507024, %v5555
        %v5571 = vor.u32 %v5569, %v5570
        %vm5572 = vcmp.lt.s32.totalorder %v5553, 1
        %vm5573 = vcmp.lt.s32.totalorder %v5553, 2
        %vm5574 = vcmp.lt.s32.totalorder %v5553, 3
        %vm5575 = vcmp.lt.s32.totalorder %v5553, 4
        %v5576 = vsel %vm5572, %v5556, %v5559
        %v5577 = vsel %vm5575, %v5565, 2102212464
        %v5578 = vsel %vm5574, %v5562, %v5577
        %v5579 = vsel %vm5573, %v5576, %v5578
        %v5580 = vsel %vm5572, %v5559, %v5562
        %v5581 = vsel %vm5575, %v5568, 920167782
        %v5582 = vsel %vm5574, %v5565, %v5581
        %v5583 = vsel %vm5573, %v5580, %v5582
        %v5584 = vsel %vm5572, %v5562, %v5565
        %v5585 = vsel %vm5575, %v5571, 1326507024
        %v5586 = vsel %vm5574, %v5568, %v5585
        %v5587 = vsel %vm5573, %v5584, %v5586
        %v5588 = vshll.u32 %v5548, 8
        %v5589 = vand.u32 %v5588, 65535
        %v5590 = vshrl.u32 %v5588, 16
        %v5591 = vand.u32 %v5587, 65535
        %v5592 = vshrl.u32 %v5587, 16
        %v5593 = vmul.u32 %v5589, %v5591
        %v5594 = vmul.u32 %v5589, %v5592
        %v5595 = vmul.u32 %v5590, %v5591
        %v5596 = vmul.u32 %v5590, %v5592
        %v5597 = vshll.u32 %v5594, 16
        %v5598 = vshrl.u32 %v5594, 16
        %v5599 = vshll.u32 %v5595, 16
        %v5600 = vshrl.u32 %v5595, 16
        %vm5601 = vc.u32 %v5593, %v5597
        %v5602 = vsel %vm5601, 1, 0
        %v5603 = vadd.s32 %v5593, %v5597
        %v5604 = vadd.s32 %v5596, %v5602
        %vm5605 = vc.u32 %v5603, %v5599
        %v5606 = vsel %vm5605, 1, 0
        %v5607 = vadd.s32 %v5603, %v5599
        %v5608 = vadd.s32 %v5604, %v5606
        %v5609 = vadd.s32 %v5608, %v5598
        %v5610 = vadd.s32 %v5609, %v5600
        %v5611 = vand.u32 %v5588, 65535
        %v5612 = vshrl.u32 %v5588, 16
        %v5613 = vand.u32 %v5583, 65535
        %v5614 = vshrl.u32 %v5583, 16
        %v5615 = vmul.u32 %v5611, %v5613
        %v5616 = vmul.u32 %v5611, %v5614
        %v5617 = vmul.u32 %v5612, %v5613
        %v5618 = vmul.u32 %v5612, %v5614
        %v5619 = vshll.u32 %v5616, 16
        %v5620 = vshrl.u32 %v5616, 16
        %v5621 = vshll.u32 %v5617, 16
        %v5622 = vshrl.u32 %v5617, 16
        %vm5623 = vc.u32 %v5615, %v5619
        %v5624 = vsel %vm5623, 1, 0
        %v5625 = vadd.s32 %v5615, %v5619
        %v5626 = vadd.s32 %v5618, %v5624
        %vm5627 = vc.u32 %v5625, %v5621
        %v5628 = vsel %vm5627, 1, 0
        %v5629 = vadd.s32 %v5625, %v5621
        %v5630 = vadd.s32 %v5626, %v5628
        %v5631 = vadd.s32 %v5630, %v5620
        %v5632 = vadd.s32 %v5631, %v5622
        %v5633 = vmul.u32 %v5588, %v5579
        %v5634 = vadd.s32 %v5610, %v5629
        %vm5635 = vc.u32 %v5610, %v5629
        %v5636 = vadd.s32 %v5632, 1
        %v5637 = vsel %vm5635, %v5636, %v5632
        %v5638 = vadd.s32 %v5633, %v5637
        %v5639 = vadd.s32 %v5638, 536870912
        %v5640 = vshrl.u32 %v5639, 30
        %v5641 = vshll.u32 %v5640, 30
        %v5642 = vsub.s32 %v5638, %v5641
        %vm5643 = vcmp.lt.s32.totalorder %v5642, 0
        %v5644 = vsub.s32 0, %v5642
        %v5645 = vsel %vm5643, %v5644, %v5642
        %v5646 = vclz %v5645
        %v5647 = vsub.s32 %v5646, 2
        %vm5648 = vcmp.gt.s32.totalorder 0, %v5647
        %v5649 = vsel %vm5648, 0, %v5647
        %v5650 = vsub.s32 32, %v5649
        %v5651 = vshll.u32 %v5642, %v5649
        %v5652 = vshrl.u32 %v5634, %v5650
        %v5653 = vor.u32 %v5651, %v5652
        %v5654 = vsub.s32 4294967266, %v5649
        %v5655 = vadd.s32 %v5654, 127
        %v5656 = vshll.u32 %v5655, 23
        %v5657 = vor.u32 4788187, %v5656
        %v5658 = vand.u32 2147483647, %v5657
        %v5660 = vcvt.s32.f32 %v5653
        %v5661 = vmul.f32 %v5660, %v5658
        %v5662 = vxor.u32 %v5661, 2147483648
        %v5663 = vsel %vm5542, %v5662, %v5661
        %v5664 = vsub.s32 4, %v5640
        %v5665 = vsel %vm5542, %v5664, %v5640
        %v5666 = vsel %vm5541, %v419, %v5663
        %v5667 = vsel %vm5541, 0, %v5665
        %v5668 = vmul.f32 %v5666, %v5666
        %v5669 = vmul.f32 %v5668, -0.001358992
        %v5670 = vadd.f32 %v5669, 0.041655596
        %v5671 = vmul.f32 %v5668, %v5670
        %v5672 = vadd.f32 %v5671, -0.4999988
        %v5673 = vmul.f32 %v5668, %v5672
        %v5674 = vadd.f32 1.0, %v5673
        %v5675 = vmul.f32 %v5666, %v5666
        %v5676 = vmul.f32 %v5675, -0.00019511016
        %v5677 = vadd.f32 %v5676, 0.008332121
        %v5678 = vmul.f32 %v5675, %v5677
        %v5679 = vadd.f32 %v5678, -0.16666654
        %v5680 = vmul.f32 %v5675, %v5679
        %v5681 = vadd.f32 %v5680, 1.0
        %v5682 = vmul.f32 %v5681, %v5666
        %vm5683 = vweird.f32 %v419
        %v5684 = vand.u32 %v5667, 3
        %vm5685 = vcmp.lt.s32.totalorder %v5684, 2
        %vm5686 = vcmp.eq.s32.totalorder %v5684, 0
        %v5687 = vxor.u32 %v5682, 2147483648
        %v5688 = vsel %vm5686, %v5674, %v5687
        %vm5689 = vcmp.eq.s32.totalorder %v5684, 2
        %v5690 = vxor.u32 %v5674, 2147483648
        %v5691 = vsel %vm5689, %v5690, %v5682
        %v5692 = vsel %vm5685, %v5688, %v5691
        %v5693 = vsel %vm5683, nan, %v5692
        %v5694 = vand.u32 2147483647, %v420
        %vm5695 = vcmp.le.f32.partialorder %v5694, 0.7853982
        %vm5696 = vcmp.lt.s32.totalorder %v420, 0
        %v5697 = vand.u32 %v420, 2139095040
        %v5698 = vshrl.u32 %v5697, 23
        %v5699 = vsub.s32 %v5698, 127
        %v5700 = vand.u32 2147483647, %v420
        %v5701 = vand.u32 %v5700, 8388607
        %v5702 = vor.u32 %v5701, 8388608
        %v5703 = vsub.s32 0, %v5702
        %v5704 = vadd.s32 %v5699, 1
        %vm5705 = vcmp.gt.s32.totalorder %v5704, 0
        %v5706 = vsel %vm5705, %v5704, 0
        %v5707 = vshrl.u32 %v5706, 5
        %v5708 = vand.u32 %v5706, 31
        %v5709 = vsub.s32 32, %v5708
        %v5710 = vshrl.u32 683565275, %v5709
        %v5711 = vshll.u32 683565275, %v5708
        %v5712 = vshrl.u32 2475754826, %v5709
        %v5713 = vor.u32 %v5711, %v5712
        %v5714 = vshll.u32 2475754826, %v5708
        %v5715 = vshrl.u32 2131351028, %v5709
        %v5716 = vor.u32 %v5714, %v5715
        %v5717 = vshll.u32 2131351028, %v5708
        %v5718 = vshrl.u32 2102212464, %v5709
        %v5719 = vor.u32 %v5717, %v5718
        %v5720 = vshll.u32 2102212464, %v5708
        %v5721 = vshrl.u32 920167782, %v5709
        %v5722 = vor.u32 %v5720, %v5721
        %v5723 = vshll.u32 920167782, %v5708
        %v5724 = vshrl.u32 1326507024, %v5709
        %v5725 = vor.u32 %v5723, %v5724
        %vm5726 = vcmp.lt.s32.totalorder %v5707, 1
        %vm5727 = vcmp.lt.s32.totalorder %v5707, 2
        %vm5728 = vcmp.lt.s32.totalorder %v5707, 3
        %vm5729 = vcmp.lt.s32.totalorder %v5707, 4
        %v5730 = vsel %vm5726, %v5710, %v5713
        %v5731 = vsel %vm5729, %v5719, 2102212464
        %v5732 = vsel %vm5728, %v5716, %v5731
        %v5733 = vsel %vm5727, %v5730, %v5732
        %v5734 = vsel %vm5726, %v5713, %v5716
        %v5735 = vsel %vm5729, %v5722, 920167782
        %v5736 = vsel %vm5728, %v5719, %v5735
        %v5737 = vsel %vm5727, %v5734, %v5736
        %v5738 = vsel %vm5726, %v5716, %v5719
        %v5739 = vsel %vm5729, %v5725, 1326507024
        %v5740 = vsel %vm5728, %v5722, %v5739
        %v5741 = vsel %vm5727, %v5738, %v5740
        %v5742 = vshll.u32 %v5702, 8
        %v5743 = vand.u32 %v5742, 65535
        %v5744 = vshrl.u32 %v5742, 16
        %v5745 = vand.u32 %v5741, 65535
        %v5746 = vshrl.u32 %v5741, 16
        %v5747 = vmul.u32 %v5743, %v5745
        %v5748 = vmul.u32 %v5743, %v5746
        %v5749 = vmul.u32 %v5744, %v5745
        %v5750 = vmul.u32 %v5744, %v5746
        %v5751 = vshll.u32 %v5748, 16
        %v5752 = vshrl.u32 %v5748, 16
        %v5753 = vshll.u32 %v5749, 16
        %v5754 = vshrl.u32 %v5749, 16
        %vm5755 = vc.u32 %v5747, %v5751
        %v5756 = vsel %vm5755, 1, 0
        %v5757 = vadd.s32 %v5747, %v5751
        %v5758 = vadd.s32 %v5750, %v5756
        %vm5759 = vc.u32 %v5757, %v5753
        %v5760 = vsel %vm5759, 1, 0
        %v5761 = vadd.s32 %v5757, %v5753
        %v5762 = vadd.s32 %v5758, %v5760
        %v5763 = vadd.s32 %v5762, %v5752
        %v5764 = vadd.s32 %v5763, %v5754
        %v5765 = vand.u32 %v5742, 65535
        %v5766 = vshrl.u32 %v5742, 16
        %v5767 = vand.u32 %v5737, 65535
        %v5768 = vshrl.u32 %v5737, 16
        %v5769 = vmul.u32 %v5765, %v5767
        %v5770 = vmul.u32 %v5765, %v5768
        %v5771 = vmul.u32 %v5766, %v5767
        %v5772 = vmul.u32 %v5766, %v5768
        %v5773 = vshll.u32 %v5770, 16
        %v5774 = vshrl.u32 %v5770, 16
        %v5775 = vshll.u32 %v5771, 16
        %v5776 = vshrl.u32 %v5771, 16
        %vm5777 = vc.u32 %v5769, %v5773
        %v5778 = vsel %vm5777, 1, 0
        %v5779 = vadd.s32 %v5769, %v5773
        %v5780 = vadd.s32 %v5772, %v5778
        %vm5781 = vc.u32 %v5779, %v5775
        %v5782 = vsel %vm5781, 1, 0
        %v5783 = vadd.s32 %v5779, %v5775
        %v5784 = vadd.s32 %v5780, %v5782
        %v5785 = vadd.s32 %v5784, %v5774
        %v5786 = vadd.s32 %v5785, %v5776
        %v5787 = vmul.u32 %v5742, %v5733
        %v5788 = vadd.s32 %v5764, %v5783
        %vm5789 = vc.u32 %v5764, %v5783
        %v5790 = vadd.s32 %v5786, 1
        %v5791 = vsel %vm5789, %v5790, %v5786
        %v5792 = vadd.s32 %v5787, %v5791
        %v5793 = vadd.s32 %v5792, 536870912
        %v5794 = vshrl.u32 %v5793, 30
        %v5795 = vshll.u32 %v5794, 30
        %v5796 = vsub.s32 %v5792, %v5795
        %vm5797 = vcmp.lt.s32.totalorder %v5796, 0
        %v5798 = vsub.s32 0, %v5796
        %v5799 = vsel %vm5797, %v5798, %v5796
        %v5800 = vclz %v5799
        %v5801 = vsub.s32 %v5800, 2
        %vm5802 = vcmp.gt.s32.totalorder 0, %v5801
        %v5803 = vsel %vm5802, 0, %v5801
        %v5804 = vsub.s32 32, %v5803
        %v5805 = vshll.u32 %v5796, %v5803
        %v5806 = vshrl.u32 %v5788, %v5804
        %v5807 = vor.u32 %v5805, %v5806
        %v5808 = vsub.s32 4294967266, %v5803
        %v5809 = vadd.s32 %v5808, 127
        %v5810 = vshll.u32 %v5809, 23
        %v5811 = vor.u32 4788187, %v5810
        %v5812 = vand.u32 2147483647, %v5811
        %v5814 = vcvt.s32.f32 %v5807
        %v5815 = vmul.f32 %v5814, %v5812
        %v5816 = vxor.u32 %v5815, 2147483648
        %v5817 = vsel %vm5696, %v5816, %v5815
        %v5818 = vsub.s32 4, %v5794
        %v5819 = vsel %vm5696, %v5818, %v5794
        %v5820 = vsel %vm5695, %v420, %v5817
        %v5821 = vsel %vm5695, 0, %v5819
        %v5822 = vmul.f32 %v5820, %v5820
        %v5823 = vmul.f32 %v5822, -0.001358992
        %v5824 = vadd.f32 %v5823, 0.041655596
        %v5825 = vmul.f32 %v5822, %v5824
        %v5826 = vadd.f32 %v5825, -0.4999988
        %v5827 = vmul.f32 %v5822, %v5826
        %v5828 = vadd.f32 1.0, %v5827
        %v5829 = vmul.f32 %v5820, %v5820
        %v5830 = vmul.f32 %v5829, -0.00019511016
        %v5831 = vadd.f32 %v5830, 0.008332121
        %v5832 = vmul.f32 %v5829, %v5831
        %v5833 = vadd.f32 %v5832, -0.16666654
        %v5834 = vmul.f32 %v5829, %v5833
        %v5835 = vadd.f32 %v5834, 1.0
        %v5836 = vmul.f32 %v5835, %v5820
        %vm5837 = vweird.f32 %v420
        %v5838 = vand.u32 %v5821, 3
        %vm5839 = vcmp.lt.s32.totalorder %v5838, 2
        %vm5840 = vcmp.eq.s32.totalorder %v5838, 0
        %v5841 = vxor.u32 %v5836, 2147483648
        %v5842 = vsel %vm5840, %v5828, %v5841
        %vm5843 = vcmp.eq.s32.totalorder %v5838, 2
        %v5844 = vxor.u32 %v5828, 2147483648
        %v5845 = vsel %vm5843, %v5844, %v5836
        %v5846 = vsel %vm5839, %v5842, %v5845
        %v5847 = vsel %vm5837, nan, %v5846
        %v5848 = vand.u32 2147483647, %v421
        %vm5849 = vcmp.le.f32.partialorder %v5848, 0.7853982
        %vm5850 = vcmp.lt.s32.totalorder %v421, 0
        %v5851 = vand.u32 %v421, 2139095040
        %v5852 = vshrl.u32 %v5851, 23
        %v5853 = vsub.s32 %v5852, 127
        %v5854 = vand.u32 2147483647, %v421
        %v5855 = vand.u32 %v5854, 8388607
        %v5856 = vor.u32 %v5855, 8388608
        %v5857 = vsub.s32 0, %v5856
        %v5858 = vadd.s32 %v5853, 1
        %vm5859 = vcmp.gt.s32.totalorder %v5858, 0
        %v5860 = vsel %vm5859, %v5858, 0
        %v5861 = vshrl.u32 %v5860, 5
        %v5862 = vand.u32 %v5860, 31
        %v5863 = vsub.s32 32, %v5862
        %v5864 = vshrl.u32 683565275, %v5863
        %v5865 = vshll.u32 683565275, %v5862
        %v5866 = vshrl.u32 2475754826, %v5863
        %v5867 = vor.u32 %v5865, %v5866
        %v5868 = vshll.u32 2475754826, %v5862
        %v5869 = vshrl.u32 2131351028, %v5863
        %v5870 = vor.u32 %v5868, %v5869
        %v5871 = vshll.u32 2131351028, %v5862
        %v5872 = vshrl.u32 2102212464, %v5863
        %v5873 = vor.u32 %v5871, %v5872
        %v5874 = vshll.u32 2102212464, %v5862
        %v5875 = vshrl.u32 920167782, %v5863
        %v5876 = vor.u32 %v5874, %v5875
        %v5877 = vshll.u32 920167782, %v5862
        %v5878 = vshrl.u32 1326507024, %v5863
        %v5879 = vor.u32 %v5877, %v5878
        %vm5880 = vcmp.lt.s32.totalorder %v5861, 1
        %vm5881 = vcmp.lt.s32.totalorder %v5861, 2
        %vm5882 = vcmp.lt.s32.totalorder %v5861, 3
        %vm5883 = vcmp.lt.s32.totalorder %v5861, 4
        %v5884 = vsel %vm5880, %v5864, %v5867
        %v5885 = vsel %vm5883, %v5873, 2102212464
        %v5886 = vsel %vm5882, %v5870, %v5885
        %v5887 = vsel %vm5881, %v5884, %v5886
        %v5888 = vsel %vm5880, %v5867, %v5870
        %v5889 = vsel %vm5883, %v5876, 920167782
        %v5890 = vsel %vm5882, %v5873, %v5889
        %v5891 = vsel %vm5881, %v5888, %v5890
        %v5892 = vsel %vm5880, %v5870, %v5873
        %v5893 = vsel %vm5883, %v5879, 1326507024
        %v5894 = vsel %vm5882, %v5876, %v5893
        %v5895 = vsel %vm5881, %v5892, %v5894
        %v5896 = vshll.u32 %v5856, 8
        %v5897 = vand.u32 %v5896, 65535
        %v5898 = vshrl.u32 %v5896, 16
        %v5899 = vand.u32 %v5895, 65535
        %v5900 = vshrl.u32 %v5895, 16
        %v5901 = vmul.u32 %v5897, %v5899
        %v5902 = vmul.u32 %v5897, %v5900
        %v5903 = vmul.u32 %v5898, %v5899
        %v5904 = vmul.u32 %v5898, %v5900
        %v5905 = vshll.u32 %v5902, 16
        %v5906 = vshrl.u32 %v5902, 16
        %v5907 = vshll.u32 %v5903, 16
        %v5908 = vshrl.u32 %v5903, 16
        %vm5909 = vc.u32 %v5901, %v5905
        %v5910 = vsel %vm5909, 1, 0
        %v5911 = vadd.s32 %v5901, %v5905
        %v5912 = vadd.s32 %v5904, %v5910
        %vm5913 = vc.u32 %v5911, %v5907
        %v5914 = vsel %vm5913, 1, 0
        %v5915 = vadd.s32 %v5911, %v5907
        %v5916 = vadd.s32 %v5912, %v5914
        %v5917 = vadd.s32 %v5916, %v5906
        %v5918 = vadd.s32 %v5917, %v5908
        %v5919 = vand.u32 %v5896, 65535
        %v5920 = vshrl.u32 %v5896, 16
        %v5921 = vand.u32 %v5891, 65535
        %v5922 = vshrl.u32 %v5891, 16
        %v5923 = vmul.u32 %v5919, %v5921
        %v5924 = vmul.u32 %v5919, %v5922
        %v5925 = vmul.u32 %v5920, %v5921
        %v5926 = vmul.u32 %v5920, %v5922
        %v5927 = vshll.u32 %v5924, 16
        %v5928 = vshrl.u32 %v5924, 16
        %v5929 = vshll.u32 %v5925, 16
        %v5930 = vshrl.u32 %v5925, 16
        %vm5931 = vc.u32 %v5923, %v5927
        %v5932 = vsel %vm5931, 1, 0
        %v5933 = vadd.s32 %v5923, %v5927
        %v5934 = vadd.s32 %v5926, %v5932
        %vm5935 = vc.u32 %v5933, %v5929
        %v5936 = vsel %vm5935, 1, 0
        %v5937 = vadd.s32 %v5933, %v5929
        %v5938 = vadd.s32 %v5934, %v5936
        %v5939 = vadd.s32 %v5938, %v5928
        %v5940 = vadd.s32 %v5939, %v5930
        %v5941 = vmul.u32 %v5896, %v5887
        %v5942 = vadd.s32 %v5918, %v5937
        %vm5943 = vc.u32 %v5918, %v5937
        %v5944 = vadd.s32 %v5940, 1
        %v5945 = vsel %vm5943, %v5944, %v5940
        %v5946 = vadd.s32 %v5941, %v5945
        %v5947 = vadd.s32 %v5946, 536870912
        %v5948 = vshrl.u32 %v5947, 30
        %v5949 = vshll.u32 %v5948, 30
        %v5950 = vsub.s32 %v5946, %v5949
        %vm5951 = vcmp.lt.s32.totalorder %v5950, 0
        %v5952 = vsub.s32 0, %v5950
        %v5953 = vsel %vm5951, %v5952, %v5950
        %v5954 = vclz %v5953
        %v5955 = vsub.s32 %v5954, 2
        %vm5956 = vcmp.gt.s32.totalorder 0, %v5955
        %v5957 = vsel %vm5956, 0, %v5955
        %v5958 = vsub.s32 32, %v5957
        %v5959 = vshll.u32 %v5950, %v5957
        %v5960 = vshrl.u32 %v5942, %v5958
        %v5961 = vor.u32 %v5959, %v5960
        %v5962 = vsub.s32 4294967266, %v5957
        %v5963 = vadd.s32 %v5962, 127
        %v5964 = vshll.u32 %v5963, 23
        %v5965 = vor.u32 4788187, %v5964
        %v5966 = vand.u32 2147483647, %v5965
        %v5968 = vcvt.s32.f32 %v5961
        %v5969 = vmul.f32 %v5968, %v5966
        %v5970 = vxor.u32 %v5969, 2147483648
        %v5971 = vsel %vm5850, %v5970, %v5969
        %v5972 = vsub.s32 4, %v5948
        %v5973 = vsel %vm5850, %v5972, %v5948
        %v5974 = vsel %vm5849, %v421, %v5971
        %v5975 = vsel %vm5849, 0, %v5973
        %v5976 = vmul.f32 %v5974, %v5974
        %v5977 = vmul.f32 %v5976, -0.001358992
        %v5978 = vadd.f32 %v5977, 0.041655596
        %v5979 = vmul.f32 %v5976, %v5978
        %v5980 = vadd.f32 %v5979, -0.4999988
        %v5981 = vmul.f32 %v5976, %v5980
        %v5982 = vadd.f32 1.0, %v5981
        %v5983 = vmul.f32 %v5974, %v5974
        %v5984 = vmul.f32 %v5983, -0.00019511016
        %v5985 = vadd.f32 %v5984, 0.008332121
        %v5986 = vmul.f32 %v5983, %v5985
        %v5987 = vadd.f32 %v5986, -0.16666654
        %v5988 = vmul.f32 %v5983, %v5987
        %v5989 = vadd.f32 %v5988, 1.0
        %v5990 = vmul.f32 %v5989, %v5974
        %vm5991 = vweird.f32 %v421
        %v5992 = vand.u32 %v5975, 3
        %vm5993 = vcmp.lt.s32.totalorder %v5992, 2
        %vm5994 = vcmp.eq.s32.totalorder %v5992, 0
        %v5995 = vxor.u32 %v5990, 2147483648
        %v5996 = vsel %vm5994, %v5982, %v5995
        %vm5997 = vcmp.eq.s32.totalorder %v5992, 2
        %v5998 = vxor.u32 %v5982, 2147483648
        %v5999 = vsel %vm5997, %v5998, %v5990
        %v6000 = vsel %vm5993, %v5996, %v5999
        %v6001 = vsel %vm5991, nan, %v6000
        %v6002 = vand.u32 2147483647, %v422
        %vm6003 = vcmp.le.f32.partialorder %v6002, 0.7853982
        %vm6004 = vcmp.lt.s32.totalorder %v422, 0
        %v6005 = vand.u32 %v422, 2139095040
        %v6006 = vshrl.u32 %v6005, 23
        %v6007 = vsub.s32 %v6006, 127
        %v6008 = vand.u32 2147483647, %v422
        %v6009 = vand.u32 %v6008, 8388607
        %v6010 = vor.u32 %v6009, 8388608
        %v6011 = vsub.s32 0, %v6010
        %v6012 = vadd.s32 %v6007, 1
        %vm6013 = vcmp.gt.s32.totalorder %v6012, 0
        %v6014 = vsel %vm6013, %v6012, 0
        %v6015 = vshrl.u32 %v6014, 5
        %v6016 = vand.u32 %v6014, 31
        %v6017 = vsub.s32 32, %v6016
        %v6018 = vshrl.u32 683565275, %v6017
        %v6019 = vshll.u32 683565275, %v6016
        %v6020 = vshrl.u32 2475754826, %v6017
        %v6021 = vor.u32 %v6019, %v6020
        %v6022 = vshll.u32 2475754826, %v6016
        %v6023 = vshrl.u32 2131351028, %v6017
        %v6024 = vor.u32 %v6022, %v6023
        %v6025 = vshll.u32 2131351028, %v6016
        %v6026 = vshrl.u32 2102212464, %v6017
        %v6027 = vor.u32 %v6025, %v6026
        %v6028 = vshll.u32 2102212464, %v6016
        %v6029 = vshrl.u32 920167782, %v6017
        %v6030 = vor.u32 %v6028, %v6029
        %v6031 = vshll.u32 920167782, %v6016
        %v6032 = vshrl.u32 1326507024, %v6017
        %v6033 = vor.u32 %v6031, %v6032
        %vm6034 = vcmp.lt.s32.totalorder %v6015, 1
        %vm6035 = vcmp.lt.s32.totalorder %v6015, 2
        %vm6036 = vcmp.lt.s32.totalorder %v6015, 3
        %vm6037 = vcmp.lt.s32.totalorder %v6015, 4
        %v6038 = vsel %vm6034, %v6018, %v6021
        %v6039 = vsel %vm6037, %v6027, 2102212464
        %v6040 = vsel %vm6036, %v6024, %v6039
        %v6041 = vsel %vm6035, %v6038, %v6040
        %v6042 = vsel %vm6034, %v6021, %v6024
        %v6043 = vsel %vm6037, %v6030, 920167782
        %v6044 = vsel %vm6036, %v6027, %v6043
        %v6045 = vsel %vm6035, %v6042, %v6044
        %v6046 = vsel %vm6034, %v6024, %v6027
        %v6047 = vsel %vm6037, %v6033, 1326507024
        %v6048 = vsel %vm6036, %v6030, %v6047
        %v6049 = vsel %vm6035, %v6046, %v6048
        %v6050 = vshll.u32 %v6010, 8
        %v6051 = vand.u32 %v6050, 65535
        %v6052 = vshrl.u32 %v6050, 16
        %v6053 = vand.u32 %v6049, 65535
        %v6054 = vshrl.u32 %v6049, 16
        %v6055 = vmul.u32 %v6051, %v6053
        %v6056 = vmul.u32 %v6051, %v6054
        %v6057 = vmul.u32 %v6052, %v6053
        %v6058 = vmul.u32 %v6052, %v6054
        %v6059 = vshll.u32 %v6056, 16
        %v6060 = vshrl.u32 %v6056, 16
        %v6061 = vshll.u32 %v6057, 16
        %v6062 = vshrl.u32 %v6057, 16
        %vm6063 = vc.u32 %v6055, %v6059
        %v6064 = vsel %vm6063, 1, 0
        %v6065 = vadd.s32 %v6055, %v6059
        %v6066 = vadd.s32 %v6058, %v6064
        %vm6067 = vc.u32 %v6065, %v6061
        %v6068 = vsel %vm6067, 1, 0
        %v6069 = vadd.s32 %v6065, %v6061
        %v6070 = vadd.s32 %v6066, %v6068
        %v6071 = vadd.s32 %v6070, %v6060
        %v6072 = vadd.s32 %v6071, %v6062
        %v6073 = vand.u32 %v6050, 65535
        %v6074 = vshrl.u32 %v6050, 16
        %v6075 = vand.u32 %v6045, 65535
        %v6076 = vshrl.u32 %v6045, 16
        %v6077 = vmul.u32 %v6073, %v6075
        %v6078 = vmul.u32 %v6073, %v6076
        %v6079 = vmul.u32 %v6074, %v6075
        %v6080 = vmul.u32 %v6074, %v6076
        %v6081 = vshll.u32 %v6078, 16
        %v6082 = vshrl.u32 %v6078, 16
        %v6083 = vshll.u32 %v6079, 16
        %v6084 = vshrl.u32 %v6079, 16
        %vm6085 = vc.u32 %v6077, %v6081
        %v6086 = vsel %vm6085, 1, 0
        %v6087 = vadd.s32 %v6077, %v6081
        %v6088 = vadd.s32 %v6080, %v6086
        %vm6089 = vc.u32 %v6087, %v6083
        %v6090 = vsel %vm6089, 1, 0
        %v6091 = vadd.s32 %v6087, %v6083
        %v6092 = vadd.s32 %v6088, %v6090
        %v6093 = vadd.s32 %v6092, %v6082
        %v6094 = vadd.s32 %v6093, %v6084
        %v6095 = vmul.u32 %v6050, %v6041
        %v6096 = vadd.s32 %v6072, %v6091
        %vm6097 = vc.u32 %v6072, %v6091
        %v6098 = vadd.s32 %v6094, 1
        %v6099 = vsel %vm6097, %v6098, %v6094
        %v6100 = vadd.s32 %v6095, %v6099
        %v6101 = vadd.s32 %v6100, 536870912
        %v6102 = vshrl.u32 %v6101, 30
        %v6103 = vshll.u32 %v6102, 30
        %v6104 = vsub.s32 %v6100, %v6103
        %vm6105 = vcmp.lt.s32.totalorder %v6104, 0
        %v6106 = vsub.s32 0, %v6104
        %v6107 = vsel %vm6105, %v6106, %v6104
        %v6108 = vclz %v6107
        %v6109 = vsub.s32 %v6108, 2
        %vm6110 = vcmp.gt.s32.totalorder 0, %v6109
        %v6111 = vsel %vm6110, 0, %v6109
        %v6112 = vsub.s32 32, %v6111
        %v6113 = vshll.u32 %v6104, %v6111
        %v6114 = vshrl.u32 %v6096, %v6112
        %v6115 = vor.u32 %v6113, %v6114
        %v6116 = vsub.s32 4294967266, %v6111
        %v6117 = vadd.s32 %v6116, 127
        %v6118 = vshll.u32 %v6117, 23
        %v6119 = vor.u32 4788187, %v6118
        %v6120 = vand.u32 2147483647, %v6119
        %v6122 = vcvt.s32.f32 %v6115
        %v6123 = vmul.f32 %v6122, %v6120
        %v6124 = vxor.u32 %v6123, 2147483648
        %v6125 = vsel %vm6004, %v6124, %v6123
        %v6126 = vsub.s32 4, %v6102
        %v6127 = vsel %vm6004, %v6126, %v6102
        %v6128 = vsel %vm6003, %v422, %v6125
        %v6129 = vsel %vm6003, 0, %v6127
        %v6130 = vmul.f32 %v6128, %v6128
        %v6131 = vmul.f32 %v6130, -0.001358992
        %v6132 = vadd.f32 %v6131, 0.041655596
        %v6133 = vmul.f32 %v6130, %v6132
        %v6134 = vadd.f32 %v6133, -0.4999988
        %v6135 = vmul.f32 %v6130, %v6134
        %v6136 = vadd.f32 1.0, %v6135
        %v6137 = vmul.f32 %v6128, %v6128
        %v6138 = vmul.f32 %v6137, -0.00019511016
        %v6139 = vadd.f32 %v6138, 0.008332121
        %v6140 = vmul.f32 %v6137, %v6139
        %v6141 = vadd.f32 %v6140, -0.16666654
        %v6142 = vmul.f32 %v6137, %v6141
        %v6143 = vadd.f32 %v6142, 1.0
        %v6144 = vmul.f32 %v6143, %v6128
        %vm6145 = vweird.f32 %v422
        %v6146 = vand.u32 %v6129, 3
        %vm6147 = vcmp.lt.s32.totalorder %v6146, 2
        %vm6148 = vcmp.eq.s32.totalorder %v6146, 0
        %v6149 = vxor.u32 %v6144, 2147483648
        %v6150 = vsel %vm6148, %v6136, %v6149
        %vm6151 = vcmp.eq.s32.totalorder %v6146, 2
        %v6152 = vxor.u32 %v6136, 2147483648
        %v6153 = vsel %vm6151, %v6152, %v6144
        %v6154 = vsel %vm6147, %v6150, %v6153
        %v6155 = vsel %vm6145, nan, %v6154
        %v6156 = vand.u32 2147483647, %v423
        %vm6157 = vcmp.le.f32.partialorder %v6156, 0.7853982
        %vm6158 = vcmp.lt.s32.totalorder %v423, 0
        %v6159 = vand.u32 %v423, 2139095040
        %v6160 = vshrl.u32 %v6159, 23
        %v6161 = vsub.s32 %v6160, 127
        %v6162 = vand.u32 2147483647, %v423
        %v6163 = vand.u32 %v6162, 8388607
        %v6164 = vor.u32 %v6163, 8388608
        %v6165 = vsub.s32 0, %v6164
        %v6166 = vadd.s32 %v6161, 1
        %vm6167 = vcmp.gt.s32.totalorder %v6166, 0
        %v6168 = vsel %vm6167, %v6166, 0
        %v6169 = vshrl.u32 %v6168, 5
        %v6170 = vand.u32 %v6168, 31
        %v6171 = vsub.s32 32, %v6170
        %v6172 = vshrl.u32 683565275, %v6171
        %v6173 = vshll.u32 683565275, %v6170
        %v6174 = vshrl.u32 2475754826, %v6171
        %v6175 = vor.u32 %v6173, %v6174
        %v6176 = vshll.u32 2475754826, %v6170
        %v6177 = vshrl.u32 2131351028, %v6171
        %v6178 = vor.u32 %v6176, %v6177
        %v6179 = vshll.u32 2131351028, %v6170
        %v6180 = vshrl.u32 2102212464, %v6171
        %v6181 = vor.u32 %v6179, %v6180
        %v6182 = vshll.u32 2102212464, %v6170
        %v6183 = vshrl.u32 920167782, %v6171
        %v6184 = vor.u32 %v6182, %v6183
        %v6185 = vshll.u32 920167782, %v6170
        %v6186 = vshrl.u32 1326507024, %v6171
        %v6187 = vor.u32 %v6185, %v6186
        %vm6188 = vcmp.lt.s32.totalorder %v6169, 1
        %vm6189 = vcmp.lt.s32.totalorder %v6169, 2
        %vm6190 = vcmp.lt.s32.totalorder %v6169, 3
        %vm6191 = vcmp.lt.s32.totalorder %v6169, 4
        %v6192 = vsel %vm6188, %v6172, %v6175
        %v6193 = vsel %vm6191, %v6181, 2102212464
        %v6194 = vsel %vm6190, %v6178, %v6193
        %v6195 = vsel %vm6189, %v6192, %v6194
        %v6196 = vsel %vm6188, %v6175, %v6178
        %v6197 = vsel %vm6191, %v6184, 920167782
        %v6198 = vsel %vm6190, %v6181, %v6197
        %v6199 = vsel %vm6189, %v6196, %v6198
        %v6200 = vsel %vm6188, %v6178, %v6181
        %v6201 = vsel %vm6191, %v6187, 1326507024
        %v6202 = vsel %vm6190, %v6184, %v6201
        %v6203 = vsel %vm6189, %v6200, %v6202
        %v6204 = vshll.u32 %v6164, 8
        %v6205 = vand.u32 %v6204, 65535
        %v6206 = vshrl.u32 %v6204, 16
        %v6207 = vand.u32 %v6203, 65535
        %v6208 = vshrl.u32 %v6203, 16
        %v6209 = vmul.u32 %v6205, %v6207
        %v6210 = vmul.u32 %v6205, %v6208
        %v6211 = vmul.u32 %v6206, %v6207
        %v6212 = vmul.u32 %v6206, %v6208
        %v6213 = vshll.u32 %v6210, 16
        %v6214 = vshrl.u32 %v6210, 16
        %v6215 = vshll.u32 %v6211, 16
        %v6216 = vshrl.u32 %v6211, 16
        %vm6217 = vc.u32 %v6209, %v6213
        %v6218 = vsel %vm6217, 1, 0
        %v6219 = vadd.s32 %v6209, %v6213
        %v6220 = vadd.s32 %v6212, %v6218
        %vm6221 = vc.u32 %v6219, %v6215
        %v6222 = vsel %vm6221, 1, 0
        %v6223 = vadd.s32 %v6219, %v6215
        %v6224 = vadd.s32 %v6220, %v6222
        %v6225 = vadd.s32 %v6224, %v6214
        %v6226 = vadd.s32 %v6225, %v6216
        %v6227 = vand.u32 %v6204, 65535
        %v6228 = vshrl.u32 %v6204, 16
        %v6229 = vand.u32 %v6199, 65535
        %v6230 = vshrl.u32 %v6199, 16
        %v6231 = vmul.u32 %v6227, %v6229
        %v6232 = vmul.u32 %v6227, %v6230
        %v6233 = vmul.u32 %v6228, %v6229
        %v6234 = vmul.u32 %v6228, %v6230
        %v6235 = vshll.u32 %v6232, 16
        %v6236 = vshrl.u32 %v6232, 16
        %v6237 = vshll.u32 %v6233, 16
        %v6238 = vshrl.u32 %v6233, 16
        %vm6239 = vc.u32 %v6231, %v6235
        %v6240 = vsel %vm6239, 1, 0
        %v6241 = vadd.s32 %v6231, %v6235
        %v6242 = vadd.s32 %v6234, %v6240
        %vm6243 = vc.u32 %v6241, %v6237
        %v6244 = vsel %vm6243, 1, 0
        %v6245 = vadd.s32 %v6241, %v6237
        %v6246 = vadd.s32 %v6242, %v6244
        %v6247 = vadd.s32 %v6246, %v6236
        %v6248 = vadd.s32 %v6247, %v6238
        %v6249 = vmul.u32 %v6204, %v6195
        %v6250 = vadd.s32 %v6226, %v6245
        %vm6251 = vc.u32 %v6226, %v6245
        %v6252 = vadd.s32 %v6248, 1
        %v6253 = vsel %vm6251, %v6252, %v6248
        %v6254 = vadd.s32 %v6249, %v6253
        %v6255 = vadd.s32 %v6254, 536870912
        %v6256 = vshrl.u32 %v6255, 30
        %v6257 = vshll.u32 %v6256, 30
        %v6258 = vsub.s32 %v6254, %v6257
        %vm6259 = vcmp.lt.s32.totalorder %v6258, 0
        %v6260 = vsub.s32 0, %v6258
        %v6261 = vsel %vm6259, %v6260, %v6258
        %v6262 = vclz %v6261
        %v6263 = vsub.s32 %v6262, 2
        %vm6264 = vcmp.gt.s32.totalorder 0, %v6263
        %v6265 = vsel %vm6264, 0, %v6263
        %v6266 = vsub.s32 32, %v6265
        %v6267 = vshll.u32 %v6258, %v6265
        %v6268 = vshrl.u32 %v6250, %v6266
        %v6269 = vor.u32 %v6267, %v6268
        %v6270 = vsub.s32 4294967266, %v6265
        %v6271 = vadd.s32 %v6270, 127
        %v6272 = vshll.u32 %v6271, 23
        %v6273 = vor.u32 4788187, %v6272
        %v6274 = vand.u32 2147483647, %v6273
        %v6276 = vcvt.s32.f32 %v6269
        %v6277 = vmul.f32 %v6276, %v6274
        %v6278 = vxor.u32 %v6277, 2147483648
        %v6279 = vsel %vm6158, %v6278, %v6277
        %v6280 = vsub.s32 4, %v6256
        %v6281 = vsel %vm6158, %v6280, %v6256
        %v6282 = vsel %vm6157, %v423, %v6279
        %v6283 = vsel %vm6157, 0, %v6281
        %v6284 = vmul.f32 %v6282, %v6282
        %v6285 = vmul.f32 %v6284, -0.001358992
        %v6286 = vadd.f32 %v6285, 0.041655596
        %v6287 = vmul.f32 %v6284, %v6286
        %v6288 = vadd.f32 %v6287, -0.4999988
        %v6289 = vmul.f32 %v6284, %v6288
        %v6290 = vadd.f32 1.0, %v6289
        %v6291 = vmul.f32 %v6282, %v6282
        %v6292 = vmul.f32 %v6291, -0.00019511016
        %v6293 = vadd.f32 %v6292, 0.008332121
        %v6294 = vmul.f32 %v6291, %v6293
        %v6295 = vadd.f32 %v6294, -0.16666654
        %v6296 = vmul.f32 %v6291, %v6295
        %v6297 = vadd.f32 %v6296, 1.0
        %v6298 = vmul.f32 %v6297, %v6282
        %vm6299 = vweird.f32 %v423
        %v6300 = vand.u32 %v6283, 3
        %vm6301 = vcmp.lt.s32.totalorder %v6300, 2
        %vm6302 = vcmp.eq.s32.totalorder %v6300, 0
        %v6303 = vxor.u32 %v6298, 2147483648
        %v6304 = vsel %vm6302, %v6290, %v6303
        %vm6305 = vcmp.eq.s32.totalorder %v6300, 2
        %v6306 = vxor.u32 %v6290, 2147483648
        %v6307 = vsel %vm6305, %v6306, %v6298
        %v6308 = vsel %vm6301, %v6304, %v6307
        %v6309 = vsel %vm6299, nan, %v6308
        %v6310 = vand.u32 2147483647, %v424
        %vm6311 = vcmp.le.f32.partialorder %v6310, 0.7853982
        %vm6312 = vcmp.lt.s32.totalorder %v424, 0
        %v6313 = vand.u32 %v424, 2139095040
        %v6314 = vshrl.u32 %v6313, 23
        %v6315 = vsub.s32 %v6314, 127
        %v6316 = vand.u32 2147483647, %v424
        %v6317 = vand.u32 %v6316, 8388607
        %v6318 = vor.u32 %v6317, 8388608
        %v6319 = vsub.s32 0, %v6318
        %v6320 = vadd.s32 %v6315, 1
        %vm6321 = vcmp.gt.s32.totalorder %v6320, 0
        %v6322 = vsel %vm6321, %v6320, 0
        %v6323 = vshrl.u32 %v6322, 5
        %v6324 = vand.u32 %v6322, 31
        %v6325 = vsub.s32 32, %v6324
        %v6326 = vshrl.u32 683565275, %v6325
        %v6327 = vshll.u32 683565275, %v6324
        %v6328 = vshrl.u32 2475754826, %v6325
        %v6329 = vor.u32 %v6327, %v6328
        %v6330 = vshll.u32 2475754826, %v6324
        %v6331 = vshrl.u32 2131351028, %v6325
        %v6332 = vor.u32 %v6330, %v6331
        %v6333 = vshll.u32 2131351028, %v6324
        %v6334 = vshrl.u32 2102212464, %v6325
        %v6335 = vor.u32 %v6333, %v6334
        %v6336 = vshll.u32 2102212464, %v6324
        %v6337 = vshrl.u32 920167782, %v6325
        %v6338 = vor.u32 %v6336, %v6337
        %v6339 = vshll.u32 920167782, %v6324
        %v6340 = vshrl.u32 1326507024, %v6325
        %v6341 = vor.u32 %v6339, %v6340
        %vm6342 = vcmp.lt.s32.totalorder %v6323, 1
        %vm6343 = vcmp.lt.s32.totalorder %v6323, 2
        %vm6344 = vcmp.lt.s32.totalorder %v6323, 3
        %vm6345 = vcmp.lt.s32.totalorder %v6323, 4
        %v6346 = vsel %vm6342, %v6326, %v6329
        %v6347 = vsel %vm6345, %v6335, 2102212464
        %v6348 = vsel %vm6344, %v6332, %v6347
        %v6349 = vsel %vm6343, %v6346, %v6348
        %v6350 = vsel %vm6342, %v6329, %v6332
        %v6351 = vsel %vm6345, %v6338, 920167782
        %v6352 = vsel %vm6344, %v6335, %v6351
        %v6353 = vsel %vm6343, %v6350, %v6352
        %v6354 = vsel %vm6342, %v6332, %v6335
        %v6355 = vsel %vm6345, %v6341, 1326507024
        %v6356 = vsel %vm6344, %v6338, %v6355
        %v6357 = vsel %vm6343, %v6354, %v6356
        %v6358 = vshll.u32 %v6318, 8
        %v6359 = vand.u32 %v6358, 65535
        %v6360 = vshrl.u32 %v6358, 16
        %v6361 = vand.u32 %v6357, 65535
        %v6362 = vshrl.u32 %v6357, 16
        %v6363 = vmul.u32 %v6359, %v6361
        %v6364 = vmul.u32 %v6359, %v6362
        %v6365 = vmul.u32 %v6360, %v6361
        %v6366 = vmul.u32 %v6360, %v6362
        %v6367 = vshll.u32 %v6364, 16
        %v6368 = vshrl.u32 %v6364, 16
        %v6369 = vshll.u32 %v6365, 16
        %v6370 = vshrl.u32 %v6365, 16
        %vm6371 = vc.u32 %v6363, %v6367
        %v6372 = vsel %vm6371, 1, 0
        %v6373 = vadd.s32 %v6363, %v6367
        %v6374 = vadd.s32 %v6366, %v6372
        %vm6375 = vc.u32 %v6373, %v6369
        %v6376 = vsel %vm6375, 1, 0
        %v6377 = vadd.s32 %v6373, %v6369
        %v6378 = vadd.s32 %v6374, %v6376
        %v6379 = vadd.s32 %v6378, %v6368
        %v6380 = vadd.s32 %v6379, %v6370
        %v6381 = vand.u32 %v6358, 65535
        %v6382 = vshrl.u32 %v6358, 16
        %v6383 = vand.u32 %v6353, 65535
        %v6384 = vshrl.u32 %v6353, 16
        %v6385 = vmul.u32 %v6381, %v6383
        %v6386 = vmul.u32 %v6381, %v6384
        %v6387 = vmul.u32 %v6382, %v6383
        %v6388 = vmul.u32 %v6382, %v6384
        %v6389 = vshll.u32 %v6386, 16
        %v6390 = vshrl.u32 %v6386, 16
        %v6391 = vshll.u32 %v6387, 16
        %v6392 = vshrl.u32 %v6387, 16
        %vm6393 = vc.u32 %v6385, %v6389
        %v6394 = vsel %vm6393, 1, 0
        %v6395 = vadd.s32 %v6385, %v6389
        %v6396 = vadd.s32 %v6388, %v6394
        %vm6397 = vc.u32 %v6395, %v6391
        %v6398 = vsel %vm6397, 1, 0
        %v6399 = vadd.s32 %v6395, %v6391
        %v6400 = vadd.s32 %v6396, %v6398
        %v6401 = vadd.s32 %v6400, %v6390
        %v6402 = vadd.s32 %v6401, %v6392
        %v6403 = vmul.u32 %v6358, %v6349
        %v6404 = vadd.s32 %v6380, %v6399
        %vm6405 = vc.u32 %v6380, %v6399
        %v6406 = vadd.s32 %v6402, 1
        %v6407 = vsel %vm6405, %v6406, %v6402
        %v6408 = vadd.s32 %v6403, %v6407
        %v6409 = vadd.s32 %v6408, 536870912
        %v6410 = vshrl.u32 %v6409, 30
        %v6411 = vshll.u32 %v6410, 30
        %v6412 = vsub.s32 %v6408, %v6411
        %vm6413 = vcmp.lt.s32.totalorder %v6412, 0
        %v6414 = vsub.s32 0, %v6412
        %v6415 = vsel %vm6413, %v6414, %v6412
        %v6416 = vclz %v6415
        %v6417 = vsub.s32 %v6416, 2
        %vm6418 = vcmp.gt.s32.totalorder 0, %v6417
        %v6419 = vsel %vm6418, 0, %v6417
        %v6420 = vsub.s32 32, %v6419
        %v6421 = vshll.u32 %v6412, %v6419
        %v6422 = vshrl.u32 %v6404, %v6420
        %v6423 = vor.u32 %v6421, %v6422
        %v6424 = vsub.s32 4294967266, %v6419
        %v6425 = vadd.s32 %v6424, 127
        %v6426 = vshll.u32 %v6425, 23
        %v6427 = vor.u32 4788187, %v6426
        %v6428 = vand.u32 2147483647, %v6427
        %v6430 = vcvt.s32.f32 %v6423
        %v6431 = vmul.f32 %v6430, %v6428
        %v6432 = vxor.u32 %v6431, 2147483648
        %v6433 = vsel %vm6312, %v6432, %v6431
        %v6434 = vsub.s32 4, %v6410
        %v6435 = vsel %vm6312, %v6434, %v6410
        %v6436 = vsel %vm6311, %v424, %v6433
        %v6437 = vsel %vm6311, 0, %v6435
        %v6438 = vmul.f32 %v6436, %v6436
        %v6439 = vmul.f32 %v6438, -0.001358992
        %v6440 = vadd.f32 %v6439, 0.041655596
        %v6441 = vmul.f32 %v6438, %v6440
        %v6442 = vadd.f32 %v6441, -0.4999988
        %v6443 = vmul.f32 %v6438, %v6442
        %v6444 = vadd.f32 1.0, %v6443
        %v6445 = vmul.f32 %v6436, %v6436
        %v6446 = vmul.f32 %v6445, -0.00019511016
        %v6447 = vadd.f32 %v6446, 0.008332121
        %v6448 = vmul.f32 %v6445, %v6447
        %v6449 = vadd.f32 %v6448, -0.16666654
        %v6450 = vmul.f32 %v6445, %v6449
        %v6451 = vadd.f32 %v6450, 1.0
        %v6452 = vmul.f32 %v6451, %v6436
        %vm6453 = vweird.f32 %v424
        %v6454 = vand.u32 %v6437, 3
        %vm6455 = vcmp.lt.s32.totalorder %v6454, 2
        %vm6456 = vcmp.eq.s32.totalorder %v6454, 0
        %v6457 = vxor.u32 %v6452, 2147483648
        %v6458 = vsel %vm6456, %v6444, %v6457
        %vm6459 = vcmp.eq.s32.totalorder %v6454, 2
        %v6460 = vxor.u32 %v6444, 2147483648
        %v6461 = vsel %vm6459, %v6460, %v6452
        %v6462 = vsel %vm6455, %v6458, %v6461
        %v6463 = vsel %vm6453, nan, %v6462
        %v6464 = vand.u32 2147483647, %v425
        %vm6465 = vcmp.le.f32.partialorder %v6464, 0.7853982
        %vm6466 = vcmp.lt.s32.totalorder %v425, 0
        %v6467 = vand.u32 %v425, 2139095040
        %v6468 = vshrl.u32 %v6467, 23
        %v6469 = vsub.s32 %v6468, 127
        %v6470 = vand.u32 2147483647, %v425
        %v6471 = vand.u32 %v6470, 8388607
        %v6472 = vor.u32 %v6471, 8388608
        %v6473 = vsub.s32 0, %v6472
        %v6474 = vadd.s32 %v6469, 1
        %vm6475 = vcmp.gt.s32.totalorder %v6474, 0
        %v6476 = vsel %vm6475, %v6474, 0
        %v6477 = vshrl.u32 %v6476, 5
        %v6478 = vand.u32 %v6476, 31
        %v6479 = vsub.s32 32, %v6478
        %v6480 = vshrl.u32 683565275, %v6479
        %v6481 = vshll.u32 683565275, %v6478
        %v6482 = vshrl.u32 2475754826, %v6479
        %v6483 = vor.u32 %v6481, %v6482
        %v6484 = vshll.u32 2475754826, %v6478
        %v6485 = vshrl.u32 2131351028, %v6479
        %v6486 = vor.u32 %v6484, %v6485
        %v6487 = vshll.u32 2131351028, %v6478
        %v6488 = vshrl.u32 2102212464, %v6479
        %v6489 = vor.u32 %v6487, %v6488
        %v6490 = vshll.u32 2102212464, %v6478
        %v6491 = vshrl.u32 920167782, %v6479
        %v6492 = vor.u32 %v6490, %v6491
        %v6493 = vshll.u32 920167782, %v6478
        %v6494 = vshrl.u32 1326507024, %v6479
        %v6495 = vor.u32 %v6493, %v6494
        %vm6496 = vcmp.lt.s32.totalorder %v6477, 1
        %vm6497 = vcmp.lt.s32.totalorder %v6477, 2
        %vm6498 = vcmp.lt.s32.totalorder %v6477, 3
        %vm6499 = vcmp.lt.s32.totalorder %v6477, 4
        %v6500 = vsel %vm6496, %v6480, %v6483
        %v6501 = vsel %vm6499, %v6489, 2102212464
        %v6502 = vsel %vm6498, %v6486, %v6501
        %v6503 = vsel %vm6497, %v6500, %v6502
        %v6504 = vsel %vm6496, %v6483, %v6486
        %v6505 = vsel %vm6499, %v6492, 920167782
        %v6506 = vsel %vm6498, %v6489, %v6505
        %v6507 = vsel %vm6497, %v6504, %v6506
        %v6508 = vsel %vm6496, %v6486, %v6489
        %v6509 = vsel %vm6499, %v6495, 1326507024
        %v6510 = vsel %vm6498, %v6492, %v6509
        %v6511 = vsel %vm6497, %v6508, %v6510
        %v6512 = vshll.u32 %v6472, 8
        %v6513 = vand.u32 %v6512, 65535
        %v6514 = vshrl.u32 %v6512, 16
        %v6515 = vand.u32 %v6511, 65535
        %v6516 = vshrl.u32 %v6511, 16
        %v6517 = vmul.u32 %v6513, %v6515
        %v6518 = vmul.u32 %v6513, %v6516
        %v6519 = vmul.u32 %v6514, %v6515
        %v6520 = vmul.u32 %v6514, %v6516
        %v6521 = vshll.u32 %v6518, 16
        %v6522 = vshrl.u32 %v6518, 16
        %v6523 = vshll.u32 %v6519, 16
        %v6524 = vshrl.u32 %v6519, 16
        %vm6525 = vc.u32 %v6517, %v6521
        %v6526 = vsel %vm6525, 1, 0
        %v6527 = vadd.s32 %v6517, %v6521
        %v6528 = vadd.s32 %v6520, %v6526
        %vm6529 = vc.u32 %v6527, %v6523
        %v6530 = vsel %vm6529, 1, 0
        %v6531 = vadd.s32 %v6527, %v6523
        %v6532 = vadd.s32 %v6528, %v6530
        %v6533 = vadd.s32 %v6532, %v6522
        %v6534 = vadd.s32 %v6533, %v6524
        %v6535 = vand.u32 %v6512, 65535
        %v6536 = vshrl.u32 %v6512, 16
        %v6537 = vand.u32 %v6507, 65535
        %v6538 = vshrl.u32 %v6507, 16
        %v6539 = vmul.u32 %v6535, %v6537
        %v6540 = vmul.u32 %v6535, %v6538
        %v6541 = vmul.u32 %v6536, %v6537
        %v6542 = vmul.u32 %v6536, %v6538
        %v6543 = vshll.u32 %v6540, 16
        %v6544 = vshrl.u32 %v6540, 16
        %v6545 = vshll.u32 %v6541, 16
        %v6546 = vshrl.u32 %v6541, 16
        %vm6547 = vc.u32 %v6539, %v6543
        %v6548 = vsel %vm6547, 1, 0
        %v6549 = vadd.s32 %v6539, %v6543
        %v6550 = vadd.s32 %v6542, %v6548
        %vm6551 = vc.u32 %v6549, %v6545
        %v6552 = vsel %vm6551, 1, 0
        %v6553 = vadd.s32 %v6549, %v6545
        %v6554 = vadd.s32 %v6550, %v6552
        %v6555 = vadd.s32 %v6554, %v6544
        %v6556 = vadd.s32 %v6555, %v6546
        %v6557 = vmul.u32 %v6512, %v6503
        %v6558 = vadd.s32 %v6534, %v6553
        %vm6559 = vc.u32 %v6534, %v6553
        %v6560 = vadd.s32 %v6556, 1
        %v6561 = vsel %vm6559, %v6560, %v6556
        %v6562 = vadd.s32 %v6557, %v6561
        %v6563 = vadd.s32 %v6562, 536870912
        %v6564 = vshrl.u32 %v6563, 30
        %v6565 = vshll.u32 %v6564, 30
        %v6566 = vsub.s32 %v6562, %v6565
        %vm6567 = vcmp.lt.s32.totalorder %v6566, 0
        %v6568 = vsub.s32 0, %v6566
        %v6569 = vsel %vm6567, %v6568, %v6566
        %v6570 = vclz %v6569
        %v6571 = vsub.s32 %v6570, 2
        %vm6572 = vcmp.gt.s32.totalorder 0, %v6571
        %v6573 = vsel %vm6572, 0, %v6571
        %v6574 = vsub.s32 32, %v6573
        %v6575 = vshll.u32 %v6566, %v6573
        %v6576 = vshrl.u32 %v6558, %v6574
        %v6577 = vor.u32 %v6575, %v6576
        %v6578 = vsub.s32 4294967266, %v6573
        %v6579 = vadd.s32 %v6578, 127
        %v6580 = vshll.u32 %v6579, 23
        %v6581 = vor.u32 4788187, %v6580
        %v6582 = vand.u32 2147483647, %v6581
        %v6584 = vcvt.s32.f32 %v6577
        %v6585 = vmul.f32 %v6584, %v6582
        %v6586 = vxor.u32 %v6585, 2147483648
        %v6587 = vsel %vm6466, %v6586, %v6585
        %v6588 = vsub.s32 4, %v6564
        %v6589 = vsel %vm6466, %v6588, %v6564
        %v6590 = vsel %vm6465, %v425, %v6587
        %v6591 = vsel %vm6465, 0, %v6589
        %v6592 = vmul.f32 %v6590, %v6590
        %v6593 = vmul.f32 %v6592, -0.001358992
        %v6594 = vadd.f32 %v6593, 0.041655596
        %v6595 = vmul.f32 %v6592, %v6594
        %v6596 = vadd.f32 %v6595, -0.4999988
        %v6597 = vmul.f32 %v6592, %v6596
        %v6598 = vadd.f32 1.0, %v6597
        %v6599 = vmul.f32 %v6590, %v6590
        %v6600 = vmul.f32 %v6599, -0.00019511016
        %v6601 = vadd.f32 %v6600, 0.008332121
        %v6602 = vmul.f32 %v6599, %v6601
        %v6603 = vadd.f32 %v6602, -0.16666654
        %v6604 = vmul.f32 %v6599, %v6603
        %v6605 = vadd.f32 %v6604, 1.0
        %v6606 = vmul.f32 %v6605, %v6590
        %vm6607 = vweird.f32 %v425
        %v6608 = vand.u32 %v6591, 3
        %vm6609 = vcmp.lt.s32.totalorder %v6608, 2
        %vm6610 = vcmp.eq.s32.totalorder %v6608, 0
        %v6611 = vxor.u32 %v6606, 2147483648
        %v6612 = vsel %vm6610, %v6598, %v6611
        %vm6613 = vcmp.eq.s32.totalorder %v6608, 2
        %v6614 = vxor.u32 %v6598, 2147483648
        %v6615 = vsel %vm6613, %v6614, %v6606
        %v6616 = vsel %vm6609, %v6612, %v6615
        %v6617 = vsel %vm6607, nan, %v6616
        %v6618 = vand.u32 2147483647, %v426
        %vm6619 = vcmp.le.f32.partialorder %v6618, 0.7853982
        %vm6620 = vcmp.lt.s32.totalorder %v426, 0
        %v6621 = vand.u32 %v426, 2139095040
        %v6622 = vshrl.u32 %v6621, 23
        %v6623 = vsub.s32 %v6622, 127
        %v6624 = vand.u32 2147483647, %v426
        %v6625 = vand.u32 %v6624, 8388607
        %v6626 = vor.u32 %v6625, 8388608
        %v6627 = vsub.s32 0, %v6626
        %v6628 = vadd.s32 %v6623, 1
        %vm6629 = vcmp.gt.s32.totalorder %v6628, 0
        %v6630 = vsel %vm6629, %v6628, 0
        %v6631 = vshrl.u32 %v6630, 5
        %v6632 = vand.u32 %v6630, 31
        %v6633 = vsub.s32 32, %v6632
        %v6634 = vshrl.u32 683565275, %v6633
        %v6635 = vshll.u32 683565275, %v6632
        %v6636 = vshrl.u32 2475754826, %v6633
        %v6637 = vor.u32 %v6635, %v6636
        %v6638 = vshll.u32 2475754826, %v6632
        %v6639 = vshrl.u32 2131351028, %v6633
        %v6640 = vor.u32 %v6638, %v6639
        %v6641 = vshll.u32 2131351028, %v6632
        %v6642 = vshrl.u32 2102212464, %v6633
        %v6643 = vor.u32 %v6641, %v6642
        %v6644 = vshll.u32 2102212464, %v6632
        %v6645 = vshrl.u32 920167782, %v6633
        %v6646 = vor.u32 %v6644, %v6645
        %v6647 = vshll.u32 920167782, %v6632
        %v6648 = vshrl.u32 1326507024, %v6633
        %v6649 = vor.u32 %v6647, %v6648
        %vm6650 = vcmp.lt.s32.totalorder %v6631, 1
        %vm6651 = vcmp.lt.s32.totalorder %v6631, 2
        %vm6652 = vcmp.lt.s32.totalorder %v6631, 3
        %vm6653 = vcmp.lt.s32.totalorder %v6631, 4
        %v6654 = vsel %vm6650, %v6634, %v6637
        %v6655 = vsel %vm6653, %v6643, 2102212464
        %v6656 = vsel %vm6652, %v6640, %v6655
        %v6657 = vsel %vm6651, %v6654, %v6656
        %v6658 = vsel %vm6650, %v6637, %v6640
        %v6659 = vsel %vm6653, %v6646, 920167782
        %v6660 = vsel %vm6652, %v6643, %v6659
        %v6661 = vsel %vm6651, %v6658, %v6660
        %v6662 = vsel %vm6650, %v6640, %v6643
        %v6663 = vsel %vm6653, %v6649, 1326507024
        %v6664 = vsel %vm6652, %v6646, %v6663
        %v6665 = vsel %vm6651, %v6662, %v6664
        %v6666 = vshll.u32 %v6626, 8
        %v6667 = vand.u32 %v6666, 65535
        %v6668 = vshrl.u32 %v6666, 16
        %v6669 = vand.u32 %v6665, 65535
        %v6670 = vshrl.u32 %v6665, 16
        %v6671 = vmul.u32 %v6667, %v6669
        %v6672 = vmul.u32 %v6667, %v6670
        %v6673 = vmul.u32 %v6668, %v6669
        %v6674 = vmul.u32 %v6668, %v6670
        %v6675 = vshll.u32 %v6672, 16
        %v6676 = vshrl.u32 %v6672, 16
        %v6677 = vshll.u32 %v6673, 16
        %v6678 = vshrl.u32 %v6673, 16
        %vm6679 = vc.u32 %v6671, %v6675
        %v6680 = vsel %vm6679, 1, 0
        %v6681 = vadd.s32 %v6671, %v6675
        %v6682 = vadd.s32 %v6674, %v6680
        %vm6683 = vc.u32 %v6681, %v6677
        %v6684 = vsel %vm6683, 1, 0
        %v6685 = vadd.s32 %v6681, %v6677
        %v6686 = vadd.s32 %v6682, %v6684
        %v6687 = vadd.s32 %v6686, %v6676
        %v6688 = vadd.s32 %v6687, %v6678
        %v6689 = vand.u32 %v6666, 65535
        %v6690 = vshrl.u32 %v6666, 16
        %v6691 = vand.u32 %v6661, 65535
        %v6692 = vshrl.u32 %v6661, 16
        %v6693 = vmul.u32 %v6689, %v6691
        %v6694 = vmul.u32 %v6689, %v6692
        %v6695 = vmul.u32 %v6690, %v6691
        %v6696 = vmul.u32 %v6690, %v6692
        %v6697 = vshll.u32 %v6694, 16
        %v6698 = vshrl.u32 %v6694, 16
        %v6699 = vshll.u32 %v6695, 16
        %v6700 = vshrl.u32 %v6695, 16
        %vm6701 = vc.u32 %v6693, %v6697
        %v6702 = vsel %vm6701, 1, 0
        %v6703 = vadd.s32 %v6693, %v6697
        %v6704 = vadd.s32 %v6696, %v6702
        %vm6705 = vc.u32 %v6703, %v6699
        %v6706 = vsel %vm6705, 1, 0
        %v6707 = vadd.s32 %v6703, %v6699
        %v6708 = vadd.s32 %v6704, %v6706
        %v6709 = vadd.s32 %v6708, %v6698
        %v6710 = vadd.s32 %v6709, %v6700
        %v6711 = vmul.u32 %v6666, %v6657
        %v6712 = vadd.s32 %v6688, %v6707
        %vm6713 = vc.u32 %v6688, %v6707
        %v6714 = vadd.s32 %v6710, 1
        %v6715 = vsel %vm6713, %v6714, %v6710
        %v6716 = vadd.s32 %v6711, %v6715
        %v6717 = vadd.s32 %v6716, 536870912
        %v6718 = vshrl.u32 %v6717, 30
        %v6719 = vshll.u32 %v6718, 30
        %v6720 = vsub.s32 %v6716, %v6719
        %vm6721 = vcmp.lt.s32.totalorder %v6720, 0
        %v6722 = vsub.s32 0, %v6720
        %v6723 = vsel %vm6721, %v6722, %v6720
        %v6724 = vclz %v6723
        %v6725 = vsub.s32 %v6724, 2
        %vm6726 = vcmp.gt.s32.totalorder 0, %v6725
        %v6727 = vsel %vm6726, 0, %v6725
        %v6728 = vsub.s32 32, %v6727
        %v6729 = vshll.u32 %v6720, %v6727
        %v6730 = vshrl.u32 %v6712, %v6728
        %v6731 = vor.u32 %v6729, %v6730
        %v6732 = vsub.s32 4294967266, %v6727
        %v6733 = vadd.s32 %v6732, 127
        %v6734 = vshll.u32 %v6733, 23
        %v6735 = vor.u32 4788187, %v6734
        %v6736 = vand.u32 2147483647, %v6735
        %v6738 = vcvt.s32.f32 %v6731
        %v6739 = vmul.f32 %v6738, %v6736
        %v6740 = vxor.u32 %v6739, 2147483648
        %v6741 = vsel %vm6620, %v6740, %v6739
        %v6742 = vsub.s32 4, %v6718
        %v6743 = vsel %vm6620, %v6742, %v6718
        %v6744 = vsel %vm6619, %v426, %v6741
        %v6745 = vsel %vm6619, 0, %v6743
        %v6746 = vmul.f32 %v6744, %v6744
        %v6747 = vmul.f32 %v6746, -0.001358992
        %v6748 = vadd.f32 %v6747, 0.041655596
        %v6749 = vmul.f32 %v6746, %v6748
        %v6750 = vadd.f32 %v6749, -0.4999988
        %v6751 = vmul.f32 %v6746, %v6750
        %v6752 = vadd.f32 1.0, %v6751
        %v6753 = vmul.f32 %v6744, %v6744
        %v6754 = vmul.f32 %v6753, -0.00019511016
        %v6755 = vadd.f32 %v6754, 0.008332121
        %v6756 = vmul.f32 %v6753, %v6755
        %v6757 = vadd.f32 %v6756, -0.16666654
        %v6758 = vmul.f32 %v6753, %v6757
        %v6759 = vadd.f32 %v6758, 1.0
        %v6760 = vmul.f32 %v6759, %v6744
        %vm6761 = vweird.f32 %v426
        %v6762 = vand.u32 %v6745, 3
        %vm6763 = vcmp.lt.s32.totalorder %v6762, 2
        %vm6764 = vcmp.eq.s32.totalorder %v6762, 0
        %v6765 = vxor.u32 %v6760, 2147483648
        %v6766 = vsel %vm6764, %v6752, %v6765
        %vm6767 = vcmp.eq.s32.totalorder %v6762, 2
        %v6768 = vxor.u32 %v6752, 2147483648
        %v6769 = vsel %vm6767, %v6768, %v6760
        %v6770 = vsel %vm6763, %v6766, %v6769
        %v6771 = vsel %vm6761, nan, %v6770
        %v6772 = vand.u32 2147483647, %v427
        %vm6773 = vcmp.le.f32.partialorder %v6772, 0.7853982
        %vm6774 = vcmp.lt.s32.totalorder %v427, 0
        %v6775 = vand.u32 %v427, 2139095040
        %v6776 = vshrl.u32 %v6775, 23
        %v6777 = vsub.s32 %v6776, 127
        %v6778 = vand.u32 2147483647, %v427
        %v6779 = vand.u32 %v6778, 8388607
        %v6780 = vor.u32 %v6779, 8388608
        %v6781 = vsub.s32 0, %v6780
        %v6782 = vadd.s32 %v6777, 1
        %vm6783 = vcmp.gt.s32.totalorder %v6782, 0
        %v6784 = vsel %vm6783, %v6782, 0
        %v6785 = vshrl.u32 %v6784, 5
        %v6786 = vand.u32 %v6784, 31
        %v6787 = vsub.s32 32, %v6786
        %v6788 = vshrl.u32 683565275, %v6787
        %v6789 = vshll.u32 683565275, %v6786
        %v6790 = vshrl.u32 2475754826, %v6787
        %v6791 = vor.u32 %v6789, %v6790
        %v6792 = vshll.u32 2475754826, %v6786
        %v6793 = vshrl.u32 2131351028, %v6787
        %v6794 = vor.u32 %v6792, %v6793
        %v6795 = vshll.u32 2131351028, %v6786
        %v6796 = vshrl.u32 2102212464, %v6787
        %v6797 = vor.u32 %v6795, %v6796
        %v6798 = vshll.u32 2102212464, %v6786
        %v6799 = vshrl.u32 920167782, %v6787
        %v6800 = vor.u32 %v6798, %v6799
        %v6801 = vshll.u32 920167782, %v6786
        %v6802 = vshrl.u32 1326507024, %v6787
        %v6803 = vor.u32 %v6801, %v6802
        %vm6804 = vcmp.lt.s32.totalorder %v6785, 1
        %vm6805 = vcmp.lt.s32.totalorder %v6785, 2
        %vm6806 = vcmp.lt.s32.totalorder %v6785, 3
        %vm6807 = vcmp.lt.s32.totalorder %v6785, 4
        %v6808 = vsel %vm6804, %v6788, %v6791
        %v6809 = vsel %vm6807, %v6797, 2102212464
        %v6810 = vsel %vm6806, %v6794, %v6809
        %v6811 = vsel %vm6805, %v6808, %v6810
        %v6812 = vsel %vm6804, %v6791, %v6794
        %v6813 = vsel %vm6807, %v6800, 920167782
        %v6814 = vsel %vm6806, %v6797, %v6813
        %v6815 = vsel %vm6805, %v6812, %v6814
        %v6816 = vsel %vm6804, %v6794, %v6797
        %v6817 = vsel %vm6807, %v6803, 1326507024
        %v6818 = vsel %vm6806, %v6800, %v6817
        %v6819 = vsel %vm6805, %v6816, %v6818
        %v6820 = vshll.u32 %v6780, 8
        %v6821 = vand.u32 %v6820, 65535
        %v6822 = vshrl.u32 %v6820, 16
        %v6823 = vand.u32 %v6819, 65535
        %v6824 = vshrl.u32 %v6819, 16
        %v6825 = vmul.u32 %v6821, %v6823
        %v6826 = vmul.u32 %v6821, %v6824
        %v6827 = vmul.u32 %v6822, %v6823
        %v6828 = vmul.u32 %v6822, %v6824
        %v6829 = vshll.u32 %v6826, 16
        %v6830 = vshrl.u32 %v6826, 16
        %v6831 = vshll.u32 %v6827, 16
        %v6832 = vshrl.u32 %v6827, 16
        %vm6833 = vc.u32 %v6825, %v6829
        %v6834 = vsel %vm6833, 1, 0
        %v6835 = vadd.s32 %v6825, %v6829
        %v6836 = vadd.s32 %v6828, %v6834
        %vm6837 = vc.u32 %v6835, %v6831
        %v6838 = vsel %vm6837, 1, 0
        %v6839 = vadd.s32 %v6835, %v6831
        %v6840 = vadd.s32 %v6836, %v6838
        %v6841 = vadd.s32 %v6840, %v6830
        %v6842 = vadd.s32 %v6841, %v6832
        %v6843 = vand.u32 %v6820, 65535
        %v6844 = vshrl.u32 %v6820, 16
        %v6845 = vand.u32 %v6815, 65535
        %v6846 = vshrl.u32 %v6815, 16
        %v6847 = vmul.u32 %v6843, %v6845
        %v6848 = vmul.u32 %v6843, %v6846
        %v6849 = vmul.u32 %v6844, %v6845
        %v6850 = vmul.u32 %v6844, %v6846
        %v6851 = vshll.u32 %v6848, 16
        %v6852 = vshrl.u32 %v6848, 16
        %v6853 = vshll.u32 %v6849, 16
        %v6854 = vshrl.u32 %v6849, 16
        %vm6855 = vc.u32 %v6847, %v6851
        %v6856 = vsel %vm6855, 1, 0
        %v6857 = vadd.s32 %v6847, %v6851
        %v6858 = vadd.s32 %v6850, %v6856
        %vm6859 = vc.u32 %v6857, %v6853
        %v6860 = vsel %vm6859, 1, 0
        %v6861 = vadd.s32 %v6857, %v6853
        %v6862 = vadd.s32 %v6858, %v6860
        %v6863 = vadd.s32 %v6862, %v6852
        %v6864 = vadd.s32 %v6863, %v6854
        %v6865 = vmul.u32 %v6820, %v6811
        %v6866 = vadd.s32 %v6842, %v6861
        %vm6867 = vc.u32 %v6842, %v6861
        %v6868 = vadd.s32 %v6864, 1
        %v6869 = vsel %vm6867, %v6868, %v6864
        %v6870 = vadd.s32 %v6865, %v6869
        %v6871 = vadd.s32 %v6870, 536870912
        %v6872 = vshrl.u32 %v6871, 30
        %v6873 = vshll.u32 %v6872, 30
        %v6874 = vsub.s32 %v6870, %v6873
        %vm6875 = vcmp.lt.s32.totalorder %v6874, 0
        %v6876 = vsub.s32 0, %v6874
        %v6877 = vsel %vm6875, %v6876, %v6874
        %v6878 = vclz %v6877
        %v6879 = vsub.s32 %v6878, 2
        %vm6880 = vcmp.gt.s32.totalorder 0, %v6879
        %v6881 = vsel %vm6880, 0, %v6879
        %v6882 = vsub.s32 32, %v6881
        %v6883 = vshll.u32 %v6874, %v6881
        %v6884 = vshrl.u32 %v6866, %v6882
        %v6885 = vor.u32 %v6883, %v6884
        %v6886 = vsub.s32 4294967266, %v6881
        %v6887 = vadd.s32 %v6886, 127
        %v6888 = vshll.u32 %v6887, 23
        %v6889 = vor.u32 4788187, %v6888
        %v6890 = vand.u32 2147483647, %v6889
        %v6892 = vcvt.s32.f32 %v6885
        %v6893 = vmul.f32 %v6892, %v6890
        %v6894 = vxor.u32 %v6893, 2147483648
        %v6895 = vsel %vm6774, %v6894, %v6893
        %v6896 = vsub.s32 4, %v6872
        %v6897 = vsel %vm6774, %v6896, %v6872
        %v6898 = vsel %vm6773, %v427, %v6895
        %v6899 = vsel %vm6773, 0, %v6897
        %v6900 = vmul.f32 %v6898, %v6898
        %v6901 = vmul.f32 %v6900, -0.001358992
        %v6902 = vadd.f32 %v6901, 0.041655596
        %v6903 = vmul.f32 %v6900, %v6902
        %v6904 = vadd.f32 %v6903, -0.4999988
        %v6905 = vmul.f32 %v6900, %v6904
        %v6906 = vadd.f32 1.0, %v6905
        %v6907 = vmul.f32 %v6898, %v6898
        %v6908 = vmul.f32 %v6907, -0.00019511016
        %v6909 = vadd.f32 %v6908, 0.008332121
        %v6910 = vmul.f32 %v6907, %v6909
        %v6911 = vadd.f32 %v6910, -0.16666654
        %v6912 = vmul.f32 %v6907, %v6911
        %v6913 = vadd.f32 %v6912, 1.0
        %v6914 = vmul.f32 %v6913, %v6898
        %vm6915 = vweird.f32 %v427
        %v6916 = vand.u32 %v6899, 3
        %vm6917 = vcmp.lt.s32.totalorder %v6916, 2
        %vm6918 = vcmp.eq.s32.totalorder %v6916, 0
        %v6919 = vxor.u32 %v6914, 2147483648
        %v6920 = vsel %vm6918, %v6906, %v6919
        %vm6921 = vcmp.eq.s32.totalorder %v6916, 2
        %v6922 = vxor.u32 %v6906, 2147483648
        %v6923 = vsel %vm6921, %v6922, %v6914
        %v6924 = vsel %vm6917, %v6920, %v6923
        %v6925 = vsel %vm6915, nan, %v6924
        %v6926 = vand.u32 2147483647, %v428
        %vm6927 = vcmp.le.f32.partialorder %v6926, 0.7853982
        %vm6928 = vcmp.lt.s32.totalorder %v428, 0
        %v6929 = vand.u32 %v428, 2139095040
        %v6930 = vshrl.u32 %v6929, 23
        %v6931 = vsub.s32 %v6930, 127
        %v6932 = vand.u32 2147483647, %v428
        %v6933 = vand.u32 %v6932, 8388607
        %v6934 = vor.u32 %v6933, 8388608
        %v6935 = vsub.s32 0, %v6934
        %v6936 = vadd.s32 %v6931, 1
        %vm6937 = vcmp.gt.s32.totalorder %v6936, 0
        %v6938 = vsel %vm6937, %v6936, 0
        %v6939 = vshrl.u32 %v6938, 5
        %v6940 = vand.u32 %v6938, 31
        %v6941 = vsub.s32 32, %v6940
        %v6942 = vshrl.u32 683565275, %v6941
        %v6943 = vshll.u32 683565275, %v6940
        %v6944 = vshrl.u32 2475754826, %v6941
        %v6945 = vor.u32 %v6943, %v6944
        %v6946 = vshll.u32 2475754826, %v6940
        %v6947 = vshrl.u32 2131351028, %v6941
        %v6948 = vor.u32 %v6946, %v6947
        %v6949 = vshll.u32 2131351028, %v6940
        %v6950 = vshrl.u32 2102212464, %v6941
        %v6951 = vor.u32 %v6949, %v6950
        %v6952 = vshll.u32 2102212464, %v6940
        %v6953 = vshrl.u32 920167782, %v6941
        %v6954 = vor.u32 %v6952, %v6953
        %v6955 = vshll.u32 920167782, %v6940
        %v6956 = vshrl.u32 1326507024, %v6941
        %v6957 = vor.u32 %v6955, %v6956
        %vm6958 = vcmp.lt.s32.totalorder %v6939, 1
        %vm6959 = vcmp.lt.s32.totalorder %v6939, 2
        %vm6960 = vcmp.lt.s32.totalorder %v6939, 3
        %vm6961 = vcmp.lt.s32.totalorder %v6939, 4
        %v6962 = vsel %vm6958, %v6942, %v6945
        %v6963 = vsel %vm6961, %v6951, 2102212464
        %v6964 = vsel %vm6960, %v6948, %v6963
        %v6965 = vsel %vm6959, %v6962, %v6964
        %v6966 = vsel %vm6958, %v6945, %v6948
        %v6967 = vsel %vm6961, %v6954, 920167782
        %v6968 = vsel %vm6960, %v6951, %v6967
        %v6969 = vsel %vm6959, %v6966, %v6968
        %v6970 = vsel %vm6958, %v6948, %v6951
        %v6971 = vsel %vm6961, %v6957, 1326507024
        %v6972 = vsel %vm6960, %v6954, %v6971
        %v6973 = vsel %vm6959, %v6970, %v6972
        %v6974 = vshll.u32 %v6934, 8
        %v6975 = vand.u32 %v6974, 65535
        %v6976 = vshrl.u32 %v6974, 16
        %v6977 = vand.u32 %v6973, 65535
        %v6978 = vshrl.u32 %v6973, 16
        %v6979 = vmul.u32 %v6975, %v6977
        %v6980 = vmul.u32 %v6975, %v6978
        %v6981 = vmul.u32 %v6976, %v6977
        %v6982 = vmul.u32 %v6976, %v6978
        %v6983 = vshll.u32 %v6980, 16
        %v6984 = vshrl.u32 %v6980, 16
        %v6985 = vshll.u32 %v6981, 16
        %v6986 = vshrl.u32 %v6981, 16
        %vm6987 = vc.u32 %v6979, %v6983
        %v6988 = vsel %vm6987, 1, 0
        %v6989 = vadd.s32 %v6979, %v6983
        %v6990 = vadd.s32 %v6982, %v6988
        %vm6991 = vc.u32 %v6989, %v6985
        %v6992 = vsel %vm6991, 1, 0
        %v6993 = vadd.s32 %v6989, %v6985
        %v6994 = vadd.s32 %v6990, %v6992
        %v6995 = vadd.s32 %v6994, %v6984
        %v6996 = vadd.s32 %v6995, %v6986
        %v6997 = vand.u32 %v6974, 65535
        %v6998 = vshrl.u32 %v6974, 16
        %v6999 = vand.u32 %v6969, 65535
        %v7000 = vshrl.u32 %v6969, 16
        %v7001 = vmul.u32 %v6997, %v6999
        %v7002 = vmul.u32 %v6997, %v7000
        %v7003 = vmul.u32 %v6998, %v6999
        %v7004 = vmul.u32 %v6998, %v7000
        %v7005 = vshll.u32 %v7002, 16
        %v7006 = vshrl.u32 %v7002, 16
        %v7007 = vshll.u32 %v7003, 16
        %v7008 = vshrl.u32 %v7003, 16
        %vm7009 = vc.u32 %v7001, %v7005
        %v7010 = vsel %vm7009, 1, 0
        %v7011 = vadd.s32 %v7001, %v7005
        %v7012 = vadd.s32 %v7004, %v7010
        %vm7013 = vc.u32 %v7011, %v7007
        %v7014 = vsel %vm7013, 1, 0
        %v7015 = vadd.s32 %v7011, %v7007
        %v7016 = vadd.s32 %v7012, %v7014
        %v7017 = vadd.s32 %v7016, %v7006
        %v7018 = vadd.s32 %v7017, %v7008
        %v7019 = vmul.u32 %v6974, %v6965
        %v7020 = vadd.s32 %v6996, %v7015
        %vm7021 = vc.u32 %v6996, %v7015
        %v7022 = vadd.s32 %v7018, 1
        %v7023 = vsel %vm7021, %v7022, %v7018
        %v7024 = vadd.s32 %v7019, %v7023
        %v7025 = vadd.s32 %v7024, 536870912
        %v7026 = vshrl.u32 %v7025, 30
        %v7027 = vshll.u32 %v7026, 30
        %v7028 = vsub.s32 %v7024, %v7027
        %vm7029 = vcmp.lt.s32.totalorder %v7028, 0
        %v7030 = vsub.s32 0, %v7028
        %v7031 = vsel %vm7029, %v7030, %v7028
        %v7032 = vclz %v7031
        %v7033 = vsub.s32 %v7032, 2
        %vm7034 = vcmp.gt.s32.totalorder 0, %v7033
        %v7035 = vsel %vm7034, 0, %v7033
        %v7036 = vsub.s32 32, %v7035
        %v7037 = vshll.u32 %v7028, %v7035
        %v7038 = vshrl.u32 %v7020, %v7036
        %v7039 = vor.u32 %v7037, %v7038
        %v7040 = vsub.s32 4294967266, %v7035
        %v7041 = vadd.s32 %v7040, 127
        %v7042 = vshll.u32 %v7041, 23
        %v7043 = vor.u32 4788187, %v7042
        %v7044 = vand.u32 2147483647, %v7043
        %v7046 = vcvt.s32.f32 %v7039
        %v7047 = vmul.f32 %v7046, %v7044
        %v7048 = vxor.u32 %v7047, 2147483648
        %v7049 = vsel %vm6928, %v7048, %v7047
        %v7050 = vsub.s32 4, %v7026
        %v7051 = vsel %vm6928, %v7050, %v7026
        %v7052 = vsel %vm6927, %v428, %v7049
        %v7053 = vsel %vm6927, 0, %v7051
        %v7054 = vmul.f32 %v7052, %v7052
        %v7055 = vmul.f32 %v7054, -0.001358992
        %v7056 = vadd.f32 %v7055, 0.041655596
        %v7057 = vmul.f32 %v7054, %v7056
        %v7058 = vadd.f32 %v7057, -0.4999988
        %v7059 = vmul.f32 %v7054, %v7058
        %v7060 = vadd.f32 1.0, %v7059
        %v7061 = vmul.f32 %v7052, %v7052
        %v7062 = vmul.f32 %v7061, -0.00019511016
        %v7063 = vadd.f32 %v7062, 0.008332121
        %v7064 = vmul.f32 %v7061, %v7063
        %v7065 = vadd.f32 %v7064, -0.16666654
        %v7066 = vmul.f32 %v7061, %v7065
        %v7067 = vadd.f32 %v7066, 1.0
        %v7068 = vmul.f32 %v7067, %v7052
        %vm7069 = vweird.f32 %v428
        %v7070 = vand.u32 %v7053, 3
        %vm7071 = vcmp.lt.s32.totalorder %v7070, 2
        %vm7072 = vcmp.eq.s32.totalorder %v7070, 0
        %v7073 = vxor.u32 %v7068, 2147483648
        %v7074 = vsel %vm7072, %v7060, %v7073
        %vm7075 = vcmp.eq.s32.totalorder %v7070, 2
        %v7076 = vxor.u32 %v7060, 2147483648
        %v7077 = vsel %vm7075, %v7076, %v7068
        %v7078 = vsel %vm7071, %v7074, %v7077
        %v7079 = vsel %vm7069, nan, %v7078
        %v7080 = vand.u32 2147483647, %v429
        %vm7081 = vcmp.le.f32.partialorder %v7080, 0.7853982
        %vm7082 = vcmp.lt.s32.totalorder %v429, 0
        %v7083 = vand.u32 %v429, 2139095040
        %v7084 = vshrl.u32 %v7083, 23
        %v7085 = vsub.s32 %v7084, 127
        %v7086 = vand.u32 2147483647, %v429
        %v7087 = vand.u32 %v7086, 8388607
        %v7088 = vor.u32 %v7087, 8388608
        %v7089 = vsub.s32 0, %v7088
        %v7090 = vadd.s32 %v7085, 1
        %vm7091 = vcmp.gt.s32.totalorder %v7090, 0
        %v7092 = vsel %vm7091, %v7090, 0
        %v7093 = vshrl.u32 %v7092, 5
        %v7094 = vand.u32 %v7092, 31
        %v7095 = vsub.s32 32, %v7094
        %v7096 = vshrl.u32 683565275, %v7095
        %v7097 = vshll.u32 683565275, %v7094
        %v7098 = vshrl.u32 2475754826, %v7095
        %v7099 = vor.u32 %v7097, %v7098
        %v7100 = vshll.u32 2475754826, %v7094
        %v7101 = vshrl.u32 2131351028, %v7095
        %v7102 = vor.u32 %v7100, %v7101
        %v7103 = vshll.u32 2131351028, %v7094
        %v7104 = vshrl.u32 2102212464, %v7095
        %v7105 = vor.u32 %v7103, %v7104
        %v7106 = vshll.u32 2102212464, %v7094
        %v7107 = vshrl.u32 920167782, %v7095
        %v7108 = vor.u32 %v7106, %v7107
        %v7109 = vshll.u32 920167782, %v7094
        %v7110 = vshrl.u32 1326507024, %v7095
        %v7111 = vor.u32 %v7109, %v7110
        %vm7112 = vcmp.lt.s32.totalorder %v7093, 1
        %vm7113 = vcmp.lt.s32.totalorder %v7093, 2
        %vm7114 = vcmp.lt.s32.totalorder %v7093, 3
        %vm7115 = vcmp.lt.s32.totalorder %v7093, 4
        %v7116 = vsel %vm7112, %v7096, %v7099
        %v7117 = vsel %vm7115, %v7105, 2102212464
        %v7118 = vsel %vm7114, %v7102, %v7117
        %v7119 = vsel %vm7113, %v7116, %v7118
        %v7120 = vsel %vm7112, %v7099, %v7102
        %v7121 = vsel %vm7115, %v7108, 920167782
        %v7122 = vsel %vm7114, %v7105, %v7121
        %v7123 = vsel %vm7113, %v7120, %v7122
        %v7124 = vsel %vm7112, %v7102, %v7105
        %v7125 = vsel %vm7115, %v7111, 1326507024
        %v7126 = vsel %vm7114, %v7108, %v7125
        %v7127 = vsel %vm7113, %v7124, %v7126
        %v7128 = vshll.u32 %v7088, 8
        %v7129 = vand.u32 %v7128, 65535
        %v7130 = vshrl.u32 %v7128, 16
        %v7131 = vand.u32 %v7127, 65535
        %v7132 = vshrl.u32 %v7127, 16
        %v7133 = vmul.u32 %v7129, %v7131
        %v7134 = vmul.u32 %v7129, %v7132
        %v7135 = vmul.u32 %v7130, %v7131
        %v7136 = vmul.u32 %v7130, %v7132
        %v7137 = vshll.u32 %v7134, 16
        %v7138 = vshrl.u32 %v7134, 16
        %v7139 = vshll.u32 %v7135, 16
        %v7140 = vshrl.u32 %v7135, 16
        %vm7141 = vc.u32 %v7133, %v7137
        %v7142 = vsel %vm7141, 1, 0
        %v7143 = vadd.s32 %v7133, %v7137
        %v7144 = vadd.s32 %v7136, %v7142
        %vm7145 = vc.u32 %v7143, %v7139
        %v7146 = vsel %vm7145, 1, 0
        %v7147 = vadd.s32 %v7143, %v7139
        %v7148 = vadd.s32 %v7144, %v7146
        %v7149 = vadd.s32 %v7148, %v7138
        %v7150 = vadd.s32 %v7149, %v7140
        %v7151 = vand.u32 %v7128, 65535
        %v7152 = vshrl.u32 %v7128, 16
        %v7153 = vand.u32 %v7123, 65535
        %v7154 = vshrl.u32 %v7123, 16
        %v7155 = vmul.u32 %v7151, %v7153
        %v7156 = vmul.u32 %v7151, %v7154
        %v7157 = vmul.u32 %v7152, %v7153
        %v7158 = vmul.u32 %v7152, %v7154
        %v7159 = vshll.u32 %v7156, 16
        %v7160 = vshrl.u32 %v7156, 16
        %v7161 = vshll.u32 %v7157, 16
        %v7162 = vshrl.u32 %v7157, 16
        %vm7163 = vc.u32 %v7155, %v7159
        %v7164 = vsel %vm7163, 1, 0
        %v7165 = vadd.s32 %v7155, %v7159
        %v7166 = vadd.s32 %v7158, %v7164
        %vm7167 = vc.u32 %v7165, %v7161
        %v7168 = vsel %vm7167, 1, 0
        %v7169 = vadd.s32 %v7165, %v7161
        %v7170 = vadd.s32 %v7166, %v7168
        %v7171 = vadd.s32 %v7170, %v7160
        %v7172 = vadd.s32 %v7171, %v7162
        %v7173 = vmul.u32 %v7128, %v7119
        %v7174 = vadd.s32 %v7150, %v7169
        %vm7175 = vc.u32 %v7150, %v7169
        %v7176 = vadd.s32 %v7172, 1
        %v7177 = vsel %vm7175, %v7176, %v7172
        %v7178 = vadd.s32 %v7173, %v7177
        %v7179 = vadd.s32 %v7178, 536870912
        %v7180 = vshrl.u32 %v7179, 30
        %v7181 = vshll.u32 %v7180, 30
        %v7182 = vsub.s32 %v7178, %v7181
        %vm7183 = vcmp.lt.s32.totalorder %v7182, 0
        %v7184 = vsub.s32 0, %v7182
        %v7185 = vsel %vm7183, %v7184, %v7182
        %v7186 = vclz %v7185
        %v7187 = vsub.s32 %v7186, 2
        %vm7188 = vcmp.gt.s32.totalorder 0, %v7187
        %v7189 = vsel %vm7188, 0, %v7187
        %v7190 = vsub.s32 32, %v7189
        %v7191 = vshll.u32 %v7182, %v7189
        %v7192 = vshrl.u32 %v7174, %v7190
        %v7193 = vor.u32 %v7191, %v7192
        %v7194 = vsub.s32 4294967266, %v7189
        %v7195 = vadd.s32 %v7194, 127
        %v7196 = vshll.u32 %v7195, 23
        %v7197 = vor.u32 4788187, %v7196
        %v7198 = vand.u32 2147483647, %v7197
        %v7200 = vcvt.s32.f32 %v7193
        %v7201 = vmul.f32 %v7200, %v7198
        %v7202 = vxor.u32 %v7201, 2147483648
        %v7203 = vsel %vm7082, %v7202, %v7201
        %v7204 = vsub.s32 4, %v7180
        %v7205 = vsel %vm7082, %v7204, %v7180
        %v7206 = vsel %vm7081, %v429, %v7203
        %v7207 = vsel %vm7081, 0, %v7205
        %v7208 = vmul.f32 %v7206, %v7206
        %v7209 = vmul.f32 %v7208, -0.001358992
        %v7210 = vadd.f32 %v7209, 0.041655596
        %v7211 = vmul.f32 %v7208, %v7210
        %v7212 = vadd.f32 %v7211, -0.4999988
        %v7213 = vmul.f32 %v7208, %v7212
        %v7214 = vadd.f32 1.0, %v7213
        %v7215 = vmul.f32 %v7206, %v7206
        %v7216 = vmul.f32 %v7215, -0.00019511016
        %v7217 = vadd.f32 %v7216, 0.008332121
        %v7218 = vmul.f32 %v7215, %v7217
        %v7219 = vadd.f32 %v7218, -0.16666654
        %v7220 = vmul.f32 %v7215, %v7219
        %v7221 = vadd.f32 %v7220, 1.0
        %v7222 = vmul.f32 %v7221, %v7206
        %vm7223 = vweird.f32 %v429
        %v7224 = vand.u32 %v7207, 3
        %vm7225 = vcmp.lt.s32.totalorder %v7224, 2
        %vm7226 = vcmp.eq.s32.totalorder %v7224, 0
        %v7227 = vxor.u32 %v7222, 2147483648
        %v7228 = vsel %vm7226, %v7214, %v7227
        %vm7229 = vcmp.eq.s32.totalorder %v7224, 2
        %v7230 = vxor.u32 %v7214, 2147483648
        %v7231 = vsel %vm7229, %v7230, %v7222
        %v7232 = vsel %vm7225, %v7228, %v7231
        %v7233 = vsel %vm7223, nan, %v7232
        %v7234 = vand.u32 2147483647, %v430
        %vm7235 = vcmp.le.f32.partialorder %v7234, 0.7853982
        %vm7236 = vcmp.lt.s32.totalorder %v430, 0
        %v7237 = vand.u32 %v430, 2139095040
        %v7238 = vshrl.u32 %v7237, 23
        %v7239 = vsub.s32 %v7238, 127
        %v7240 = vand.u32 2147483647, %v430
        %v7241 = vand.u32 %v7240, 8388607
        %v7242 = vor.u32 %v7241, 8388608
        %v7243 = vsub.s32 0, %v7242
        %v7244 = vadd.s32 %v7239, 1
        %vm7245 = vcmp.gt.s32.totalorder %v7244, 0
        %v7246 = vsel %vm7245, %v7244, 0
        %v7247 = vshrl.u32 %v7246, 5
        %v7248 = vand.u32 %v7246, 31
        %v7249 = vsub.s32 32, %v7248
        %v7250 = vshrl.u32 683565275, %v7249
        %v7251 = vshll.u32 683565275, %v7248
        %v7252 = vshrl.u32 2475754826, %v7249
        %v7253 = vor.u32 %v7251, %v7252
        %v7254 = vshll.u32 2475754826, %v7248
        %v7255 = vshrl.u32 2131351028, %v7249
        %v7256 = vor.u32 %v7254, %v7255
        %v7257 = vshll.u32 2131351028, %v7248
        %v7258 = vshrl.u32 2102212464, %v7249
        %v7259 = vor.u32 %v7257, %v7258
        %v7260 = vshll.u32 2102212464, %v7248
        %v7261 = vshrl.u32 920167782, %v7249
        %v7262 = vor.u32 %v7260, %v7261
        %v7263 = vshll.u32 920167782, %v7248
        %v7264 = vshrl.u32 1326507024, %v7249
        %v7265 = vor.u32 %v7263, %v7264
        %vm7266 = vcmp.lt.s32.totalorder %v7247, 1
        %vm7267 = vcmp.lt.s32.totalorder %v7247, 2
        %vm7268 = vcmp.lt.s32.totalorder %v7247, 3
        %vm7269 = vcmp.lt.s32.totalorder %v7247, 4
        %v7270 = vsel %vm7266, %v7250, %v7253
        %v7271 = vsel %vm7269, %v7259, 2102212464
        %v7272 = vsel %vm7268, %v7256, %v7271
        %v7273 = vsel %vm7267, %v7270, %v7272
        %v7274 = vsel %vm7266, %v7253, %v7256
        %v7275 = vsel %vm7269, %v7262, 920167782
        %v7276 = vsel %vm7268, %v7259, %v7275
        %v7277 = vsel %vm7267, %v7274, %v7276
        %v7278 = vsel %vm7266, %v7256, %v7259
        %v7279 = vsel %vm7269, %v7265, 1326507024
        %v7280 = vsel %vm7268, %v7262, %v7279
        %v7281 = vsel %vm7267, %v7278, %v7280
        %v7282 = vshll.u32 %v7242, 8
        %v7283 = vand.u32 %v7282, 65535
        %v7284 = vshrl.u32 %v7282, 16
        %v7285 = vand.u32 %v7281, 65535
        %v7286 = vshrl.u32 %v7281, 16
        %v7287 = vmul.u32 %v7283, %v7285
        %v7288 = vmul.u32 %v7283, %v7286
        %v7289 = vmul.u32 %v7284, %v7285
        %v7290 = vmul.u32 %v7284, %v7286
        %v7291 = vshll.u32 %v7288, 16
        %v7292 = vshrl.u32 %v7288, 16
        %v7293 = vshll.u32 %v7289, 16
        %v7294 = vshrl.u32 %v7289, 16
        %vm7295 = vc.u32 %v7287, %v7291
        %v7296 = vsel %vm7295, 1, 0
        %v7297 = vadd.s32 %v7287, %v7291
        %v7298 = vadd.s32 %v7290, %v7296
        %vm7299 = vc.u32 %v7297, %v7293
        %v7300 = vsel %vm7299, 1, 0
        %v7301 = vadd.s32 %v7297, %v7293
        %v7302 = vadd.s32 %v7298, %v7300
        %v7303 = vadd.s32 %v7302, %v7292
        %v7304 = vadd.s32 %v7303, %v7294
        %v7305 = vand.u32 %v7282, 65535
        %v7306 = vshrl.u32 %v7282, 16
        %v7307 = vand.u32 %v7277, 65535
        %v7308 = vshrl.u32 %v7277, 16
        %v7309 = vmul.u32 %v7305, %v7307
        %v7310 = vmul.u32 %v7305, %v7308
        %v7311 = vmul.u32 %v7306, %v7307
        %v7312 = vmul.u32 %v7306, %v7308
        %v7313 = vshll.u32 %v7310, 16
        %v7314 = vshrl.u32 %v7310, 16
        %v7315 = vshll.u32 %v7311, 16
        %v7316 = vshrl.u32 %v7311, 16
        %vm7317 = vc.u32 %v7309, %v7313
        %v7318 = vsel %vm7317, 1, 0
        %v7319 = vadd.s32 %v7309, %v7313
        %v7320 = vadd.s32 %v7312, %v7318
        %vm7321 = vc.u32 %v7319, %v7315
        %v7322 = vsel %vm7321, 1, 0
        %v7323 = vadd.s32 %v7319, %v7315
        %v7324 = vadd.s32 %v7320, %v7322
        %v7325 = vadd.s32 %v7324, %v7314
        %v7326 = vadd.s32 %v7325, %v7316
        %v7327 = vmul.u32 %v7282, %v7273
        %v7328 = vadd.s32 %v7304, %v7323
        %vm7329 = vc.u32 %v7304, %v7323
        %v7330 = vadd.s32 %v7326, 1
        %v7331 = vsel %vm7329, %v7330, %v7326
        %v7332 = vadd.s32 %v7327, %v7331
        %v7333 = vadd.s32 %v7332, 536870912
        %v7334 = vshrl.u32 %v7333, 30
        %v7335 = vshll.u32 %v7334, 30
        %v7336 = vsub.s32 %v7332, %v7335
        %vm7337 = vcmp.lt.s32.totalorder %v7336, 0
        %v7338 = vsub.s32 0, %v7336
        %v7339 = vsel %vm7337, %v7338, %v7336
        %v7340 = vclz %v7339
        %v7341 = vsub.s32 %v7340, 2
        %vm7342 = vcmp.gt.s32.totalorder 0, %v7341
        %v7343 = vsel %vm7342, 0, %v7341
        %v7344 = vsub.s32 32, %v7343
        %v7345 = vshll.u32 %v7336, %v7343
        %v7346 = vshrl.u32 %v7328, %v7344
        %v7347 = vor.u32 %v7345, %v7346
        %v7348 = vsub.s32 4294967266, %v7343
        %v7349 = vadd.s32 %v7348, 127
        %v7350 = vshll.u32 %v7349, 23
        %v7351 = vor.u32 4788187, %v7350
        %v7352 = vand.u32 2147483647, %v7351
        %v7354 = vcvt.s32.f32 %v7347
        %v7355 = vmul.f32 %v7354, %v7352
        %v7356 = vxor.u32 %v7355, 2147483648
        %v7357 = vsel %vm7236, %v7356, %v7355
        %v7358 = vsub.s32 4, %v7334
        %v7359 = vsel %vm7236, %v7358, %v7334
        %v7360 = vsel %vm7235, %v430, %v7357
        %v7361 = vsel %vm7235, 0, %v7359
        %v7362 = vmul.f32 %v7360, %v7360
        %v7363 = vmul.f32 %v7362, -0.001358992
        %v7364 = vadd.f32 %v7363, 0.041655596
        %v7365 = vmul.f32 %v7362, %v7364
        %v7366 = vadd.f32 %v7365, -0.4999988
        %v7367 = vmul.f32 %v7362, %v7366
        %v7368 = vadd.f32 1.0, %v7367
        %v7369 = vmul.f32 %v7360, %v7360
        %v7370 = vmul.f32 %v7369, -0.00019511016
        %v7371 = vadd.f32 %v7370, 0.008332121
        %v7372 = vmul.f32 %v7369, %v7371
        %v7373 = vadd.f32 %v7372, -0.16666654
        %v7374 = vmul.f32 %v7369, %v7373
        %v7375 = vadd.f32 %v7374, 1.0
        %v7376 = vmul.f32 %v7375, %v7360
        %vm7377 = vweird.f32 %v430
        %v7378 = vand.u32 %v7361, 3
        %vm7379 = vcmp.lt.s32.totalorder %v7378, 2
        %vm7380 = vcmp.eq.s32.totalorder %v7378, 0
        %v7381 = vxor.u32 %v7376, 2147483648
        %v7382 = vsel %vm7380, %v7368, %v7381
        %vm7383 = vcmp.eq.s32.totalorder %v7378, 2
        %v7384 = vxor.u32 %v7368, 2147483648
        %v7385 = vsel %vm7383, %v7384, %v7376
        %v7386 = vsel %vm7379, %v7382, %v7385
        %v7387 = vsel %vm7377, nan, %v7386
        %v7388 = vand.u32 2147483647, %v431
        %vm7389 = vcmp.le.f32.partialorder %v7388, 0.7853982
        %vm7390 = vcmp.lt.s32.totalorder %v431, 0
        %v7391 = vand.u32 %v431, 2139095040
        %v7392 = vshrl.u32 %v7391, 23
        %v7393 = vsub.s32 %v7392, 127
        %v7394 = vand.u32 2147483647, %v431
        %v7395 = vand.u32 %v7394, 8388607
        %v7396 = vor.u32 %v7395, 8388608
        %v7397 = vsub.s32 0, %v7396
        %v7398 = vadd.s32 %v7393, 1
        %vm7399 = vcmp.gt.s32.totalorder %v7398, 0
        %v7400 = vsel %vm7399, %v7398, 0
        %v7401 = vshrl.u32 %v7400, 5
        %v7402 = vand.u32 %v7400, 31
        %v7403 = vsub.s32 32, %v7402
        %v7404 = vshrl.u32 683565275, %v7403
        %v7405 = vshll.u32 683565275, %v7402
        %v7406 = vshrl.u32 2475754826, %v7403
        %v7407 = vor.u32 %v7405, %v7406
        %v7408 = vshll.u32 2475754826, %v7402
        %v7409 = vshrl.u32 2131351028, %v7403
        %v7410 = vor.u32 %v7408, %v7409
        %v7411 = vshll.u32 2131351028, %v7402
        %v7412 = vshrl.u32 2102212464, %v7403
        %v7413 = vor.u32 %v7411, %v7412
        %v7414 = vshll.u32 2102212464, %v7402
        %v7415 = vshrl.u32 920167782, %v7403
        %v7416 = vor.u32 %v7414, %v7415
        %v7417 = vshll.u32 920167782, %v7402
        %v7418 = vshrl.u32 1326507024, %v7403
        %v7419 = vor.u32 %v7417, %v7418
        %vm7420 = vcmp.lt.s32.totalorder %v7401, 1
        %vm7421 = vcmp.lt.s32.totalorder %v7401, 2
        %vm7422 = vcmp.lt.s32.totalorder %v7401, 3
        %vm7423 = vcmp.lt.s32.totalorder %v7401, 4
        %v7424 = vsel %vm7420, %v7404, %v7407
        %v7425 = vsel %vm7423, %v7413, 2102212464
        %v7426 = vsel %vm7422, %v7410, %v7425
        %v7427 = vsel %vm7421, %v7424, %v7426
        %v7428 = vsel %vm7420, %v7407, %v7410
        %v7429 = vsel %vm7423, %v7416, 920167782
        %v7430 = vsel %vm7422, %v7413, %v7429
        %v7431 = vsel %vm7421, %v7428, %v7430
        %v7432 = vsel %vm7420, %v7410, %v7413
        %v7433 = vsel %vm7423, %v7419, 1326507024
        %v7434 = vsel %vm7422, %v7416, %v7433
        %v7435 = vsel %vm7421, %v7432, %v7434
        %v7436 = vshll.u32 %v7396, 8
        %v7437 = vand.u32 %v7436, 65535
        %v7438 = vshrl.u32 %v7436, 16
        %v7439 = vand.u32 %v7435, 65535
        %v7440 = vshrl.u32 %v7435, 16
        %v7441 = vmul.u32 %v7437, %v7439
        %v7442 = vmul.u32 %v7437, %v7440
        %v7443 = vmul.u32 %v7438, %v7439
        %v7444 = vmul.u32 %v7438, %v7440
        %v7445 = vshll.u32 %v7442, 16
        %v7446 = vshrl.u32 %v7442, 16
        %v7447 = vshll.u32 %v7443, 16
        %v7448 = vshrl.u32 %v7443, 16
        %vm7449 = vc.u32 %v7441, %v7445
        %v7450 = vsel %vm7449, 1, 0
        %v7451 = vadd.s32 %v7441, %v7445
        %v7452 = vadd.s32 %v7444, %v7450
        %vm7453 = vc.u32 %v7451, %v7447
        %v7454 = vsel %vm7453, 1, 0
        %v7455 = vadd.s32 %v7451, %v7447
        %v7456 = vadd.s32 %v7452, %v7454
        %v7457 = vadd.s32 %v7456, %v7446
        %v7458 = vadd.s32 %v7457, %v7448
        %v7459 = vand.u32 %v7436, 65535
        %v7460 = vshrl.u32 %v7436, 16
        %v7461 = vand.u32 %v7431, 65535
        %v7462 = vshrl.u32 %v7431, 16
        %v7463 = vmul.u32 %v7459, %v7461
        %v7464 = vmul.u32 %v7459, %v7462
        %v7465 = vmul.u32 %v7460, %v7461
        %v7466 = vmul.u32 %v7460, %v7462
        %v7467 = vshll.u32 %v7464, 16
        %v7468 = vshrl.u32 %v7464, 16
        %v7469 = vshll.u32 %v7465, 16
        %v7470 = vshrl.u32 %v7465, 16
        %vm7471 = vc.u32 %v7463, %v7467
        %v7472 = vsel %vm7471, 1, 0
        %v7473 = vadd.s32 %v7463, %v7467
        %v7474 = vadd.s32 %v7466, %v7472
        %vm7475 = vc.u32 %v7473, %v7469
        %v7476 = vsel %vm7475, 1, 0
        %v7477 = vadd.s32 %v7473, %v7469
        %v7478 = vadd.s32 %v7474, %v7476
        %v7479 = vadd.s32 %v7478, %v7468
        %v7480 = vadd.s32 %v7479, %v7470
        %v7481 = vmul.u32 %v7436, %v7427
        %v7482 = vadd.s32 %v7458, %v7477
        %vm7483 = vc.u32 %v7458, %v7477
        %v7484 = vadd.s32 %v7480, 1
        %v7485 = vsel %vm7483, %v7484, %v7480
        %v7486 = vadd.s32 %v7481, %v7485
        %v7487 = vadd.s32 %v7486, 536870912
        %v7488 = vshrl.u32 %v7487, 30
        %v7489 = vshll.u32 %v7488, 30
        %v7490 = vsub.s32 %v7486, %v7489
        %vm7491 = vcmp.lt.s32.totalorder %v7490, 0
        %v7492 = vsub.s32 0, %v7490
        %v7493 = vsel %vm7491, %v7492, %v7490
        %v7494 = vclz %v7493
        %v7495 = vsub.s32 %v7494, 2
        %vm7496 = vcmp.gt.s32.totalorder 0, %v7495
        %v7497 = vsel %vm7496, 0, %v7495
        %v7498 = vsub.s32 32, %v7497
        %v7499 = vshll.u32 %v7490, %v7497
        %v7500 = vshrl.u32 %v7482, %v7498
        %v7501 = vor.u32 %v7499, %v7500
        %v7502 = vsub.s32 4294967266, %v7497
        %v7503 = vadd.s32 %v7502, 127
        %v7504 = vshll.u32 %v7503, 23
        %v7505 = vor.u32 4788187, %v7504
        %v7506 = vand.u32 2147483647, %v7505
        %v7508 = vcvt.s32.f32 %v7501
        %v7509 = vmul.f32 %v7508, %v7506
        %v7510 = vxor.u32 %v7509, 2147483648
        %v7511 = vsel %vm7390, %v7510, %v7509
        %v7512 = vsub.s32 4, %v7488
        %v7513 = vsel %vm7390, %v7512, %v7488
        %v7514 = vsel %vm7389, %v431, %v7511
        %v7515 = vsel %vm7389, 0, %v7513
        %v7516 = vmul.f32 %v7514, %v7514
        %v7517 = vmul.f32 %v7516, -0.001358992
        %v7518 = vadd.f32 %v7517, 0.041655596
        %v7519 = vmul.f32 %v7516, %v7518
        %v7520 = vadd.f32 %v7519, -0.4999988
        %v7521 = vmul.f32 %v7516, %v7520
        %v7522 = vadd.f32 1.0, %v7521
        %v7523 = vmul.f32 %v7514, %v7514
        %v7524 = vmul.f32 %v7523, -0.00019511016
        %v7525 = vadd.f32 %v7524, 0.008332121
        %v7526 = vmul.f32 %v7523, %v7525
        %v7527 = vadd.f32 %v7526, -0.16666654
        %v7528 = vmul.f32 %v7523, %v7527
        %v7529 = vadd.f32 %v7528, 1.0
        %v7530 = vmul.f32 %v7529, %v7514
        %vm7531 = vweird.f32 %v431
        %v7532 = vand.u32 %v7515, 3
        %vm7533 = vcmp.lt.s32.totalorder %v7532, 2
        %vm7534 = vcmp.eq.s32.totalorder %v7532, 0
        %v7535 = vxor.u32 %v7530, 2147483648
        %v7536 = vsel %vm7534, %v7522, %v7535
        %vm7537 = vcmp.eq.s32.totalorder %v7532, 2
        %v7538 = vxor.u32 %v7522, 2147483648
        %v7539 = vsel %vm7537, %v7538, %v7530
        %v7540 = vsel %vm7533, %v7536, %v7539
        %v7541 = vsel %vm7531, nan, %v7540
        %v7542 = vand.u32 2147483647, %v432
        %vm7543 = vcmp.le.f32.partialorder %v7542, 0.7853982
        %vm7544 = vcmp.lt.s32.totalorder %v432, 0
        %v7545 = vand.u32 %v432, 2139095040
        %v7546 = vshrl.u32 %v7545, 23
        %v7547 = vsub.s32 %v7546, 127
        %v7548 = vand.u32 2147483647, %v432
        %v7549 = vand.u32 %v7548, 8388607
        %v7550 = vor.u32 %v7549, 8388608
        %v7551 = vsub.s32 0, %v7550
        %v7552 = vadd.s32 %v7547, 1
        %vm7553 = vcmp.gt.s32.totalorder %v7552, 0
        %v7554 = vsel %vm7553, %v7552, 0
        %v7555 = vshrl.u32 %v7554, 5
        %v7556 = vand.u32 %v7554, 31
        %v7557 = vsub.s32 32, %v7556
        %v7558 = vshrl.u32 683565275, %v7557
        %v7559 = vshll.u32 683565275, %v7556
        %v7560 = vshrl.u32 2475754826, %v7557
        %v7561 = vor.u32 %v7559, %v7560
        %v7562 = vshll.u32 2475754826, %v7556
        %v7563 = vshrl.u32 2131351028, %v7557
        %v7564 = vor.u32 %v7562, %v7563
        %v7565 = vshll.u32 2131351028, %v7556
        %v7566 = vshrl.u32 2102212464, %v7557
        %v7567 = vor.u32 %v7565, %v7566
        %v7568 = vshll.u32 2102212464, %v7556
        %v7569 = vshrl.u32 920167782, %v7557
        %v7570 = vor.u32 %v7568, %v7569
        %v7571 = vshll.u32 920167782, %v7556
        %v7572 = vshrl.u32 1326507024, %v7557
        %v7573 = vor.u32 %v7571, %v7572
        %vm7574 = vcmp.lt.s32.totalorder %v7555, 1
        %vm7575 = vcmp.lt.s32.totalorder %v7555, 2
        %vm7576 = vcmp.lt.s32.totalorder %v7555, 3
        %vm7577 = vcmp.lt.s32.totalorder %v7555, 4
        %v7578 = vsel %vm7574, %v7558, %v7561
        %v7579 = vsel %vm7577, %v7567, 2102212464
        %v7580 = vsel %vm7576, %v7564, %v7579
        %v7581 = vsel %vm7575, %v7578, %v7580
        %v7582 = vsel %vm7574, %v7561, %v7564
        %v7583 = vsel %vm7577, %v7570, 920167782
        %v7584 = vsel %vm7576, %v7567, %v7583
        %v7585 = vsel %vm7575, %v7582, %v7584
        %v7586 = vsel %vm7574, %v7564, %v7567
        %v7587 = vsel %vm7577, %v7573, 1326507024
        %v7588 = vsel %vm7576, %v7570, %v7587
        %v7589 = vsel %vm7575, %v7586, %v7588
        %v7590 = vshll.u32 %v7550, 8
        %v7591 = vand.u32 %v7590, 65535
        %v7592 = vshrl.u32 %v7590, 16
        %v7593 = vand.u32 %v7589, 65535
        %v7594 = vshrl.u32 %v7589, 16
        %v7595 = vmul.u32 %v7591, %v7593
        %v7596 = vmul.u32 %v7591, %v7594
        %v7597 = vmul.u32 %v7592, %v7593
        %v7598 = vmul.u32 %v7592, %v7594
        %v7599 = vshll.u32 %v7596, 16
        %v7600 = vshrl.u32 %v7596, 16
        %v7601 = vshll.u32 %v7597, 16
        %v7602 = vshrl.u32 %v7597, 16
        %vm7603 = vc.u32 %v7595, %v7599
        %v7604 = vsel %vm7603, 1, 0
        %v7605 = vadd.s32 %v7595, %v7599
        %v7606 = vadd.s32 %v7598, %v7604
        %vm7607 = vc.u32 %v7605, %v7601
        %v7608 = vsel %vm7607, 1, 0
        %v7609 = vadd.s32 %v7605, %v7601
        %v7610 = vadd.s32 %v7606, %v7608
        %v7611 = vadd.s32 %v7610, %v7600
        %v7612 = vadd.s32 %v7611, %v7602
        %v7613 = vand.u32 %v7590, 65535
        %v7614 = vshrl.u32 %v7590, 16
        %v7615 = vand.u32 %v7585, 65535
        %v7616 = vshrl.u32 %v7585, 16
        %v7617 = vmul.u32 %v7613, %v7615
        %v7618 = vmul.u32 %v7613, %v7616
        %v7619 = vmul.u32 %v7614, %v7615
        %v7620 = vmul.u32 %v7614, %v7616
        %v7621 = vshll.u32 %v7618, 16
        %v7622 = vshrl.u32 %v7618, 16
        %v7623 = vshll.u32 %v7619, 16
        %v7624 = vshrl.u32 %v7619, 16
        %vm7625 = vc.u32 %v7617, %v7621
        %v7626 = vsel %vm7625, 1, 0
        %v7627 = vadd.s32 %v7617, %v7621
        %v7628 = vadd.s32 %v7620, %v7626
        %vm7629 = vc.u32 %v7627, %v7623
        %v7630 = vsel %vm7629, 1, 0
        %v7631 = vadd.s32 %v7627, %v7623
        %v7632 = vadd.s32 %v7628, %v7630
        %v7633 = vadd.s32 %v7632, %v7622
        %v7634 = vadd.s32 %v7633, %v7624
        %v7635 = vmul.u32 %v7590, %v7581
        %v7636 = vadd.s32 %v7612, %v7631
        %vm7637 = vc.u32 %v7612, %v7631
        %v7638 = vadd.s32 %v7634, 1
        %v7639 = vsel %vm7637, %v7638, %v7634
        %v7640 = vadd.s32 %v7635, %v7639
        %v7641 = vadd.s32 %v7640, 536870912
        %v7642 = vshrl.u32 %v7641, 30
        %v7643 = vshll.u32 %v7642, 30
        %v7644 = vsub.s32 %v7640, %v7643
        %vm7645 = vcmp.lt.s32.totalorder %v7644, 0
        %v7646 = vsub.s32 0, %v7644
        %v7647 = vsel %vm7645, %v7646, %v7644
        %v7648 = vclz %v7647
        %v7649 = vsub.s32 %v7648, 2
        %vm7650 = vcmp.gt.s32.totalorder 0, %v7649
        %v7651 = vsel %vm7650, 0, %v7649
        %v7652 = vsub.s32 32, %v7651
        %v7653 = vshll.u32 %v7644, %v7651
        %v7654 = vshrl.u32 %v7636, %v7652
        %v7655 = vor.u32 %v7653, %v7654
        %v7656 = vsub.s32 4294967266, %v7651
        %v7657 = vadd.s32 %v7656, 127
        %v7658 = vshll.u32 %v7657, 23
        %v7659 = vor.u32 4788187, %v7658
        %v7660 = vand.u32 2147483647, %v7659
        %v7662 = vcvt.s32.f32 %v7655
        %v7663 = vmul.f32 %v7662, %v7660
        %v7664 = vxor.u32 %v7663, 2147483648
        %v7665 = vsel %vm7544, %v7664, %v7663
        %v7666 = vsub.s32 4, %v7642
        %v7667 = vsel %vm7544, %v7666, %v7642
        %v7668 = vsel %vm7543, %v432, %v7665
        %v7669 = vsel %vm7543, 0, %v7667
        %v7670 = vmul.f32 %v7668, %v7668
        %v7671 = vmul.f32 %v7670, -0.001358992
        %v7672 = vadd.f32 %v7671, 0.041655596
        %v7673 = vmul.f32 %v7670, %v7672
        %v7674 = vadd.f32 %v7673, -0.4999988
        %v7675 = vmul.f32 %v7670, %v7674
        %v7676 = vadd.f32 1.0, %v7675
        %v7677 = vmul.f32 %v7668, %v7668
        %v7678 = vmul.f32 %v7677, -0.00019511016
        %v7679 = vadd.f32 %v7678, 0.008332121
        %v7680 = vmul.f32 %v7677, %v7679
        %v7681 = vadd.f32 %v7680, -0.16666654
        %v7682 = vmul.f32 %v7677, %v7681
        %v7683 = vadd.f32 %v7682, 1.0
        %v7684 = vmul.f32 %v7683, %v7668
        %vm7685 = vweird.f32 %v432
        %v7686 = vand.u32 %v7669, 3
        %vm7687 = vcmp.lt.s32.totalorder %v7686, 2
        %vm7688 = vcmp.eq.s32.totalorder %v7686, 0
        %v7689 = vxor.u32 %v7684, 2147483648
        %v7690 = vsel %vm7688, %v7676, %v7689
        %vm7691 = vcmp.eq.s32.totalorder %v7686, 2
        %v7692 = vxor.u32 %v7676, 2147483648
        %v7693 = vsel %vm7691, %v7692, %v7684
        %v7694 = vsel %vm7687, %v7690, %v7693
        %v7695 = vsel %vm7685, nan, %v7694
        %v7696 = vand.u32 2147483647, %v433
        %vm7697 = vcmp.le.f32.partialorder %v7696, 0.7853982
        %vm7698 = vcmp.lt.s32.totalorder %v433, 0
        %v7699 = vand.u32 %v433, 2139095040
        %v7700 = vshrl.u32 %v7699, 23
        %v7701 = vsub.s32 %v7700, 127
        %v7702 = vand.u32 2147483647, %v433
        %v7703 = vand.u32 %v7702, 8388607
        %v7704 = vor.u32 %v7703, 8388608
        %v7705 = vsub.s32 0, %v7704
        %v7706 = vadd.s32 %v7701, 1
        %vm7707 = vcmp.gt.s32.totalorder %v7706, 0
        %v7708 = vsel %vm7707, %v7706, 0
        %v7709 = vshrl.u32 %v7708, 5
        %v7710 = vand.u32 %v7708, 31
        %v7711 = vsub.s32 32, %v7710
        %v7712 = vshrl.u32 683565275, %v7711
        %v7713 = vshll.u32 683565275, %v7710
        %v7714 = vshrl.u32 2475754826, %v7711
        %v7715 = vor.u32 %v7713, %v7714
        %v7716 = vshll.u32 2475754826, %v7710
        %v7717 = vshrl.u32 2131351028, %v7711
        %v7718 = vor.u32 %v7716, %v7717
        %v7719 = vshll.u32 2131351028, %v7710
        %v7720 = vshrl.u32 2102212464, %v7711
        %v7721 = vor.u32 %v7719, %v7720
        %v7722 = vshll.u32 2102212464, %v7710
        %v7723 = vshrl.u32 920167782, %v7711
        %v7724 = vor.u32 %v7722, %v7723
        %v7725 = vshll.u32 920167782, %v7710
        %v7726 = vshrl.u32 1326507024, %v7711
        %v7727 = vor.u32 %v7725, %v7726
        %vm7728 = vcmp.lt.s32.totalorder %v7709, 1
        %vm7729 = vcmp.lt.s32.totalorder %v7709, 2
        %vm7730 = vcmp.lt.s32.totalorder %v7709, 3
        %vm7731 = vcmp.lt.s32.totalorder %v7709, 4
        %v7732 = vsel %vm7728, %v7712, %v7715
        %v7733 = vsel %vm7731, %v7721, 2102212464
        %v7734 = vsel %vm7730, %v7718, %v7733
        %v7735 = vsel %vm7729, %v7732, %v7734
        %v7736 = vsel %vm7728, %v7715, %v7718
        %v7737 = vsel %vm7731, %v7724, 920167782
        %v7738 = vsel %vm7730, %v7721, %v7737
        %v7739 = vsel %vm7729, %v7736, %v7738
        %v7740 = vsel %vm7728, %v7718, %v7721
        %v7741 = vsel %vm7731, %v7727, 1326507024
        %v7742 = vsel %vm7730, %v7724, %v7741
        %v7743 = vsel %vm7729, %v7740, %v7742
        %v7744 = vshll.u32 %v7704, 8
        %v7745 = vand.u32 %v7744, 65535
        %v7746 = vshrl.u32 %v7744, 16
        %v7747 = vand.u32 %v7743, 65535
        %v7748 = vshrl.u32 %v7743, 16
        %v7749 = vmul.u32 %v7745, %v7747
        %v7750 = vmul.u32 %v7745, %v7748
        %v7751 = vmul.u32 %v7746, %v7747
        %v7752 = vmul.u32 %v7746, %v7748
        %v7753 = vshll.u32 %v7750, 16
        %v7754 = vshrl.u32 %v7750, 16
        %v7755 = vshll.u32 %v7751, 16
        %v7756 = vshrl.u32 %v7751, 16
        %vm7757 = vc.u32 %v7749, %v7753
        %v7758 = vsel %vm7757, 1, 0
        %v7759 = vadd.s32 %v7749, %v7753
        %v7760 = vadd.s32 %v7752, %v7758
        %vm7761 = vc.u32 %v7759, %v7755
        %v7762 = vsel %vm7761, 1, 0
        %v7763 = vadd.s32 %v7759, %v7755
        %v7764 = vadd.s32 %v7760, %v7762
        %v7765 = vadd.s32 %v7764, %v7754
        %v7766 = vadd.s32 %v7765, %v7756
        %v7767 = vand.u32 %v7744, 65535
        %v7768 = vshrl.u32 %v7744, 16
        %v7769 = vand.u32 %v7739, 65535
        %v7770 = vshrl.u32 %v7739, 16
        %v7771 = vmul.u32 %v7767, %v7769
        %v7772 = vmul.u32 %v7767, %v7770
        %v7773 = vmul.u32 %v7768, %v7769
        %v7774 = vmul.u32 %v7768, %v7770
        %v7775 = vshll.u32 %v7772, 16
        %v7776 = vshrl.u32 %v7772, 16
        %v7777 = vshll.u32 %v7773, 16
        %v7778 = vshrl.u32 %v7773, 16
        %vm7779 = vc.u32 %v7771, %v7775
        %v7780 = vsel %vm7779, 1, 0
        %v7781 = vadd.s32 %v7771, %v7775
        %v7782 = vadd.s32 %v7774, %v7780
        %vm7783 = vc.u32 %v7781, %v7777
        %v7784 = vsel %vm7783, 1, 0
        %v7785 = vadd.s32 %v7781, %v7777
        %v7786 = vadd.s32 %v7782, %v7784
        %v7787 = vadd.s32 %v7786, %v7776
        %v7788 = vadd.s32 %v7787, %v7778
        %v7789 = vmul.u32 %v7744, %v7735
        %v7790 = vadd.s32 %v7766, %v7785
        %vm7791 = vc.u32 %v7766, %v7785
        %v7792 = vadd.s32 %v7788, 1
        %v7793 = vsel %vm7791, %v7792, %v7788
        %v7794 = vadd.s32 %v7789, %v7793
        %v7795 = vadd.s32 %v7794, 536870912
        %v7796 = vshrl.u32 %v7795, 30
        %v7797 = vshll.u32 %v7796, 30
        %v7798 = vsub.s32 %v7794, %v7797
        %vm7799 = vcmp.lt.s32.totalorder %v7798, 0
        %v7800 = vsub.s32 0, %v7798
        %v7801 = vsel %vm7799, %v7800, %v7798
        %v7802 = vclz %v7801
        %v7803 = vsub.s32 %v7802, 2
        %vm7804 = vcmp.gt.s32.totalorder 0, %v7803
        %v7805 = vsel %vm7804, 0, %v7803
        %v7806 = vsub.s32 32, %v7805
        %v7807 = vshll.u32 %v7798, %v7805
        %v7808 = vshrl.u32 %v7790, %v7806
        %v7809 = vor.u32 %v7807, %v7808
        %v7810 = vsub.s32 4294967266, %v7805
        %v7811 = vadd.s32 %v7810, 127
        %v7812 = vshll.u32 %v7811, 23
        %v7813 = vor.u32 4788187, %v7812
        %v7814 = vand.u32 2147483647, %v7813
        %v7816 = vcvt.s32.f32 %v7809
        %v7817 = vmul.f32 %v7816, %v7814
        %v7818 = vxor.u32 %v7817, 2147483648
        %v7819 = vsel %vm7698, %v7818, %v7817
        %v7820 = vsub.s32 4, %v7796
        %v7821 = vsel %vm7698, %v7820, %v7796
        %v7822 = vsel %vm7697, %v433, %v7819
        %v7823 = vsel %vm7697, 0, %v7821
        %v7824 = vmul.f32 %v7822, %v7822
        %v7825 = vmul.f32 %v7824, -0.001358992
        %v7826 = vadd.f32 %v7825, 0.041655596
        %v7827 = vmul.f32 %v7824, %v7826
        %v7828 = vadd.f32 %v7827, -0.4999988
        %v7829 = vmul.f32 %v7824, %v7828
        %v7830 = vadd.f32 1.0, %v7829
        %v7831 = vmul.f32 %v7822, %v7822
        %v7832 = vmul.f32 %v7831, -0.00019511016
        %v7833 = vadd.f32 %v7832, 0.008332121
        %v7834 = vmul.f32 %v7831, %v7833
        %v7835 = vadd.f32 %v7834, -0.16666654
        %v7836 = vmul.f32 %v7831, %v7835
        %v7837 = vadd.f32 %v7836, 1.0
        %v7838 = vmul.f32 %v7837, %v7822
        %vm7839 = vweird.f32 %v433
        %v7840 = vand.u32 %v7823, 3
        %vm7841 = vcmp.lt.s32.totalorder %v7840, 2
        %vm7842 = vcmp.eq.s32.totalorder %v7840, 0
        %v7843 = vxor.u32 %v7838, 2147483648
        %v7844 = vsel %vm7842, %v7830, %v7843
        %vm7845 = vcmp.eq.s32.totalorder %v7840, 2
        %v7846 = vxor.u32 %v7830, 2147483648
        %v7847 = vsel %vm7845, %v7846, %v7838
        %v7848 = vsel %vm7841, %v7844, %v7847
        %v7849 = vsel %vm7839, nan, %v7848
        %v7850 = vrcp.pop %v410
        %v7851 = vmul.f32 %v410, %v7850
        %v7852 = vsub.f32 1.0, %v7851
        %v7853 = vmul.f32 %v7850, %v7852
        %v7854 = vadd.f32 %v7850, %v7853
        %vm7855 = vweird.f32 %v410
        %vm7856 = vweird.f32 %v7850
        %vm7857 = vmor %vm7855, %vm7856
        %v7858 = vsel %vm7857, %v7850, %v7854
        %v7859 = vand.u32 2147483647, %v410
        %vm7860 = vcmp.eq.f32.partialorder %v7859, 8.507059e+37
        %v7861 = vand.u32 %v410, 2147483648
        %v7862 = vor.u32 1.1754944e-38, %v7861
        %v7863 = vsel %vm7860, %v7862, %v7858
        %v7864 = vmul.f32 1.0, %v7863
        %v7865 = vrcp.pop %v411
        %v7866 = vmul.f32 %v411, %v7865
        %v7867 = vsub.f32 1.0, %v7866
        %v7868 = vmul.f32 %v7865, %v7867
        %v7869 = vadd.f32 %v7865, %v7868
        %vm7870 = vweird.f32 %v411
        %vm7871 = vweird.f32 %v7865
        %vm7872 = vmor %vm7870, %vm7871
        %v7873 = vsel %vm7872, %v7865, %v7869
        %v7874 = vand.u32 2147483647, %v411
        %vm7875 = vcmp.eq.f32.partialorder %v7874, 8.507059e+37
        %v7876 = vand.u32 %v411, 2147483648
        %v7877 = vor.u32 1.1754944e-38, %v7876
        %v7878 = vsel %vm7875, %v7877, %v7873
        %v7879 = vmul.f32 1.0, %v7878
        %v7880 = vrcp.pop %v412
        %v7881 = vmul.f32 %v412, %v7880
        %v7882 = vsub.f32 1.0, %v7881
        %v7883 = vmul.f32 %v7880, %v7882
        %v7884 = vadd.f32 %v7880, %v7883
        %vm7885 = vweird.f32 %v412
        %vm7886 = vweird.f32 %v7880
        %vm7887 = vmor %vm7885, %vm7886
        %v7888 = vsel %vm7887, %v7880, %v7884
        %v7889 = vand.u32 2147483647, %v412
        %vm7890 = vcmp.eq.f32.partialorder %v7889, 8.507059e+37
        %v7891 = vand.u32 %v412, 2147483648
        %v7892 = vor.u32 1.1754944e-38, %v7891
        %v7893 = vsel %vm7890, %v7892, %v7888
        %v7894 = vmul.f32 1.0, %v7893
        %v7895 = vrcp.pop %v413
        %v7896 = vmul.f32 %v413, %v7895
        %v7897 = vsub.f32 1.0, %v7896
        %v7898 = vmul.f32 %v7895, %v7897
        %v7899 = vadd.f32 %v7895, %v7898
        %vm7900 = vweird.f32 %v413
        %vm7901 = vweird.f32 %v7895
        %vm7902 = vmor %vm7900, %vm7901
        %v7903 = vsel %vm7902, %v7895, %v7899
        %v7904 = vand.u32 2147483647, %v413
        %vm7905 = vcmp.eq.f32.partialorder %v7904, 8.507059e+37
        %v7906 = vand.u32 %v413, 2147483648
        %v7907 = vor.u32 1.1754944e-38, %v7906
        %v7908 = vsel %vm7905, %v7907, %v7903
        %v7909 = vmul.f32 1.0, %v7908
        %v7910 = vrcp.pop %v414
        %v7911 = vmul.f32 %v414, %v7910
        %v7912 = vsub.f32 1.0, %v7911
        %v7913 = vmul.f32 %v7910, %v7912
        %v7914 = vadd.f32 %v7910, %v7913
        %vm7915 = vweird.f32 %v414
        %vm7916 = vweird.f32 %v7910
        %vm7917 = vmor %vm7915, %vm7916
        %v7918 = vsel %vm7917, %v7910, %v7914
        %v7919 = vand.u32 2147483647, %v414
        %vm7920 = vcmp.eq.f32.partialorder %v7919, 8.507059e+37
        %v7921 = vand.u32 %v414, 2147483648
        %v7922 = vor.u32 1.1754944e-38, %v7921
        %v7923 = vsel %vm7920, %v7922, %v7918
        %v7924 = vmul.f32 1.0, %v7923
        %v7925 = vrcp.pop %v415
        %v7926 = vmul.f32 %v415, %v7925
        %v7927 = vsub.f32 1.0, %v7926
        %v7928 = vmul.f32 %v7925, %v7927
        %v7929 = vadd.f32 %v7925, %v7928
        %vm7930 = vweird.f32 %v415
        %vm7931 = vweird.f32 %v7925
        %vm7932 = vmor %vm7930, %vm7931
        %v7933 = vsel %vm7932, %v7925, %v7929
        %v7934 = vand.u32 2147483647, %v415
        %vm7935 = vcmp.eq.f32.partialorder %v7934, 8.507059e+37
        %v7936 = vand.u32 %v415, 2147483648
        %v7937 = vor.u32 1.1754944e-38, %v7936
        %v7938 = vsel %vm7935, %v7937, %v7933
        %v7939 = vmul.f32 1.0, %v7938
        %v7940 = vrcp.pop %v416
        %v7941 = vmul.f32 %v416, %v7940
        %v7942 = vsub.f32 1.0, %v7941
        %v7943 = vmul.f32 %v7940, %v7942
        %v7944 = vadd.f32 %v7940, %v7943
        %vm7945 = vweird.f32 %v416
        %vm7946 = vweird.f32 %v7940
        %vm7947 = vmor %vm7945, %vm7946
        %v7948 = vsel %vm7947, %v7940, %v7944
        %v7949 = vand.u32 2147483647, %v416
        %vm7950 = vcmp.eq.f32.partialorder %v7949, 8.507059e+37
        %v7951 = vand.u32 %v416, 2147483648
        %v7952 = vor.u32 1.1754944e-38, %v7951
        %v7953 = vsel %vm7950, %v7952, %v7948
        %v7954 = vmul.f32 1.0, %v7953
        %v7955 = vrcp.pop %v417
        %v7956 = vmul.f32 %v417, %v7955
        %v7957 = vsub.f32 1.0, %v7956
        %v7958 = vmul.f32 %v7955, %v7957
        %v7959 = vadd.f32 %v7955, %v7958
        %vm7960 = vweird.f32 %v417
        %vm7961 = vweird.f32 %v7955
        %vm7962 = vmor %vm7960, %vm7961
        %v7963 = vsel %vm7962, %v7955, %v7959
        %v7964 = vand.u32 2147483647, %v417
        %vm7965 = vcmp.eq.f32.partialorder %v7964, 8.507059e+37
        %v7966 = vand.u32 %v417, 2147483648
        %v7967 = vor.u32 1.1754944e-38, %v7966
        %v7968 = vsel %vm7965, %v7967, %v7963
        %v7969 = vmul.f32 1.0, %v7968
        %v7970 = vrcp.pop %v418
        %v7971 = vmul.f32 %v418, %v7970
        %v7972 = vsub.f32 1.0, %v7971
        %v7973 = vmul.f32 %v7970, %v7972
        %v7974 = vadd.f32 %v7970, %v7973
        %vm7975 = vweird.f32 %v418
        %vm7976 = vweird.f32 %v7970
        %vm7977 = vmor %vm7975, %vm7976
        %v7978 = vsel %vm7977, %v7970, %v7974
        %v7979 = vand.u32 2147483647, %v418
        %vm7980 = vcmp.eq.f32.partialorder %v7979, 8.507059e+37
        %v7981 = vand.u32 %v418, 2147483648
        %v7982 = vor.u32 1.1754944e-38, %v7981
        %v7983 = vsel %vm7980, %v7982, %v7978
        %v7984 = vmul.f32 1.0, %v7983
        %v7985 = vrcp.pop %v419
        %v7986 = vmul.f32 %v419, %v7985
        %v7987 = vsub.f32 1.0, %v7986
        %v7988 = vmul.f32 %v7985, %v7987
        %v7989 = vadd.f32 %v7985, %v7988
        %vm7990 = vweird.f32 %v419
        %vm7991 = vweird.f32 %v7985
        %vm7992 = vmor %vm7990, %vm7991
        %v7993 = vsel %vm7992, %v7985, %v7989
        %v7994 = vand.u32 2147483647, %v419
        %vm7995 = vcmp.eq.f32.partialorder %v7994, 8.507059e+37
        %v7996 = vand.u32 %v419, 2147483648
        %v7997 = vor.u32 1.1754944e-38, %v7996
        %v7998 = vsel %vm7995, %v7997, %v7993
        %v7999 = vmul.f32 1.0, %v7998
        %v8000 = vrcp.pop %v420
        %v8001 = vmul.f32 %v420, %v8000
        %v8002 = vsub.f32 1.0, %v8001
        %v8003 = vmul.f32 %v8000, %v8002
        %v8004 = vadd.f32 %v8000, %v8003
        %vm8005 = vweird.f32 %v420
        %vm8006 = vweird.f32 %v8000
        %vm8007 = vmor %vm8005, %vm8006
        %v8008 = vsel %vm8007, %v8000, %v8004
        %v8009 = vand.u32 2147483647, %v420
        %vm8010 = vcmp.eq.f32.partialorder %v8009, 8.507059e+37
        %v8011 = vand.u32 %v420, 2147483648
        %v8012 = vor.u32 1.1754944e-38, %v8011
        %v8013 = vsel %vm8010, %v8012, %v8008
        %v8014 = vmul.f32 1.0, %v8013
        %v8015 = vrcp.pop %v421
        %v8016 = vmul.f32 %v421, %v8015
        %v8017 = vsub.f32 1.0, %v8016
        %v8018 = vmul.f32 %v8015, %v8017
        %v8019 = vadd.f32 %v8015, %v8018
        %vm8020 = vweird.f32 %v421
        %vm8021 = vweird.f32 %v8015
        %vm8022 = vmor %vm8020, %vm8021
        %v8023 = vsel %vm8022, %v8015, %v8019
        %v8024 = vand.u32 2147483647, %v421
        %vm8025 = vcmp.eq.f32.partialorder %v8024, 8.507059e+37
        %v8026 = vand.u32 %v421, 2147483648
        %v8027 = vor.u32 1.1754944e-38, %v8026
        %v8028 = vsel %vm8025, %v8027, %v8023
        %v8029 = vmul.f32 1.0, %v8028
        %v8030 = vrcp.pop %v422
        %v8031 = vmul.f32 %v422, %v8030
        %v8032 = vsub.f32 1.0, %v8031
        %v8033 = vmul.f32 %v8030, %v8032
        %v8034 = vadd.f32 %v8030, %v8033
        %vm8035 = vweird.f32 %v422
        %vm8036 = vweird.f32 %v8030
        %vm8037 = vmor %vm8035, %vm8036
        %v8038 = vsel %vm8037, %v8030, %v8034
        %v8039 = vand.u32 2147483647, %v422
        %vm8040 = vcmp.eq.f32.partialorder %v8039, 8.507059e+37
        %v8041 = vand.u32 %v422, 2147483648
        %v8042 = vor.u32 1.1754944e-38, %v8041
        %v8043 = vsel %vm8040, %v8042, %v8038
        %v8044 = vmul.f32 1.0, %v8043
        %v8045 = vrcp.pop %v423
        %v8046 = vmul.f32 %v423, %v8045
        %v8047 = vsub.f32 1.0, %v8046
        %v8048 = vmul.f32 %v8045, %v8047
        %v8049 = vadd.f32 %v8045, %v8048
        %vm8050 = vweird.f32 %v423
        %vm8051 = vweird.f32 %v8045
        %vm8052 = vmor %vm8050, %vm8051
        %v8053 = vsel %vm8052, %v8045, %v8049
        %v8054 = vand.u32 2147483647, %v423
        %vm8055 = vcmp.eq.f32.partialorder %v8054, 8.507059e+37
        %v8056 = vand.u32 %v423, 2147483648
        %v8057 = vor.u32 1.1754944e-38, %v8056
        %v8058 = vsel %vm8055, %v8057, %v8053
        %v8059 = vmul.f32 1.0, %v8058
        %v8060 = vrcp.pop %v424
        %v8061 = vmul.f32 %v424, %v8060
        %v8062 = vsub.f32 1.0, %v8061
        %v8063 = vmul.f32 %v8060, %v8062
        %v8064 = vadd.f32 %v8060, %v8063
        %vm8065 = vweird.f32 %v424
        %vm8066 = vweird.f32 %v8060
        %vm8067 = vmor %vm8065, %vm8066
        %v8068 = vsel %vm8067, %v8060, %v8064
        %v8069 = vand.u32 2147483647, %v424
        %vm8070 = vcmp.eq.f32.partialorder %v8069, 8.507059e+37
        %v8071 = vand.u32 %v424, 2147483648
        %v8072 = vor.u32 1.1754944e-38, %v8071
        %v8073 = vsel %vm8070, %v8072, %v8068
        %v8074 = vmul.f32 1.0, %v8073
        %v8075 = vrcp.pop %v425
        %v8076 = vmul.f32 %v425, %v8075
        %v8077 = vsub.f32 1.0, %v8076
        %v8078 = vmul.f32 %v8075, %v8077
        %v8079 = vadd.f32 %v8075, %v8078
        %vm8080 = vweird.f32 %v425
        %vm8081 = vweird.f32 %v8075
        %vm8082 = vmor %vm8080, %vm8081
        %v8083 = vsel %vm8082, %v8075, %v8079
        %v8084 = vand.u32 2147483647, %v425
        %vm8085 = vcmp.eq.f32.partialorder %v8084, 8.507059e+37
        %v8086 = vand.u32 %v425, 2147483648
        %v8087 = vor.u32 1.1754944e-38, %v8086
        %v8088 = vsel %vm8085, %v8087, %v8083
        %v8089 = vmul.f32 1.0, %v8088
        %v8090 = vrcp.pop %v426
        %v8091 = vmul.f32 %v426, %v8090
        %v8092 = vsub.f32 1.0, %v8091
        %v8093 = vmul.f32 %v8090, %v8092
        %v8094 = vadd.f32 %v8090, %v8093
        %vm8095 = vweird.f32 %v426
        %vm8096 = vweird.f32 %v8090
        %vm8097 = vmor %vm8095, %vm8096
        %v8098 = vsel %vm8097, %v8090, %v8094
        %v8099 = vand.u32 2147483647, %v426
        %vm8100 = vcmp.eq.f32.partialorder %v8099, 8.507059e+37
        %v8101 = vand.u32 %v426, 2147483648
        %v8102 = vor.u32 1.1754944e-38, %v8101
        %v8103 = vsel %vm8100, %v8102, %v8098
        %v8104 = vmul.f32 1.0, %v8103
        %v8105 = vrcp.pop %v427
        %v8106 = vmul.f32 %v427, %v8105
        %v8107 = vsub.f32 1.0, %v8106
        %v8108 = vmul.f32 %v8105, %v8107
        %v8109 = vadd.f32 %v8105, %v8108
        %vm8110 = vweird.f32 %v427
        %vm8111 = vweird.f32 %v8105
        %vm8112 = vmor %vm8110, %vm8111
        %v8113 = vsel %vm8112, %v8105, %v8109
        %v8114 = vand.u32 2147483647, %v427
        %vm8115 = vcmp.eq.f32.partialorder %v8114, 8.507059e+37
        %v8116 = vand.u32 %v427, 2147483648
        %v8117 = vor.u32 1.1754944e-38, %v8116
        %v8118 = vsel %vm8115, %v8117, %v8113
        %v8119 = vmul.f32 1.0, %v8118
        %v8120 = vrcp.pop %v428
        %v8121 = vmul.f32 %v428, %v8120
        %v8122 = vsub.f32 1.0, %v8121
        %v8123 = vmul.f32 %v8120, %v8122
        %v8124 = vadd.f32 %v8120, %v8123
        %vm8125 = vweird.f32 %v428
        %vm8126 = vweird.f32 %v8120
        %vm8127 = vmor %vm8125, %vm8126
        %v8128 = vsel %vm8127, %v8120, %v8124
        %v8129 = vand.u32 2147483647, %v428
        %vm8130 = vcmp.eq.f32.partialorder %v8129, 8.507059e+37
        %v8131 = vand.u32 %v428, 2147483648
        %v8132 = vor.u32 1.1754944e-38, %v8131
        %v8133 = vsel %vm8130, %v8132, %v8128
        %v8134 = vmul.f32 1.0, %v8133
        %v8135 = vrcp.pop %v429
        %v8136 = vmul.f32 %v429, %v8135
        %v8137 = vsub.f32 1.0, %v8136
        %v8138 = vmul.f32 %v8135, %v8137
        %v8139 = vadd.f32 %v8135, %v8138
        %vm8140 = vweird.f32 %v429
        %vm8141 = vweird.f32 %v8135
        %vm8142 = vmor %vm8140, %vm8141
        %v8143 = vsel %vm8142, %v8135, %v8139
        %v8144 = vand.u32 2147483647, %v429
        %vm8145 = vcmp.eq.f32.partialorder %v8144, 8.507059e+37
        %v8146 = vand.u32 %v429, 2147483648
        %v8147 = vor.u32 1.1754944e-38, %v8146
        %v8148 = vsel %vm8145, %v8147, %v8143
        %v8149 = vmul.f32 1.0, %v8148
        %v8150 = vrcp.pop %v430
        %v8151 = vmul.f32 %v430, %v8150
        %v8152 = vsub.f32 1.0, %v8151
        %v8153 = vmul.f32 %v8150, %v8152
        %v8154 = vadd.f32 %v8150, %v8153
        %vm8155 = vweird.f32 %v430
        %vm8156 = vweird.f32 %v8150
        %vm8157 = vmor %vm8155, %vm8156
        %v8158 = vsel %vm8157, %v8150, %v8154
        %v8159 = vand.u32 2147483647, %v430
        %vm8160 = vcmp.eq.f32.partialorder %v8159, 8.507059e+37
        %v8161 = vand.u32 %v430, 2147483648
        %v8162 = vor.u32 1.1754944e-38, %v8161
        %v8163 = vsel %vm8160, %v8162, %v8158
        %v8164 = vmul.f32 1.0, %v8163
        %v8165 = vrcp.pop %v431
        %v8166 = vmul.f32 %v431, %v8165
        %v8167 = vsub.f32 1.0, %v8166
        %v8168 = vmul.f32 %v8165, %v8167
        %v8169 = vadd.f32 %v8165, %v8168
        %vm8170 = vweird.f32 %v431
        %vm8171 = vweird.f32 %v8165
        %vm8172 = vmor %vm8170, %vm8171
        %v8173 = vsel %vm8172, %v8165, %v8169
        %v8174 = vand.u32 2147483647, %v431
        %vm8175 = vcmp.eq.f32.partialorder %v8174, 8.507059e+37
        %v8176 = vand.u32 %v431, 2147483648
        %v8177 = vor.u32 1.1754944e-38, %v8176
        %v8178 = vsel %vm8175, %v8177, %v8173
        %v8179 = vmul.f32 1.0, %v8178
        %v8180 = vrcp.pop %v432
        %v8181 = vmul.f32 %v432, %v8180
        %v8182 = vsub.f32 1.0, %v8181
        %v8183 = vmul.f32 %v8180, %v8182
        %v8184 = vadd.f32 %v8180, %v8183
        %vm8185 = vweird.f32 %v432
        %vm8186 = vweird.f32 %v8180
        %vm8187 = vmor %vm8185, %vm8186
        %v8188 = vsel %vm8187, %v8180, %v8184
        %v8189 = vand.u32 2147483647, %v432
        %vm8190 = vcmp.eq.f32.partialorder %v8189, 8.507059e+37
        %v8191 = vand.u32 %v432, 2147483648
        %v8192 = vor.u32 1.1754944e-38, %v8191
        %v8193 = vsel %vm8190, %v8192, %v8188
        %v8194 = vmul.f32 1.0, %v8193
        %v8195 = vrcp.pop %v433
        %v8196 = vmul.f32 %v433, %v8195
        %v8197 = vsub.f32 1.0, %v8196
        %v8198 = vmul.f32 %v8195, %v8197
        %v8199 = vadd.f32 %v8195, %v8198
        %vm8200 = vweird.f32 %v433
        %vm8201 = vweird.f32 %v8195
        %vm8202 = vmor %vm8200, %vm8201
        %v8203 = vsel %vm8202, %v8195, %v8199
        %v8204 = vand.u32 2147483647, %v433
        %vm8205 = vcmp.eq.f32.partialorder %v8204, 8.507059e+37
        %v8206 = vand.u32 %v433, 2147483648
        %v8207 = vor.u32 1.1754944e-38, %v8206
        %v8208 = vsel %vm8205, %v8207, %v8203
        %v8209 = vmul.f32 1.0, %v8208
        %v8210 = vmul.f32 %v588, %v7864
        %v8211 = vmul.f32 %v743, %v7879
        %v8212 = vmul.f32 %v898, %v7894
        %v8213 = vmul.f32 %v1053, %v7909
        %v8214 = vmul.f32 %v1208, %v7924
        %v8215 = vmul.f32 %v1363, %v7939
        %v8216 = vmul.f32 %v1518, %v7954
        %v8217 = vmul.f32 %v1673, %v7969
        %8219 = vset.pattern.permute.xlu0 0
        %8220 = vperm.xlu0 %8219, %v375
        %v8221 = vpop.permute.xlu0 %8220
        %v8223 = vmul.f32 %v8210, %v8221
        %v8224 = vmul.f32 %v8211, %v8221
        %v8225 = vmul.f32 %v8212, %v8221
        %v8226 = vmul.f32 %v8213, %v8221
        %v8227 = vmul.f32 %v8214, %v8221
        %v8228 = vmul.f32 %v8215, %v8221
        %v8229 = vmul.f32 %v8216, %v8221
        %v8230 = vmul.f32 %v8217, %v8221
        %8231 = vst [vmem:[%s203] sm:$0x3f] %v8223
        %8232 = vst [vmem:[%s203 + $0x8] sm:$0x3f] %v8224
        %8233 = vst [vmem:[%s203 + $0x10] sm:$0x3f] %v8225
        %8234 = vst [vmem:[%s203 + $0x18] sm:$0x3f] %v8226
        %8235 = vst [vmem:[%s203 + $0x20] sm:$0x3f] %v8227
        %8236 = vst [vmem:[%s203 + $0x28] sm:$0x3f] %v8228
        %8237 = vst [vmem:[%s203 + $0x30] sm:$0x3f] %v8229
        %8238 = vst [vmem:[%s203 + $0x38] sm:$0x3f] %v8230
        %v8239 = vmul.f32 %v1828, %v7984
        %v8240 = vmul.f32 %v1983, %v7999
        %v8241 = vmul.f32 %v2138, %v8014
        %v8242 = vmul.f32 %v2293, %v8029
        %v8243 = vmul.f32 %v2448, %v8044
        %v8244 = vmul.f32 %v2603, %v8059
        %v8245 = vmul.f32 %v2758, %v8074
        %v8246 = vmul.f32 %v2913, %v8089
        %v8247 = vsub.f32 %v8210, %v4307
        %v8248 = vsub.f32 %v8211, %v4461
        %v8249 = vsub.f32 %v8212, %v4615
        %v8250 = vsub.f32 %v8213, %v4769
        %v8251 = vsub.f32 %v8214, %v4923
        %v8252 = vsub.f32 %v8215, %v5077
        %v8253 = vsub.f32 %v8216, %v5231
        %v8254 = vsub.f32 %v8217, %v5385
        %v8255 = vsub.f32 %v8239, %v5539
        %v8256 = vsub.f32 %v8240, %v5693
        %v8257 = vsub.f32 %v8241, %v5847
        %v8258 = vsub.f32 %v8242, %v6001
        %v8259 = vsub.f32 %v8243, %v6155
        %v8260 = vsub.f32 %v8244, %v6309
        %v8261 = vsub.f32 %v8245, %v6463
        %v8262 = vsub.f32 %v8246, %v6617
        %v8263 = vmul.f32 %v8247, %v7864
        %v8264 = vmul.f32 %v8248, %v7879
        %v8265 = vmul.f32 %v8249, %v7894
        %v8266 = vmul.f32 %v8250, %v7909
        %v8267 = vmul.f32 %v8251, %v7924
        %v8268 = vmul.f32 %v8252, %v7939
        %v8269 = vmul.f32 %v8253, %v7954
        %v8270 = vmul.f32 %v8254, %v7969
        %v8271 = vmul.f32 %v8255, %v7984
        %v8272 = vmul.f32 %v8256, %v7999
        %v8273 = vmul.f32 %v8257, %v8014
        %v8274 = vmul.f32 %v8258, %v8029
        %v8275 = vmul.f32 %v8259, %v8044
        %v8276 = vmul.f32 %v8260, %v8059
        %v8277 = vmul.f32 %v8261, %v8074
        %v8278 = vmul.f32 %v8262, %v8089
        %8280 = vset.pattern.permute.xlu0 0
        %8281 = vperm.xlu0 %8280, %v376
        %v8282 = vpop.permute.xlu0 %8281
        %v8285 = vperm.slane %v371, 0
        %v8286 = vperm.slane %v371, 1
        %v8287 = vperm.slane %v371, 2
        %v8288 = vperm.slane %v371, 3
        %v8289 = vperm.slane %v371, 4
        %v8290 = vperm.slane %v371, 5
        %v8291 = vperm.slane %v371, 6
        %v8292 = vperm.slane %v371, 7
        %v8301 = vmul.f32 %v8221, %v8285
        %v8302 = vmul.f32 %v8221, %v8286
        %v8303 = vmul.f32 %v8221, %v8287
        %v8304 = vmul.f32 %v8221, %v8288
        %v8305 = vmul.f32 %v8221, %v8289
        %v8306 = vmul.f32 %v8221, %v8290
        %v8307 = vmul.f32 %v8221, %v8291
        %v8308 = vmul.f32 %v8221, %v8292
        %v8309 = vmul.f32 %v8282, %v8285
        %v8310 = vmul.f32 %v8282, %v8286
        %v8311 = vmul.f32 %v8282, %v8287
        %v8312 = vmul.f32 %v8282, %v8288
        %v8313 = vmul.f32 %v8282, %v8289
        %v8314 = vmul.f32 %v8282, %v8290
        %v8315 = vmul.f32 %v8282, %v8291
        %v8316 = vmul.f32 %v8282, %v8292
        %v8317 = vmul.f32 %v8263, %v8301
        %v8318 = vmul.f32 %v8264, %v8302
        %v8319 = vmul.f32 %v8265, %v8303
        %v8320 = vmul.f32 %v8266, %v8304
        %v8321 = vmul.f32 %v8267, %v8305
        %v8322 = vmul.f32 %v8268, %v8306
        %v8323 = vmul.f32 %v8269, %v8307
        %v8324 = vmul.f32 %v8270, %v8308
        %v8325 = vmul.f32 %v8271, %v8309
        %v8326 = vmul.f32 %v8272, %v8310
        %v8327 = vmul.f32 %v8273, %v8311
        %v8328 = vmul.f32 %v8274, %v8312
        %v8329 = vmul.f32 %v8275, %v8313
        %v8330 = vmul.f32 %v8276, %v8314
        %v8331 = vmul.f32 %v8277, %v8315
        %v8332 = vmul.f32 %v8278, %v8316
        %8333 = vst [vmem:[%s203] sm:$0xc0] %v8317
        %8334 = vst [vmem:[%s203 + $0x8] sm:$0xc0] %v8318
        %8335 = vst [vmem:[%s203 + $0x10] sm:$0xc0] %v8319
        %8336 = vst [vmem:[%s203 + $0x18] sm:$0xc0] %v8320
        %8337 = vst [vmem:[%s203 + $0x20] sm:$0xc0] %v8321
        %8338 = vst [vmem:[%s203 + $0x28] sm:$0xc0] %v8322
        %8339 = vst [vmem:[%s203 + $0x30] sm:$0xc0] %v8323
        %8340 = vst [vmem:[%s203 + $0x38] sm:$0xc0] %v8324
        %8341 = vst [vmem:[%s203 + $0x40] sm:$0xf] %v8325
        %8342 = vst [vmem:[%s203 + $0x48] sm:$0xf] %v8326
        %8343 = vst [vmem:[%s203 + $0x50] sm:$0xf] %v8327
        %8344 = vst [vmem:[%s203 + $0x58] sm:$0xf] %v8328
        %8345 = vst [vmem:[%s203 + $0x60] sm:$0xf] %v8329
        %8346 = vst [vmem:[%s203 + $0x68] sm:$0xf] %v8330
        %8347 = vst [vmem:[%s203 + $0x70] sm:$0xf] %v8331
        %8348 = vst [vmem:[%s203 + $0x78] sm:$0xf] %v8332
        %v8349 = vmul.f32 %v371, 3.0
        %v8350 = vmul.f32 %v8349, %v371
        %v8351 = vsub.f32 %v8350, 1.0
        %v8352 = vmul.f32 %v8351, 0.5
        %v8353 = vmul.f32 %v3068, %v8104
        %v8354 = vmul.f32 %v3223, %v8119
        %v8355 = vmul.f32 %v3378, %v8134
        %v8356 = vmul.f32 %v3533, %v8149
        %v8357 = vmul.f32 %v3688, %v8164
        %v8358 = vmul.f32 %v3843, %v8179
        %v8359 = vmul.f32 %v3998, %v8194
        %v8360 = vmul.f32 %v4153, %v8209
        %v8361 = vsub.f32 %v8353, %v6771
        %v8362 = vsub.f32 %v8354, %v6925
        %v8363 = vsub.f32 %v8355, %v7079
        %v8364 = vsub.f32 %v8356, %v7233
        %v8365 = vsub.f32 %v8357, %v7387
        %v8366 = vsub.f32 %v8358, %v7541
        %v8367 = vsub.f32 %v8359, %v7695
        %v8368 = vsub.f32 %v8360, %v7849
        %v8369 = vmul.f32 %v8361, %v8104
        %v8370 = vmul.f32 %v8362, %v8119
        %v8371 = vmul.f32 %v8363, %v8134
        %v8372 = vmul.f32 %v8364, %v8149
        %v8373 = vmul.f32 %v8365, %v8164
        %v8374 = vmul.f32 %v8366, %v8179
        %v8375 = vmul.f32 %v8367, %v8194
        %v8376 = vmul.f32 %v8368, %v8209
        %v8377 = vmul.f32 %v7984, 3.0
        %v8378 = vmul.f32 %v7999, 3.0
        %v8379 = vmul.f32 %v8014, 3.0
        %v8380 = vmul.f32 %v8029, 3.0
        %v8381 = vmul.f32 %v8044, 3.0
        %v8382 = vmul.f32 %v8059, 3.0
        %v8383 = vmul.f32 %v8074, 3.0
        %v8384 = vmul.f32 %v8089, 3.0
        %v8385 = vmul.f32 %v8104, 3.0
        %v8386 = vmul.f32 %v8119, 3.0
        %v8387 = vmul.f32 %v8134, 3.0
        %v8388 = vmul.f32 %v8149, 3.0
        %v8389 = vmul.f32 %v8164, 3.0
        %v8390 = vmul.f32 %v8179, 3.0
        %v8391 = vmul.f32 %v8194, 3.0
        %v8392 = vmul.f32 %v8209, 3.0
        %v8393 = vmul.f32 %v8377, %v8271
        %v8394 = vmul.f32 %v8378, %v8272
        %v8395 = vmul.f32 %v8379, %v8273
        %v8396 = vmul.f32 %v8380, %v8274
        %v8397 = vmul.f32 %v8381, %v8275
        %v8398 = vmul.f32 %v8382, %v8276
        %v8399 = vmul.f32 %v8383, %v8277
        %v8400 = vmul.f32 %v8384, %v8278
        %v8401 = vmul.f32 %v8385, %v8369
        %v8402 = vmul.f32 %v8386, %v8370
        %v8403 = vmul.f32 %v8387, %v8371
        %v8404 = vmul.f32 %v8388, %v8372
        %v8405 = vmul.f32 %v8389, %v8373
        %v8406 = vmul.f32 %v8390, %v8374
        %v8407 = vmul.f32 %v8391, %v8375
        %v8408 = vmul.f32 %v8392, %v8376
        %v8409 = vsub.f32 %v8393, %v8239
        %v8410 = vsub.f32 %v8394, %v8240
        %v8411 = vsub.f32 %v8395, %v8241
        %v8412 = vsub.f32 %v8396, %v8242
        %v8413 = vsub.f32 %v8397, %v8243
        %v8414 = vsub.f32 %v8398, %v8244
        %v8415 = vsub.f32 %v8399, %v8245
        %v8416 = vsub.f32 %v8400, %v8246
        %v8417 = vsub.f32 %v8401, %v8353
        %v8418 = vsub.f32 %v8402, %v8354
        %v8419 = vsub.f32 %v8403, %v8355
        %v8420 = vsub.f32 %v8404, %v8356
        %v8421 = vsub.f32 %v8405, %v8357
        %v8422 = vsub.f32 %v8406, %v8358
        %v8423 = vsub.f32 %v8407, %v8359
        %v8424 = vsub.f32 %v8408, %v8360
        %8426 = vset.pattern.permute.xlu0 0
        %8427 = vperm.xlu0 %8426, %v377
        %v8428 = vpop.permute.xlu0 %8427
        %v8431 = vperm.slane %v8352, 0
        %v8432 = vperm.slane %v8352, 1
        %v8433 = vperm.slane %v8352, 2
        %v8434 = vperm.slane %v8352, 3
        %v8435 = vperm.slane %v8352, 4
        %v8436 = vperm.slane %v8352, 5
        %v8437 = vperm.slane %v8352, 6
        %v8438 = vperm.slane %v8352, 7
        %v8447 = vmul.f32 %v8282, %v8431
        %v8448 = vmul.f32 %v8282, %v8432
        %v8449 = vmul.f32 %v8282, %v8433
        %v8450 = vmul.f32 %v8282, %v8434
        %v8451 = vmul.f32 %v8282, %v8435
        %v8452 = vmul.f32 %v8282, %v8436
        %v8453 = vmul.f32 %v8282, %v8437
        %v8454 = vmul.f32 %v8282, %v8438
        %v8455 = vmul.f32 %v8428, %v8431
        %v8456 = vmul.f32 %v8428, %v8432
        %v8457 = vmul.f32 %v8428, %v8433
        %v8458 = vmul.f32 %v8428, %v8434
        %v8459 = vmul.f32 %v8428, %v8435
        %v8460 = vmul.f32 %v8428, %v8436
        %v8461 = vmul.f32 %v8428, %v8437
        %v8462 = vmul.f32 %v8428, %v8438
        %v8463 = vmul.f32 %v8409, %v8447
        %v8464 = vmul.f32 %v8410, %v8448
        %v8465 = vmul.f32 %v8411, %v8449
        %v8466 = vmul.f32 %v8412, %v8450
        %v8467 = vmul.f32 %v8413, %v8451
        %v8468 = vmul.f32 %v8414, %v8452
        %v8469 = vmul.f32 %v8415, %v8453
        %v8470 = vmul.f32 %v8416, %v8454
        %v8471 = vmul.f32 %v8417, %v8455
        %v8472 = vmul.f32 %v8418, %v8456
        %v8473 = vmul.f32 %v8419, %v8457
        %v8474 = vmul.f32 %v8420, %v8458
        %v8475 = vmul.f32 %v8421, %v8459
        %v8476 = vmul.f32 %v8422, %v8460
        %v8477 = vmul.f32 %v8423, %v8461
        %v8478 = vmul.f32 %v8424, %v8462
        %8479 = vst [vmem:[%s203 + $0x40] sm:$0xf0] %v8463
        %8480 = vst [vmem:[%s203 + $0x48] sm:$0xf0] %v8464
        %8481 = vst [vmem:[%s203 + $0x50] sm:$0xf0] %v8465
        %8482 = vst [vmem:[%s203 + $0x58] sm:$0xf0] %v8466
        %8483 = vst [vmem:[%s203 + $0x60] sm:$0xf0] %v8467
        %8484 = vst [vmem:[%s203 + $0x68] sm:$0xf0] %v8468
        %8485 = vst [vmem:[%s203 + $0x70] sm:$0xf0] %v8469
        %8486 = vst [vmem:[%s203 + $0x78] sm:$0xf0] %v8470
        %8487 = vst [vmem:[%s203 + $0x80] sm:$0x3] %v8471
        %8488 = vst [vmem:[%s203 + $0x88] sm:$0x3] %v8472
        %8489 = vst [vmem:[%s203 + $0x90] sm:$0x3] %v8473
        %8490 = vst [vmem:[%s203 + $0x98] sm:$0x3] %v8474
        %8491 = vst [vmem:[%s203 + $0xa0] sm:$0x3] %v8475
        %8492 = vst [vmem:[%s203 + $0xa8] sm:$0x3] %v8476
        %8493 = vst [vmem:[%s203 + $0xb0] sm:$0x3] %v8477
        %8494 = vst [vmem:[%s203 + $0xb8] sm:$0x3] %v8478
        %s8495 = sand.u32 %s120, 1
        %s8496 = scalar_lea.sflag [#allocation3], %s8495
        %s8497 = sand.u32 %s120, 1
        %s8498 = smul.addr %s8497, 192
        %s8499 = scalar_lea.vmem [#allocation2], %s8498
        // Predicated region
        $region37: #{tpu_custom_call.1} parent=35 // pred_check
          %p8500 = pneg %p130
        $region38: #{tpu_custom_call.1} parent=35 // pred_check_branch
          %8502 = sbr.rel (%p8500) target = $region40
        $region39: #{tpu_custom_call.1} parent=35 // pred_region
          %s8503 = smul.u32 8, %s18
          %8505 = vsyncadd %s8496, 0
          %s8506 = smul.addr %s8503, 8
          %s8507 = scalar_lea.hbm %s4, %s8506
          %s8508 = sshll.u32 %s8499, 4
          %s8509 = int_to_ptr.vmem [resolvable:$true] %s8508
          %s8510 = sshll.u32 %s8507, 4
          %s8511 = int_to_ptr.hbm [resolvable:$true] %s8510
          %8516 = dma.vmem_to_hbm [thread:$0]  %s8509, 3072, %s8511, %s8496, 1024, 3072, 64
        $region40: #{tpu_custom_call.1} parent=35 // pred_fallthru
          _
      $region36: #{tpu_custom_call.1} parent=5 // pred_fallthru
        _
      %p8517 = scmp.le.s32.totalorder 2, %s13
      // Predicated region
      $region41: #{tpu_custom_call.1} parent=5 // pred_check
        %p8518 = pneg %p8517
      $region42: #{tpu_custom_call.1} parent=5 // pred_check_branch
        %8520 = sbr.rel (%p8518) target = $region44
      $region43: #{tpu_custom_call.1} parent=5 // pred_region
        %s8521 = ssub.s32 %s13, 2
        // Predicated region
        $region45: #{tpu_custom_call.1} parent=43 // pred_check
          %p8522 = pneg %p136
        $region46: #{tpu_custom_call.1} parent=43 // pred_check_branch
          %8524 = sbr.rel (%p8522) target = $region48
        $region47: #{tpu_custom_call.1} parent=43 // pred_region
          %s8525 = sand.u32 %s121, 1
          %s8526 = scalar_lea.sflag [#allocation3], %s8525
          %s8527 = sand.u32 %s121, 1
          %s8528 = smul.addr %s8527, 192
          %s8529 = scalar_lea.vmem [#allocation2], %s8528
          %8531 = dma.done %s8526, 3072
        $region48: #{tpu_custom_call.1} parent=43 // pred_fallthru
          _
      $region44: #{tpu_custom_call.1} parent=5 // pred_fallthru
        _
    $region6: #{tpu_custom_call.1} parent=1 // loop_footer
      %s17 = sadd.s32 1, %s13
    $region7: #{tpu_custom_call.1} parent=1 // loop_footer_branch
      %12 = sbr.rel target = $region3
    $region8: #{tpu_custom_call.1} parent=1 // loop_exit
      _
    %8532 = vsyncpa [#allocation3], 1
    %s8533 = scalar_lea.sflag [#allocation3], 1
    %8534 = vsyncpa %s8533, 1

</llo_original>
